<compile_context>
chip_gen: v7x
topology: tpu7x:2x2x1
jax: 0.10.0
libtpu: 0.0.40
codegen_flags: <defaults>
</compile_context>

<pallas_src>
import functools

import jax
import jax.numpy as jnp
from jax import lax
from jax.experimental import pallas as pl
from jax.experimental.pallas import tpu as pltpu

EPS = 1e-12  # matches torch.nn.functional.normalize default eps


def _capsule_normalize(v, cap_sel):
    """L2-normalize each delta_d capsule slab of v (rows, d) along features.

    cap_sel is a static (d, k) 0/1 selector; the per-capsule sum of squares is
    an MXU contraction and its broadcast back to (rows, d) is a tiny MXU
    expansion — no per-capsule slices / concatenations.
    Equivalent to torch F.normalize(v.view(rows, k, dd), dim=2).
    """
    ssq = lax.dot_general(v * v, cap_sel, (((1,), (0,)), ((), ())),
                          preferred_element_type=jnp.float32)        # (rows, k)
    ssq_full = lax.dot_general(ssq, cap_sel, (((1,), (1,)), ((), ())),
                               preferred_element_type=jnp.float32)   # (rows, d)
    # v * rsqrt(max(ssq, EPS^2)) == v / max(||v||, EPS)
    return v * lax.rsqrt(jnp.maximum(ssq_full, EPS * EPS))


def neib_rout_kernel(x_ref, s_ref, e_ref, cs_ref, o_ref,
                     xn_ref, u_ref, acc_ref, *, niter, inv_tau):
    it = pl.program_id(0)                  # routing iteration (sequential)
    j = pl.program_id(1)                   # edge tile         (sequential)
    nj = pl.num_programs(1)
    cap_sel = cs_ref[...]                  # (d, k) f32 capsule selector

    # --- one-time init: xn = normalize(x), u = xn --------------------------
    @pl.when((it == 0) & (j == 0))
    def _():
        xn = _capsule_normalize(x_ref[...], cap_sel)
        xn_ref[...] = xn
        u_ref[...] = xn.astype(u_ref.dtype)

    # --- start of each routing iteration: zero the scatter accumulator -----
    @pl.when(j == 0)
    def _():
        acc_ref[...] = jnp.zeros_like(acc_ref)

    s = s_ref[...]                         # (tm, n) bf16 one-hot(src)
    e = e_ref[...]                         # (tm, n) bf16 one-hot(trg)

    # Gathers x[src] / u[trg] as bf16 MXU matmuls with f32 accumulation.
    z = jnp.dot(s, xn_ref[...].astype(jnp.bfloat16),
                preferred_element_type=jnp.float32)       # (tm, d)
    ut = jnp.dot(e, u_ref[...],
                 preferred_element_type=jnp.float32)      # (tm, d)

    # Routing logits per capsule: <z_c, ut_c> / tau via the selector matrix.
    logits = lax.dot_general(z * ut, cap_sel, (((1,), (0,)), ((), ())),
                             preferred_element_type=jnp.float32) * inv_tau  # (tm, k)
    mx = jnp.max(logits, axis=1, keepdims=True)
    ex = jnp.exp(logits - mx)
    den = jnp.sum(ex, axis=1, keepdims=True)
    p = ex * pl.reciprocal(den, approx=True)                                # (tm, k)

    # Expand softmax weights to (tm, d) and scale z -> scatter payload.
    w = lax.dot_general(p, cap_sel, (((1,), (1,)), ((), ())),
                        preferred_element_type=jnp.float32)                 # (tm, d)
    scatter_src = (z * w).astype(jnp.bfloat16)

    # scatter_add over trg == E^T @ scatter_src, accumulated across edge tiles.
    acc_ref[...] += lax.dot_general(e, scatter_src, (((0,), (0,)), ((), ())),
                                    preferred_element_type=jnp.float32)     # (n, d)

    # --- end of a routing iteration: u = normalize(acc + xn) ---------------
    @pl.when(j == nj - 1)
    def _():
        u_new = _capsule_normalize(acc_ref[...] + xn_ref[...], cap_sel)
        u_ref[...] = u_new.astype(u_ref.dtype)
        # Stash the f32 result in acc (it is re-zeroed at the next j==0) so
        # the final write-back below needs no recompute and no nested when.
        acc_ref[...] = u_new

    @pl.when((j == nj - 1) & (it == niter - 1))
    def _():
        o_ref[...] = acc_ref[...]


def neib_rout_layer(x, src_trg, *, num_caps, niter, tau=1.0, edge_tile=256):
    """Pallas implementation of NeibRoutLayer.forward(x, src_trg)."""
    n, d = x.shape
    k = num_caps
    dd = d // k
    m = src_trg.shape[1]
    src, trg = src_trg[0], src_trg[1]

    # Pad the edge list to a multiple of the edge tile with out-of-range
    # indices: one_hot maps them to all-zero rows, so padded edges gather
    # zeros and scatter nothing (exact no-ops).
    tm = edge_tile
    m_pad = ((m + tm - 1) // tm) * tm
    pad = m_pad - m
    if pad:
        src = jnp.concatenate([src, jnp.full((pad,), n, src.dtype)])
        trg = jnp.concatenate([trg, jnp.full((pad,), n, trg.dtype)])

    # bf16 incidence matrices: values are exactly 0/1, half the HBM/VMEM
    # traffic of f32, and they keep the big matmuls on the bf16 MXU path.
    S = jax.nn.one_hot(src, n, dtype=jnp.bfloat16)     # (m_pad, n)
    E = jax.nn.one_hot(trg, n, dtype=jnp.bfloat16)     # (m_pad, n)

    # Static (d, k) 0/1 capsule selector: column c selects capsule c's slab.
    cap_sel = (jnp.arange(d)[:, None] // dd
               == jnp.arange(k)[None, :]).astype(jnp.float32)

    num_m_tiles = m_pad // tm
    kernel = functools.partial(neib_rout_kernel, niter=niter, inv_tau=1.0 / tau)

    return pl.pallas_call(
        kernel,
        out_shape=jax.ShapeDtypeStruct((n, d), jnp.float32),
        grid_spec=pltpu.PrefetchScalarGridSpec(
            num_scalar_prefetch=0,
            grid=(niter, num_m_tiles),                        # edge tiles innermost
            in_specs=[
                pl.BlockSpec((n, d), lambda it, j: (0, 0)),   # x (VMEM resident)
                pl.BlockSpec((tm, n), lambda it, j: (j, 0)),  # S streamed over m
                pl.BlockSpec((tm, n), lambda it, j: (j, 0)),  # E streamed over m
                pl.BlockSpec((d, k), lambda it, j: (0, 0)),   # capsule selector
            ],
            out_specs=pl.BlockSpec((n, d), lambda it, j: (0, 0)),
            scratch_shapes=[
                pltpu.VMEM((n, d), jnp.float32),    # xn  (normalized input)
                pltpu.VMEM((n, d), jnp.bfloat16),   # u   (routing state, MXU operand)
                pltpu.VMEM((n, d), jnp.float32),    # acc (scatter_add accumulator)
            ],
        ),
        compiler_params=pltpu.CompilerParams(
            # Both grid axes carry cross-step state (u / acc) -> sequential.
            dimension_semantics=("arbitrary", "arbitrary"),
            # Sized under v7x's 64 MiB physical VMEM; plenty on v5e/v6e too.
            vmem_limit_bytes=48 * 1024 * 1024,
        ),
    )(x.astype(jnp.float32), S, E, cap_sel)


def neib_rout_reference(x, src_trg, *, num_caps, niter, tau=1.0):
    """Pure-JAX f32 reference mirroring the PyTorch forward exactly."""
    n, d = x.shape
    k = num_caps
    dd = d // k
    m = src_trg.shape[1]
    src, trg = src_trg[0], src_trg[1]

    def norm(v):
        v = v.reshape(n, k, dd)
        nrm = jnp.sqrt(jnp.sum(v * v, axis=2, keepdims=True))
        return (v / jnp.maximum(nrm, EPS)).reshape(n, d)

    x = norm(x.astype(jnp.float32))
    z = x[src].reshape(m, k, dd)
    u = x
    for _ in range(niter):
        p = jnp.sum(z * u[trg].reshape(m, k, dd), axis=2)
        p = jax.nn.softmax(p / tau, axis=1)
        scatter_src = (z * p[:, :, None]).reshape(m, d)
        u = jnp.zeros((n, d), jnp.float32).at[trg].add(scatter_src)
        u = u + x
        u = norm(u)
    return u


if __name__ == "__main__":
    # NeibRoutLayer(num_caps=4, niter=3, tau=1.0); d = k * delta_d = 4 * 128.
    num_caps, niter, tau = 4, 3, 1.0
    n, d = 256, 512
    m = 500   # deliberately not a multiple of the edge tile -> exercises padding

    key = jax.random.PRNGKey(0)
    kx, ks, kt = jax.random.split(key, 3)
    x = jax.random.normal(kx, (n, d), dtype=jnp.float32)
    src = jax.random.randint(ks, (m,), 0, n, dtype=jnp.int32)
    trg = jax.random.randint(kt, (m,), 0, n, dtype=jnp.int32)
    src_trg = jnp.stack([src, trg], axis=0)            # (2, m)

    out = neib_rout_layer(x, src_trg, num_caps=num_caps, niter=niter, tau=tau)
    out = jax.block_until_ready(out)

    ref = neib_rout_reference(x, src_trg, num_caps=num_caps, niter=niter, tau=tau)
    assert out.shape == (n, d) and out.dtype == jnp.float32
    # bf16 MXU operands (one-hot gather/scatter with u/x cast at the dot) and
    # the approx softmax reciprocal give ~1e-3-level error on the unit-norm
    # capsule outputs; the bound below leaves several-x margin.
    assert jnp.allclose(out, ref, atol=1e-2, rtol=1e-2), (
        f"mismatch vs reference, max abs err {float(jnp.max(jnp.abs(out - ref)))}")
    assert float(jnp.mean(jnp.abs(out - ref))) < 2e-3
    print("KERNEL_OK")
</pallas_src>

<mosaic_0001>
module attributes {stable_mosaic.version = 11 : i64} {
  func.func @neib_rout_kernel(%arg0: i32, %arg1: i32, %arg2: memref<256x512xf32, #tpu.memory_space<vmem>>, %arg3: memref<256x256xbf16, #tpu.memory_space<vmem>>, %arg4: memref<256x256xbf16, #tpu.memory_space<vmem>>, %arg5: memref<512x4xf32, #tpu.memory_space<vmem>>, %arg6: memref<256x512xf32, #tpu.memory_space<vmem>>, %arg7: memref<256x512xf32, #tpu.memory_space<vmem>>, %arg8: memref<256x512xbf16, #tpu.memory_space<vmem>>, %arg9: memref<256x512xf32, #tpu.memory_space<vmem>>) attributes {dimension_semantics = [#tpu.dimension_semantics<arbitrary>, #tpu.dimension_semantics<arbitrary>], iteration_bounds = array<i64: 3, 2>, scalar_prefetch = 0 : i64, scratch_operands = 3 : i64, tpu.core_type = #tpu.core_type<tc>, window_params = [{pipeline_mode = #tpu.pipeline_mode<synchronous>, transform_indices = @transform_0, window_bounds = array<i64: 256, 512>}, {transform_indices = @transform_1, window_bounds = array<i64: 256, 256>}, {transform_indices = @transform_2, window_bounds = array<i64: 256, 256>}, {pipeline_mode = #tpu.pipeline_mode<synchronous>, transform_indices = @transform_3, window_bounds = array<i64: 512, 4>}, {pipeline_mode = #tpu.pipeline_mode<synchronous>, transform_indices = @transform_4, window_bounds = array<i64: 256, 512>}]} {
    %c0 = arith.constant 0 : index
    %c0_0 = arith.constant 0 : index
    %0 = vector.load %arg5[%c0, %c0_0] : memref<512x4xf32, #tpu.memory_space<vmem>>, vector<512x4xf32>
    %c0_i32 = arith.constant 0 : i32
    %1 = arith.cmpi eq, %arg0, %c0_i32 : i32
    %c0_i32_1 = arith.constant 0 : i32
    %2 = arith.cmpi eq, %arg1, %c0_i32_1 : i32
    %3 = arith.andi %1, %2 : i1
    %4 = arith.extui %3 : i1 to i32
    %c0_i32_2 = arith.constant 0 : i32
    %5 = arith.cmpi ne, %4, %c0_i32_2 : i32
    scf.if %5 {
      %c0_27 = arith.constant 0 : index
      %c0_28 = arith.constant 0 : index
      %45 = vector.load %arg2[%c0_27, %c0_28] : memref<256x512xf32, #tpu.memory_space<vmem>>, vector<256x512xf32>
      %46 = arith.mulf %45, %45 : vector<256x512xf32>
      %cst_29 = arith.constant dense<0.000000e+00> : vector<256x4xf32>
      %47 = tpu.matmul %46, %0, %cst_29 {dimension_numbers = #tpu.dot_dimension_numbers<[1], [0], [0], [1], [0, 0, 1, 1], [], []>} : vector<256x512xf32>, vector<512x4xf32>, vector<256x4xf32> -> vector<256x4xf32>
      %cst_30 = arith.constant dense<0.000000e+00> : vector<256x512xf32>
      %48 = tpu.matmul %47, %0, %cst_30 {dimension_numbers = #tpu.dot_dimension_numbers<[1], [1], [0], [0], [0, 0, 1, 0], [], []>} : vector<256x4xf32>, vector<512x4xf32>, vector<256x512xf32> -> vector<256x512xf32>
      %cst_31 = arith.constant 1.000000e-24 : f32
      %49 = vector.broadcast %cst_31 : f32 to vector<256x512xf32>
      %50 = arith.maximumf %48, %49 : vector<256x512xf32>
      %51 = math.rsqrt %50 : vector<256x512xf32>
      %52 = arith.mulf %45, %51 : vector<256x512xf32>
      %c0_32 = arith.constant 0 : index
      %c0_33 = arith.constant 0 : index
      %53 = vector.load %arg7[%c0_32, %c0_33] : memref<256x512xf32, #tpu.memory_space<vmem>>, vector<256x512xf32>
      tpu.vector_store %arg7[%c0_32, %c0_33], %52 {strides = array<i32>} : memref<256x512xf32, #tpu.memory_space<vmem>>, vector<256x512xf32>,
      %54 = arith.truncf %52 : vector<256x512xf32> to vector<256x512xbf16>
      %c0_34 = arith.constant 0 : index
      %c0_35 = arith.constant 0 : index
      %55 = vector.load %arg8[%c0_34, %c0_35] : memref<256x512xbf16, #tpu.memory_space<vmem>>, vector<256x512xbf16>
      tpu.vector_store %arg8[%c0_34, %c0_35], %54 {strides = array<i32>} : memref<256x512xbf16, #tpu.memory_space<vmem>>, vector<256x512xbf16>,
    } else {
    }
    %c0_i32_3 = arith.constant 0 : i32
    %6 = arith.cmpi eq, %arg1, %c0_i32_3 : i32
    %7 = arith.extui %6 : i1 to i32
    %c0_i32_4 = arith.constant 0 : i32
    %8 = arith.cmpi ne, %7, %c0_i32_4 : i32
    scf.if %8 {
      %cst_27 = arith.constant 0.000000e+00 : f32
      %45 = vector.broadcast %cst_27 : f32 to vector<256x512xf32>
      %c0_28 = arith.constant 0 : index
      %c0_29 = arith.constant 0 : index
      %46 = vector.load %arg9[%c0_28, %c0_29] : memref<256x512xf32, #tpu.memory_space<vmem>>, vector<256x512xf32>
      tpu.vector_store %arg9[%c0_28, %c0_29], %45 {strides = array<i32>} : memref<256x512xf32, #tpu.memory_space<vmem>>, vector<256x512xf32>,
    } else {
    }
    %c0_5 = arith.constant 0 : index
    %c0_6 = arith.constant 0 : index
    %9 = vector.load %arg3[%c0_5, %c0_6] : memref<256x256xbf16, #tpu.memory_space<vmem>>, vector<256x256xbf16>
    %c0_7 = arith.constant 0 : index
    %c0_8 = arith.constant 0 : index
    %10 = vector.load %arg4[%c0_7, %c0_8] : memref<256x256xbf16, #tpu.memory_space<vmem>>, vector<256x256xbf16>
    %c0_9 = arith.constant 0 : index
    %c0_10 = arith.constant 0 : index
    %11 = vector.load %arg7[%c0_9, %c0_10] : memref<256x512xf32, #tpu.memory_space<vmem>>, vector<256x512xf32>
    %12 = arith.truncf %11 : vector<256x512xf32> to vector<256x512xbf16>
    %cst = arith.constant dense<0.000000e+00> : vector<256x512xf32>
    %13 = tpu.matmul %9, %12, %cst {dimension_numbers = #tpu.dot_dimension_numbers<[1], [0], [0], [1], [0, 0, 1, 1], [], []>} : vector<256x256xbf16>, vector<256x512xbf16>, vector<256x512xf32> -> vector<256x512xf32>
    %c0_11 = arith.constant 0 : index
    %c0_12 = arith.constant 0 : index
    %14 = vector.load %arg8[%c0_11, %c0_12] : memref<256x512xbf16, #tpu.memory_space<vmem>>, vector<256x512xbf16>
    %cst_13 = arith.constant dense<0.000000e+00> : vector<256x512xf32>
    %15 = tpu.matmul %10, %14, %cst_13 {dimension_numbers = #tpu.dot_dimension_numbers<[1], [0], [0], [1], [0, 0, 1, 1], [], []>} : vector<256x256xbf16>, vector<256x512xbf16>, vector<256x512xf32> -> vector<256x512xf32>
    %16 = arith.mulf %13, %15 : vector<256x512xf32>
    %cst_14 = arith.constant dense<0.000000e+00> : vector<256x4xf32>
    %17 = tpu.matmul %16, %0, %cst_14 {dimension_numbers = #tpu.dot_dimension_numbers<[1], [0], [0], [1], [0, 0, 1, 1], [], []>} : vector<256x512xf32>, vector<512x4xf32>, vector<256x4xf32> -> vector<256x4xf32>
    %cst_15 = arith.constant 1.000000e+00 : f32
    %18 = vector.broadcast %cst_15 : f32 to vector<256x4xf32>
    %19 = arith.mulf %17, %18 : vector<256x4xf32>
    %cst_16 = arith.constant dense<0xFF800000> : vector<256xf32>
    %20 = vector.multi_reduction <maximumf>, %19, %cst_16 [1] : vector<256x4xf32> to vector<256xf32>
    %21 = vector.shape_cast %20 : vector<256xf32> to vector<256x1xf32>
    %22 = vector.broadcast %21 : vector<256x1xf32> to vector<256x4xf32>
    %23 = arith.subf %19, %22 : vector<256x4xf32>
    %24 = math.exp %23 : vector<256x4xf32>
    %cst_17 = arith.constant dense<0.000000e+00> : vector<256xf32>
    %25 = vector.multi_reduction <add>, %24, %cst_17 [1] : vector<256x4xf32> to vector<256xf32>
    %26 = vector.shape_cast %25 : vector<256xf32> to vector<256x1xf32>
    %27 = tpu.reciprocal %26 {approx = true} : vector<256x1xf32> -> vector<256x1xf32>
    %28 = vector.broadcast %27 : vector<256x1xf32> to vector<256x4xf32>
    %29 = arith.mulf %24, %28 : vector<256x4xf32>
    %cst_18 = arith.constant dense<0.000000e+00> : vector<256x512xf32>
    %30 = tpu.matmul %29, %0, %cst_18 {dimension_numbers = #tpu.dot_dimension_numbers<[1], [1], [0], [0], [0, 0, 1, 0], [], []>} : vector<256x4xf32>, vector<512x4xf32>, vector<256x512xf32> -> vector<256x512xf32>
    %31 = arith.mulf %13, %30 : vector<256x512xf32>
    %32 = arith.truncf %31 : vector<256x512xf32> to vector<256x512xbf16>
    %c0_19 = arith.constant 0 : index
    %c0_20 = arith.constant 0 : index
    %33 = vector.load %arg9[%c0_19, %c0_20] : memref<256x512xf32, #tpu.memory_space<vmem>>, vector<256x512xf32>
    %cst_21 = arith.constant dense<0.000000e+00> : vector<256x512xf32>
    %34 = tpu.matmul %10, %32, %cst_21 {dimension_numbers = #tpu.dot_dimension_numbers<[0], [0], [1], [1], [0, 1, 1, 1], [], []>} : vector<256x256xbf16>, vector<256x512xbf16>, vector<256x512xf32> -> vector<256x512xf32>
    %35 = arith.addf %33, %34 : vector<256x512xf32>
    %c0_22 = arith.constant 0 : index
    %c0_23 = arith.constant 0 : index
    %36 = vector.load %arg9[%c0_22, %c0_23] : memref<256x512xf32, #tpu.memory_space<vmem>>, vector<256x512xf32>
    tpu.vector_store %arg9[%c0_22, %c0_23], %35 {strides = array<i32>} : memref<256x512xf32, #tpu.memory_space<vmem>>, vector<256x512xf32>,
    %c1_i32 = arith.constant 1 : i32
    %37 = arith.cmpi eq, %arg1, %c1_i32 : i32
    %38 = arith.extui %37 : i1 to i32
    %c0_i32_24 = arith.constant 0 : i32
    %39 = arith.cmpi ne, %38, %c0_i32_24 : i32
    scf.if %39 {
      %c0_27 = arith.constant 0 : index
      %c0_28 = arith.constant 0 : index
      %45 = vector.load %arg9[%c0_27, %c0_28] : memref<256x512xf32, #tpu.memory_space<vmem>>, vector<256x512xf32>
      %c0_29 = arith.constant 0 : index
      %c0_30 = arith.constant 0 : index
      %46 = vector.load %arg7[%c0_29, %c0_30] : memref<256x512xf32, #tpu.memory_space<vmem>>, vector<256x512xf32>
      %47 = arith.addf %45, %46 : vector<256x512xf32>
      %48 = arith.mulf %47, %47 : vector<256x512xf32>
      %cst_31 = arith.constant dense<0.000000e+00> : vector<256x4xf32>
      %49 = tpu.matmul %48, %0, %cst_31 {dimension_numbers = #tpu.dot_dimension_numbers<[1], [0], [0], [1], [0, 0, 1, 1], [], []>} : vector<256x512xf32>, vector<512x4xf32>, vector<256x4xf32> -> vector<256x4xf32>
      %cst_32 = arith.constant dense<0.000000e+00> : vector<256x512xf32>
      %50 = tpu.matmul %49, %0, %cst_32 {dimension_numbers = #tpu.dot_dimension_numbers<[1], [1], [0], [0], [0, 0, 1, 0], [], []>} : vector<256x4xf32>, vector<512x4xf32>, vector<256x512xf32> -> vector<256x512xf32>
      %cst_33 = arith.constant 1.000000e-24 : f32
      %51 = vector.broadcast %cst_33 : f32 to vector<256x512xf32>
      %52 = arith.maximumf %50, %51 : vector<256x512xf32>
      %53 = math.rsqrt %52 : vector<256x512xf32>
      %54 = arith.mulf %47, %53 : vector<256x512xf32>
      %55 = arith.truncf %54 : vector<256x512xf32> to vector<256x512xbf16>
      %c0_34 = arith.constant 0 : index
      %c0_35 = arith.constant 0 : index
      %56 = vector.load %arg8[%c0_34, %c0_35] : memref<256x512xbf16, #tpu.memory_space<vmem>>, vector<256x512xbf16>
      tpu.vector_store %arg8[%c0_34, %c0_35], %55 {strides = array<i32>} : memref<256x512xbf16, #tpu.memory_space<vmem>>, vector<256x512xbf16>,
      %c0_36 = arith.constant 0 : index
      %c0_37 = arith.constant 0 : index
      %57 = vector.load %arg9[%c0_36, %c0_37] : memref<256x512xf32, #tpu.memory_space<vmem>>, vector<256x512xf32>
      tpu.vector_store %arg9[%c0_36, %c0_37], %54 {strides = array<i32>} : memref<256x512xf32, #tpu.memory_space<vmem>>, vector<256x512xf32>,
    } else {
    }
    %c1_i32_25 = arith.constant 1 : i32
    %40 = arith.cmpi eq, %arg1, %c1_i32_25 : i32
    %c2_i32 = arith.constant 2 : i32
    %41 = arith.cmpi eq, %arg0, %c2_i32 : i32
    %42 = arith.andi %40, %41 : i1
    %43 = arith.extui %42 : i1 to i32
    %c0_i32_26 = arith.constant 0 : i32
    %44 = arith.cmpi ne, %43, %c0_i32_26 : i32
    scf.if %44 {
      %c0_27 = arith.constant 0 : index
      %c0_28 = arith.constant 0 : index
      %45 = vector.load %arg9[%c0_27, %c0_28] : memref<256x512xf32, #tpu.memory_space<vmem>>, vector<256x512xf32>
      %c0_29 = arith.constant 0 : index
      %c0_30 = arith.constant 0 : index
      %46 = vector.load %arg6[%c0_29, %c0_30] : memref<256x512xf32, #tpu.memory_space<vmem>>, vector<256x512xf32>
      tpu.vector_store %arg6[%c0_29, %c0_30], %45 {strides = array<i32>} : memref<256x512xf32, #tpu.memory_space<vmem>>, vector<256x512xf32>,
    } else {
    }
    return
  }
  func.func @transform_0(%arg0: i32, %arg1: i32) -> (i32, i32) {
    %c0_i32 = arith.constant 0 : i32
    %c0_i32_0 = arith.constant 0 : i32
    %c0_i32_1 = arith.constant 0 : i32
    return %c0_i32, %c0_i32_0 : i32, i32
  }
  func.func @transform_1(%arg0: i32, %arg1: i32) -> (i32, i32) {
    %c0_i32 = arith.constant 0 : i32
    %c0_i32_0 = arith.constant 0 : i32
    return %arg1, %c0_i32 : i32, i32
  }
  func.func @transform_2(%arg0: i32, %arg1: i32) -> (i32, i32) {
    %c0_i32 = arith.constant 0 : i32
    %c0_i32_0 = arith.constant 0 : i32
    return %arg1, %c0_i32 : i32, i32
  }
  func.func @transform_3(%arg0: i32, %arg1: i32) -> (i32, i32) {
    %c0_i32 = arith.constant 0 : i32
    %c0_i32_0 = arith.constant 0 : i32
    %c0_i32_1 = arith.constant 0 : i32
    return %c0_i32, %c0_i32_0 : i32, i32
  }
  func.func @transform_4(%arg0: i32, %arg1: i32) -> (i32, i32) {
    %c0_i32 = arith.constant 0 : i32
    %c0_i32_0 = arith.constant 0 : i32
    %c0_i32_1 = arith.constant 0 : i32
    return %c0_i32, %c0_i32_0 : i32, i32
  }
}

</mosaic_0001>

<llo_original>
// kernel: tpu_custom_call.1
$region0: #{tpu_custom_call.1}
  #allocation0 [shape = 'u32[]', space=smem, size = 0x4, offset = 0x4, fixed_abs, tag = 'smem constant byte address 0x4 - core index']
  #allocation1 [shape = 'u32[144,128]{1,0:T(1,128)}', space=vmem, size = 0x12000, scoped, tag = 'internal scratch']
  #allocation2 [shape = 'f32[256,512]{1,0:T(8,128)}', space=vmem, size = 0x80000, scoped, tag = 'scratch operand']
  #allocation3 [shape = 'bf16[256,512]{1,0:T(16,128)(2,1)}', space=vmem, size = 0x40000, scoped, tag = 'scratch operand']
  #allocation4 [shape = 'f32[256,512]{1,0:T(8,128)}', space=vmem, size = 0x80000, scoped, tag = 'scratch operand']
  %s0 = inlined_call_operand.hbm [shape: f32[256,512], index: 0, kind: input, shape index: {}]
  %s1 = inlined_call_operand.vmem [shape: bf16[512,256], index: 1, kind: input, shape index: {}]
  %s2 = inlined_call_operand.hbm [shape: bf16[512,256], index: 2, kind: input, shape index: {}]
  %s3 = inlined_call_operand.vmem [shape: f32[512,4], index: 3, kind: input, shape index: {}]
  %s4 = inlined_call_operand.hbm [shape: f32[256,512], index: 4, kind: output, shape index: {}]
  %s5 = sld [smem:[#allocation0]]
  $region73: #{tpu_custom_call.1} parent=0
    _
  %s7 = ssub.s32 1, %s5
  %s8 = scalar_select 0, %s7, %s5
  $region1: #{tpu_custom_call.1} parent=0
    #allocation5 [shape = 'u8[524288]{0}', space=vmem, size = 0x80000, scoped, tag = 'input window, operand 0, single buffered']
    #allocation6 [shape = 's32[2]{0}', space=sflag, size = 0x8, scoped, tag = 'scoped memory for tpu_custom_call.1']
    #allocation7 [shape = 's32[2]{0}', space=sflag, size = 0x8, scoped, tag = 'scoped memory for tpu_custom_call.1']
    #allocation8 [shape = 'u8[262144]{0}', space=vmem, size = 0x40000, scoped, tag = 'input window, operand 2']
    #allocation9 [shape = 's32[2]{0}', space=sflag, size = 0x8, scoped, tag = 'scoped memory for tpu_custom_call.1']
    #allocation10 [shape = 'u8[524288]{0}', space=vmem, size = 0x80000, scoped, tag = 'output window, operand 0, single buffered']
    %9 = vsyncpa [#allocation6], 0
    %10 = vsyncpa [#allocation9], 0
    %s11 = scalar_lea.sflag [#allocation9], 1
    %12 = vsyncpa %s11, 0
    %13 = vsyncpa [#allocation7], 0
    loop: start=0, step=1, limit=8
    $region2: #{tpu_custom_call.1} parent=1 // loop_pre_header
      _
    $region3: #{tpu_custom_call.1} parent=1 // loop_header
      %s15 = sphi 0, %s19
      %p16 = scmp.ge.s32.totalorder %s15, 8
      %s22 = sphi 0, %s34
      %s23 = sphi 0, %s30
      %s24 = sphi 0, %s22
      %s25 = sphi 0, %s23
      %s26 = sphi 0, %s24
      %s27 = sphi 0, %s25
      %s35 = sphi 0, %s35
      %s37 = sphi 0, %s35
      %s38 = sphi 0, %s37
      %s52 = sphi 0, %s38
      %s58 = sphi 0, %s60
      %s61 = sphi 0, %s58
      %s62 = sphi 0, %s61
      %s78 = sphi 0, %s62
      %s84 = sphi 0, %s86
      %s87 = sphi 0, %s84
      %s88 = sphi 0, %s87
      %s104 = sphi 0, %s88
      %s108 = sphi 0, %s108
      %s110 = sphi 0, %s108
      %s111 = sphi 0, %s110
      %s125 = sphi 0, %s111
      %s129 = sphi 0, %s129
      %s131 = sphi 0, %s129
      %s132 = sphi 0, %s131
      %s146 = sphi 0, %s132
    $region4: #{tpu_custom_call.1} parent=1 // loop_header_branch
      %18 = sbr.rel (%p16) target = $region8
    $region5: #{tpu_custom_call.1} parent=1 // loop_body
      %s20 = ssub.s32 %s15, 1
      %s21 = ssub.s32 %s15, 2
      %s28 = sadd.s32 1, %s23
      %p29 = scmp.ge.s32.totalorder %s28, 2
      %s30 = scalar_select %p29, 0, %s28
      %s31 = sadd.s32 1, %s22
      %s32 = scalar_select %p29, %s31, %s22
      %p33 = scmp.ge.s32.totalorder %s32, 3
      %s34 = scalar_select %p33, 0, %s32
      %s36 = sadd.s32 %s35, 1
      %p39 = scmp.eq.s32.totalorder %s15, 5
      %p40 = scmp.ne.s32.totalorder %s35, %s37
      %p41 = scmp.eq.s32.totalorder %s15, 0
      %p42 = por %p40, %p41
      %p43 = scmp.ne.s32.totalorder %s35, %s37
      %p44 = scmp.eq.s32.totalorder %s20, 5
      %p45 = por %p43, %p44
      %p46 = scmp.ne.s32.totalorder %s37, %s38
      %p47 = scmp.eq.s32.totalorder %s20, 0
      %p48 = por %p46, %p47
      %p49 = scmp.ne.s32.totalorder %s37, %s38
      %p50 = scmp.eq.s32.totalorder %s21, 5
      %p51 = por %p49, %p50
      %p53 = scmp.ne.s32.totalorder %s38, %s52
      %p54 = scmp.eq.s32.totalorder %s21, 0
      %p55 = por %p53, %p54
      %s56 = ssub.s32 %s23, %s30
      %p57 = scmp.eq.s32.totalorder %s56, 0
      %s59 = sadd.s32 %s58, 1
      %s60 = scalar_select %p57, %s58, %s59
      %p63 = pneg %p57
      %p64 = scmp.eq.s32.totalorder %s15, 5
      %p65 = por %p63, %p64
      %p66 = scmp.ne.s32.totalorder %s58, %s61
      %p67 = scmp.eq.s32.totalorder %s15, 0
      %p68 = por %p66, %p67
      %p69 = scmp.ne.s32.totalorder %s58, %s61
      %p70 = scmp.eq.s32.totalorder %s20, 5
      %p71 = por %p69, %p70
      %p72 = scmp.ne.s32.totalorder %s61, %s62
      %p73 = scmp.eq.s32.totalorder %s20, 0
      %p74 = por %p72, %p73
      %p75 = scmp.ne.s32.totalorder %s61, %s62
      %p76 = scmp.eq.s32.totalorder %s21, 5
      %p77 = por %p75, %p76
      %p79 = scmp.ne.s32.totalorder %s62, %s78
      %p80 = scmp.eq.s32.totalorder %s21, 0
      %p81 = por %p79, %p80
      %s82 = ssub.s32 %s23, %s30
      %p83 = scmp.eq.s32.totalorder %s82, 0
      %s85 = sadd.s32 %s84, 1
      %s86 = scalar_select %p83, %s84, %s85
      %p89 = pneg %p83
      %p90 = scmp.eq.s32.totalorder %s15, 5
      %p91 = por %p89, %p90
      %p92 = scmp.ne.s32.totalorder %s84, %s87
      %p93 = scmp.eq.s32.totalorder %s15, 0
      %p94 = por %p92, %p93
      %p95 = scmp.ne.s32.totalorder %s84, %s87
      %p96 = scmp.eq.s32.totalorder %s20, 5
      %p97 = por %p95, %p96
      %p98 = scmp.ne.s32.totalorder %s87, %s88
      %p99 = scmp.eq.s32.totalorder %s20, 0
      %p100 = por %p98, %p99
      %p101 = scmp.ne.s32.totalorder %s87, %s88
      %p102 = scmp.eq.s32.totalorder %s21, 5
      %p103 = por %p101, %p102
      %p105 = scmp.ne.s32.totalorder %s88, %s104
      %p106 = scmp.eq.s32.totalorder %s21, 0
      %p107 = por %p105, %p106
      %s109 = sadd.s32 %s108, 1
      %p112 = scmp.eq.s32.totalorder %s15, 5
      %p113 = scmp.ne.s32.totalorder %s108, %s110
      %p114 = scmp.eq.s32.totalorder %s15, 0
      %p115 = por %p113, %p114
      %p116 = scmp.ne.s32.totalorder %s108, %s110
      %p117 = scmp.eq.s32.totalorder %s20, 5
      %p118 = por %p116, %p117
      %p119 = scmp.ne.s32.totalorder %s110, %s111
      %p120 = scmp.eq.s32.totalorder %s20, 0
      %p121 = por %p119, %p120
      %p122 = scmp.ne.s32.totalorder %s110, %s111
      %p123 = scmp.eq.s32.totalorder %s21, 5
      %p124 = por %p122, %p123
      %p126 = scmp.ne.s32.totalorder %s111, %s125
      %p127 = scmp.eq.s32.totalorder %s21, 0
      %p128 = por %p126, %p127
      %s130 = sadd.s32 %s129, 1
      %p133 = scmp.eq.s32.totalorder %s15, 5
      %p134 = scmp.ne.s32.totalorder %s129, %s131
      %p135 = scmp.eq.s32.totalorder %s15, 0
      %p136 = por %p134, %p135
      %p137 = scmp.ne.s32.totalorder %s129, %s131
      %p138 = scmp.eq.s32.totalorder %s20, 5
      %p139 = por %p137, %p138
      %p140 = scmp.ne.s32.totalorder %s131, %s132
      %p141 = scmp.eq.s32.totalorder %s20, 0
      %p142 = por %p140, %p141
      %p143 = scmp.ne.s32.totalorder %s131, %s132
      %p144 = scmp.eq.s32.totalorder %s21, 5
      %p145 = por %p143, %p144
      %p147 = scmp.ne.s32.totalorder %s132, %s146
      %p148 = scmp.eq.s32.totalorder %s21, 0
      %p149 = por %p147, %p148
      %p150 = scmp.le.s32.totalorder 1, %s15
      %p151 = scmp.lt.s32.totalorder %s15, 7
      %p152 = pnand %p150, %p151
      %p153 = pneg %p152
      // Predicated region
      $region9: #{tpu_custom_call.1} parent=5 // pred_check
        _
      $region10: #{tpu_custom_call.1} parent=5 // pred_check_branch
        %155 = sbr.rel (%p152) target = $region12
      $region11: #{tpu_custom_call.1} parent=5 // pred_region
        %s156 = ssub.s32 %s15, 1
        // Predicated region
        $region13: #{tpu_custom_call.1} parent=11 // pred_check
          %p157 = pneg %p48
        $region14: #{tpu_custom_call.1} parent=11 // pred_check_branch
          %159 = sbr.rel (%p157) target = $region16
        $region15: #{tpu_custom_call.1} parent=11 // pred_region
          %s161 = ssub.s32 16384, 16384
          %162 = vsyncadd [#allocation6], %s161
          %s163 = sshll.u32 [#allocation5], 4
          %s164 = int_to_ptr.vmem [resolvable:$true] %s163
          %169 = dma.hbm_to_vmem [thread:$0]  %s0, 16384, %s164, [#allocation6], 512, 512, 32
        $region16: #{tpu_custom_call.1} parent=11 // pred_fallthru
          _
        // Predicated region
        $region17: #{tpu_custom_call.1} parent=11 // pred_check
          %p170 = pneg %p121
        $region18: #{tpu_custom_call.1} parent=11 // pred_check_branch
          %172 = sbr.rel (%p170) target = $region20
        $region19: #{tpu_custom_call.1} parent=11 // pred_region
          _
        $region20: #{tpu_custom_call.1} parent=11 // pred_fallthru
          _
      $region12: #{tpu_custom_call.1} parent=5 // pred_fallthru
        _
      %p173 = scmp.lt.s32.totalorder %s15, 6
      // Predicated region
      $region21: #{tpu_custom_call.1} parent=5 // pred_check
        %p174 = pneg %p173
      $region22: #{tpu_custom_call.1} parent=5 // pred_check_branch
        %176 = sbr.rel (%p174) target = $region24
      $region23: #{tpu_custom_call.1} parent=5 // pred_region
        // Predicated region
        $region25: #{tpu_custom_call.1} parent=23 // pred_check
          %p177 = pneg %p68
        $region26: #{tpu_custom_call.1} parent=23 // pred_check_branch
          %179 = sbr.rel (%p177) target = $region28
        $region27: #{tpu_custom_call.1} parent=23 // pred_region
          %s180 = smul.u32 32, %s23
          %p181 = scmp.lt.s32.totalorder %s180, 63
          %s182 = scalar_select %p181, %s180, 63
          %s183 = smul.addr %s182, 2
          %s184 = smul.addr %s183, 4
          %s185 = scalar_lea.vmem %s1, %s184
          %s186 = smul.u32 32, %s23
        $region28: #{tpu_custom_call.1} parent=23 // pred_fallthru
          _
        // Predicated region
        $region29: #{tpu_custom_call.1} parent=23 // pred_check
          %p187 = pneg %p94
        $region30: #{tpu_custom_call.1} parent=23 // pred_check_branch
          %189 = sbr.rel (%p187) target = $region32
        $region31: #{tpu_custom_call.1} parent=23 // pred_region
          %s190 = sand.u32 %s84, 1
          %s191 = scalar_lea.sflag [#allocation9], %s190
          %s192 = sand.u32 %s84, 1
          %s193 = smul.addr %s192, 256
          %s194 = scalar_lea.vmem [#allocation8], %s193
          %s195 = smul.u32 32, %s23
          %s197 = ssub.s32 4096, 4096
          %198 = vsyncadd %s191, %s197
          %s199 = smul.addr %s195, 2
          %s200 = smul.addr %s199, 64
          %s201 = scalar_lea.hbm %s2, %s200
          %s202 = sshll.u32 %s194, 4
          %s203 = int_to_ptr.vmem [resolvable:$true] %s202
          %208 = dma.hbm_to_vmem [thread:$0]  %s201, 4096, %s203, %s191, 128, 128, 8
        $region32: #{tpu_custom_call.1} parent=23 // pred_fallthru
          _
      $region24: #{tpu_custom_call.1} parent=5 // pred_fallthru
        _
      %p209 = scmp.le.s32.totalorder 1, %s15
      %p210 = scmp.lt.s32.totalorder %s15, 7
      %p211 = pnand %p209, %p210
      %p212 = pneg %p211
      // Predicated region
      $region33: #{tpu_custom_call.1} parent=5 // pred_check
        _
      $region34: #{tpu_custom_call.1} parent=5 // pred_check_branch
        %214 = sbr.rel (%p211) target = $region36
      $region35: #{tpu_custom_call.1} parent=5 // pred_region
        %s215 = ssub.s32 %s15, 1
        // Predicated region
        $region37: #{tpu_custom_call.1} parent=35 // pred_check
          %p216 = pneg %p48
        $region38: #{tpu_custom_call.1} parent=35 // pred_check_branch
          %218 = sbr.rel (%p216) target = $region40
        $region39: #{tpu_custom_call.1} parent=35 // pred_region
          %219 = dma.done [#allocation6], 16384
        $region40: #{tpu_custom_call.1} parent=35 // pred_fallthru
          _
        %s220 = sand.u32 %s87, 1
        %s221 = scalar_lea.sflag [#allocation9], %s220
        %s222 = sand.u32 %s87, 1
        %s223 = smul.addr %s222, 256
        %s224 = scalar_lea.vmem [#allocation8], %s223
        // Predicated region
        $region41: #{tpu_custom_call.1} parent=35 // pred_check
          %p225 = pneg %p100
        $region42: #{tpu_custom_call.1} parent=35 // pred_check_branch
          %227 = sbr.rel (%p225) target = $region44
        $region43: #{tpu_custom_call.1} parent=35 // pred_region
          %228 = dma.done %s221, 4096
        $region44: #{tpu_custom_call.1} parent=35 // pred_fallthru
          _
        %p229 = pneg %p48
        %p230 = pneg %p45
        %s231 = smul.u32 32, %s25
        %p232 = scmp.lt.s32.totalorder %s231, 63
        %s233 = scalar_select %p232, %s231, 63
        %s234 = smul.addr %s233, 2
        %s235 = smul.addr %s234, 4
        %s236 = scalar_lea.vmem %s1, %s235
        %p237 = pneg %p74
        %p238 = pneg %p71
        %s239 = sand.u32 %s87, 1
        %s240 = scalar_lea.sflag [#allocation9], %s239
        %s241 = sand.u32 %s87, 1
        %s242 = smul.addr %s241, 256
        %s243 = scalar_lea.vmem [#allocation8], %s242
        %p244 = pneg %p100
        %p245 = pneg %p97
        %p246 = pneg %p121
        %p247 = pneg %p118
        %p248 = pneg %p142
        %p249 = pneg %p139
        %s250 = smul.u32 32, %s25
        %p251 = scmp.lt.s32.totalorder %s250, 63
        %s252 = scalar_select %p251, %s250, 63
        %s253 = smul.addr %s252, 2
        %s254 = smul.addr %s253, 4
        %s255 = scalar_lea.vmem %s1, %s254
        %s256 = smul.u32 32, %s25
        %s257 = smul.u32 32, %s25
        %v258 = vld [vmem:[%s3] sm:$0xff]
        %v259 = vld [vmem:[%s3 + $0x8] sm:$0xff]
        %v260 = vld [vmem:[%s3 + $0x10] sm:$0xff]
        %v261 = vld [vmem:[%s3 + $0x18] sm:$0xff]
        %v262 = vld [vmem:[%s3 + $0x20] sm:$0xff]
        %v263 = vld [vmem:[%s3 + $0x28] sm:$0xff]
        %v264 = vld [vmem:[%s3 + $0x30] sm:$0xff]
        %v265 = vld [vmem:[%s3 + $0x38] sm:$0xff]
        %v266 = vld [vmem:[%s3 + $0x40] sm:$0xff]
        %v267 = vld [vmem:[%s3 + $0x48] sm:$0xff]
        %v268 = vld [vmem:[%s3 + $0x50] sm:$0xff]
        %v269 = vld [vmem:[%s3 + $0x58] sm:$0xff]
        %v270 = vld [vmem:[%s3 + $0x60] sm:$0xff]
        %v271 = vld [vmem:[%s3 + $0x68] sm:$0xff]
        %v272 = vld [vmem:[%s3 + $0x70] sm:$0xff]
        %v273 = vld [vmem:[%s3 + $0x78] sm:$0xff]
        %v274 = vld [vmem:[%s3 + $0x80] sm:$0xff]
        %v275 = vld [vmem:[%s3 + $0x88] sm:$0xff]
        %v276 = vld [vmem:[%s3 + $0x90] sm:$0xff]
        %v277 = vld [vmem:[%s3 + $0x98] sm:$0xff]
        %v278 = vld [vmem:[%s3 + $0xa0] sm:$0xff]
        %v279 = vld [vmem:[%s3 + $0xa8] sm:$0xff]
        %v280 = vld [vmem:[%s3 + $0xb0] sm:$0xff]
        %v281 = vld [vmem:[%s3 + $0xb8] sm:$0xff]
        %v282 = vld [vmem:[%s3 + $0xc0] sm:$0xff]
        %v283 = vld [vmem:[%s3 + $0xc8] sm:$0xff]
        %v284 = vld [vmem:[%s3 + $0xd0] sm:$0xff]
        %v285 = vld [vmem:[%s3 + $0xd8] sm:$0xff]
        %v286 = vld [vmem:[%s3 + $0xe0] sm:$0xff]
        %v287 = vld [vmem:[%s3 + $0xe8] sm:$0xff]
        %v288 = vld [vmem:[%s3 + $0xf0] sm:$0xff]
        %v289 = vld [vmem:[%s3 + $0xf8] sm:$0xff]
        %v290 = vld [vmem:[%s3 + $0x100] sm:$0xff]
        %v291 = vld [vmem:[%s3 + $0x108] sm:$0xff]
        %v292 = vld [vmem:[%s3 + $0x110] sm:$0xff]
        %v293 = vld [vmem:[%s3 + $0x118] sm:$0xff]
        %v294 = vld [vmem:[%s3 + $0x120] sm:$0xff]
        %v295 = vld [vmem:[%s3 + $0x128] sm:$0xff]
        %v296 = vld [vmem:[%s3 + $0x130] sm:$0xff]
        %v297 = vld [vmem:[%s3 + $0x138] sm:$0xff]
        %v298 = vld [vmem:[%s3 + $0x140] sm:$0xff]
        %v299 = vld [vmem:[%s3 + $0x148] sm:$0xff]
        %v300 = vld [vmem:[%s3 + $0x150] sm:$0xff]
        %v301 = vld [vmem:[%s3 + $0x158] sm:$0xff]
        %v302 = vld [vmem:[%s3 + $0x160] sm:$0xff]
        %v303 = vld [vmem:[%s3 + $0x168] sm:$0xff]
        %v304 = vld [vmem:[%s3 + $0x170] sm:$0xff]
        %v305 = vld [vmem:[%s3 + $0x178] sm:$0xff]
        %v306 = vld [vmem:[%s3 + $0x180] sm:$0xff]
        %v307 = vld [vmem:[%s3 + $0x188] sm:$0xff]
        %v308 = vld [vmem:[%s3 + $0x190] sm:$0xff]
        %v309 = vld [vmem:[%s3 + $0x198] sm:$0xff]
        %v310 = vld [vmem:[%s3 + $0x1a0] sm:$0xff]
        %v311 = vld [vmem:[%s3 + $0x1a8] sm:$0xff]
        %v312 = vld [vmem:[%s3 + $0x1b0] sm:$0xff]
        %v313 = vld [vmem:[%s3 + $0x1b8] sm:$0xff]
        %v314 = vld [vmem:[%s3 + $0x1c0] sm:$0xff]
        %v315 = vld [vmem:[%s3 + $0x1c8] sm:$0xff]
        %v316 = vld [vmem:[%s3 + $0x1d0] sm:$0xff]
        %v317 = vld [vmem:[%s3 + $0x1d8] sm:$0xff]
        %v318 = vld [vmem:[%s3 + $0x1e0] sm:$0xff]
        %v319 = vld [vmem:[%s3 + $0x1e8] sm:$0xff]
        %v320 = vld [vmem:[%s3 + $0x1f0] sm:$0xff]
        %v321 = vld [vmem:[%s3 + $0x1f8] sm:$0xff]
        %p322 = scmp.eq.s32.totalorder %s24, 0
        %p323 = scmp.eq.s32.totalorder %s25, 0
        %p324 = pnand %p322, %p323
        %p325 = pneg %p324
        // Predicated region
        $region45: #{tpu_custom_call.1} parent=35 // pred_check
          _
        $region46: #{tpu_custom_call.1} parent=35 // pred_check_branch
          %327 = sbr.rel (%p324) target = $region48
        $region47: #{tpu_custom_call.1} parent=35 // pred_region
          %v328 = vld [vmem:[#allocation5] sm:$0xff]
          %v329 = vld [vmem:[#allocation5 + $0x8] sm:$0xff]
          %v330 = vld [vmem:[#allocation5 + $0x10] sm:$0xff]
          %v331 = vld [vmem:[#allocation5 + $0x18] sm:$0xff]
          %v332 = vld [vmem:[#allocation5 + $0x20] sm:$0xff]
          %v333 = vld [vmem:[#allocation5 + $0x28] sm:$0xff]
          %v334 = vld [vmem:[#allocation5 + $0x30] sm:$0xff]
          %v335 = vld [vmem:[#allocation5 + $0x38] sm:$0xff]
          %v336 = vld [vmem:[#allocation5 + $0x40] sm:$0xff]
          %v337 = vld [vmem:[#allocation5 + $0x48] sm:$0xff]
          %v338 = vld [vmem:[#allocation5 + $0x50] sm:$0xff]
          %v339 = vld [vmem:[#allocation5 + $0x58] sm:$0xff]
          %v340 = vld [vmem:[#allocation5 + $0x60] sm:$0xff]
          %v341 = vld [vmem:[#allocation5 + $0x68] sm:$0xff]
          %v342 = vld [vmem:[#allocation5 + $0x70] sm:$0xff]
          %v343 = vld [vmem:[#allocation5 + $0x78] sm:$0xff]
          %v344 = vld [vmem:[#allocation5 + $0x80] sm:$0xff]
          %v345 = vld [vmem:[#allocation5 + $0x88] sm:$0xff]
          %v346 = vld [vmem:[#allocation5 + $0x90] sm:$0xff]
          %v347 = vld [vmem:[#allocation5 + $0x98] sm:$0xff]
          %v348 = vld [vmem:[#allocation5 + $0xa0] sm:$0xff]
          %v349 = vld [vmem:[#allocation5 + $0xa8] sm:$0xff]
          %v350 = vld [vmem:[#allocation5 + $0xb0] sm:$0xff]
          %v351 = vld [vmem:[#allocation5 + $0xb8] sm:$0xff]
          %v352 = vld [vmem:[#allocation5 + $0xc0] sm:$0xff]
          %v353 = vld [vmem:[#allocation5 + $0xc8] sm:$0xff]
          %v354 = vld [vmem:[#allocation5 + $0xd0] sm:$0xff]
          %v355 = vld [vmem:[#allocation5 + $0xd8] sm:$0xff]
          %v356 = vld [vmem:[#allocation5 + $0xe0] sm:$0xff]
          %v357 = vld [vmem:[#allocation5 + $0xe8] sm:$0xff]
          %v358 = vld [vmem:[#allocation5 + $0xf0] sm:$0xff]
          %v359 = vld [vmem:[#allocation5 + $0xf8] sm:$0xff]
          %v360 = vld [vmem:[#allocation5 + $0x100] sm:$0xff]
          %v361 = vld [vmem:[#allocation5 + $0x108] sm:$0xff]
          %v362 = vld [vmem:[#allocation5 + $0x110] sm:$0xff]
          %v363 = vld [vmem:[#allocation5 + $0x118] sm:$0xff]
          %v364 = vld [vmem:[#allocation5 + $0x120] sm:$0xff]
          %v365 = vld [vmem:[#allocation5 + $0x128] sm:$0xff]
          %v366 = vld [vmem:[#allocation5 + $0x130] sm:$0xff]
          %v367 = vld [vmem:[#allocation5 + $0x138] sm:$0xff]
          %v368 = vld [vmem:[#allocation5 + $0x140] sm:$0xff]
          %v369 = vld [vmem:[#allocation5 + $0x148] sm:$0xff]
          %v370 = vld [vmem:[#allocation5 + $0x150] sm:$0xff]
          %v371 = vld [vmem:[#allocation5 + $0x158] sm:$0xff]
          %v372 = vld [vmem:[#allocation5 + $0x160] sm:$0xff]
          %v373 = vld [vmem:[#allocation5 + $0x168] sm:$0xff]
          %v374 = vld [vmem:[#allocation5 + $0x170] sm:$0xff]
          %v375 = vld [vmem:[#allocation5 + $0x178] sm:$0xff]
          %v376 = vld [vmem:[#allocation5 + $0x180] sm:$0xff]
          %v377 = vld [vmem:[#allocation5 + $0x188] sm:$0xff]
          %v378 = vld [vmem:[#allocation5 + $0x190] sm:$0xff]
          %v379 = vld [vmem:[#allocation5 + $0x198] sm:$0xff]
          %v380 = vld [vmem:[#allocation5 + $0x1a0] sm:$0xff]
          %v381 = vld [vmem:[#allocation5 + $0x1a8] sm:$0xff]
          %v382 = vld [vmem:[#allocation5 + $0x1b0] sm:$0xff]
          %v383 = vld [vmem:[#allocation5 + $0x1b8] sm:$0xff]
          %v384 = vld [vmem:[#allocation5 + $0x1c0] sm:$0xff]
          %v385 = vld [vmem:[#allocation5 + $0x1c8] sm:$0xff]
          %v386 = vld [vmem:[#allocation5 + $0x1d0] sm:$0xff]
          %v387 = vld [vmem:[#allocation5 + $0x1d8] sm:$0xff]
          %v388 = vld [vmem:[#allocation5 + $0x1e0] sm:$0xff]
          %v389 = vld [vmem:[#allocation5 + $0x1e8] sm:$0xff]
          %v390 = vld [vmem:[#allocation5 + $0x1f0] sm:$0xff]
          %v391 = vld [vmem:[#allocation5 + $0x1f8] sm:$0xff]
          %v392 = vld [vmem:[#allocation5 + $0x200] sm:$0xff]
          %v393 = vld [vmem:[#allocation5 + $0x208] sm:$0xff]
          %v394 = vld [vmem:[#allocation5 + $0x210] sm:$0xff]
          %v395 = vld [vmem:[#allocation5 + $0x218] sm:$0xff]
          %v396 = vld [vmem:[#allocation5 + $0x220] sm:$0xff]
          %v397 = vld [vmem:[#allocation5 + $0x228] sm:$0xff]
          %v398 = vld [vmem:[#allocation5 + $0x230] sm:$0xff]
          %v399 = vld [vmem:[#allocation5 + $0x238] sm:$0xff]
          %v400 = vld [vmem:[#allocation5 + $0x240] sm:$0xff]
          %v401 = vld [vmem:[#allocation5 + $0x248] sm:$0xff]
          %v402 = vld [vmem:[#allocation5 + $0x250] sm:$0xff]
          %v403 = vld [vmem:[#allocation5 + $0x258] sm:$0xff]
          %v404 = vld [vmem:[#allocation5 + $0x260] sm:$0xff]
          %v405 = vld [vmem:[#allocation5 + $0x268] sm:$0xff]
          %v406 = vld [vmem:[#allocation5 + $0x270] sm:$0xff]
          %v407 = vld [vmem:[#allocation5 + $0x278] sm:$0xff]
          %v408 = vld [vmem:[#allocation5 + $0x280] sm:$0xff]
          %v409 = vld [vmem:[#allocation5 + $0x288] sm:$0xff]
          %v410 = vld [vmem:[#allocation5 + $0x290] sm:$0xff]
          %v411 = vld [vmem:[#allocation5 + $0x298] sm:$0xff]
          %v412 = vld [vmem:[#allocation5 + $0x2a0] sm:$0xff]
          %v413 = vld [vmem:[#allocation5 + $0x2a8] sm:$0xff]
          %v414 = vld [vmem:[#allocation5 + $0x2b0] sm:$0xff]
          %v415 = vld [vmem:[#allocation5 + $0x2b8] sm:$0xff]
          %v416 = vld [vmem:[#allocation5 + $0x2c0] sm:$0xff]
          %v417 = vld [vmem:[#allocation5 + $0x2c8] sm:$0xff]
          %v418 = vld [vmem:[#allocation5 + $0x2d0] sm:$0xff]
          %v419 = vld [vmem:[#allocation5 + $0x2d8] sm:$0xff]
          %v420 = vld [vmem:[#allocation5 + $0x2e0] sm:$0xff]
          %v421 = vld [vmem:[#allocation5 + $0x2e8] sm:$0xff]
          %v422 = vld [vmem:[#allocation5 + $0x2f0] sm:$0xff]
          %v423 = vld [vmem:[#allocation5 + $0x2f8] sm:$0xff]
          %v424 = vld [vmem:[#allocation5 + $0x300] sm:$0xff]
          %v425 = vld [vmem:[#allocation5 + $0x308] sm:$0xff]
          %v426 = vld [vmem:[#allocation5 + $0x310] sm:$0xff]
          %v427 = vld [vmem:[#allocation5 + $0x318] sm:$0xff]
          %v428 = vld [vmem:[#allocation5 + $0x320] sm:$0xff]
          %v429 = vld [vmem:[#allocation5 + $0x328] sm:$0xff]
          %v430 = vld [vmem:[#allocation5 + $0x330] sm:$0xff]
          %v431 = vld [vmem:[#allocation5 + $0x338] sm:$0xff]
          %v432 = vld [vmem:[#allocation5 + $0x340] sm:$0xff]
          %v433 = vld [vmem:[#allocation5 + $0x348] sm:$0xff]
          %v434 = vld [vmem:[#allocation5 + $0x350] sm:$0xff]
          %v435 = vld [vmem:[#allocation5 + $0x358] sm:$0xff]
          %v436 = vld [vmem:[#allocation5 + $0x360] sm:$0xff]
          %v437 = vld [vmem:[#allocation5 + $0x368] sm:$0xff]
          %v438 = vld [vmem:[#allocation5 + $0x370] sm:$0xff]
          %v439 = vld [vmem:[#allocation5 + $0x378] sm:$0xff]
          %v440 = vld [vmem:[#allocation5 + $0x380] sm:$0xff]
          %v441 = vld [vmem:[#allocation5 + $0x388] sm:$0xff]
          %v442 = vld [vmem:[#allocation5 + $0x390] sm:$0xff]
          %v443 = vld [vmem:[#allocation5 + $0x398] sm:$0xff]
          %v444 = vld [vmem:[#allocation5 + $0x3a0] sm:$0xff]
          %v445 = vld [vmem:[#allocation5 + $0x3a8] sm:$0xff]
          %v446 = vld [vmem:[#allocation5 + $0x3b0] sm:$0xff]
          %v447 = vld [vmem:[#allocation5 + $0x3b8] sm:$0xff]
          %v448 = vld [vmem:[#allocation5 + $0x3c0] sm:$0xff]
          %v449 = vld [vmem:[#allocation5 + $0x3c8] sm:$0xff]
          %v450 = vld [vmem:[#allocation5 + $0x3d0] sm:$0xff]
          %v451 = vld [vmem:[#allocation5 + $0x3d8] sm:$0xff]
          %v452 = vld [vmem:[#allocation5 + $0x3e0] sm:$0xff]
          %v453 = vld [vmem:[#allocation5 + $0x3e8] sm:$0xff]
          %v454 = vld [vmem:[#allocation5 + $0x3f0] sm:$0xff]
          %v455 = vld [vmem:[#allocation5 + $0x3f8] sm:$0xff]
          %v456 = vmul.f32 %v328, %v328
          %v457 = vmul.f32 %v329, %v329
          %v458 = vmul.f32 %v330, %v330
          %v459 = vmul.f32 %v331, %v331
          %v460 = vmul.f32 %v332, %v332
          %v461 = vmul.f32 %v333, %v333
          %v462 = vmul.f32 %v334, %v334
          %v463 = vmul.f32 %v335, %v335
          %v464 = vmul.f32 %v336, %v336
          %v465 = vmul.f32 %v337, %v337
          %v466 = vmul.f32 %v338, %v338
          %v467 = vmul.f32 %v339, %v339
          %v468 = vmul.f32 %v340, %v340
          %v469 = vmul.f32 %v341, %v341
          %v470 = vmul.f32 %v342, %v342
          %v471 = vmul.f32 %v343, %v343
          %v472 = vmul.f32 %v344, %v344
          %v473 = vmul.f32 %v345, %v345
          %v474 = vmul.f32 %v346, %v346
          %v475 = vmul.f32 %v347, %v347
          %v476 = vmul.f32 %v348, %v348
          %v477 = vmul.f32 %v349, %v349
          %v478 = vmul.f32 %v350, %v350
          %v479 = vmul.f32 %v351, %v351
          %v480 = vmul.f32 %v352, %v352
          %v481 = vmul.f32 %v353, %v353
          %v482 = vmul.f32 %v354, %v354
          %v483 = vmul.f32 %v355, %v355
          %v484 = vmul.f32 %v356, %v356
          %v485 = vmul.f32 %v357, %v357
          %v486 = vmul.f32 %v358, %v358
          %v487 = vmul.f32 %v359, %v359
          %v488 = vmul.f32 %v360, %v360
          %v489 = vmul.f32 %v361, %v361
          %v490 = vmul.f32 %v362, %v362
          %v491 = vmul.f32 %v363, %v363
          %v492 = vmul.f32 %v364, %v364
          %v493 = vmul.f32 %v365, %v365
          %v494 = vmul.f32 %v366, %v366
          %v495 = vmul.f32 %v367, %v367
          %v496 = vmul.f32 %v368, %v368
          %v497 = vmul.f32 %v369, %v369
          %v498 = vmul.f32 %v370, %v370
          %v499 = vmul.f32 %v371, %v371
          %v500 = vmul.f32 %v372, %v372
          %v501 = vmul.f32 %v373, %v373
          %v502 = vmul.f32 %v374, %v374
          %v503 = vmul.f32 %v375, %v375
          %v504 = vmul.f32 %v376, %v376
          %v505 = vmul.f32 %v377, %v377
          %v506 = vmul.f32 %v378, %v378
          %v507 = vmul.f32 %v379, %v379
          %v508 = vmul.f32 %v380, %v380
          %v509 = vmul.f32 %v381, %v381
          %v510 = vmul.f32 %v382, %v382
          %v511 = vmul.f32 %v383, %v383
          %v512 = vmul.f32 %v384, %v384
          %v513 = vmul.f32 %v385, %v385
          %v514 = vmul.f32 %v386, %v386
          %v515 = vmul.f32 %v387, %v387
          %v516 = vmul.f32 %v388, %v388
          %v517 = vmul.f32 %v389, %v389
          %v518 = vmul.f32 %v390, %v390
          %v519 = vmul.f32 %v391, %v391
          %v520 = vmul.f32 %v392, %v392
          %v521 = vmul.f32 %v393, %v393
          %v522 = vmul.f32 %v394, %v394
          %v523 = vmul.f32 %v395, %v395
          %v524 = vmul.f32 %v396, %v396
          %v525 = vmul.f32 %v397, %v397
          %v526 = vmul.f32 %v398, %v398
          %v527 = vmul.f32 %v399, %v399
          %v528 = vmul.f32 %v400, %v400
          %v529 = vmul.f32 %v401, %v401
          %v530 = vmul.f32 %v402, %v402
          %v531 = vmul.f32 %v403, %v403
          %v532 = vmul.f32 %v404, %v404
          %v533 = vmul.f32 %v405, %v405
          %v534 = vmul.f32 %v406, %v406
          %v535 = vmul.f32 %v407, %v407
          %v536 = vmul.f32 %v408, %v408
          %v537 = vmul.f32 %v409, %v409
          %v538 = vmul.f32 %v410, %v410
          %v539 = vmul.f32 %v411, %v411
          %v540 = vmul.f32 %v412, %v412
          %v541 = vmul.f32 %v413, %v413
          %v542 = vmul.f32 %v414, %v414
          %v543 = vmul.f32 %v415, %v415
          %v544 = vmul.f32 %v416, %v416
          %v545 = vmul.f32 %v417, %v417
          %v546 = vmul.f32 %v418, %v418
          %v547 = vmul.f32 %v419, %v419
          %v548 = vmul.f32 %v420, %v420
          %v549 = vmul.f32 %v421, %v421
          %v550 = vmul.f32 %v422, %v422
          %v551 = vmul.f32 %v423, %v423
          %v552 = vmul.f32 %v424, %v424
          %v553 = vmul.f32 %v425, %v425
          %v554 = vmul.f32 %v426, %v426
          %v555 = vmul.f32 %v427, %v427
          %v556 = vmul.f32 %v428, %v428
          %v557 = vmul.f32 %v429, %v429
          %v558 = vmul.f32 %v430, %v430
          %v559 = vmul.f32 %v431, %v431
          %v560 = vmul.f32 %v432, %v432
          %v561 = vmul.f32 %v433, %v433
          %v562 = vmul.f32 %v434, %v434
          %v563 = vmul.f32 %v435, %v435
          %v564 = vmul.f32 %v436, %v436
          %v565 = vmul.f32 %v437, %v437
          %v566 = vmul.f32 %v438, %v438
          %v567 = vmul.f32 %v439, %v439
          %v568 = vmul.f32 %v440, %v440
          %v569 = vmul.f32 %v441, %v441
          %v570 = vmul.f32 %v442, %v442
          %v571 = vmul.f32 %v443, %v443
          %v572 = vmul.f32 %v444, %v444
          %v573 = vmul.f32 %v445, %v445
          %v574 = vmul.f32 %v446, %v446
          %v575 = vmul.f32 %v447, %v447
          %v576 = vmul.f32 %v448, %v448
          %v577 = vmul.f32 %v449, %v449
          %v578 = vmul.f32 %v450, %v450
          %v579 = vmul.f32 %v451, %v451
          %v580 = vmul.f32 %v452, %v452
          %v581 = vmul.f32 %v453, %v453
          %v582 = vmul.f32 %v454, %v454
          %v583 = vmul.f32 %v455, %v455
          %584 = vmatprep.subr.mxu0 0.0
          %585 = vmatpush1.msra.mxu0 %v258
          %586 = vmatprep.subr.mxu0 0.0
          %587 = vmatpush1.msra.mxu0 %v259
          %588 = vmatprep.subr.mxu0 0.0
          %589 = vmatpush1.msra.mxu0 %v260
          %590 = vmatprep.subr.mxu0 0.0
          %591 = vmatpush1.msra.mxu0 %v261
          %592 = vmatprep.subr.mxu0 0.0
          %593 = vmatpush1.msra.mxu0 %v262
          %594 = vmatprep.subr.mxu0 0.0
          %595 = vmatpush1.msra.mxu0 %v263
          %596 = vmatprep.subr.mxu0 0.0
          %597 = vmatpush1.msra.mxu0 %v264
          %598 = vmatprep.subr.mxu0 0.0
          %599 = vmatpush1.msra.mxu0 %v265
          %600 = vmatprep.subr.mxu0 0.0
          %601 = vmatpush1.msra.mxu0 %v266
          %602 = vmatprep.subr.mxu0 0.0
          %603 = vmatpush1.msra.mxu0 %v267
          %604 = vmatprep.subr.mxu0 0.0
          %605 = vmatpush1.msra.mxu0 %v268
          %606 = vmatprep.subr.mxu0 0.0
          %607 = vmatpush1.msra.mxu0 %v269
          %608 = vmatprep.subr.mxu0 0.0
          %609 = vmatpush1.msra.mxu0 %v270
          %610 = vmatprep.subr.mxu0 0.0
          %611 = vmatpush1.msra.mxu0 %v271
          %612 = vmatprep.subr.mxu0 0.0
          %613 = vmatpush1.msra.mxu0 %v272
          %614 = vmatprep.subr.mxu0 0.0
          %615 = vmatpush1.msra.mxu0 %v273
          %616 = vmatprep.subr.mxu0 0.0
          %617 = vmatpush1.msra.mxu0 %v274
          %618 = vmatprep.subr.mxu0 0.0
          %619 = vmatpush1.msra.mxu0 %v275
          %620 = vmatprep.subr.mxu0 0.0
          %621 = vmatpush1.msra.mxu0 %v276
          %622 = vmatprep.subr.mxu0 0.0
          %623 = vmatpush1.msra.mxu0 %v277
          %624 = vmatprep.subr.mxu0 0.0
          %625 = vmatpush1.msra.mxu0 %v278
          %626 = vmatprep.subr.mxu0 0.0
          %627 = vmatpush1.msra.mxu0 %v279
          %628 = vmatprep.subr.mxu0 0.0
          %629 = vmatpush1.msra.mxu0 %v280
          %630 = vmatprep.subr.mxu0 0.0
          %631 = vmatpush1.msra.mxu0 %v281
          %632 = vmatprep.subr.mxu0 0.0
          %633 = vmatpush1.msra.mxu0 %v282
          %634 = vmatprep.subr.mxu0 0.0
          %635 = vmatpush1.msra.mxu0 %v283
          %636 = vmatprep.subr.mxu0 0.0
          %637 = vmatpush1.msra.mxu0 %v284
          %638 = vmatprep.subr.mxu0 0.0
          %639 = vmatpush1.msra.mxu0 %v285
          %640 = vmatprep.subr.mxu0 0.0
          %641 = vmatpush1.msra.mxu0 %v286
          %642 = vmatprep.subr.mxu0 0.0
          %643 = vmatpush1.msra.mxu0 %v287
          %644 = vmatprep.subr.mxu0 0.0
          %645 = vmatpush1.msra.mxu0 %v288
          %646 = vmatprep.subr.mxu0 0.0
          %647 = vmatpush1.msra.mxu0 %v289
          %648 = vmatprep.mubr.f32.mxu0 %v457
          %649 = vmatmul.mubr.f32.gmra.mrb[0].mxu0 %v456
          %v650 = vpop.f32.mrb[0].mxu0
          %v651 = vadd.f32 0.0, %v650
          %v652 = vpop.f32.mrb[0].mxu0
          %653 = vmatprep.mubr.f32.mxu0 %v461
          %654 = vmatmul.mubr.f32.gmra.mrb[0].mxu0 %v460
          %v655 = vpop.f32.mrb[0].mxu0
          %v656 = vadd.f32 0.0, %v655
          %v657 = vpop.f32.mrb[0].mxu0
          %658 = vmatprep.mubr.f32.mxu0 %v465
          %659 = vmatmul.mubr.f32.gmra.mrb[0].mxu0 %v464
          %v660 = vpop.f32.mrb[0].mxu0
          %v661 = vadd.f32 0.0, %v660
          %v662 = vpop.f32.mrb[0].mxu0
          %663 = vmatprep.mubr.f32.mxu0 %v469
          %664 = vmatmul.mubr.f32.gmra.mrb[0].mxu0 %v468
          %v665 = vpop.f32.mrb[0].mxu0
          %v666 = vadd.f32 0.0, %v665
          %v667 = vpop.f32.mrb[0].mxu0
          %668 = vmatprep.mubr.f32.mxu0 %v473
          %669 = vmatmul.mubr.f32.gmra.mrb[0].mxu0 %v472
          %v670 = vpop.f32.mrb[0].mxu0
          %v671 = vadd.f32 0.0, %v670
          %v672 = vpop.f32.mrb[0].mxu0
          %673 = vmatprep.mubr.f32.mxu0 %v477
          %674 = vmatmul.mubr.f32.gmra.mrb[0].mxu0 %v476
          %v675 = vpop.f32.mrb[0].mxu0
          %v676 = vadd.f32 0.0, %v675
          %v677 = vpop.f32.mrb[0].mxu0
          %678 = vmatprep.mubr.f32.mxu0 %v481
          %679 = vmatmul.mubr.f32.gmra.mrb[0].mxu0 %v480
          %v680 = vpop.f32.mrb[0].mxu0
          %v681 = vadd.f32 0.0, %v680
          %v682 = vpop.f32.mrb[0].mxu0
          %683 = vmatprep.mubr.f32.mxu0 %v485
          %684 = vmatmul.mubr.f32.gmra.mrb[0].mxu0 %v484
          %v685 = vpop.f32.mrb[0].mxu0
          %v686 = vadd.f32 0.0, %v685
          %v687 = vpop.f32.mrb[0].mxu0
          %688 = vmatprep.mubr.f32.mxu0 %v489
          %689 = vmatmul.mubr.f32.gmra.mrb[0].mxu0 %v488
          %v690 = vpop.f32.mrb[0].mxu0
          %v691 = vadd.f32 0.0, %v690
          %v692 = vpop.f32.mrb[0].mxu0
          %693 = vmatprep.mubr.f32.mxu0 %v493
          %694 = vmatmul.mubr.f32.gmra.mrb[0].mxu0 %v492
          %v695 = vpop.f32.mrb[0].mxu0
          %v696 = vadd.f32 0.0, %v695
          %v697 = vpop.f32.mrb[0].mxu0
          %698 = vmatprep.mubr.f32.mxu0 %v497
          %699 = vmatmul.mubr.f32.gmra.mrb[0].mxu0 %v496
          %v700 = vpop.f32.mrb[0].mxu0
          %v701 = vadd.f32 0.0, %v700
          %v702 = vpop.f32.mrb[0].mxu0
          %703 = vmatprep.mubr.f32.mxu0 %v501
          %704 = vmatmul.mubr.f32.gmra.mrb[0].mxu0 %v500
          %v705 = vpop.f32.mrb[0].mxu0
          %v706 = vadd.f32 0.0, %v705
          %v707 = vpop.f32.mrb[0].mxu0
          %708 = vmatprep.mubr.f32.mxu0 %v505
          %709 = vmatmul.mubr.f32.gmra.mrb[0].mxu0 %v504
          %v710 = vpop.f32.mrb[0].mxu0
          %v711 = vadd.f32 0.0, %v710
          %v712 = vpop.f32.mrb[0].mxu0
          %713 = vmatprep.mubr.f32.mxu0 %v509
          %714 = vmatmul.mubr.f32.gmra.mrb[0].mxu0 %v508
          %v715 = vpop.f32.mrb[0].mxu0
          %v716 = vadd.f32 0.0, %v715
          %v717 = vpop.f32.mrb[0].mxu0
          %718 = vmatprep.mubr.f32.mxu0 %v513
          %719 = vmatmul.mubr.f32.gmra.mrb[0].mxu0 %v512
          %v720 = vpop.f32.mrb[0].mxu0
          %v721 = vadd.f32 0.0, %v720
          %v722 = vpop.f32.mrb[0].mxu0
          %723 = vmatprep.mubr.f32.mxu0 %v517
          %724 = vmatmul.mubr.f32.gmra.mrb[0].mxu0 %v516
          %v725 = vpop.f32.mrb[0].mxu0
          %v726 = vadd.f32 0.0, %v725
          %v727 = vpop.f32.mrb[0].mxu0
          %728 = vmatprep.mubr.f32.mxu0 %v521
          %729 = vmatmul.mubr.f32.gmra.mrb[0].mxu0 %v520
          %v730 = vpop.f32.mrb[0].mxu0
          %v731 = vadd.f32 0.0, %v730
          %v732 = vpop.f32.mrb[0].mxu0
          %733 = vmatprep.mubr.f32.mxu0 %v525
          %734 = vmatmul.mubr.f32.gmra.mrb[0].mxu0 %v524
          %v735 = vpop.f32.mrb[0].mxu0
          %v736 = vadd.f32 0.0, %v735
          %v737 = vpop.f32.mrb[0].mxu0
          %738 = vmatprep.mubr.f32.mxu0 %v529
          %739 = vmatmul.mubr.f32.gmra.mrb[0].mxu0 %v528
          %v740 = vpop.f32.mrb[0].mxu0
          %v741 = vadd.f32 0.0, %v740
          %v742 = vpop.f32.mrb[0].mxu0
          %743 = vmatprep.mubr.f32.mxu0 %v533
          %744 = vmatmul.mubr.f32.gmra.mrb[0].mxu0 %v532
          %v745 = vpop.f32.mrb[0].mxu0
          %v746 = vadd.f32 0.0, %v745
          %v747 = vpop.f32.mrb[0].mxu0
          %748 = vmatprep.mubr.f32.mxu0 %v537
          %749 = vmatmul.mubr.f32.gmra.mrb[0].mxu0 %v536
          %v750 = vpop.f32.mrb[0].mxu0
          %v751 = vadd.f32 0.0, %v750
          %v752 = vpop.f32.mrb[0].mxu0
          %753 = vmatprep.mubr.f32.mxu0 %v541
          %754 = vmatmul.mubr.f32.gmra.mrb[0].mxu0 %v540
          %v755 = vpop.f32.mrb[0].mxu0
          %v756 = vadd.f32 0.0, %v755
          %v757 = vpop.f32.mrb[0].mxu0
          %758 = vmatprep.mubr.f32.mxu0 %v545
          %759 = vmatmul.mubr.f32.gmra.mrb[0].mxu0 %v544
          %v760 = vpop.f32.mrb[0].mxu0
          %v761 = vadd.f32 0.0, %v760
          %v762 = vpop.f32.mrb[0].mxu0
          %763 = vmatprep.mubr.f32.mxu0 %v549
          %764 = vmatmul.mubr.f32.gmra.mrb[0].mxu0 %v548
          %v765 = vpop.f32.mrb[0].mxu0
          %v766 = vadd.f32 0.0, %v765
          %v767 = vpop.f32.mrb[0].mxu0
          %768 = vmatprep.mubr.f32.mxu0 %v553
          %769 = vmatmul.mubr.f32.gmra.mrb[0].mxu0 %v552
          %v770 = vpop.f32.mrb[0].mxu0
          %v771 = vadd.f32 0.0, %v770
          %v772 = vpop.f32.mrb[0].mxu0
          %773 = vmatprep.mubr.f32.mxu0 %v557
          %774 = vmatmul.mubr.f32.gmra.mrb[0].mxu0 %v556
          %v775 = vpop.f32.mrb[0].mxu0
          %v776 = vadd.f32 0.0, %v775
          %v777 = vpop.f32.mrb[0].mxu0
          %778 = vmatprep.mubr.f32.mxu0 %v561
          %779 = vmatmul.mubr.f32.gmra.mrb[0].mxu0 %v560
          %v780 = vpop.f32.mrb[0].mxu0
          %v781 = vadd.f32 0.0, %v780
          %v782 = vpop.f32.mrb[0].mxu0
          %783 = vmatprep.mubr.f32.mxu0 %v565
          %784 = vmatmul.mubr.f32.gmra.mrb[0].mxu0 %v564
          %v785 = vpop.f32.mrb[0].mxu0
          %v786 = vadd.f32 0.0, %v785
          %v787 = vpop.f32.mrb[0].mxu0
          %788 = vmatprep.mubr.f32.mxu0 %v569
          %789 = vmatmul.mubr.f32.gmra.mrb[0].mxu0 %v568
          %v790 = vpop.f32.mrb[0].mxu0
          %v791 = vadd.f32 0.0, %v790
          %v792 = vpop.f32.mrb[0].mxu0
          %793 = vmatprep.mubr.f32.mxu0 %v573
          %794 = vmatmul.mubr.f32.gmra.mrb[0].mxu0 %v572
          %v795 = vpop.f32.mrb[0].mxu0
          %v796 = vadd.f32 0.0, %v795
          %v797 = vpop.f32.mrb[0].mxu0
          %798 = vmatprep.mubr.f32.mxu0 %v577
          %799 = vmatmul.mubr.f32.gmra.mrb[0].mxu0 %v576
          %v800 = vpop.f32.mrb[0].mxu0
          %v801 = vadd.f32 0.0, %v800
          %v802 = vpop.f32.mrb[0].mxu0
          %803 = vmatprep.mubr.f32.mxu0 %v581
          %804 = vmatmul.mubr.f32.gmra.mrb[0].mxu0 %v580
          %v805 = vpop.f32.mrb[0].mxu0
          %v806 = vadd.f32 0.0, %v805
          %v807 = vpop.f32.mrb[0].mxu0
          %808 = vdwg.mxu0
          %809 = vmatprep.subr.mxu0 0.0
          %810 = vmatpush1.msra.mxu0 %v290
          %811 = vmatprep.subr.mxu0 0.0
          %812 = vmatpush1.msra.mxu0 %v291
          %813 = vmatprep.subr.mxu0 0.0
          %814 = vmatpush1.msra.mxu0 %v292
          %815 = vmatprep.subr.mxu0 0.0
          %816 = vmatpush1.msra.mxu0 %v293
          %817 = vmatprep.subr.mxu0 0.0
          %818 = vmatpush1.msra.mxu0 %v294
          %819 = vmatprep.subr.mxu0 0.0
          %820 = vmatpush1.msra.mxu0 %v295
          %821 = vmatprep.subr.mxu0 0.0
          %822 = vmatpush1.msra.mxu0 %v296
          %823 = vmatprep.subr.mxu0 0.0
          %824 = vmatpush1.msra.mxu0 %v297
          %825 = vmatprep.subr.mxu0 0.0
          %826 = vmatpush1.msra.mxu0 %v298
          %827 = vmatprep.subr.mxu0 0.0
          %828 = vmatpush1.msra.mxu0 %v299
          %829 = vmatprep.subr.mxu0 0.0
          %830 = vmatpush1.msra.mxu0 %v300
          %831 = vmatprep.subr.mxu0 0.0
          %832 = vmatpush1.msra.mxu0 %v301
          %833 = vmatprep.subr.mxu0 0.0
          %834 = vmatpush1.msra.mxu0 %v302
          %835 = vmatprep.subr.mxu0 0.0
          %836 = vmatpush1.msra.mxu0 %v303
          %837 = vmatprep.subr.mxu0 0.0
          %838 = vmatpush1.msra.mxu0 %v304
          %839 = vmatprep.subr.mxu0 0.0
          %840 = vmatpush1.msra.mxu0 %v305
          %841 = vmatprep.subr.mxu0 0.0
          %842 = vmatpush1.msra.mxu0 %v306
          %843 = vmatprep.subr.mxu0 0.0
          %844 = vmatpush1.msra.mxu0 %v307
          %845 = vmatprep.subr.mxu0 0.0
          %846 = vmatpush1.msra.mxu0 %v308
          %847 = vmatprep.subr.mxu0 0.0
          %848 = vmatpush1.msra.mxu0 %v309
          %849 = vmatprep.subr.mxu0 0.0
          %850 = vmatpush1.msra.mxu0 %v310
          %851 = vmatprep.subr.mxu0 0.0
          %852 = vmatpush1.msra.mxu0 %v311
          %853 = vmatprep.subr.mxu0 0.0
          %854 = vmatpush1.msra.mxu0 %v312
          %855 = vmatprep.subr.mxu0 0.0
          %856 = vmatpush1.msra.mxu0 %v313
          %857 = vmatprep.subr.mxu0 0.0
          %858 = vmatpush1.msra.mxu0 %v314
          %859 = vmatprep.subr.mxu0 0.0
          %860 = vmatpush1.msra.mxu0 %v315
          %861 = vmatprep.subr.mxu0 0.0
          %862 = vmatpush1.msra.mxu0 %v316
          %863 = vmatprep.subr.mxu0 0.0
          %864 = vmatpush1.msra.mxu0 %v317
          %865 = vmatprep.subr.mxu0 0.0
          %866 = vmatpush1.msra.mxu0 %v318
          %867 = vmatprep.subr.mxu0 0.0
          %868 = vmatpush1.msra.mxu0 %v319
          %869 = vmatprep.subr.mxu0 0.0
          %870 = vmatpush1.msra.mxu0 %v320
          %871 = vmatprep.subr.mxu0 0.0
          %872 = vmatpush1.msra.mxu0 %v321
          %873 = vmatprep.mubr.f32.mxu0 %v459
          %874 = vmatmul.mubr.f32.gmra.mrb[0].mxu0 %v458
          %v875 = vpop.f32.mrb[0].mxu0
          %v876 = vadd.f32 %v651, %v875
          %v877 = vpop.f32.mrb[0].mxu0
          %878 = vmatprep.mubr.f32.mxu0 %v463
          %879 = vmatmul.mubr.f32.gmra.mrb[0].mxu0 %v462
          %v880 = vpop.f32.mrb[0].mxu0
          %v881 = vadd.f32 %v656, %v880
          %v882 = vpop.f32.mrb[0].mxu0
          %883 = vmatprep.mubr.f32.mxu0 %v467
          %884 = vmatmul.mubr.f32.gmra.mrb[0].mxu0 %v466
          %v885 = vpop.f32.mrb[0].mxu0
          %v886 = vadd.f32 %v661, %v885
          %v887 = vpop.f32.mrb[0].mxu0
          %888 = vmatprep.mubr.f32.mxu0 %v471
          %889 = vmatmul.mubr.f32.gmra.mrb[0].mxu0 %v470
          %v890 = vpop.f32.mrb[0].mxu0
          %v891 = vadd.f32 %v666, %v890
          %v892 = vpop.f32.mrb[0].mxu0
          %893 = vmatprep.mubr.f32.mxu0 %v475
          %894 = vmatmul.mubr.f32.gmra.mrb[0].mxu0 %v474
          %v895 = vpop.f32.mrb[0].mxu0
          %v896 = vadd.f32 %v671, %v895
          %v897 = vpop.f32.mrb[0].mxu0
          %898 = vmatprep.mubr.f32.mxu0 %v479
          %899 = vmatmul.mubr.f32.gmra.mrb[0].mxu0 %v478
          %v900 = vpop.f32.mrb[0].mxu0
          %v901 = vadd.f32 %v676, %v900
          %v902 = vpop.f32.mrb[0].mxu0
          %903 = vmatprep.mubr.f32.mxu0 %v483
          %904 = vmatmul.mubr.f32.gmra.mrb[0].mxu0 %v482
          %v905 = vpop.f32.mrb[0].mxu0
          %v906 = vadd.f32 %v681, %v905
          %v907 = vpop.f32.mrb[0].mxu0
          %908 = vmatprep.mubr.f32.mxu0 %v487
          %909 = vmatmul.mubr.f32.gmra.mrb[0].mxu0 %v486
          %v910 = vpop.f32.mrb[0].mxu0
          %v911 = vadd.f32 %v686, %v910
          %v912 = vpop.f32.mrb[0].mxu0
          %913 = vmatprep.mubr.f32.mxu0 %v491
          %914 = vmatmul.mubr.f32.gmra.mrb[0].mxu0 %v490
          %v915 = vpop.f32.mrb[0].mxu0
          %v916 = vadd.f32 %v691, %v915
          %v917 = vpop.f32.mrb[0].mxu0
          %918 = vmatprep.mubr.f32.mxu0 %v495
          %919 = vmatmul.mubr.f32.gmra.mrb[0].mxu0 %v494
          %v920 = vpop.f32.mrb[0].mxu0
          %v921 = vadd.f32 %v696, %v920
          %v922 = vpop.f32.mrb[0].mxu0
          %923 = vmatprep.mubr.f32.mxu0 %v499
          %924 = vmatmul.mubr.f32.gmra.mrb[0].mxu0 %v498
          %v925 = vpop.f32.mrb[0].mxu0
          %v926 = vadd.f32 %v701, %v925
          %v927 = vpop.f32.mrb[0].mxu0
          %928 = vmatprep.mubr.f32.mxu0 %v503
          %929 = vmatmul.mubr.f32.gmra.mrb[0].mxu0 %v502
          %v930 = vpop.f32.mrb[0].mxu0
          %v931 = vadd.f32 %v706, %v930
          %v932 = vpop.f32.mrb[0].mxu0
          %933 = vmatprep.mubr.f32.mxu0 %v507
          %934 = vmatmul.mubr.f32.gmra.mrb[0].mxu0 %v506
          %v935 = vpop.f32.mrb[0].mxu0
          %v936 = vadd.f32 %v711, %v935
          %v937 = vpop.f32.mrb[0].mxu0
          %938 = vmatprep.mubr.f32.mxu0 %v511
          %939 = vmatmul.mubr.f32.gmra.mrb[0].mxu0 %v510
          %v940 = vpop.f32.mrb[0].mxu0
          %v941 = vadd.f32 %v716, %v940
          %v942 = vpop.f32.mrb[0].mxu0
          %943 = vmatprep.mubr.f32.mxu0 %v515
          %944 = vmatmul.mubr.f32.gmra.mrb[0].mxu0 %v514
          %v945 = vpop.f32.mrb[0].mxu0
          %v946 = vadd.f32 %v721, %v945
          %v947 = vpop.f32.mrb[0].mxu0
          %948 = vmatprep.mubr.f32.mxu0 %v519
          %949 = vmatmul.mubr.f32.gmra.mrb[0].mxu0 %v518
          %v950 = vpop.f32.mrb[0].mxu0
          %v951 = vadd.f32 %v726, %v950
          %v952 = vpop.f32.mrb[0].mxu0
          %953 = vmatprep.mubr.f32.mxu0 %v523
          %954 = vmatmul.mubr.f32.gmra.mrb[0].mxu0 %v522
          %v955 = vpop.f32.mrb[0].mxu0
          %v956 = vadd.f32 %v731, %v955
          %v957 = vpop.f32.mrb[0].mxu0
          %958 = vmatprep.mubr.f32.mxu0 %v527
          %959 = vmatmul.mubr.f32.gmra.mrb[0].mxu0 %v526
          %v960 = vpop.f32.mrb[0].mxu0
          %v961 = vadd.f32 %v736, %v960
          %v962 = vpop.f32.mrb[0].mxu0
          %963 = vmatprep.mubr.f32.mxu0 %v531
          %964 = vmatmul.mubr.f32.gmra.mrb[0].mxu0 %v530
          %v965 = vpop.f32.mrb[0].mxu0
          %v966 = vadd.f32 %v741, %v965
          %v967 = vpop.f32.mrb[0].mxu0
          %968 = vmatprep.mubr.f32.mxu0 %v535
          %969 = vmatmul.mubr.f32.gmra.mrb[0].mxu0 %v534
          %v970 = vpop.f32.mrb[0].mxu0
          %v971 = vadd.f32 %v746, %v970
          %v972 = vpop.f32.mrb[0].mxu0
          %973 = vmatprep.mubr.f32.mxu0 %v539
          %974 = vmatmul.mubr.f32.gmra.mrb[0].mxu0 %v538
          %v975 = vpop.f32.mrb[0].mxu0
          %v976 = vadd.f32 %v751, %v975
          %v977 = vpop.f32.mrb[0].mxu0
          %978 = vmatprep.mubr.f32.mxu0 %v543
          %979 = vmatmul.mubr.f32.gmra.mrb[0].mxu0 %v542
          %v980 = vpop.f32.mrb[0].mxu0
          %v981 = vadd.f32 %v756, %v980
          %v982 = vpop.f32.mrb[0].mxu0
          %983 = vmatprep.mubr.f32.mxu0 %v547
          %984 = vmatmul.mubr.f32.gmra.mrb[0].mxu0 %v546
          %v985 = vpop.f32.mrb[0].mxu0
          %v986 = vadd.f32 %v761, %v985
          %v987 = vpop.f32.mrb[0].mxu0
          %988 = vmatprep.mubr.f32.mxu0 %v551
          %989 = vmatmul.mubr.f32.gmra.mrb[0].mxu0 %v550
          %v990 = vpop.f32.mrb[0].mxu0
          %v991 = vadd.f32 %v766, %v990
          %v992 = vpop.f32.mrb[0].mxu0
          %993 = vmatprep.mubr.f32.mxu0 %v555
          %994 = vmatmul.mubr.f32.gmra.mrb[0].mxu0 %v554
          %v995 = vpop.f32.mrb[0].mxu0
          %v996 = vadd.f32 %v771, %v995
          %v997 = vpop.f32.mrb[0].mxu0
          %998 = vmatprep.mubr.f32.mxu0 %v559
          %999 = vmatmul.mubr.f32.gmra.mrb[0].mxu0 %v558
          %v1000 = vpop.f32.mrb[0].mxu0
          %v1001 = vadd.f32 %v776, %v1000
          %v1002 = vpop.f32.mrb[0].mxu0
          %1003 = vmatprep.mubr.f32.mxu0 %v563
          %1004 = vmatmul.mubr.f32.gmra.mrb[0].mxu0 %v562
          %v1005 = vpop.f32.mrb[0].mxu0
          %v1006 = vadd.f32 %v781, %v1005
          %v1007 = vpop.f32.mrb[0].mxu0
          %1008 = vmatprep.mubr.f32.mxu0 %v567
          %1009 = vmatmul.mubr.f32.gmra.mrb[0].mxu0 %v566
          %v1010 = vpop.f32.mrb[0].mxu0
          %v1011 = vadd.f32 %v786, %v1010
          %v1012 = vpop.f32.mrb[0].mxu0
          %1013 = vmatprep.mubr.f32.mxu0 %v571
          %1014 = vmatmul.mubr.f32.gmra.mrb[0].mxu0 %v570
          %v1015 = vpop.f32.mrb[0].mxu0
          %v1016 = vadd.f32 %v791, %v1015
          %v1017 = vpop.f32.mrb[0].mxu0
          %1018 = vmatprep.mubr.f32.mxu0 %v575
          %1019 = vmatmul.mubr.f32.gmra.mrb[0].mxu0 %v574
          %v1020 = vpop.f32.mrb[0].mxu0
          %v1021 = vadd.f32 %v796, %v1020
          %v1022 = vpop.f32.mrb[0].mxu0
          %1023 = vmatprep.mubr.f32.mxu0 %v579
          %1024 = vmatmul.mubr.f32.gmra.mrb[0].mxu0 %v578
          %v1025 = vpop.f32.mrb[0].mxu0
          %v1026 = vadd.f32 %v801, %v1025
          %v1027 = vpop.f32.mrb[0].mxu0
          %1028 = vmatprep.mubr.f32.mxu0 %v583
          %1029 = vmatmul.mubr.f32.gmra.mrb[0].mxu0 %v582
          %v1030 = vpop.f32.mrb[0].mxu0
          %v1031 = vadd.f32 %v806, %v1030
          %v1032 = vpop.f32.mrb[0].mxu0
          %1033 = vdwg.mxu0
          %vm1034 = vcmask 31744
          %v1036 = vsel %vm1034, %v876, 0
          %v1039 = vsel %vm1034, %v881, 0
          %v1042 = vsel %vm1034, %v886, 0
          %v1045 = vsel %vm1034, %v891, 0
          %v1048 = vsel %vm1034, %v896, 0
          %v1051 = vsel %vm1034, %v901, 0
          %v1054 = vsel %vm1034, %v906, 0
          %v1057 = vsel %vm1034, %v911, 0
          %v1060 = vsel %vm1034, %v916, 0
          %v1063 = vsel %vm1034, %v921, 0
          %v1066 = vsel %vm1034, %v926, 0
          %v1069 = vsel %vm1034, %v931, 0
          %v1072 = vsel %vm1034, %v936, 0
          %v1075 = vsel %vm1034, %v941, 0
          %v1078 = vsel %vm1034, %v946, 0
          %v1081 = vsel %vm1034, %v951, 0
          %v1084 = vsel %vm1034, %v956, 0
          %v1087 = vsel %vm1034, %v961, 0
          %v1090 = vsel %vm1034, %v966, 0
          %v1093 = vsel %vm1034, %v971, 0
          %v1096 = vsel %vm1034, %v976, 0
          %v1099 = vsel %vm1034, %v981, 0
          %v1102 = vsel %vm1034, %v986, 0
          %v1105 = vsel %vm1034, %v991, 0
          %v1108 = vsel %vm1034, %v996, 0
          %v1111 = vsel %vm1034, %v1001, 0
          %v1114 = vsel %vm1034, %v1006, 0
          %v1117 = vsel %vm1034, %v1011, 0
          %v1120 = vsel %vm1034, %v1016, 0
          %v1123 = vsel %vm1034, %v1021, 0
          %v1126 = vsel %vm1034, %v1026, 0
          %v1129 = vsel %vm1034, %v1031, 0
          %v1132 = vsel %vm1034, %v258, 0
          %v1135 = vsel %vm1034, %v259, 0
          %v1138 = vsel %vm1034, %v260, 0
          %v1141 = vsel %vm1034, %v261, 0
          %v1144 = vsel %vm1034, %v262, 0
          %v1147 = vsel %vm1034, %v263, 0
          %v1150 = vsel %vm1034, %v264, 0
          %v1153 = vsel %vm1034, %v265, 0
          %v1156 = vsel %vm1034, %v266, 0
          %v1159 = vsel %vm1034, %v267, 0
          %v1162 = vsel %vm1034, %v268, 0
          %v1165 = vsel %vm1034, %v269, 0
          %v1168 = vsel %vm1034, %v270, 0
          %v1171 = vsel %vm1034, %v271, 0
          %v1174 = vsel %vm1034, %v272, 0
          %v1177 = vsel %vm1034, %v273, 0
          %v1180 = vsel %vm1034, %v274, 0
          %v1183 = vsel %vm1034, %v275, 0
          %v1186 = vsel %vm1034, %v276, 0
          %v1189 = vsel %vm1034, %v277, 0
          %v1192 = vsel %vm1034, %v278, 0
          %v1195 = vsel %vm1034, %v279, 0
          %v1198 = vsel %vm1034, %v280, 0
          %v1201 = vsel %vm1034, %v281, 0
          %v1204 = vsel %vm1034, %v282, 0
          %v1207 = vsel %vm1034, %v283, 0
          %v1210 = vsel %vm1034, %v284, 0
          %v1213 = vsel %vm1034, %v285, 0
          %v1216 = vsel %vm1034, %v286, 0
          %v1219 = vsel %vm1034, %v287, 0
          %v1222 = vsel %vm1034, %v288, 0
          %v1225 = vsel %vm1034, %v289, 0
          %v1228 = vsel %vm1034, %v290, 0
          %v1231 = vsel %vm1034, %v291, 0
          %v1234 = vsel %vm1034, %v292, 0
          %v1237 = vsel %vm1034, %v293, 0
          %v1240 = vsel %vm1034, %v294, 0
          %v1243 = vsel %vm1034, %v295, 0
          %v1246 = vsel %vm1034, %v296, 0
          %v1249 = vsel %vm1034, %v297, 0
          %v1252 = vsel %vm1034, %v298, 0
          %v1255 = vsel %vm1034, %v299, 0
          %v1258 = vsel %vm1034, %v300, 0
          %v1261 = vsel %vm1034, %v301, 0
          %v1264 = vsel %vm1034, %v302, 0
          %v1267 = vsel %vm1034, %v303, 0
          %v1270 = vsel %vm1034, %v304, 0
          %v1273 = vsel %vm1034, %v305, 0
          %v1276 = vsel %vm1034, %v306, 0
          %v1279 = vsel %vm1034, %v307, 0
          %v1282 = vsel %vm1034, %v308, 0
          %v1285 = vsel %vm1034, %v309, 0
          %v1288 = vsel %vm1034, %v310, 0
          %v1291 = vsel %vm1034, %v311, 0
          %v1294 = vsel %vm1034, %v312, 0
          %v1297 = vsel %vm1034, %v313, 0
          %v1300 = vsel %vm1034, %v314, 0
          %v1303 = vsel %vm1034, %v315, 0
          %v1306 = vsel %vm1034, %v316, 0
          %v1309 = vsel %vm1034, %v317, 0
          %v1312 = vsel %vm1034, %v318, 0
          %v1315 = vsel %vm1034, %v319, 0
          %v1318 = vsel %vm1034, %v320, 0
          %v1321 = vsel %vm1034, %v321, 0
          %1323 = vmatprep.subr.mxu0 0.0
          %1324 = vmatpush1.xpose.msra.mxu0 %v1132
          %1325 = vmatprep.subr.mxu0 0.0
          %1326 = vmatpush1.xpose.msra.mxu0 %v1135
          %1327 = vmatprep.subr.mxu0 0.0
          %1328 = vmatpush1.xpose.msra.mxu0 %v1138
          %1329 = vmatprep.subr.mxu0 0.0
          %1330 = vmatpush1.xpose.msra.mxu0 %v1141
          %1331 = vmatprep.subr.mxu0 0.0
          %1332 = vmatpush1.xpose.msra.mxu0 %v1144
          %1333 = vmatprep.subr.mxu0 0.0
          %1334 = vmatpush1.xpose.msra.mxu0 %v1147
          %1335 = vmatprep.subr.mxu0 0.0
          %1336 = vmatpush1.xpose.msra.mxu0 %v1150
          %1337 = vmatprep.subr.mxu0 0.0
          %1338 = vmatpush1.xpose.msra.mxu0 %v1153
          %1339 = vmatprep.subr.mxu0 0.0
          %1340 = vmatpush1.xpose.msra.mxu0 %v1156
          %1341 = vmatprep.subr.mxu0 0.0
          %1342 = vmatpush1.xpose.msra.mxu0 %v1159
          %1343 = vmatprep.subr.mxu0 0.0
          %1344 = vmatpush1.xpose.msra.mxu0 %v1162
          %1345 = vmatprep.subr.mxu0 0.0
          %1346 = vmatpush1.xpose.msra.mxu0 %v1165
          %1347 = vmatprep.subr.mxu0 0.0
          %1348 = vmatpush1.xpose.msra.mxu0 %v1168
          %1349 = vmatprep.subr.mxu0 0.0
          %1350 = vmatpush1.xpose.msra.mxu0 %v1171
          %1351 = vmatprep.subr.mxu0 0.0
          %1352 = vmatpush1.xpose.msra.mxu0 %v1174
          %1353 = vmatprep.subr.mxu0 0.0
          %1354 = vmatpush1.xpose.msra.mxu0 %v1177
          %1355 = vmatprep.subr.mxu0 0.0
          %1356 = vmatpush1.xpose.msra.mxu0 %v1180
          %1357 = vmatprep.subr.mxu0 0.0
          %1358 = vmatpush1.xpose.msra.mxu0 %v1183
          %1359 = vmatprep.subr.mxu0 0.0
          %1360 = vmatpush1.xpose.msra.mxu0 %v1186
          %1361 = vmatprep.subr.mxu0 0.0
          %1362 = vmatpush1.xpose.msra.mxu0 %v1189
          %1363 = vmatprep.subr.mxu0 0.0
          %1364 = vmatpush1.xpose.msra.mxu0 %v1192
          %1365 = vmatprep.subr.mxu0 0.0
          %1366 = vmatpush1.xpose.msra.mxu0 %v1195
          %1367 = vmatprep.subr.mxu0 0.0
          %1368 = vmatpush1.xpose.msra.mxu0 %v1198
          %1369 = vmatprep.subr.mxu0 0.0
          %1370 = vmatpush1.xpose.msra.mxu0 %v1201
          %1371 = vmatprep.subr.mxu0 0.0
          %1372 = vmatpush1.xpose.msra.mxu0 %v1204
          %1373 = vmatprep.subr.mxu0 0.0
          %1374 = vmatpush1.xpose.msra.mxu0 %v1207
          %1375 = vmatprep.subr.mxu0 0.0
          %1376 = vmatpush1.xpose.msra.mxu0 %v1210
          %1377 = vmatprep.subr.mxu0 0.0
          %1378 = vmatpush1.xpose.msra.mxu0 %v1213
          %1379 = vmatprep.subr.mxu0 0.0
          %1380 = vmatpush1.xpose.msra.mxu0 %v1216
          %1381 = vmatprep.subr.mxu0 0.0
          %1382 = vmatpush1.xpose.msra.mxu0 %v1219
          %1383 = vmatprep.subr.mxu0 0.0
          %1384 = vmatpush1.xpose.msra.mxu0 %v1222
          %1385 = vmatprep.subr.mxu0 0.0
          %1386 = vmatpush1.xpose.msra.mxu0 %v1225
          %1387 = vmatprep.mubr.f32.mxu0 0.0
          %1388 = vmatmul.mubr.f32.gmra.mrb[0].mxu0 %v1036
          %v1389 = vpop.f32.mrb[0].mxu0
          %v1390 = vadd.f32 0.0, %v1389
          %v1391 = vpop.f32.mrb[0].mxu0
          %v1392 = vadd.f32 0.0, %v1391
          %1393 = vmatprep.mubr.f32.mxu0 0.0
          %1394 = vmatmul.mubr.f32.gmra.mrb[0].mxu0 %v1039
          %v1395 = vpop.f32.mrb[0].mxu0
          %v1396 = vadd.f32 0.0, %v1395
          %v1397 = vpop.f32.mrb[0].mxu0
          %v1398 = vadd.f32 0.0, %v1397
          %1399 = vmatprep.mubr.f32.mxu0 0.0
          %1400 = vmatmul.mubr.f32.gmra.mrb[0].mxu0 %v1042
          %v1401 = vpop.f32.mrb[0].mxu0
          %v1402 = vadd.f32 0.0, %v1401
          %v1403 = vpop.f32.mrb[0].mxu0
          %v1404 = vadd.f32 0.0, %v1403
          %1405 = vmatprep.mubr.f32.mxu0 0.0
          %1406 = vmatmul.mubr.f32.gmra.mrb[0].mxu0 %v1045
          %v1407 = vpop.f32.mrb[0].mxu0
          %v1408 = vadd.f32 0.0, %v1407
          %v1409 = vpop.f32.mrb[0].mxu0
          %v1410 = vadd.f32 0.0, %v1409
          %1411 = vmatprep.mubr.f32.mxu0 0.0
          %1412 = vmatmul.mubr.f32.gmra.mrb[0].mxu0 %v1048
          %v1413 = vpop.f32.mrb[0].mxu0
          %v1414 = vadd.f32 0.0, %v1413
          %v1415 = vpop.f32.mrb[0].mxu0
          %v1416 = vadd.f32 0.0, %v1415
          %1417 = vmatprep.mubr.f32.mxu0 0.0
          %1418 = vmatmul.mubr.f32.gmra.mrb[0].mxu0 %v1051
          %v1419 = vpop.f32.mrb[0].mxu0
          %v1420 = vadd.f32 0.0, %v1419
          %v1421 = vpop.f32.mrb[0].mxu0
          %v1422 = vadd.f32 0.0, %v1421
          %1423 = vmatprep.mubr.f32.mxu0 0.0
          %1424 = vmatmul.mubr.f32.gmra.mrb[0].mxu0 %v1054
          %v1425 = vpop.f32.mrb[0].mxu0
          %v1426 = vadd.f32 0.0, %v1425
          %v1427 = vpop.f32.mrb[0].mxu0
          %v1428 = vadd.f32 0.0, %v1427
          %1429 = vmatprep.mubr.f32.mxu0 0.0
          %1430 = vmatmul.mubr.f32.gmra.mrb[0].mxu0 %v1057
          %v1431 = vpop.f32.mrb[0].mxu0
          %v1432 = vadd.f32 0.0, %v1431
          %v1433 = vpop.f32.mrb[0].mxu0
          %v1434 = vadd.f32 0.0, %v1433
          %1435 = vmatprep.mubr.f32.mxu0 0.0
          %1436 = vmatmul.mubr.f32.gmra.mrb[0].mxu0 %v1060
          %v1437 = vpop.f32.mrb[0].mxu0
          %v1438 = vadd.f32 0.0, %v1437
          %v1439 = vpop.f32.mrb[0].mxu0
          %v1440 = vadd.f32 0.0, %v1439
          %1441 = vmatprep.mubr.f32.mxu0 0.0
          %1442 = vmatmul.mubr.f32.gmra.mrb[0].mxu0 %v1063
          %v1443 = vpop.f32.mrb[0].mxu0
          %v1444 = vadd.f32 0.0, %v1443
          %v1445 = vpop.f32.mrb[0].mxu0
          %v1446 = vadd.f32 0.0, %v1445
          %1447 = vmatprep.mubr.f32.mxu0 0.0
          %1448 = vmatmul.mubr.f32.gmra.mrb[0].mxu0 %v1066
          %v1449 = vpop.f32.mrb[0].mxu0
          %v1450 = vadd.f32 0.0, %v1449
          %v1451 = vpop.f32.mrb[0].mxu0
          %v1452 = vadd.f32 0.0, %v1451
          %1453 = vmatprep.mubr.f32.mxu0 0.0
          %1454 = vmatmul.mubr.f32.gmra.mrb[0].mxu0 %v1069
          %v1455 = vpop.f32.mrb[0].mxu0
          %v1456 = vadd.f32 0.0, %v1455
          %v1457 = vpop.f32.mrb[0].mxu0
          %v1458 = vadd.f32 0.0, %v1457
          %1459 = vmatprep.mubr.f32.mxu0 0.0
          %1460 = vmatmul.mubr.f32.gmra.mrb[0].mxu0 %v1072
          %v1461 = vpop.f32.mrb[0].mxu0
          %v1462 = vadd.f32 0.0, %v1461
          %v1463 = vpop.f32.mrb[0].mxu0
          %v1464 = vadd.f32 0.0, %v1463
          %1465 = vmatprep.mubr.f32.mxu0 0.0
          %1466 = vmatmul.mubr.f32.gmra.mrb[0].mxu0 %v1075
          %v1467 = vpop.f32.mrb[0].mxu0
          %v1468 = vadd.f32 0.0, %v1467
          %v1469 = vpop.f32.mrb[0].mxu0
          %v1470 = vadd.f32 0.0, %v1469
          %1471 = vmatprep.mubr.f32.mxu0 0.0
          %1472 = vmatmul.mubr.f32.gmra.mrb[0].mxu0 %v1078
          %v1473 = vpop.f32.mrb[0].mxu0
          %v1474 = vadd.f32 0.0, %v1473
          %v1475 = vpop.f32.mrb[0].mxu0
          %v1476 = vadd.f32 0.0, %v1475
          %1477 = vmatprep.mubr.f32.mxu0 0.0
          %1478 = vmatmul.mubr.f32.gmra.mrb[0].mxu0 %v1081
          %v1479 = vpop.f32.mrb[0].mxu0
          %v1480 = vadd.f32 0.0, %v1479
          %v1481 = vpop.f32.mrb[0].mxu0
          %v1482 = vadd.f32 0.0, %v1481
          %1483 = vmatprep.mubr.f32.mxu0 0.0
          %1484 = vmatmul.mubr.f32.gmra.mrb[0].mxu0 %v1084
          %v1485 = vpop.f32.mrb[0].mxu0
          %v1486 = vadd.f32 0.0, %v1485
          %v1487 = vpop.f32.mrb[0].mxu0
          %v1488 = vadd.f32 0.0, %v1487
          %1489 = vmatprep.mubr.f32.mxu0 0.0
          %1490 = vmatmul.mubr.f32.gmra.mrb[0].mxu0 %v1087
          %v1491 = vpop.f32.mrb[0].mxu0
          %v1492 = vadd.f32 0.0, %v1491
          %v1493 = vpop.f32.mrb[0].mxu0
          %v1494 = vadd.f32 0.0, %v1493
          %1495 = vmatprep.mubr.f32.mxu0 0.0
          %1496 = vmatmul.mubr.f32.gmra.mrb[0].mxu0 %v1090
          %v1497 = vpop.f32.mrb[0].mxu0
          %v1498 = vadd.f32 0.0, %v1497
          %v1499 = vpop.f32.mrb[0].mxu0
          %v1500 = vadd.f32 0.0, %v1499
          %1501 = vmatprep.mubr.f32.mxu0 0.0
          %1502 = vmatmul.mubr.f32.gmra.mrb[0].mxu0 %v1093
          %v1503 = vpop.f32.mrb[0].mxu0
          %v1504 = vadd.f32 0.0, %v1503
          %v1505 = vpop.f32.mrb[0].mxu0
          %v1506 = vadd.f32 0.0, %v1505
          %1507 = vmatprep.mubr.f32.mxu0 0.0
          %1508 = vmatmul.mubr.f32.gmra.mrb[0].mxu0 %v1096
          %v1509 = vpop.f32.mrb[0].mxu0
          %v1510 = vadd.f32 0.0, %v1509
          %v1511 = vpop.f32.mrb[0].mxu0
          %v1512 = vadd.f32 0.0, %v1511
          %1513 = vmatprep.mubr.f32.mxu0 0.0
          %1514 = vmatmul.mubr.f32.gmra.mrb[0].mxu0 %v1099
          %v1515 = vpop.f32.mrb[0].mxu0
          %v1516 = vadd.f32 0.0, %v1515
          %v1517 = vpop.f32.mrb[0].mxu0
          %v1518 = vadd.f32 0.0, %v1517
          %1519 = vmatprep.mubr.f32.mxu0 0.0
          %1520 = vmatmul.mubr.f32.gmra.mrb[0].mxu0 %v1102
          %v1521 = vpop.f32.mrb[0].mxu0
          %v1522 = vadd.f32 0.0, %v1521
          %v1523 = vpop.f32.mrb[0].mxu0
          %v1524 = vadd.f32 0.0, %v1523
          %1525 = vmatprep.mubr.f32.mxu0 0.0
          %1526 = vmatmul.mubr.f32.gmra.mrb[0].mxu0 %v1105
          %v1527 = vpop.f32.mrb[0].mxu0
          %v1528 = vadd.f32 0.0, %v1527
          %v1529 = vpop.f32.mrb[0].mxu0
          %v1530 = vadd.f32 0.0, %v1529
          %1531 = vmatprep.mubr.f32.mxu0 0.0
          %1532 = vmatmul.mubr.f32.gmra.mrb[0].mxu0 %v1108
          %v1533 = vpop.f32.mrb[0].mxu0
          %v1534 = vadd.f32 0.0, %v1533
          %v1535 = vpop.f32.mrb[0].mxu0
          %v1536 = vadd.f32 0.0, %v1535
          %1537 = vmatprep.mubr.f32.mxu0 0.0
          %1538 = vmatmul.mubr.f32.gmra.mrb[0].mxu0 %v1111
          %v1539 = vpop.f32.mrb[0].mxu0
          %v1540 = vadd.f32 0.0, %v1539
          %v1541 = vpop.f32.mrb[0].mxu0
          %v1542 = vadd.f32 0.0, %v1541
          %1543 = vmatprep.mubr.f32.mxu0 0.0
          %1544 = vmatmul.mubr.f32.gmra.mrb[0].mxu0 %v1114
          %v1545 = vpop.f32.mrb[0].mxu0
          %v1546 = vadd.f32 0.0, %v1545
          %v1547 = vpop.f32.mrb[0].mxu0
          %v1548 = vadd.f32 0.0, %v1547
          %1549 = vmatprep.mubr.f32.mxu0 0.0
          %1550 = vmatmul.mubr.f32.gmra.mrb[0].mxu0 %v1117
          %v1551 = vpop.f32.mrb[0].mxu0
          %v1552 = vadd.f32 0.0, %v1551
          %v1553 = vpop.f32.mrb[0].mxu0
          %v1554 = vadd.f32 0.0, %v1553
          %1555 = vmatprep.mubr.f32.mxu0 0.0
          %1556 = vmatmul.mubr.f32.gmra.mrb[0].mxu0 %v1120
          %v1557 = vpop.f32.mrb[0].mxu0
          %v1558 = vadd.f32 0.0, %v1557
          %v1559 = vpop.f32.mrb[0].mxu0
          %v1560 = vadd.f32 0.0, %v1559
          %1561 = vmatprep.mubr.f32.mxu0 0.0
          %1562 = vmatmul.mubr.f32.gmra.mrb[0].mxu0 %v1123
          %v1563 = vpop.f32.mrb[0].mxu0
          %v1564 = vadd.f32 0.0, %v1563
          %v1565 = vpop.f32.mrb[0].mxu0
          %v1566 = vadd.f32 0.0, %v1565
          %1567 = vmatprep.mubr.f32.mxu0 0.0
          %1568 = vmatmul.mubr.f32.gmra.mrb[0].mxu0 %v1126
          %v1569 = vpop.f32.mrb[0].mxu0
          %v1570 = vadd.f32 0.0, %v1569
          %v1571 = vpop.f32.mrb[0].mxu0
          %v1572 = vadd.f32 0.0, %v1571
          %1573 = vmatprep.mubr.f32.mxu0 0.0
          %1574 = vmatmul.mubr.f32.gmra.mrb[0].mxu0 %v1129
          %v1575 = vpop.f32.mrb[0].mxu0
          %v1576 = vadd.f32 0.0, %v1575
          %v1577 = vpop.f32.mrb[0].mxu0
          %v1578 = vadd.f32 0.0, %v1577
          %1579 = vdwg.mxu0
          %1580 = vmatprep.subr.mxu0 0.0
          %1581 = vmatpush1.xpose.msra.mxu0 %v1228
          %1582 = vmatprep.subr.mxu0 0.0
          %1583 = vmatpush1.xpose.msra.mxu0 %v1231
          %1584 = vmatprep.subr.mxu0 0.0
          %1585 = vmatpush1.xpose.msra.mxu0 %v1234
          %1586 = vmatprep.subr.mxu0 0.0
          %1587 = vmatpush1.xpose.msra.mxu0 %v1237
          %1588 = vmatprep.subr.mxu0 0.0
          %1589 = vmatpush1.xpose.msra.mxu0 %v1240
          %1590 = vmatprep.subr.mxu0 0.0
          %1591 = vmatpush1.xpose.msra.mxu0 %v1243
          %1592 = vmatprep.subr.mxu0 0.0
          %1593 = vmatpush1.xpose.msra.mxu0 %v1246
          %1594 = vmatprep.subr.mxu0 0.0
          %1595 = vmatpush1.xpose.msra.mxu0 %v1249
          %1596 = vmatprep.subr.mxu0 0.0
          %1597 = vmatpush1.xpose.msra.mxu0 %v1252
          %1598 = vmatprep.subr.mxu0 0.0
          %1599 = vmatpush1.xpose.msra.mxu0 %v1255
          %1600 = vmatprep.subr.mxu0 0.0
          %1601 = vmatpush1.xpose.msra.mxu0 %v1258
          %1602 = vmatprep.subr.mxu0 0.0
          %1603 = vmatpush1.xpose.msra.mxu0 %v1261
          %1604 = vmatprep.subr.mxu0 0.0
          %1605 = vmatpush1.xpose.msra.mxu0 %v1264
          %1606 = vmatprep.subr.mxu0 0.0
          %1607 = vmatpush1.xpose.msra.mxu0 %v1267
          %1608 = vmatprep.subr.mxu0 0.0
          %1609 = vmatpush1.xpose.msra.mxu0 %v1270
          %1610 = vmatprep.subr.mxu0 0.0
          %1611 = vmatpush1.xpose.msra.mxu0 %v1273
          %1612 = vmatprep.subr.mxu0 0.0
          %1613 = vmatpush1.xpose.msra.mxu0 %v1276
          %1614 = vmatprep.subr.mxu0 0.0
          %1615 = vmatpush1.xpose.msra.mxu0 %v1279
          %1616 = vmatprep.subr.mxu0 0.0
          %1617 = vmatpush1.xpose.msra.mxu0 %v1282
          %1618 = vmatprep.subr.mxu0 0.0
          %1619 = vmatpush1.xpose.msra.mxu0 %v1285
          %1620 = vmatprep.subr.mxu0 0.0
          %1621 = vmatpush1.xpose.msra.mxu0 %v1288
          %1622 = vmatprep.subr.mxu0 0.0
          %1623 = vmatpush1.xpose.msra.mxu0 %v1291
          %1624 = vmatprep.subr.mxu0 0.0
          %1625 = vmatpush1.xpose.msra.mxu0 %v1294
          %1626 = vmatprep.subr.mxu0 0.0
          %1627 = vmatpush1.xpose.msra.mxu0 %v1297
          %1628 = vmatprep.subr.mxu0 0.0
          %1629 = vmatpush1.xpose.msra.mxu0 %v1300
          %1630 = vmatprep.subr.mxu0 0.0
          %1631 = vmatpush1.xpose.msra.mxu0 %v1303
          %1632 = vmatprep.subr.mxu0 0.0
          %1633 = vmatpush1.xpose.msra.mxu0 %v1306
          %1634 = vmatprep.subr.mxu0 0.0
          %1635 = vmatpush1.xpose.msra.mxu0 %v1309
          %1636 = vmatprep.subr.mxu0 0.0
          %1637 = vmatpush1.xpose.msra.mxu0 %v1312
          %1638 = vmatprep.subr.mxu0 0.0
          %1639 = vmatpush1.xpose.msra.mxu0 %v1315
          %1640 = vmatprep.subr.mxu0 0.0
          %1641 = vmatpush1.xpose.msra.mxu0 %v1318
          %1642 = vmatprep.subr.mxu0 0.0
          %1643 = vmatpush1.xpose.msra.mxu0 %v1321
          %1644 = vmatprep.mubr.f32.mxu0 0.0
          %1645 = vmatmul.mubr.f32.gmra.mrb[0].mxu0 %v1036
          %v1646 = vpop.f32.mrb[0].mxu0
          %v1647 = vadd.f32 0.0, %v1646
          %v1648 = vpop.f32.mrb[0].mxu0
          %v1649 = vadd.f32 0.0, %v1648
          %1650 = vmatprep.mubr.f32.mxu0 0.0
          %1651 = vmatmul.mubr.f32.gmra.mrb[0].mxu0 %v1039
          %v1652 = vpop.f32.mrb[0].mxu0
          %v1653 = vadd.f32 0.0, %v1652
          %v1654 = vpop.f32.mrb[0].mxu0
          %v1655 = vadd.f32 0.0, %v1654
          %1656 = vmatprep.mubr.f32.mxu0 0.0
          %1657 = vmatmul.mubr.f32.gmra.mrb[0].mxu0 %v1042
          %v1658 = vpop.f32.mrb[0].mxu0
          %v1659 = vadd.f32 0.0, %v1658
          %v1660 = vpop.f32.mrb[0].mxu0
          %v1661 = vadd.f32 0.0, %v1660
          %1662 = vmatprep.mubr.f32.mxu0 0.0
          %1663 = vmatmul.mubr.f32.gmra.mrb[0].mxu0 %v1045
          %v1664 = vpop.f32.mrb[0].mxu0
          %v1665 = vadd.f32 0.0, %v1664
          %v1666 = vpop.f32.mrb[0].mxu0
          %v1667 = vadd.f32 0.0, %v1666
          %1668 = vmatprep.mubr.f32.mxu0 0.0
          %1669 = vmatmul.mubr.f32.gmra.mrb[0].mxu0 %v1048
          %v1670 = vpop.f32.mrb[0].mxu0
          %v1671 = vadd.f32 0.0, %v1670
          %v1672 = vpop.f32.mrb[0].mxu0
          %v1673 = vadd.f32 0.0, %v1672
          %1674 = vmatprep.mubr.f32.mxu0 0.0
          %1675 = vmatmul.mubr.f32.gmra.mrb[0].mxu0 %v1051
          %v1676 = vpop.f32.mrb[0].mxu0
          %v1677 = vadd.f32 0.0, %v1676
          %v1678 = vpop.f32.mrb[0].mxu0
          %v1679 = vadd.f32 0.0, %v1678
          %1680 = vmatprep.mubr.f32.mxu0 0.0
          %1681 = vmatmul.mubr.f32.gmra.mrb[0].mxu0 %v1054
          %v1682 = vpop.f32.mrb[0].mxu0
          %v1683 = vadd.f32 0.0, %v1682
          %v1684 = vpop.f32.mrb[0].mxu0
          %v1685 = vadd.f32 0.0, %v1684
          %1686 = vmatprep.mubr.f32.mxu0 0.0
          %1687 = vmatmul.mubr.f32.gmra.mrb[0].mxu0 %v1057
          %v1688 = vpop.f32.mrb[0].mxu0
          %v1689 = vadd.f32 0.0, %v1688
          %v1690 = vpop.f32.mrb[0].mxu0
          %v1691 = vadd.f32 0.0, %v1690
          %1692 = vmatprep.mubr.f32.mxu0 0.0
          %1693 = vmatmul.mubr.f32.gmra.mrb[0].mxu0 %v1060
          %v1694 = vpop.f32.mrb[0].mxu0
          %v1695 = vadd.f32 0.0, %v1694
          %v1696 = vpop.f32.mrb[0].mxu0
          %v1697 = vadd.f32 0.0, %v1696
          %1698 = vmatprep.mubr.f32.mxu0 0.0
          %1699 = vmatmul.mubr.f32.gmra.mrb[0].mxu0 %v1063
          %v1700 = vpop.f32.mrb[0].mxu0
          %v1701 = vadd.f32 0.0, %v1700
          %v1702 = vpop.f32.mrb[0].mxu0
          %v1703 = vadd.f32 0.0, %v1702
          %1704 = vmatprep.mubr.f32.mxu0 0.0
          %1705 = vmatmul.mubr.f32.gmra.mrb[0].mxu0 %v1066
          %v1706 = vpop.f32.mrb[0].mxu0
          %v1707 = vadd.f32 0.0, %v1706
          %v1708 = vpop.f32.mrb[0].mxu0
          %v1709 = vadd.f32 0.0, %v1708
          %1710 = vmatprep.mubr.f32.mxu0 0.0
          %1711 = vmatmul.mubr.f32.gmra.mrb[0].mxu0 %v1069
          %v1712 = vpop.f32.mrb[0].mxu0
          %v1713 = vadd.f32 0.0, %v1712
          %v1714 = vpop.f32.mrb[0].mxu0
          %v1715 = vadd.f32 0.0, %v1714
          %1716 = vmatprep.mubr.f32.mxu0 0.0
          %1717 = vmatmul.mubr.f32.gmra.mrb[0].mxu0 %v1072
          %v1718 = vpop.f32.mrb[0].mxu0
          %v1719 = vadd.f32 0.0, %v1718
          %v1720 = vpop.f32.mrb[0].mxu0
          %v1721 = vadd.f32 0.0, %v1720
          %1722 = vmatprep.mubr.f32.mxu0 0.0
          %1723 = vmatmul.mubr.f32.gmra.mrb[0].mxu0 %v1075
          %v1724 = vpop.f32.mrb[0].mxu0
          %v1725 = vadd.f32 0.0, %v1724
          %v1726 = vpop.f32.mrb[0].mxu0
          %v1727 = vadd.f32 0.0, %v1726
          %1728 = vmatprep.mubr.f32.mxu0 0.0
          %1729 = vmatmul.mubr.f32.gmra.mrb[0].mxu0 %v1078
          %v1730 = vpop.f32.mrb[0].mxu0
          %v1731 = vadd.f32 0.0, %v1730
          %v1732 = vpop.f32.mrb[0].mxu0
          %v1733 = vadd.f32 0.0, %v1732
          %1734 = vmatprep.mubr.f32.mxu0 0.0
          %1735 = vmatmul.mubr.f32.gmra.mrb[0].mxu0 %v1081
          %v1736 = vpop.f32.mrb[0].mxu0
          %v1737 = vadd.f32 0.0, %v1736
          %v1738 = vpop.f32.mrb[0].mxu0
          %v1739 = vadd.f32 0.0, %v1738
          %1740 = vmatprep.mubr.f32.mxu0 0.0
          %1741 = vmatmul.mubr.f32.gmra.mrb[0].mxu0 %v1084
          %v1742 = vpop.f32.mrb[0].mxu0
          %v1743 = vadd.f32 0.0, %v1742
          %v1744 = vpop.f32.mrb[0].mxu0
          %v1745 = vadd.f32 0.0, %v1744
          %1746 = vmatprep.mubr.f32.mxu0 0.0
          %1747 = vmatmul.mubr.f32.gmra.mrb[0].mxu0 %v1087
          %v1748 = vpop.f32.mrb[0].mxu0
          %v1749 = vadd.f32 0.0, %v1748
          %v1750 = vpop.f32.mrb[0].mxu0
          %v1751 = vadd.f32 0.0, %v1750
          %1752 = vmatprep.mubr.f32.mxu0 0.0
          %1753 = vmatmul.mubr.f32.gmra.mrb[0].mxu0 %v1090
          %v1754 = vpop.f32.mrb[0].mxu0
          %v1755 = vadd.f32 0.0, %v1754
          %v1756 = vpop.f32.mrb[0].mxu0
          %v1757 = vadd.f32 0.0, %v1756
          %1758 = vmatprep.mubr.f32.mxu0 0.0
          %1759 = vmatmul.mubr.f32.gmra.mrb[0].mxu0 %v1093
          %v1760 = vpop.f32.mrb[0].mxu0
          %v1761 = vadd.f32 0.0, %v1760
          %v1762 = vpop.f32.mrb[0].mxu0
          %v1763 = vadd.f32 0.0, %v1762
          %1764 = vmatprep.mubr.f32.mxu0 0.0
          %1765 = vmatmul.mubr.f32.gmra.mrb[0].mxu0 %v1096
          %v1766 = vpop.f32.mrb[0].mxu0
          %v1767 = vadd.f32 0.0, %v1766
          %v1768 = vpop.f32.mrb[0].mxu0
          %v1769 = vadd.f32 0.0, %v1768
          %1770 = vmatprep.mubr.f32.mxu0 0.0
          %1771 = vmatmul.mubr.f32.gmra.mrb[0].mxu0 %v1099
          %v1772 = vpop.f32.mrb[0].mxu0
          %v1773 = vadd.f32 0.0, %v1772
          %v1774 = vpop.f32.mrb[0].mxu0
          %v1775 = vadd.f32 0.0, %v1774
          %1776 = vmatprep.mubr.f32.mxu0 0.0
          %1777 = vmatmul.mubr.f32.gmra.mrb[0].mxu0 %v1102
          %v1778 = vpop.f32.mrb[0].mxu0
          %v1779 = vadd.f32 0.0, %v1778
          %v1780 = vpop.f32.mrb[0].mxu0
          %v1781 = vadd.f32 0.0, %v1780
          %1782 = vmatprep.mubr.f32.mxu0 0.0
          %1783 = vmatmul.mubr.f32.gmra.mrb[0].mxu0 %v1105
          %v1784 = vpop.f32.mrb[0].mxu0
          %v1785 = vadd.f32 0.0, %v1784
          %v1786 = vpop.f32.mrb[0].mxu0
          %v1787 = vadd.f32 0.0, %v1786
          %1788 = vmatprep.mubr.f32.mxu0 0.0
          %1789 = vmatmul.mubr.f32.gmra.mrb[0].mxu0 %v1108
          %v1790 = vpop.f32.mrb[0].mxu0
          %v1791 = vadd.f32 0.0, %v1790
          %v1792 = vpop.f32.mrb[0].mxu0
          %v1793 = vadd.f32 0.0, %v1792
          %1794 = vmatprep.mubr.f32.mxu0 0.0
          %1795 = vmatmul.mubr.f32.gmra.mrb[0].mxu0 %v1111
          %v1796 = vpop.f32.mrb[0].mxu0
          %v1797 = vadd.f32 0.0, %v1796
          %v1798 = vpop.f32.mrb[0].mxu0
          %v1799 = vadd.f32 0.0, %v1798
          %1800 = vmatprep.mubr.f32.mxu0 0.0
          %1801 = vmatmul.mubr.f32.gmra.mrb[0].mxu0 %v1114
          %v1802 = vpop.f32.mrb[0].mxu0
          %v1803 = vadd.f32 0.0, %v1802
          %v1804 = vpop.f32.mrb[0].mxu0
          %v1805 = vadd.f32 0.0, %v1804
          %1806 = vmatprep.mubr.f32.mxu0 0.0
          %1807 = vmatmul.mubr.f32.gmra.mrb[0].mxu0 %v1117
          %v1808 = vpop.f32.mrb[0].mxu0
          %v1809 = vadd.f32 0.0, %v1808
          %v1810 = vpop.f32.mrb[0].mxu0
          %v1811 = vadd.f32 0.0, %v1810
          %1812 = vmatprep.mubr.f32.mxu0 0.0
          %1813 = vmatmul.mubr.f32.gmra.mrb[0].mxu0 %v1120
          %v1814 = vpop.f32.mrb[0].mxu0
          %v1815 = vadd.f32 0.0, %v1814
          %v1816 = vpop.f32.mrb[0].mxu0
          %v1817 = vadd.f32 0.0, %v1816
          %1818 = vmatprep.mubr.f32.mxu0 0.0
          %1819 = vmatmul.mubr.f32.gmra.mrb[0].mxu0 %v1123
          %v1820 = vpop.f32.mrb[0].mxu0
          %v1821 = vadd.f32 0.0, %v1820
          %v1822 = vpop.f32.mrb[0].mxu0
          %v1823 = vadd.f32 0.0, %v1822
          %1824 = vmatprep.mubr.f32.mxu0 0.0
          %1825 = vmatmul.mubr.f32.gmra.mrb[0].mxu0 %v1126
          %v1826 = vpop.f32.mrb[0].mxu0
          %v1827 = vadd.f32 0.0, %v1826
          %v1828 = vpop.f32.mrb[0].mxu0
          %v1829 = vadd.f32 0.0, %v1828
          %1830 = vmatprep.mubr.f32.mxu0 0.0
          %1831 = vmatmul.mubr.f32.gmra.mrb[0].mxu0 %v1129
          %v1832 = vpop.f32.mrb[0].mxu0
          %v1833 = vadd.f32 0.0, %v1832
          %v1834 = vpop.f32.mrb[0].mxu0
          %v1835 = vadd.f32 0.0, %v1834
          %1836 = vdwg.mxu0
          %v1837 = vmax.f32 %v1390, 1e-24
          %v1838 = vmax.f32 %v1392, 1e-24
          %v1839 = vmax.f32 %v1647, 1e-24
          %v1840 = vmax.f32 %v1649, 1e-24
          %v1841 = vmax.f32 %v1396, 1e-24
          %v1842 = vmax.f32 %v1398, 1e-24
          %v1843 = vmax.f32 %v1653, 1e-24
          %v1844 = vmax.f32 %v1655, 1e-24
          %v1845 = vmax.f32 %v1402, 1e-24
          %v1846 = vmax.f32 %v1404, 1e-24
          %v1847 = vmax.f32 %v1659, 1e-24
          %v1848 = vmax.f32 %v1661, 1e-24
          %v1849 = vmax.f32 %v1408, 1e-24
          %v1850 = vmax.f32 %v1410, 1e-24
          %v1851 = vmax.f32 %v1665, 1e-24
          %v1852 = vmax.f32 %v1667, 1e-24
          %v1853 = vmax.f32 %v1414, 1e-24
          %v1854 = vmax.f32 %v1416, 1e-24
          %v1855 = vmax.f32 %v1671, 1e-24
          %v1856 = vmax.f32 %v1673, 1e-24
          %v1857 = vmax.f32 %v1420, 1e-24
          %v1858 = vmax.f32 %v1422, 1e-24
          %v1859 = vmax.f32 %v1677, 1e-24
          %v1860 = vmax.f32 %v1679, 1e-24
          %v1861 = vmax.f32 %v1426, 1e-24
          %v1862 = vmax.f32 %v1428, 1e-24
          %v1863 = vmax.f32 %v1683, 1e-24
          %v1864 = vmax.f32 %v1685, 1e-24
          %v1865 = vmax.f32 %v1432, 1e-24
          %v1866 = vmax.f32 %v1434, 1e-24
          %v1867 = vmax.f32 %v1689, 1e-24
          %v1868 = vmax.f32 %v1691, 1e-24
          %v1869 = vmax.f32 %v1438, 1e-24
          %v1870 = vmax.f32 %v1440, 1e-24
          %v1871 = vmax.f32 %v1695, 1e-24
          %v1872 = vmax.f32 %v1697, 1e-24
          %v1873 = vmax.f32 %v1444, 1e-24
          %v1874 = vmax.f32 %v1446, 1e-24
          %v1875 = vmax.f32 %v1701, 1e-24
          %v1876 = vmax.f32 %v1703, 1e-24
          %v1877 = vmax.f32 %v1450, 1e-24
          %v1878 = vmax.f32 %v1452, 1e-24
          %v1879 = vmax.f32 %v1707, 1e-24
          %v1880 = vmax.f32 %v1709, 1e-24
          %v1881 = vmax.f32 %v1456, 1e-24
          %v1882 = vmax.f32 %v1458, 1e-24
          %v1883 = vmax.f32 %v1713, 1e-24
          %v1884 = vmax.f32 %v1715, 1e-24
          %v1885 = vmax.f32 %v1462, 1e-24
          %v1886 = vmax.f32 %v1464, 1e-24
          %v1887 = vmax.f32 %v1719, 1e-24
          %v1888 = vmax.f32 %v1721, 1e-24
          %v1889 = vmax.f32 %v1468, 1e-24
          %v1890 = vmax.f32 %v1470, 1e-24
          %v1891 = vmax.f32 %v1725, 1e-24
          %v1892 = vmax.f32 %v1727, 1e-24
          %v1893 = vmax.f32 %v1474, 1e-24
          %v1894 = vmax.f32 %v1476, 1e-24
          %v1895 = vmax.f32 %v1731, 1e-24
          %v1896 = vmax.f32 %v1733, 1e-24
          %v1897 = vmax.f32 %v1480, 1e-24
          %v1898 = vmax.f32 %v1482, 1e-24
          %v1899 = vmax.f32 %v1737, 1e-24
          %v1900 = vmax.f32 %v1739, 1e-24
          %v1901 = vmax.f32 %v1486, 1e-24
          %v1902 = vmax.f32 %v1488, 1e-24
          %v1903 = vmax.f32 %v1743, 1e-24
          %v1904 = vmax.f32 %v1745, 1e-24
          %v1905 = vmax.f32 %v1492, 1e-24
          %v1906 = vmax.f32 %v1494, 1e-24
          %v1907 = vmax.f32 %v1749, 1e-24
          %v1908 = vmax.f32 %v1751, 1e-24
          %v1909 = vmax.f32 %v1498, 1e-24
          %v1910 = vmax.f32 %v1500, 1e-24
          %v1911 = vmax.f32 %v1755, 1e-24
          %v1912 = vmax.f32 %v1757, 1e-24
          %v1913 = vmax.f32 %v1504, 1e-24
          %v1914 = vmax.f32 %v1506, 1e-24
          %v1915 = vmax.f32 %v1761, 1e-24
          %v1916 = vmax.f32 %v1763, 1e-24
          %v1917 = vmax.f32 %v1510, 1e-24
          %v1918 = vmax.f32 %v1512, 1e-24
          %v1919 = vmax.f32 %v1767, 1e-24
          %v1920 = vmax.f32 %v1769, 1e-24
          %v1921 = vmax.f32 %v1516, 1e-24
          %v1922 = vmax.f32 %v1518, 1e-24
          %v1923 = vmax.f32 %v1773, 1e-24
          %v1924 = vmax.f32 %v1775, 1e-24
          %v1925 = vmax.f32 %v1522, 1e-24
          %v1926 = vmax.f32 %v1524, 1e-24
          %v1927 = vmax.f32 %v1779, 1e-24
          %v1928 = vmax.f32 %v1781, 1e-24
          %v1929 = vmax.f32 %v1528, 1e-24
          %v1930 = vmax.f32 %v1530, 1e-24
          %v1931 = vmax.f32 %v1785, 1e-24
          %v1932 = vmax.f32 %v1787, 1e-24
          %v1933 = vmax.f32 %v1534, 1e-24
          %v1934 = vmax.f32 %v1536, 1e-24
          %v1935 = vmax.f32 %v1791, 1e-24
          %v1936 = vmax.f32 %v1793, 1e-24
          %v1937 = vmax.f32 %v1540, 1e-24
          %v1938 = vmax.f32 %v1542, 1e-24
          %v1939 = vmax.f32 %v1797, 1e-24
          %v1940 = vmax.f32 %v1799, 1e-24
          %v1941 = vmax.f32 %v1546, 1e-24
          %v1942 = vmax.f32 %v1548, 1e-24
          %v1943 = vmax.f32 %v1803, 1e-24
          %v1944 = vmax.f32 %v1805, 1e-24
          %v1945 = vmax.f32 %v1552, 1e-24
          %v1946 = vmax.f32 %v1554, 1e-24
          %v1947 = vmax.f32 %v1809, 1e-24
          %v1948 = vmax.f32 %v1811, 1e-24
          %v1949 = vmax.f32 %v1558, 1e-24
          %v1950 = vmax.f32 %v1560, 1e-24
          %v1951 = vmax.f32 %v1815, 1e-24
          %v1952 = vmax.f32 %v1817, 1e-24
          %v1953 = vmax.f32 %v1564, 1e-24
          %v1954 = vmax.f32 %v1566, 1e-24
          %v1955 = vmax.f32 %v1821, 1e-24
          %v1956 = vmax.f32 %v1823, 1e-24
          %v1957 = vmax.f32 %v1570, 1e-24
          %v1958 = vmax.f32 %v1572, 1e-24
          %v1959 = vmax.f32 %v1827, 1e-24
          %v1960 = vmax.f32 %v1829, 1e-24
          %v1961 = vmax.f32 %v1576, 1e-24
          %v1962 = vmax.f32 %v1578, 1e-24
          %v1963 = vmax.f32 %v1833, 1e-24
          %v1964 = vmax.f32 %v1835, 1e-24
          %v1965 = vrsqrt.pop %v1837
          %v1966 = vrsqrt.pop %v1838
          %v1967 = vrsqrt.pop %v1839
          %v1968 = vrsqrt.pop %v1840
          %v1969 = vrsqrt.pop %v1841
          %v1970 = vrsqrt.pop %v1842
          %v1971 = vrsqrt.pop %v1843
          %v1972 = vrsqrt.pop %v1844
          %v1973 = vrsqrt.pop %v1845
          %v1974 = vrsqrt.pop %v1846
          %v1975 = vrsqrt.pop %v1847
          %v1976 = vrsqrt.pop %v1848
          %v1977 = vrsqrt.pop %v1849
          %v1978 = vrsqrt.pop %v1850
          %v1979 = vrsqrt.pop %v1851
          %v1980 = vrsqrt.pop %v1852
          %v1981 = vrsqrt.pop %v1853
          %v1982 = vrsqrt.pop %v1854
          %v1983 = vrsqrt.pop %v1855
          %v1984 = vrsqrt.pop %v1856
          %v1985 = vrsqrt.pop %v1857
          %v1986 = vrsqrt.pop %v1858
          %v1987 = vrsqrt.pop %v1859
          %v1988 = vrsqrt.pop %v1860
          %v1989 = vrsqrt.pop %v1861
          %v1990 = vrsqrt.pop %v1862
          %v1991 = vrsqrt.pop %v1863
          %v1992 = vrsqrt.pop %v1864
          %v1993 = vrsqrt.pop %v1865
          %v1994 = vrsqrt.pop %v1866
          %v1995 = vrsqrt.pop %v1867
          %v1996 = vrsqrt.pop %v1868
          %v1997 = vrsqrt.pop %v1869
          %v1998 = vrsqrt.pop %v1870
          %v1999 = vrsqrt.pop %v1871
          %v2000 = vrsqrt.pop %v1872
          %v2001 = vrsqrt.pop %v1873
          %v2002 = vrsqrt.pop %v1874
          %v2003 = vrsqrt.pop %v1875
          %v2004 = vrsqrt.pop %v1876
          %v2005 = vrsqrt.pop %v1877
          %v2006 = vrsqrt.pop %v1878
          %v2007 = vrsqrt.pop %v1879
          %v2008 = vrsqrt.pop %v1880
          %v2009 = vrsqrt.pop %v1881
          %v2010 = vrsqrt.pop %v1882
          %v2011 = vrsqrt.pop %v1883
          %v2012 = vrsqrt.pop %v1884
          %v2013 = vrsqrt.pop %v1885
          %v2014 = vrsqrt.pop %v1886
          %v2015 = vrsqrt.pop %v1887
          %v2016 = vrsqrt.pop %v1888
          %v2017 = vrsqrt.pop %v1889
          %v2018 = vrsqrt.pop %v1890
          %v2019 = vrsqrt.pop %v1891
          %v2020 = vrsqrt.pop %v1892
          %v2021 = vrsqrt.pop %v1893
          %v2022 = vrsqrt.pop %v1894
          %v2023 = vrsqrt.pop %v1895
          %v2024 = vrsqrt.pop %v1896
          %v2025 = vrsqrt.pop %v1897
          %v2026 = vrsqrt.pop %v1898
          %v2027 = vrsqrt.pop %v1899
          %v2028 = vrsqrt.pop %v1900
          %v2029 = vrsqrt.pop %v1901
          %v2030 = vrsqrt.pop %v1902
          %v2031 = vrsqrt.pop %v1903
          %v2032 = vrsqrt.pop %v1904
          %v2033 = vrsqrt.pop %v1905
          %v2034 = vrsqrt.pop %v1906
          %v2035 = vrsqrt.pop %v1907
          %v2036 = vrsqrt.pop %v1908
          %v2037 = vrsqrt.pop %v1909
          %v2038 = vrsqrt.pop %v1910
          %v2039 = vrsqrt.pop %v1911
          %v2040 = vrsqrt.pop %v1912
          %v2041 = vrsqrt.pop %v1913
          %v2042 = vrsqrt.pop %v1914
          %v2043 = vrsqrt.pop %v1915
          %v2044 = vrsqrt.pop %v1916
          %v2045 = vrsqrt.pop %v1917
          %v2046 = vrsqrt.pop %v1918
          %v2047 = vrsqrt.pop %v1919
          %v2048 = vrsqrt.pop %v1920
          %v2049 = vrsqrt.pop %v1921
          %v2050 = vrsqrt.pop %v1922
          %v2051 = vrsqrt.pop %v1923
          %v2052 = vrsqrt.pop %v1924
          %v2053 = vrsqrt.pop %v1925
          %v2054 = vrsqrt.pop %v1926
          %v2055 = vrsqrt.pop %v1927
          %v2056 = vrsqrt.pop %v1928
          %v2057 = vrsqrt.pop %v1929
          %v2058 = vrsqrt.pop %v1930
          %v2059 = vrsqrt.pop %v1931
          %v2060 = vrsqrt.pop %v1932
          %v2061 = vrsqrt.pop %v1933
          %v2062 = vrsqrt.pop %v1934
          %v2063 = vrsqrt.pop %v1935
          %v2064 = vrsqrt.pop %v1936
          %v2065 = vrsqrt.pop %v1937
          %v2066 = vrsqrt.pop %v1938
          %v2067 = vrsqrt.pop %v1939
          %v2068 = vrsqrt.pop %v1940
          %v2069 = vrsqrt.pop %v1941
          %v2070 = vrsqrt.pop %v1942
          %v2071 = vrsqrt.pop %v1943
          %v2072 = vrsqrt.pop %v1944
          %v2073 = vrsqrt.pop %v1945
          %v2074 = vrsqrt.pop %v1946
          %v2075 = vrsqrt.pop %v1947
          %v2076 = vrsqrt.pop %v1948
          %v2077 = vrsqrt.pop %v1949
          %v2078 = vrsqrt.pop %v1950
          %v2079 = vrsqrt.pop %v1951
          %v2080 = vrsqrt.pop %v1952
          %v2081 = vrsqrt.pop %v1953
          %v2082 = vrsqrt.pop %v1954
          %v2083 = vrsqrt.pop %v1955
          %v2084 = vrsqrt.pop %v1956
          %v2085 = vrsqrt.pop %v1957
          %v2086 = vrsqrt.pop %v1958
          %v2087 = vrsqrt.pop %v1959
          %v2088 = vrsqrt.pop %v1960
          %v2089 = vrsqrt.pop %v1961
          %v2090 = vrsqrt.pop %v1962
          %v2091 = vrsqrt.pop %v1963
          %v2092 = vrsqrt.pop %v1964
          %v2093 = vmul.f32 %v328, %v1965
          %v2094 = vmul.f32 %v329, %v1966
          %v2095 = vmul.f32 %v330, %v1967
          %v2096 = vmul.f32 %v331, %v1968
          %v2097 = vmul.f32 %v332, %v1969
          %v2098 = vmul.f32 %v333, %v1970
          %v2099 = vmul.f32 %v334, %v1971
          %v2100 = vmul.f32 %v335, %v1972
          %v2101 = vmul.f32 %v336, %v1973
          %v2102 = vmul.f32 %v337, %v1974
          %v2103 = vmul.f32 %v338, %v1975
          %v2104 = vmul.f32 %v339, %v1976
          %v2105 = vmul.f32 %v340, %v1977
          %v2106 = vmul.f32 %v341, %v1978
          %v2107 = vmul.f32 %v342, %v1979
          %v2108 = vmul.f32 %v343, %v1980
          %v2109 = vmul.f32 %v344, %v1981
          %v2110 = vmul.f32 %v345, %v1982
          %v2111 = vmul.f32 %v346, %v1983
          %v2112 = vmul.f32 %v347, %v1984
          %v2113 = vmul.f32 %v348, %v1985
          %v2114 = vmul.f32 %v349, %v1986
          %v2115 = vmul.f32 %v350, %v1987
          %v2116 = vmul.f32 %v351, %v1988
          %v2117 = vmul.f32 %v352, %v1989
          %v2118 = vmul.f32 %v353, %v1990
          %v2119 = vmul.f32 %v354, %v1991
          %v2120 = vmul.f32 %v355, %v1992
          %v2121 = vmul.f32 %v356, %v1993
          %v2122 = vmul.f32 %v357, %v1994
          %v2123 = vmul.f32 %v358, %v1995
          %v2124 = vmul.f32 %v359, %v1996
          %v2125 = vmul.f32 %v360, %v1997
          %v2126 = vmul.f32 %v361, %v1998
          %v2127 = vmul.f32 %v362, %v1999
          %v2128 = vmul.f32 %v363, %v2000
          %v2129 = vmul.f32 %v364, %v2001
          %v2130 = vmul.f32 %v365, %v2002
          %v2131 = vmul.f32 %v366, %v2003
          %v2132 = vmul.f32 %v367, %v2004
          %v2133 = vmul.f32 %v368, %v2005
          %v2134 = vmul.f32 %v369, %v2006
          %v2135 = vmul.f32 %v370, %v2007
          %v2136 = vmul.f32 %v371, %v2008
          %v2137 = vmul.f32 %v372, %v2009
          %v2138 = vmul.f32 %v373, %v2010
          %v2139 = vmul.f32 %v374, %v2011
          %v2140 = vmul.f32 %v375, %v2012
          %v2141 = vmul.f32 %v376, %v2013
          %v2142 = vmul.f32 %v377, %v2014
          %v2143 = vmul.f32 %v378, %v2015
          %v2144 = vmul.f32 %v379, %v2016
          %v2145 = vmul.f32 %v380, %v2017
          %v2146 = vmul.f32 %v381, %v2018
          %v2147 = vmul.f32 %v382, %v2019
          %v2148 = vmul.f32 %v383, %v2020
          %v2149 = vmul.f32 %v384, %v2021
          %v2150 = vmul.f32 %v385, %v2022
          %v2151 = vmul.f32 %v386, %v2023
          %v2152 = vmul.f32 %v387, %v2024
          %v2153 = vmul.f32 %v388, %v2025
          %v2154 = vmul.f32 %v389, %v2026
          %v2155 = vmul.f32 %v390, %v2027
          %v2156 = vmul.f32 %v391, %v2028
          %v2157 = vmul.f32 %v392, %v2029
          %v2158 = vmul.f32 %v393, %v2030
          %v2159 = vmul.f32 %v394, %v2031
          %v2160 = vmul.f32 %v395, %v2032
          %v2161 = vmul.f32 %v396, %v2033
          %v2162 = vmul.f32 %v397, %v2034
          %v2163 = vmul.f32 %v398, %v2035
          %v2164 = vmul.f32 %v399, %v2036
          %v2165 = vmul.f32 %v400, %v2037
          %v2166 = vmul.f32 %v401, %v2038
          %v2167 = vmul.f32 %v402, %v2039
          %v2168 = vmul.f32 %v403, %v2040
          %v2169 = vmul.f32 %v404, %v2041
          %v2170 = vmul.f32 %v405, %v2042
          %v2171 = vmul.f32 %v406, %v2043
          %v2172 = vmul.f32 %v407, %v2044
          %v2173 = vmul.f32 %v408, %v2045
          %v2174 = vmul.f32 %v409, %v2046
          %v2175 = vmul.f32 %v410, %v2047
          %v2176 = vmul.f32 %v411, %v2048
          %v2177 = vmul.f32 %v412, %v2049
          %v2178 = vmul.f32 %v413, %v2050
          %v2179 = vmul.f32 %v414, %v2051
          %v2180 = vmul.f32 %v415, %v2052
          %v2181 = vmul.f32 %v416, %v2053
          %v2182 = vmul.f32 %v417, %v2054
          %v2183 = vmul.f32 %v418, %v2055
          %v2184 = vmul.f32 %v419, %v2056
          %v2185 = vmul.f32 %v420, %v2057
          %v2186 = vmul.f32 %v421, %v2058
          %v2187 = vmul.f32 %v422, %v2059
          %v2188 = vmul.f32 %v423, %v2060
          %v2189 = vmul.f32 %v424, %v2061
          %v2190 = vmul.f32 %v425, %v2062
          %v2191 = vmul.f32 %v426, %v2063
          %v2192 = vmul.f32 %v427, %v2064
          %v2193 = vmul.f32 %v428, %v2065
          %v2194 = vmul.f32 %v429, %v2066
          %v2195 = vmul.f32 %v430, %v2067
          %v2196 = vmul.f32 %v431, %v2068
          %v2197 = vmul.f32 %v432, %v2069
          %v2198 = vmul.f32 %v433, %v2070
          %v2199 = vmul.f32 %v434, %v2071
          %v2200 = vmul.f32 %v435, %v2072
          %v2201 = vmul.f32 %v436, %v2073
          %v2202 = vmul.f32 %v437, %v2074
          %v2203 = vmul.f32 %v438, %v2075
          %v2204 = vmul.f32 %v439, %v2076
          %v2205 = vmul.f32 %v440, %v2077
          %v2206 = vmul.f32 %v441, %v2078
          %v2207 = vmul.f32 %v442, %v2079
          %v2208 = vmul.f32 %v443, %v2080
          %v2209 = vmul.f32 %v444, %v2081
          %v2210 = vmul.f32 %v445, %v2082
          %v2211 = vmul.f32 %v446, %v2083
          %v2212 = vmul.f32 %v447, %v2084
          %v2213 = vmul.f32 %v448, %v2085
          %v2214 = vmul.f32 %v449, %v2086
          %v2215 = vmul.f32 %v450, %v2087
          %v2216 = vmul.f32 %v451, %v2088
          %v2217 = vmul.f32 %v452, %v2089
          %v2218 = vmul.f32 %v453, %v2090
          %v2219 = vmul.f32 %v454, %v2091
          %v2220 = vmul.f32 %v455, %v2092
          %2221 = vst [vmem:[#allocation2] sm:$0xff] %v2093
          %2222 = vst [vmem:[#allocation2 + $0x8] sm:$0xff] %v2094
          %2223 = vst [vmem:[#allocation2 + $0x10] sm:$0xff] %v2095
          %2224 = vst [vmem:[#allocation2 + $0x18] sm:$0xff] %v2096
          %2225 = vst [vmem:[#allocation2 + $0x20] sm:$0xff] %v2097
          %2226 = vst [vmem:[#allocation2 + $0x28] sm:$0xff] %v2098
          %2227 = vst [vmem:[#allocation2 + $0x30] sm:$0xff] %v2099
          %2228 = vst [vmem:[#allocation2 + $0x38] sm:$0xff] %v2100
          %2229 = vst [vmem:[#allocation2 + $0x40] sm:$0xff] %v2101
          %2230 = vst [vmem:[#allocation2 + $0x48] sm:$0xff] %v2102
          %2231 = vst [vmem:[#allocation2 + $0x50] sm:$0xff] %v2103
          %2232 = vst [vmem:[#allocation2 + $0x58] sm:$0xff] %v2104
          %2233 = vst [vmem:[#allocation2 + $0x60] sm:$0xff] %v2105
          %2234 = vst [vmem:[#allocation2 + $0x68] sm:$0xff] %v2106
          %2235 = vst [vmem:[#allocation2 + $0x70] sm:$0xff] %v2107
          %2236 = vst [vmem:[#allocation2 + $0x78] sm:$0xff] %v2108
          %2237 = vst [vmem:[#allocation2 + $0x80] sm:$0xff] %v2109
          %2238 = vst [vmem:[#allocation2 + $0x88] sm:$0xff] %v2110
          %2239 = vst [vmem:[#allocation2 + $0x90] sm:$0xff] %v2111
          %2240 = vst [vmem:[#allocation2 + $0x98] sm:$0xff] %v2112
          %2241 = vst [vmem:[#allocation2 + $0xa0] sm:$0xff] %v2113
          %2242 = vst [vmem:[#allocation2 + $0xa8] sm:$0xff] %v2114
          %2243 = vst [vmem:[#allocation2 + $0xb0] sm:$0xff] %v2115
          %2244 = vst [vmem:[#allocation2 + $0xb8] sm:$0xff] %v2116
          %2245 = vst [vmem:[#allocation2 + $0xc0] sm:$0xff] %v2117
          %2246 = vst [vmem:[#allocation2 + $0xc8] sm:$0xff] %v2118
          %2247 = vst [vmem:[#allocation2 + $0xd0] sm:$0xff] %v2119
          %2248 = vst [vmem:[#allocation2 + $0xd8] sm:$0xff] %v2120
          %2249 = vst [vmem:[#allocation2 + $0xe0] sm:$0xff] %v2121
          %2250 = vst [vmem:[#allocation2 + $0xe8] sm:$0xff] %v2122
          %2251 = vst [vmem:[#allocation2 + $0xf0] sm:$0xff] %v2123
          %2252 = vst [vmem:[#allocation2 + $0xf8] sm:$0xff] %v2124
          %2253 = vst [vmem:[#allocation2 + $0x100] sm:$0xff] %v2125
          %2254 = vst [vmem:[#allocation2 + $0x108] sm:$0xff] %v2126
          %2255 = vst [vmem:[#allocation2 + $0x110] sm:$0xff] %v2127
          %2256 = vst [vmem:[#allocation2 + $0x118] sm:$0xff] %v2128
          %2257 = vst [vmem:[#allocation2 + $0x120] sm:$0xff] %v2129
          %2258 = vst [vmem:[#allocation2 + $0x128] sm:$0xff] %v2130
          %2259 = vst [vmem:[#allocation2 + $0x130] sm:$0xff] %v2131
          %2260 = vst [vmem:[#allocation2 + $0x138] sm:$0xff] %v2132
          %2261 = vst [vmem:[#allocation2 + $0x140] sm:$0xff] %v2133
          %2262 = vst [vmem:[#allocation2 + $0x148] sm:$0xff] %v2134
          %2263 = vst [vmem:[#allocation2 + $0x150] sm:$0xff] %v2135
          %2264 = vst [vmem:[#allocation2 + $0x158] sm:$0xff] %v2136
          %2265 = vst [vmem:[#allocation2 + $0x160] sm:$0xff] %v2137
          %2266 = vst [vmem:[#allocation2 + $0x168] sm:$0xff] %v2138
          %2267 = vst [vmem:[#allocation2 + $0x170] sm:$0xff] %v2139
          %2268 = vst [vmem:[#allocation2 + $0x178] sm:$0xff] %v2140
          %2269 = vst [vmem:[#allocation2 + $0x180] sm:$0xff] %v2141
          %2270 = vst [vmem:[#allocation2 + $0x188] sm:$0xff] %v2142
          %2271 = vst [vmem:[#allocation2 + $0x190] sm:$0xff] %v2143
          %2272 = vst [vmem:[#allocation2 + $0x198] sm:$0xff] %v2144
          %2273 = vst [vmem:[#allocation2 + $0x1a0] sm:$0xff] %v2145
          %2274 = vst [vmem:[#allocation2 + $0x1a8] sm:$0xff] %v2146
          %2275 = vst [vmem:[#allocation2 + $0x1b0] sm:$0xff] %v2147
          %2276 = vst [vmem:[#allocation2 + $0x1b8] sm:$0xff] %v2148
          %2277 = vst [vmem:[#allocation2 + $0x1c0] sm:$0xff] %v2149
          %2278 = vst [vmem:[#allocation2 + $0x1c8] sm:$0xff] %v2150
          %2279 = vst [vmem:[#allocation2 + $0x1d0] sm:$0xff] %v2151
          %2280 = vst [vmem:[#allocation2 + $0x1d8] sm:$0xff] %v2152
          %2281 = vst [vmem:[#allocation2 + $0x1e0] sm:$0xff] %v2153
          %2282 = vst [vmem:[#allocation2 + $0x1e8] sm:$0xff] %v2154
          %2283 = vst [vmem:[#allocation2 + $0x1f0] sm:$0xff] %v2155
          %2284 = vst [vmem:[#allocation2 + $0x1f8] sm:$0xff] %v2156
          %2285 = vst [vmem:[#allocation2 + $0x200] sm:$0xff] %v2157
          %2286 = vst [vmem:[#allocation2 + $0x208] sm:$0xff] %v2158
          %2287 = vst [vmem:[#allocation2 + $0x210] sm:$0xff] %v2159
          %2288 = vst [vmem:[#allocation2 + $0x218] sm:$0xff] %v2160
          %2289 = vst [vmem:[#allocation2 + $0x220] sm:$0xff] %v2161
          %2290 = vst [vmem:[#allocation2 + $0x228] sm:$0xff] %v2162
          %2291 = vst [vmem:[#allocation2 + $0x230] sm:$0xff] %v2163
          %2292 = vst [vmem:[#allocation2 + $0x238] sm:$0xff] %v2164
          %2293 = vst [vmem:[#allocation2 + $0x240] sm:$0xff] %v2165
          %2294 = vst [vmem:[#allocation2 + $0x248] sm:$0xff] %v2166
          %2295 = vst [vmem:[#allocation2 + $0x250] sm:$0xff] %v2167
          %2296 = vst [vmem:[#allocation2 + $0x258] sm:$0xff] %v2168
          %2297 = vst [vmem:[#allocation2 + $0x260] sm:$0xff] %v2169
          %2298 = vst [vmem:[#allocation2 + $0x268] sm:$0xff] %v2170
          %2299 = vst [vmem:[#allocation2 + $0x270] sm:$0xff] %v2171
          %2300 = vst [vmem:[#allocation2 + $0x278] sm:$0xff] %v2172
          %2301 = vst [vmem:[#allocation2 + $0x280] sm:$0xff] %v2173
          %2302 = vst [vmem:[#allocation2 + $0x288] sm:$0xff] %v2174
          %2303 = vst [vmem:[#allocation2 + $0x290] sm:$0xff] %v2175
          %2304 = vst [vmem:[#allocation2 + $0x298] sm:$0xff] %v2176
          %2305 = vst [vmem:[#allocation2 + $0x2a0] sm:$0xff] %v2177
          %2306 = vst [vmem:[#allocation2 + $0x2a8] sm:$0xff] %v2178
          %2307 = vst [vmem:[#allocation2 + $0x2b0] sm:$0xff] %v2179
          %2308 = vst [vmem:[#allocation2 + $0x2b8] sm:$0xff] %v2180
          %2309 = vst [vmem:[#allocation2 + $0x2c0] sm:$0xff] %v2181
          %2310 = vst [vmem:[#allocation2 + $0x2c8] sm:$0xff] %v2182
          %2311 = vst [vmem:[#allocation2 + $0x2d0] sm:$0xff] %v2183
          %2312 = vst [vmem:[#allocation2 + $0x2d8] sm:$0xff] %v2184
          %2313 = vst [vmem:[#allocation2 + $0x2e0] sm:$0xff] %v2185
          %2314 = vst [vmem:[#allocation2 + $0x2e8] sm:$0xff] %v2186
          %2315 = vst [vmem:[#allocation2 + $0x2f0] sm:$0xff] %v2187
          %2316 = vst [vmem:[#allocation2 + $0x2f8] sm:$0xff] %v2188
          %2317 = vst [vmem:[#allocation2 + $0x300] sm:$0xff] %v2189
          %2318 = vst [vmem:[#allocation2 + $0x308] sm:$0xff] %v2190
          %2319 = vst [vmem:[#allocation2 + $0x310] sm:$0xff] %v2191
          %2320 = vst [vmem:[#allocation2 + $0x318] sm:$0xff] %v2192
          %2321 = vst [vmem:[#allocation2 + $0x320] sm:$0xff] %v2193
          %2322 = vst [vmem:[#allocation2 + $0x328] sm:$0xff] %v2194
          %2323 = vst [vmem:[#allocation2 + $0x330] sm:$0xff] %v2195
          %2324 = vst [vmem:[#allocation2 + $0x338] sm:$0xff] %v2196
          %2325 = vst [vmem:[#allocation2 + $0x340] sm:$0xff] %v2197
          %2326 = vst [vmem:[#allocation2 + $0x348] sm:$0xff] %v2198
          %2327 = vst [vmem:[#allocation2 + $0x350] sm:$0xff] %v2199
          %2328 = vst [vmem:[#allocation2 + $0x358] sm:$0xff] %v2200
          %2329 = vst [vmem:[#allocation2 + $0x360] sm:$0xff] %v2201
          %2330 = vst [vmem:[#allocation2 + $0x368] sm:$0xff] %v2202
          %2331 = vst [vmem:[#allocation2 + $0x370] sm:$0xff] %v2203
          %2332 = vst [vmem:[#allocation2 + $0x378] sm:$0xff] %v2204
          %2333 = vst [vmem:[#allocation2 + $0x380] sm:$0xff] %v2205
          %2334 = vst [vmem:[#allocation2 + $0x388] sm:$0xff] %v2206
          %2335 = vst [vmem:[#allocation2 + $0x390] sm:$0xff] %v2207
          %2336 = vst [vmem:[#allocation2 + $0x398] sm:$0xff] %v2208
          %2337 = vst [vmem:[#allocation2 + $0x3a0] sm:$0xff] %v2209
          %2338 = vst [vmem:[#allocation2 + $0x3a8] sm:$0xff] %v2210
          %2339 = vst [vmem:[#allocation2 + $0x3b0] sm:$0xff] %v2211
          %2340 = vst [vmem:[#allocation2 + $0x3b8] sm:$0xff] %v2212
          %2341 = vst [vmem:[#allocation2 + $0x3c0] sm:$0xff] %v2213
          %2342 = vst [vmem:[#allocation2 + $0x3c8] sm:$0xff] %v2214
          %2343 = vst [vmem:[#allocation2 + $0x3d0] sm:$0xff] %v2215
          %2344 = vst [vmem:[#allocation2 + $0x3d8] sm:$0xff] %v2216
          %2345 = vst [vmem:[#allocation2 + $0x3e0] sm:$0xff] %v2217
          %2346 = vst [vmem:[#allocation2 + $0x3e8] sm:$0xff] %v2218
          %2347 = vst [vmem:[#allocation2 + $0x3f0] sm:$0xff] %v2219
          %2348 = vst [vmem:[#allocation2 + $0x3f8] sm:$0xff] %v2220
          %v2349 = vpack.c.bf16 %v2097, %v2093
          %v2350 = vpack.c.bf16 %v2098, %v2094
          %v2351 = vpack.c.bf16 %v2099, %v2095
          %v2352 = vpack.c.bf16 %v2100, %v2096
          %v2353 = vpack.c.bf16 %v2105, %v2101
          %v2354 = vpack.c.bf16 %v2106, %v2102
          %v2355 = vpack.c.bf16 %v2107, %v2103
          %v2356 = vpack.c.bf16 %v2108, %v2104
          %v2357 = vpack.c.bf16 %v2113, %v2109
          %v2358 = vpack.c.bf16 %v2114, %v2110
          %v2359 = vpack.c.bf16 %v2115, %v2111
          %v2360 = vpack.c.bf16 %v2116, %v2112
          %v2361 = vpack.c.bf16 %v2121, %v2117
          %v2362 = vpack.c.bf16 %v2122, %v2118
          %v2363 = vpack.c.bf16 %v2123, %v2119
          %v2364 = vpack.c.bf16 %v2124, %v2120
          %v2365 = vpack.c.bf16 %v2129, %v2125
          %v2366 = vpack.c.bf16 %v2130, %v2126
          %v2367 = vpack.c.bf16 %v2131, %v2127
          %v2368 = vpack.c.bf16 %v2132, %v2128
          %v2369 = vpack.c.bf16 %v2137, %v2133
          %v2370 = vpack.c.bf16 %v2138, %v2134
          %v2371 = vpack.c.bf16 %v2139, %v2135
          %v2372 = vpack.c.bf16 %v2140, %v2136
          %v2373 = vpack.c.bf16 %v2145, %v2141
          %v2374 = vpack.c.bf16 %v2146, %v2142
          %v2375 = vpack.c.bf16 %v2147, %v2143
          %v2376 = vpack.c.bf16 %v2148, %v2144
          %v2377 = vpack.c.bf16 %v2153, %v2149
          %v2378 = vpack.c.bf16 %v2154, %v2150
          %v2379 = vpack.c.bf16 %v2155, %v2151
          %v2380 = vpack.c.bf16 %v2156, %v2152
          %v2381 = vpack.c.bf16 %v2161, %v2157
          %v2382 = vpack.c.bf16 %v2162, %v2158
          %v2383 = vpack.c.bf16 %v2163, %v2159
          %v2384 = vpack.c.bf16 %v2164, %v2160
          %v2385 = vpack.c.bf16 %v2169, %v2165
          %v2386 = vpack.c.bf16 %v2170, %v2166
          %v2387 = vpack.c.bf16 %v2171, %v2167
          %v2388 = vpack.c.bf16 %v2172, %v2168
          %v2389 = vpack.c.bf16 %v2177, %v2173
          %v2390 = vpack.c.bf16 %v2178, %v2174
          %v2391 = vpack.c.bf16 %v2179, %v2175
          %v2392 = vpack.c.bf16 %v2180, %v2176
          %v2393 = vpack.c.bf16 %v2185, %v2181
          %v2394 = vpack.c.bf16 %v2186, %v2182
          %v2395 = vpack.c.bf16 %v2187, %v2183
          %v2396 = vpack.c.bf16 %v2188, %v2184
          %v2397 = vpack.c.bf16 %v2193, %v2189
          %v2398 = vpack.c.bf16 %v2194, %v2190
          %v2399 = vpack.c.bf16 %v2195, %v2191
          %v2400 = vpack.c.bf16 %v2196, %v2192
          %v2401 = vpack.c.bf16 %v2201, %v2197
          %v2402 = vpack.c.bf16 %v2202, %v2198
          %v2403 = vpack.c.bf16 %v2203, %v2199
          %v2404 = vpack.c.bf16 %v2204, %v2200
          %v2405 = vpack.c.bf16 %v2209, %v2205
          %v2406 = vpack.c.bf16 %v2210, %v2206
          %v2407 = vpack.c.bf16 %v2211, %v2207
          %v2408 = vpack.c.bf16 %v2212, %v2208
          %v2409 = vpack.c.bf16 %v2217, %v2213
          %v2410 = vpack.c.bf16 %v2218, %v2214
          %v2411 = vpack.c.bf16 %v2219, %v2215
          %v2412 = vpack.c.bf16 %v2220, %v2216
          %2413 = vst [vmem:[#allocation3] sm:$0xff] %v2349
          %2414 = vst [vmem:[#allocation3 + $0x8] sm:$0xff] %v2350
          %2415 = vst [vmem:[#allocation3 + $0x10] sm:$0xff] %v2351
          %2416 = vst [vmem:[#allocation3 + $0x18] sm:$0xff] %v2352
          %2417 = vst [vmem:[#allocation3 + $0x20] sm:$0xff] %v2353
          %2418 = vst [vmem:[#allocation3 + $0x28] sm:$0xff] %v2354
          %2419 = vst [vmem:[#allocation3 + $0x30] sm:$0xff] %v2355
          %2420 = vst [vmem:[#allocation3 + $0x38] sm:$0xff] %v2356
          %2421 = vst [vmem:[#allocation3 + $0x40] sm:$0xff] %v2357
          %2422 = vst [vmem:[#allocation3 + $0x48] sm:$0xff] %v2358
          %2423 = vst [vmem:[#allocation3 + $0x50] sm:$0xff] %v2359
          %2424 = vst [vmem:[#allocation3 + $0x58] sm:$0xff] %v2360
          %2425 = vst [vmem:[#allocation3 + $0x60] sm:$0xff] %v2361
          %2426 = vst [vmem:[#allocation3 + $0x68] sm:$0xff] %v2362
          %2427 = vst [vmem:[#allocation3 + $0x70] sm:$0xff] %v2363
          %2428 = vst [vmem:[#allocation3 + $0x78] sm:$0xff] %v2364
          %2429 = vst [vmem:[#allocation3 + $0x80] sm:$0xff] %v2365
          %2430 = vst [vmem:[#allocation3 + $0x88] sm:$0xff] %v2366
          %2431 = vst [vmem:[#allocation3 + $0x90] sm:$0xff] %v2367
          %2432 = vst [vmem:[#allocation3 + $0x98] sm:$0xff] %v2368
          %2433 = vst [vmem:[#allocation3 + $0xa0] sm:$0xff] %v2369
          %2434 = vst [vmem:[#allocation3 + $0xa8] sm:$0xff] %v2370
          %2435 = vst [vmem:[#allocation3 + $0xb0] sm:$0xff] %v2371
          %2436 = vst [vmem:[#allocation3 + $0xb8] sm:$0xff] %v2372
          %2437 = vst [vmem:[#allocation3 + $0xc0] sm:$0xff] %v2373
          %2438 = vst [vmem:[#allocation3 + $0xc8] sm:$0xff] %v2374
          %2439 = vst [vmem:[#allocation3 + $0xd0] sm:$0xff] %v2375
          %2440 = vst [vmem:[#allocation3 + $0xd8] sm:$0xff] %v2376
          %2441 = vst [vmem:[#allocation3 + $0xe0] sm:$0xff] %v2377
          %2442 = vst [vmem:[#allocation3 + $0xe8] sm:$0xff] %v2378
          %2443 = vst [vmem:[#allocation3 + $0xf0] sm:$0xff] %v2379
          %2444 = vst [vmem:[#allocation3 + $0xf8] sm:$0xff] %v2380
          %2445 = vst [vmem:[#allocation3 + $0x100] sm:$0xff] %v2381
          %2446 = vst [vmem:[#allocation3 + $0x108] sm:$0xff] %v2382
          %2447 = vst [vmem:[#allocation3 + $0x110] sm:$0xff] %v2383
          %2448 = vst [vmem:[#allocation3 + $0x118] sm:$0xff] %v2384
          %2449 = vst [vmem:[#allocation3 + $0x120] sm:$0xff] %v2385
          %2450 = vst [vmem:[#allocation3 + $0x128] sm:$0xff] %v2386
          %2451 = vst [vmem:[#allocation3 + $0x130] sm:$0xff] %v2387
          %2452 = vst [vmem:[#allocation3 + $0x138] sm:$0xff] %v2388
          %2453 = vst [vmem:[#allocation3 + $0x140] sm:$0xff] %v2389
          %2454 = vst [vmem:[#allocation3 + $0x148] sm:$0xff] %v2390
          %2455 = vst [vmem:[#allocation3 + $0x150] sm:$0xff] %v2391
          %2456 = vst [vmem:[#allocation3 + $0x158] sm:$0xff] %v2392
          %2457 = vst [vmem:[#allocation3 + $0x160] sm:$0xff] %v2393
          %2458 = vst [vmem:[#allocation3 + $0x168] sm:$0xff] %v2394
          %2459 = vst [vmem:[#allocation3 + $0x170] sm:$0xff] %v2395
          %2460 = vst [vmem:[#allocation3 + $0x178] sm:$0xff] %v2396
          %2461 = vst [vmem:[#allocation3 + $0x180] sm:$0xff] %v2397
          %2462 = vst [vmem:[#allocation3 + $0x188] sm:$0xff] %v2398
          %2463 = vst [vmem:[#allocation3 + $0x190] sm:$0xff] %v2399
          %2464 = vst [vmem:[#allocation3 + $0x198] sm:$0xff] %v2400
          %2465 = vst [vmem:[#allocation3 + $0x1a0] sm:$0xff] %v2401
          %2466 = vst [vmem:[#allocation3 + $0x1a8] sm:$0xff] %v2402
          %2467 = vst [vmem:[#allocation3 + $0x1b0] sm:$0xff] %v2403
          %2468 = vst [vmem:[#allocation3 + $0x1b8] sm:$0xff] %v2404
          %2469 = vst [vmem:[#allocation3 + $0x1c0] sm:$0xff] %v2405
          %2470 = vst [vmem:[#allocation3 + $0x1c8] sm:$0xff] %v2406
          %2471 = vst [vmem:[#allocation3 + $0x1d0] sm:$0xff] %v2407
          %2472 = vst [vmem:[#allocation3 + $0x1d8] sm:$0xff] %v2408
          %2473 = vst [vmem:[#allocation3 + $0x1e0] sm:$0xff] %v2409
          %2474 = vst [vmem:[#allocation3 + $0x1e8] sm:$0xff] %v2410
          %2475 = vst [vmem:[#allocation3 + $0x1f0] sm:$0xff] %v2411
          %2476 = vst [vmem:[#allocation3 + $0x1f8] sm:$0xff] %v2412
        $region48: #{tpu_custom_call.1} parent=35 // pred_fallthru
          _
        // Predicated region
        $region49: #{tpu_custom_call.1} parent=35 // pred_check
          %p2477 = pneg %p323
        $region50: #{tpu_custom_call.1} parent=35 // pred_check_branch
          %2479 = sbr.rel (%p2477) target = $region52
        $region51: #{tpu_custom_call.1} parent=35 // pred_region
          %2480 = vst [vmem:[#allocation4] sm:$0xff] 0.0
          %2481 = vst [vmem:[#allocation4 + $0x8] sm:$0xff] 0.0
          %2482 = vst [vmem:[#allocation4 + $0x10] sm:$0xff] 0.0
          %2483 = vst [vmem:[#allocation4 + $0x18] sm:$0xff] 0.0
          %2484 = vst [vmem:[#allocation4 + $0x20] sm:$0xff] 0.0
          %2485 = vst [vmem:[#allocation4 + $0x28] sm:$0xff] 0.0
          %2486 = vst [vmem:[#allocation4 + $0x30] sm:$0xff] 0.0
          %2487 = vst [vmem:[#allocation4 + $0x38] sm:$0xff] 0.0
          %2488 = vst [vmem:[#allocation4 + $0x40] sm:$0xff] 0.0
          %2489 = vst [vmem:[#allocation4 + $0x48] sm:$0xff] 0.0
          %2490 = vst [vmem:[#allocation4 + $0x50] sm:$0xff] 0.0
          %2491 = vst [vmem:[#allocation4 + $0x58] sm:$0xff] 0.0
          %2492 = vst [vmem:[#allocation4 + $0x60] sm:$0xff] 0.0
          %2493 = vst [vmem:[#allocation4 + $0x68] sm:$0xff] 0.0
          %2494 = vst [vmem:[#allocation4 + $0x70] sm:$0xff] 0.0
          %2495 = vst [vmem:[#allocation4 + $0x78] sm:$0xff] 0.0
          %2496 = vst [vmem:[#allocation4 + $0x80] sm:$0xff] 0.0
          %2497 = vst [vmem:[#allocation4 + $0x88] sm:$0xff] 0.0
          %2498 = vst [vmem:[#allocation4 + $0x90] sm:$0xff] 0.0
          %2499 = vst [vmem:[#allocation4 + $0x98] sm:$0xff] 0.0
          %2500 = vst [vmem:[#allocation4 + $0xa0] sm:$0xff] 0.0
          %2501 = vst [vmem:[#allocation4 + $0xa8] sm:$0xff] 0.0
          %2502 = vst [vmem:[#allocation4 + $0xb0] sm:$0xff] 0.0
          %2503 = vst [vmem:[#allocation4 + $0xb8] sm:$0xff] 0.0
          %2504 = vst [vmem:[#allocation4 + $0xc0] sm:$0xff] 0.0
          %2505 = vst [vmem:[#allocation4 + $0xc8] sm:$0xff] 0.0
          %2506 = vst [vmem:[#allocation4 + $0xd0] sm:$0xff] 0.0
          %2507 = vst [vmem:[#allocation4 + $0xd8] sm:$0xff] 0.0
          %2508 = vst [vmem:[#allocation4 + $0xe0] sm:$0xff] 0.0
          %2509 = vst [vmem:[#allocation4 + $0xe8] sm:$0xff] 0.0
          %2510 = vst [vmem:[#allocation4 + $0xf0] sm:$0xff] 0.0
          %2511 = vst [vmem:[#allocation4 + $0xf8] sm:$0xff] 0.0
          %2512 = vst [vmem:[#allocation4 + $0x100] sm:$0xff] 0.0
          %2513 = vst [vmem:[#allocation4 + $0x108] sm:$0xff] 0.0
          %2514 = vst [vmem:[#allocation4 + $0x110] sm:$0xff] 0.0
          %2515 = vst [vmem:[#allocation4 + $0x118] sm:$0xff] 0.0
          %2516 = vst [vmem:[#allocation4 + $0x120] sm:$0xff] 0.0
          %2517 = vst [vmem:[#allocation4 + $0x128] sm:$0xff] 0.0
          %2518 = vst [vmem:[#allocation4 + $0x130] sm:$0xff] 0.0
          %2519 = vst [vmem:[#allocation4 + $0x138] sm:$0xff] 0.0
          %2520 = vst [vmem:[#allocation4 + $0x140] sm:$0xff] 0.0
          %2521 = vst [vmem:[#allocation4 + $0x148] sm:$0xff] 0.0
          %2522 = vst [vmem:[#allocation4 + $0x150] sm:$0xff] 0.0
          %2523 = vst [vmem:[#allocation4 + $0x158] sm:$0xff] 0.0
          %2524 = vst [vmem:[#allocation4 + $0x160] sm:$0xff] 0.0
          %2525 = vst [vmem:[#allocation4 + $0x168] sm:$0xff] 0.0
          %2526 = vst [vmem:[#allocation4 + $0x170] sm:$0xff] 0.0
          %2527 = vst [vmem:[#allocation4 + $0x178] sm:$0xff] 0.0
          %2528 = vst [vmem:[#allocation4 + $0x180] sm:$0xff] 0.0
          %2529 = vst [vmem:[#allocation4 + $0x188] sm:$0xff] 0.0
          %2530 = vst [vmem:[#allocation4 + $0x190] sm:$0xff] 0.0
          %2531 = vst [vmem:[#allocation4 + $0x198] sm:$0xff] 0.0
          %2532 = vst [vmem:[#allocation4 + $0x1a0] sm:$0xff] 0.0
          %2533 = vst [vmem:[#allocation4 + $0x1a8] sm:$0xff] 0.0
          %2534 = vst [vmem:[#allocation4 + $0x1b0] sm:$0xff] 0.0
          %2535 = vst [vmem:[#allocation4 + $0x1b8] sm:$0xff] 0.0
          %2536 = vst [vmem:[#allocation4 + $0x1c0] sm:$0xff] 0.0
          %2537 = vst [vmem:[#allocation4 + $0x1c8] sm:$0xff] 0.0
          %2538 = vst [vmem:[#allocation4 + $0x1d0] sm:$0xff] 0.0
          %2539 = vst [vmem:[#allocation4 + $0x1d8] sm:$0xff] 0.0
          %2540 = vst [vmem:[#allocation4 + $0x1e0] sm:$0xff] 0.0
          %2541 = vst [vmem:[#allocation4 + $0x1e8] sm:$0xff] 0.0
          %2542 = vst [vmem:[#allocation4 + $0x1f0] sm:$0xff] 0.0
          %2543 = vst [vmem:[#allocation4 + $0x1f8] sm:$0xff] 0.0
          %2544 = vst [vmem:[#allocation4 + $0x200] sm:$0xff] 0.0
          %2545 = vst [vmem:[#allocation4 + $0x208] sm:$0xff] 0.0
          %2546 = vst [vmem:[#allocation4 + $0x210] sm:$0xff] 0.0
          %2547 = vst [vmem:[#allocation4 + $0x218] sm:$0xff] 0.0
          %2548 = vst [vmem:[#allocation4 + $0x220] sm:$0xff] 0.0
          %2549 = vst [vmem:[#allocation4 + $0x228] sm:$0xff] 0.0
          %2550 = vst [vmem:[#allocation4 + $0x230] sm:$0xff] 0.0
          %2551 = vst [vmem:[#allocation4 + $0x238] sm:$0xff] 0.0
          %2552 = vst [vmem:[#allocation4 + $0x240] sm:$0xff] 0.0
          %2553 = vst [vmem:[#allocation4 + $0x248] sm:$0xff] 0.0
          %2554 = vst [vmem:[#allocation4 + $0x250] sm:$0xff] 0.0
          %2555 = vst [vmem:[#allocation4 + $0x258] sm:$0xff] 0.0
          %2556 = vst [vmem:[#allocation4 + $0x260] sm:$0xff] 0.0
          %2557 = vst [vmem:[#allocation4 + $0x268] sm:$0xff] 0.0
          %2558 = vst [vmem:[#allocation4 + $0x270] sm:$0xff] 0.0
          %2559 = vst [vmem:[#allocation4 + $0x278] sm:$0xff] 0.0
          %2560 = vst [vmem:[#allocation4 + $0x280] sm:$0xff] 0.0
          %2561 = vst [vmem:[#allocation4 + $0x288] sm:$0xff] 0.0
          %2562 = vst [vmem:[#allocation4 + $0x290] sm:$0xff] 0.0
          %2563 = vst [vmem:[#allocation4 + $0x298] sm:$0xff] 0.0
          %2564 = vst [vmem:[#allocation4 + $0x2a0] sm:$0xff] 0.0
          %2565 = vst [vmem:[#allocation4 + $0x2a8] sm:$0xff] 0.0
          %2566 = vst [vmem:[#allocation4 + $0x2b0] sm:$0xff] 0.0
          %2567 = vst [vmem:[#allocation4 + $0x2b8] sm:$0xff] 0.0
          %2568 = vst [vmem:[#allocation4 + $0x2c0] sm:$0xff] 0.0
          %2569 = vst [vmem:[#allocation4 + $0x2c8] sm:$0xff] 0.0
          %2570 = vst [vmem:[#allocation4 + $0x2d0] sm:$0xff] 0.0
          %2571 = vst [vmem:[#allocation4 + $0x2d8] sm:$0xff] 0.0
          %2572 = vst [vmem:[#allocation4 + $0x2e0] sm:$0xff] 0.0
          %2573 = vst [vmem:[#allocation4 + $0x2e8] sm:$0xff] 0.0
          %2574 = vst [vmem:[#allocation4 + $0x2f0] sm:$0xff] 0.0
          %2575 = vst [vmem:[#allocation4 + $0x2f8] sm:$0xff] 0.0
          %2576 = vst [vmem:[#allocation4 + $0x300] sm:$0xff] 0.0
          %2577 = vst [vmem:[#allocation4 + $0x308] sm:$0xff] 0.0
          %2578 = vst [vmem:[#allocation4 + $0x310] sm:$0xff] 0.0
          %2579 = vst [vmem:[#allocation4 + $0x318] sm:$0xff] 0.0
          %2580 = vst [vmem:[#allocation4 + $0x320] sm:$0xff] 0.0
          %2581 = vst [vmem:[#allocation4 + $0x328] sm:$0xff] 0.0
          %2582 = vst [vmem:[#allocation4 + $0x330] sm:$0xff] 0.0
          %2583 = vst [vmem:[#allocation4 + $0x338] sm:$0xff] 0.0
          %2584 = vst [vmem:[#allocation4 + $0x340] sm:$0xff] 0.0
          %2585 = vst [vmem:[#allocation4 + $0x348] sm:$0xff] 0.0
          %2586 = vst [vmem:[#allocation4 + $0x350] sm:$0xff] 0.0
          %2587 = vst [vmem:[#allocation4 + $0x358] sm:$0xff] 0.0
          %2588 = vst [vmem:[#allocation4 + $0x360] sm:$0xff] 0.0
          %2589 = vst [vmem:[#allocation4 + $0x368] sm:$0xff] 0.0
          %2590 = vst [vmem:[#allocation4 + $0x370] sm:$0xff] 0.0
          %2591 = vst [vmem:[#allocation4 + $0x378] sm:$0xff] 0.0
          %2592 = vst [vmem:[#allocation4 + $0x380] sm:$0xff] 0.0
          %2593 = vst [vmem:[#allocation4 + $0x388] sm:$0xff] 0.0
          %2594 = vst [vmem:[#allocation4 + $0x390] sm:$0xff] 0.0
          %2595 = vst [vmem:[#allocation4 + $0x398] sm:$0xff] 0.0
          %2596 = vst [vmem:[#allocation4 + $0x3a0] sm:$0xff] 0.0
          %2597 = vst [vmem:[#allocation4 + $0x3a8] sm:$0xff] 0.0
          %2598 = vst [vmem:[#allocation4 + $0x3b0] sm:$0xff] 0.0
          %2599 = vst [vmem:[#allocation4 + $0x3b8] sm:$0xff] 0.0
          %2600 = vst [vmem:[#allocation4 + $0x3c0] sm:$0xff] 0.0
          %2601 = vst [vmem:[#allocation4 + $0x3c8] sm:$0xff] 0.0
          %2602 = vst [vmem:[#allocation4 + $0x3d0] sm:$0xff] 0.0
          %2603 = vst [vmem:[#allocation4 + $0x3d8] sm:$0xff] 0.0
          %2604 = vst [vmem:[#allocation4 + $0x3e0] sm:$0xff] 0.0
          %2605 = vst [vmem:[#allocation4 + $0x3e8] sm:$0xff] 0.0
          %2606 = vst [vmem:[#allocation4 + $0x3f0] sm:$0xff] 0.0
          %2607 = vst [vmem:[#allocation4 + $0x3f8] sm:$0xff] 0.0
        $region52: #{tpu_custom_call.1} parent=35 // pred_fallthru
          _
        %v2608 = vld [vmem:[%s255] sm:$0xff]
        %v2609 = vld [vmem:[%s255 + $0x8] sm:$0xff]
        %v2610 = vld [vmem:[%s255 + $0x10] sm:$0xff]
        %v2611 = vld [vmem:[%s255 + $0x18] sm:$0xff]
        %v2612 = vld [vmem:[%s255 + $0x20] sm:$0xff]
        %v2613 = vld [vmem:[%s255 + $0x28] sm:$0xff]
        %v2614 = vld [vmem:[%s255 + $0x30] sm:$0xff]
        %v2615 = vld [vmem:[%s255 + $0x38] sm:$0xff]
        %v2616 = vld [vmem:[%s255 + $0x40] sm:$0xff]
        %v2617 = vld [vmem:[%s255 + $0x48] sm:$0xff]
        %v2618 = vld [vmem:[%s255 + $0x50] sm:$0xff]
        %v2619 = vld [vmem:[%s255 + $0x58] sm:$0xff]
        %v2620 = vld [vmem:[%s255 + $0x60] sm:$0xff]
        %v2621 = vld [vmem:[%s255 + $0x68] sm:$0xff]
        %v2622 = vld [vmem:[%s255 + $0x70] sm:$0xff]
        %v2623 = vld [vmem:[%s255 + $0x78] sm:$0xff]
        %v2624 = vld [vmem:[%s255 + $0x80] sm:$0xff]
        %v2625 = vld [vmem:[%s255 + $0x88] sm:$0xff]
        %v2626 = vld [vmem:[%s255 + $0x90] sm:$0xff]
        %v2627 = vld [vmem:[%s255 + $0x98] sm:$0xff]
        %v2628 = vld [vmem:[%s255 + $0xa0] sm:$0xff]
        %v2629 = vld [vmem:[%s255 + $0xa8] sm:$0xff]
        %v2630 = vld [vmem:[%s255 + $0xb0] sm:$0xff]
        %v2631 = vld [vmem:[%s255 + $0xb8] sm:$0xff]
        %v2632 = vld [vmem:[%s255 + $0xc0] sm:$0xff]
        %v2633 = vld [vmem:[%s255 + $0xc8] sm:$0xff]
        %v2634 = vld [vmem:[%s255 + $0xd0] sm:$0xff]
        %v2635 = vld [vmem:[%s255 + $0xd8] sm:$0xff]
        %v2636 = vld [vmem:[%s255 + $0xe0] sm:$0xff]
        %v2637 = vld [vmem:[%s255 + $0xe8] sm:$0xff]
        %v2638 = vld [vmem:[%s255 + $0xf0] sm:$0xff]
        %v2639 = vld [vmem:[%s255 + $0xf8] sm:$0xff]
        %v2640 = vld [vmem:[%s224] sm:$0xff]
        %v2641 = vld [vmem:[%s224 + $0x8] sm:$0xff]
        %v2642 = vld [vmem:[%s224 + $0x10] sm:$0xff]
        %v2643 = vld [vmem:[%s224 + $0x18] sm:$0xff]
        %v2644 = vld [vmem:[%s224 + $0x20] sm:$0xff]
        %v2645 = vld [vmem:[%s224 + $0x28] sm:$0xff]
        %v2646 = vld [vmem:[%s224 + $0x30] sm:$0xff]
        %v2647 = vld [vmem:[%s224 + $0x38] sm:$0xff]
        %v2648 = vld [vmem:[%s224 + $0x40] sm:$0xff]
        %v2649 = vld [vmem:[%s224 + $0x48] sm:$0xff]
        %v2650 = vld [vmem:[%s224 + $0x50] sm:$0xff]
        %v2651 = vld [vmem:[%s224 + $0x58] sm:$0xff]
        %v2652 = vld [vmem:[%s224 + $0x60] sm:$0xff]
        %v2653 = vld [vmem:[%s224 + $0x68] sm:$0xff]
        %v2654 = vld [vmem:[%s224 + $0x70] sm:$0xff]
        %v2655 = vld [vmem:[%s224 + $0x78] sm:$0xff]
        %v2656 = vld [vmem:[%s224 + $0x80] sm:$0xff]
        %v2657 = vld [vmem:[%s224 + $0x88] sm:$0xff]
        %v2658 = vld [vmem:[%s224 + $0x90] sm:$0xff]
        %v2659 = vld [vmem:[%s224 + $0x98] sm:$0xff]
        %v2660 = vld [vmem:[%s224 + $0xa0] sm:$0xff]
        %v2661 = vld [vmem:[%s224 + $0xa8] sm:$0xff]
        %v2662 = vld [vmem:[%s224 + $0xb0] sm:$0xff]
        %v2663 = vld [vmem:[%s224 + $0xb8] sm:$0xff]
        %v2664 = vld [vmem:[%s224 + $0xc0] sm:$0xff]
        %v2665 = vld [vmem:[%s224 + $0xc8] sm:$0xff]
        %v2666 = vld [vmem:[%s224 + $0xd0] sm:$0xff]
        %v2667 = vld [vmem:[%s224 + $0xd8] sm:$0xff]
        %v2668 = vld [vmem:[%s224 + $0xe0] sm:$0xff]
        %v2669 = vld [vmem:[%s224 + $0xe8] sm:$0xff]
        %v2670 = vld [vmem:[%s224 + $0xf0] sm:$0xff]
        %v2671 = vld [vmem:[%s224 + $0xf8] sm:$0xff]
        %v2672 = vld [vmem:[#allocation2] sm:$0xff]
        %v2673 = vld [vmem:[#allocation2 + $0x8] sm:$0xff]
        %v2674 = vld [vmem:[#allocation2 + $0x10] sm:$0xff]
        %v2675 = vld [vmem:[#allocation2 + $0x18] sm:$0xff]
        %v2676 = vld [vmem:[#allocation2 + $0x20] sm:$0xff]
        %v2677 = vld [vmem:[#allocation2 + $0x28] sm:$0xff]
        %v2678 = vld [vmem:[#allocation2 + $0x30] sm:$0xff]
        %v2679 = vld [vmem:[#allocation2 + $0x38] sm:$0xff]
        %v2680 = vld [vmem:[#allocation2 + $0x40] sm:$0xff]
        %v2681 = vld [vmem:[#allocation2 + $0x48] sm:$0xff]
        %v2682 = vld [vmem:[#allocation2 + $0x50] sm:$0xff]
        %v2683 = vld [vmem:[#allocation2 + $0x58] sm:$0xff]
        %v2684 = vld [vmem:[#allocation2 + $0x60] sm:$0xff]
        %v2685 = vld [vmem:[#allocation2 + $0x68] sm:$0xff]
        %v2686 = vld [vmem:[#allocation2 + $0x70] sm:$0xff]
        %v2687 = vld [vmem:[#allocation2 + $0x78] sm:$0xff]
        %v2688 = vld [vmem:[#allocation2 + $0x80] sm:$0xff]
        %v2689 = vld [vmem:[#allocation2 + $0x88] sm:$0xff]
        %v2690 = vld [vmem:[#allocation2 + $0x90] sm:$0xff]
        %v2691 = vld [vmem:[#allocation2 + $0x98] sm:$0xff]
        %v2692 = vld [vmem:[#allocation2 + $0xa0] sm:$0xff]
        %v2693 = vld [vmem:[#allocation2 + $0xa8] sm:$0xff]
        %v2694 = vld [vmem:[#allocation2 + $0xb0] sm:$0xff]
        %v2695 = vld [vmem:[#allocation2 + $0xb8] sm:$0xff]
        %v2696 = vld [vmem:[#allocation2 + $0xc0] sm:$0xff]
        %v2697 = vld [vmem:[#allocation2 + $0xc8] sm:$0xff]
        %v2698 = vld [vmem:[#allocation2 + $0xd0] sm:$0xff]
        %v2699 = vld [vmem:[#allocation2 + $0xd8] sm:$0xff]
        %v2700 = vld [vmem:[#allocation2 + $0xe0] sm:$0xff]
        %v2701 = vld [vmem:[#allocation2 + $0xe8] sm:$0xff]
        %v2702 = vld [vmem:[#allocation2 + $0xf0] sm:$0xff]
        %v2703 = vld [vmem:[#allocation2 + $0xf8] sm:$0xff]
        %v2704 = vld [vmem:[#allocation2 + $0x100] sm:$0xff]
        %v2705 = vld [vmem:[#allocation2 + $0x108] sm:$0xff]
        %v2706 = vld [vmem:[#allocation2 + $0x110] sm:$0xff]
        %v2707 = vld [vmem:[#allocation2 + $0x118] sm:$0xff]
        %v2708 = vld [vmem:[#allocation2 + $0x120] sm:$0xff]
        %v2709 = vld [vmem:[#allocation2 + $0x128] sm:$0xff]
        %v2710 = vld [vmem:[#allocation2 + $0x130] sm:$0xff]
        %v2711 = vld [vmem:[#allocation2 + $0x138] sm:$0xff]
        %v2712 = vld [vmem:[#allocation2 + $0x140] sm:$0xff]
        %v2713 = vld [vmem:[#allocation2 + $0x148] sm:$0xff]
        %v2714 = vld [vmem:[#allocation2 + $0x150] sm:$0xff]
        %v2715 = vld [vmem:[#allocation2 + $0x158] sm:$0xff]
        %v2716 = vld [vmem:[#allocation2 + $0x160] sm:$0xff]
        %v2717 = vld [vmem:[#allocation2 + $0x168] sm:$0xff]
        %v2718 = vld [vmem:[#allocation2 + $0x170] sm:$0xff]
        %v2719 = vld [vmem:[#allocation2 + $0x178] sm:$0xff]
        %v2720 = vld [vmem:[#allocation2 + $0x180] sm:$0xff]
        %v2721 = vld [vmem:[#allocation2 + $0x188] sm:$0xff]
        %v2722 = vld [vmem:[#allocation2 + $0x190] sm:$0xff]
        %v2723 = vld [vmem:[#allocation2 + $0x198] sm:$0xff]
        %v2724 = vld [vmem:[#allocation2 + $0x1a0] sm:$0xff]
        %v2725 = vld [vmem:[#allocation2 + $0x1a8] sm:$0xff]
        %v2726 = vld [vmem:[#allocation2 + $0x1b0] sm:$0xff]
        %v2727 = vld [vmem:[#allocation2 + $0x1b8] sm:$0xff]
        %v2728 = vld [vmem:[#allocation2 + $0x1c0] sm:$0xff]
        %v2729 = vld [vmem:[#allocation2 + $0x1c8] sm:$0xff]
        %v2730 = vld [vmem:[#allocation2 + $0x1d0] sm:$0xff]
        %v2731 = vld [vmem:[#allocation2 + $0x1d8] sm:$0xff]
        %v2732 = vld [vmem:[#allocation2 + $0x1e0] sm:$0xff]
        %v2733 = vld [vmem:[#allocation2 + $0x1e8] sm:$0xff]
        %v2734 = vld [vmem:[#allocation2 + $0x1f0] sm:$0xff]
        %v2735 = vld [vmem:[#allocation2 + $0x1f8] sm:$0xff]
        %v2736 = vld [vmem:[#allocation2 + $0x200] sm:$0xff]
        %v2737 = vld [vmem:[#allocation2 + $0x208] sm:$0xff]
        %v2738 = vld [vmem:[#allocation2 + $0x210] sm:$0xff]
        %v2739 = vld [vmem:[#allocation2 + $0x218] sm:$0xff]
        %v2740 = vld [vmem:[#allocation2 + $0x220] sm:$0xff]
        %v2741 = vld [vmem:[#allocation2 + $0x228] sm:$0xff]
        %v2742 = vld [vmem:[#allocation2 + $0x230] sm:$0xff]
        %v2743 = vld [vmem:[#allocation2 + $0x238] sm:$0xff]
        %v2744 = vld [vmem:[#allocation2 + $0x240] sm:$0xff]
        %v2745 = vld [vmem:[#allocation2 + $0x248] sm:$0xff]
        %v2746 = vld [vmem:[#allocation2 + $0x250] sm:$0xff]
        %v2747 = vld [vmem:[#allocation2 + $0x258] sm:$0xff]
        %v2748 = vld [vmem:[#allocation2 + $0x260] sm:$0xff]
        %v2749 = vld [vmem:[#allocation2 + $0x268] sm:$0xff]
        %v2750 = vld [vmem:[#allocation2 + $0x270] sm:$0xff]
        %v2751 = vld [vmem:[#allocation2 + $0x278] sm:$0xff]
        %v2752 = vld [vmem:[#allocation2 + $0x280] sm:$0xff]
        %v2753 = vld [vmem:[#allocation2 + $0x288] sm:$0xff]
        %v2754 = vld [vmem:[#allocation2 + $0x290] sm:$0xff]
        %v2755 = vld [vmem:[#allocation2 + $0x298] sm:$0xff]
        %v2756 = vld [vmem:[#allocation2 + $0x2a0] sm:$0xff]
        %v2757 = vld [vmem:[#allocation2 + $0x2a8] sm:$0xff]
        %v2758 = vld [vmem:[#allocation2 + $0x2b0] sm:$0xff]
        %v2759 = vld [vmem:[#allocation2 + $0x2b8] sm:$0xff]
        %v2760 = vld [vmem:[#allocation2 + $0x2c0] sm:$0xff]
        %v2761 = vld [vmem:[#allocation2 + $0x2c8] sm:$0xff]
        %v2762 = vld [vmem:[#allocation2 + $0x2d0] sm:$0xff]
        %v2763 = vld [vmem:[#allocation2 + $0x2d8] sm:$0xff]
        %v2764 = vld [vmem:[#allocation2 + $0x2e0] sm:$0xff]
        %v2765 = vld [vmem:[#allocation2 + $0x2e8] sm:$0xff]
        %v2766 = vld [vmem:[#allocation2 + $0x2f0] sm:$0xff]
        %v2767 = vld [vmem:[#allocation2 + $0x2f8] sm:$0xff]
        %v2768 = vld [vmem:[#allocation2 + $0x300] sm:$0xff]
        %v2769 = vld [vmem:[#allocation2 + $0x308] sm:$0xff]
        %v2770 = vld [vmem:[#allocation2 + $0x310] sm:$0xff]
        %v2771 = vld [vmem:[#allocation2 + $0x318] sm:$0xff]
        %v2772 = vld [vmem:[#allocation2 + $0x320] sm:$0xff]
        %v2773 = vld [vmem:[#allocation2 + $0x328] sm:$0xff]
        %v2774 = vld [vmem:[#allocation2 + $0x330] sm:$0xff]
        %v2775 = vld [vmem:[#allocation2 + $0x338] sm:$0xff]
        %v2776 = vld [vmem:[#allocation2 + $0x340] sm:$0xff]
        %v2777 = vld [vmem:[#allocation2 + $0x348] sm:$0xff]
        %v2778 = vld [vmem:[#allocation2 + $0x350] sm:$0xff]
        %v2779 = vld [vmem:[#allocation2 + $0x358] sm:$0xff]
        %v2780 = vld [vmem:[#allocation2 + $0x360] sm:$0xff]
        %v2781 = vld [vmem:[#allocation2 + $0x368] sm:$0xff]
        %v2782 = vld [vmem:[#allocation2 + $0x370] sm:$0xff]
        %v2783 = vld [vmem:[#allocation2 + $0x378] sm:$0xff]
        %v2784 = vld [vmem:[#allocation2 + $0x380] sm:$0xff]
        %v2785 = vld [vmem:[#allocation2 + $0x388] sm:$0xff]
        %v2786 = vld [vmem:[#allocation2 + $0x390] sm:$0xff]
        %v2787 = vld [vmem:[#allocation2 + $0x398] sm:$0xff]
        %v2788 = vld [vmem:[#allocation2 + $0x3a0] sm:$0xff]
        %v2789 = vld [vmem:[#allocation2 + $0x3a8] sm:$0xff]
        %v2790 = vld [vmem:[#allocation2 + $0x3b0] sm:$0xff]
        %v2791 = vld [vmem:[#allocation2 + $0x3b8] sm:$0xff]
        %v2792 = vld [vmem:[#allocation2 + $0x3c0] sm:$0xff]
        %v2793 = vld [vmem:[#allocation2 + $0x3c8] sm:$0xff]
        %v2794 = vld [vmem:[#allocation2 + $0x3d0] sm:$0xff]
        %v2795 = vld [vmem:[#allocation2 + $0x3d8] sm:$0xff]
        %v2796 = vld [vmem:[#allocation2 + $0x3e0] sm:$0xff]
        %v2797 = vld [vmem:[#allocation2 + $0x3e8] sm:$0xff]
        %v2798 = vld [vmem:[#allocation2 + $0x3f0] sm:$0xff]
        %v2799 = vld [vmem:[#allocation2 + $0x3f8] sm:$0xff]
        %v2800 = vpack.c.bf16 %v2676, %v2672
        %v2801 = vpack.c.bf16 %v2677, %v2673
        %v2802 = vpack.c.bf16 %v2678, %v2674
        %v2803 = vpack.c.bf16 %v2679, %v2675
        %v2804 = vpack.c.bf16 %v2684, %v2680
        %v2805 = vpack.c.bf16 %v2685, %v2681
        %v2806 = vpack.c.bf16 %v2686, %v2682
        %v2807 = vpack.c.bf16 %v2687, %v2683
        %v2808 = vpack.c.bf16 %v2692, %v2688
        %v2809 = vpack.c.bf16 %v2693, %v2689
        %v2810 = vpack.c.bf16 %v2694, %v2690
        %v2811 = vpack.c.bf16 %v2695, %v2691
        %v2812 = vpack.c.bf16 %v2700, %v2696
        %v2813 = vpack.c.bf16 %v2701, %v2697
        %v2814 = vpack.c.bf16 %v2702, %v2698
        %v2815 = vpack.c.bf16 %v2703, %v2699
        %v2816 = vpack.c.bf16 %v2708, %v2704
        %v2817 = vpack.c.bf16 %v2709, %v2705
        %v2818 = vpack.c.bf16 %v2710, %v2706
        %v2819 = vpack.c.bf16 %v2711, %v2707
        %v2820 = vpack.c.bf16 %v2716, %v2712
        %v2821 = vpack.c.bf16 %v2717, %v2713
        %v2822 = vpack.c.bf16 %v2718, %v2714
        %v2823 = vpack.c.bf16 %v2719, %v2715
        %v2824 = vpack.c.bf16 %v2724, %v2720
        %v2825 = vpack.c.bf16 %v2725, %v2721
        %v2826 = vpack.c.bf16 %v2726, %v2722
        %v2827 = vpack.c.bf16 %v2727, %v2723
        %v2828 = vpack.c.bf16 %v2732, %v2728
        %v2829 = vpack.c.bf16 %v2733, %v2729
        %v2830 = vpack.c.bf16 %v2734, %v2730
        %v2831 = vpack.c.bf16 %v2735, %v2731
        %v2832 = vpack.c.bf16 %v2740, %v2736
        %v2833 = vpack.c.bf16 %v2741, %v2737
        %v2834 = vpack.c.bf16 %v2742, %v2738
        %v2835 = vpack.c.bf16 %v2743, %v2739
        %v2836 = vpack.c.bf16 %v2748, %v2744
        %v2837 = vpack.c.bf16 %v2749, %v2745
        %v2838 = vpack.c.bf16 %v2750, %v2746
        %v2839 = vpack.c.bf16 %v2751, %v2747
        %v2840 = vpack.c.bf16 %v2756, %v2752
        %v2841 = vpack.c.bf16 %v2757, %v2753
        %v2842 = vpack.c.bf16 %v2758, %v2754
        %v2843 = vpack.c.bf16 %v2759, %v2755
        %v2844 = vpack.c.bf16 %v2764, %v2760
        %v2845 = vpack.c.bf16 %v2765, %v2761
        %v2846 = vpack.c.bf16 %v2766, %v2762
        %v2847 = vpack.c.bf16 %v2767, %v2763
        %v2848 = vpack.c.bf16 %v2772, %v2768
        %v2849 = vpack.c.bf16 %v2773, %v2769
        %v2850 = vpack.c.bf16 %v2774, %v2770
        %v2851 = vpack.c.bf16 %v2775, %v2771
        %v2852 = vpack.c.bf16 %v2780, %v2776
        %v2853 = vpack.c.bf16 %v2781, %v2777
        %v2854 = vpack.c.bf16 %v2782, %v2778
        %v2855 = vpack.c.bf16 %v2783, %v2779
        %v2856 = vpack.c.bf16 %v2788, %v2784
        %v2857 = vpack.c.bf16 %v2789, %v2785
        %v2858 = vpack.c.bf16 %v2790, %v2786
        %v2859 = vpack.c.bf16 %v2791, %v2787
        %v2860 = vpack.c.bf16 %v2796, %v2792
        %v2861 = vpack.c.bf16 %v2797, %v2793
        %v2862 = vpack.c.bf16 %v2798, %v2794
        %v2863 = vpack.c.bf16 %v2799, %v2795
        %v2896 = vunpack.c.l.b16 %v2608
        %v2897 = vunpack.c.h.b16 %v2608
        %v2898 = vunpack.c.l.b16 %v2609
        %v2899 = vunpack.c.h.b16 %v2609
        %v2900 = vunpack.c.l.b16 %v2610
        %v2901 = vunpack.c.h.b16 %v2610
        %v2902 = vunpack.c.l.b16 %v2611
        %v2903 = vunpack.c.h.b16 %v2611
        %v2904 = vunpack.c.l.b16 %v2612
        %v2905 = vunpack.c.h.b16 %v2612
        %v2906 = vunpack.c.l.b16 %v2613
        %v2907 = vunpack.c.h.b16 %v2613
        %v2908 = vunpack.c.l.b16 %v2614
        %v2909 = vunpack.c.h.b16 %v2614
        %v2910 = vunpack.c.l.b16 %v2615
        %v2911 = vunpack.c.h.b16 %v2615
        %v2912 = vunpack.c.l.b16 %v2616
        %v2913 = vunpack.c.h.b16 %v2616
        %v2914 = vunpack.c.l.b16 %v2617
        %v2915 = vunpack.c.h.b16 %v2617
        %v2916 = vunpack.c.l.b16 %v2618
        %v2917 = vunpack.c.h.b16 %v2618
        %v2918 = vunpack.c.l.b16 %v2619
        %v2919 = vunpack.c.h.b16 %v2619
        %v2920 = vunpack.c.l.b16 %v2620
        %v2921 = vunpack.c.h.b16 %v2620
        %v2922 = vunpack.c.l.b16 %v2621
        %v2923 = vunpack.c.h.b16 %v2621
        %v2924 = vunpack.c.l.b16 %v2622
        %v2925 = vunpack.c.h.b16 %v2622
        %v2926 = vunpack.c.l.b16 %v2623
        %v2927 = vunpack.c.h.b16 %v2623
        %v2928 = vunpack.c.l.b16 %v2624
        %v2929 = vunpack.c.h.b16 %v2624
        %v2930 = vunpack.c.l.b16 %v2625
        %v2931 = vunpack.c.h.b16 %v2625
        %v2932 = vunpack.c.l.b16 %v2626
        %v2933 = vunpack.c.h.b16 %v2626
        %v2934 = vunpack.c.l.b16 %v2627
        %v2935 = vunpack.c.h.b16 %v2627
        %v2936 = vunpack.c.l.b16 %v2628
        %v2937 = vunpack.c.h.b16 %v2628
        %v2938 = vunpack.c.l.b16 %v2629
        %v2939 = vunpack.c.h.b16 %v2629
        %v2940 = vunpack.c.l.b16 %v2630
        %v2941 = vunpack.c.h.b16 %v2630
        %v2942 = vunpack.c.l.b16 %v2631
        %v2943 = vunpack.c.h.b16 %v2631
        %v2944 = vunpack.c.l.b16 %v2632
        %v2945 = vunpack.c.h.b16 %v2632
        %v2946 = vunpack.c.l.b16 %v2633
        %v2947 = vunpack.c.h.b16 %v2633
        %v2948 = vunpack.c.l.b16 %v2634
        %v2949 = vunpack.c.h.b16 %v2634
        %v2950 = vunpack.c.l.b16 %v2635
        %v2951 = vunpack.c.h.b16 %v2635
        %v2952 = vunpack.c.l.b16 %v2636
        %v2953 = vunpack.c.h.b16 %v2636
        %v2954 = vunpack.c.l.b16 %v2637
        %v2955 = vunpack.c.h.b16 %v2637
        %v2956 = vunpack.c.l.b16 %v2638
        %v2957 = vunpack.c.h.b16 %v2638
        %v2958 = vunpack.c.l.b16 %v2639
        %v2959 = vunpack.c.h.b16 %v2639
        %v2960 = vpack.c.b16 %v2898, %v2896
        %v2961 = vpack.c.b16 %v2899, %v2897
        %v2962 = vpack.c.b16 %v2902, %v2900
        %v2963 = vpack.c.b16 %v2903, %v2901
        %v2964 = vpack.c.b16 %v2906, %v2904
        %v2965 = vpack.c.b16 %v2907, %v2905
        %v2966 = vpack.c.b16 %v2910, %v2908
        %v2967 = vpack.c.b16 %v2911, %v2909
        %v2968 = vpack.c.b16 %v2914, %v2912
        %v2969 = vpack.c.b16 %v2915, %v2913
        %v2970 = vpack.c.b16 %v2918, %v2916
        %v2971 = vpack.c.b16 %v2919, %v2917
        %v2972 = vpack.c.b16 %v2922, %v2920
        %v2973 = vpack.c.b16 %v2923, %v2921
        %v2974 = vpack.c.b16 %v2926, %v2924
        %v2975 = vpack.c.b16 %v2927, %v2925
        %v2976 = vpack.c.b16 %v2930, %v2928
        %v2977 = vpack.c.b16 %v2931, %v2929
        %v2978 = vpack.c.b16 %v2934, %v2932
        %v2979 = vpack.c.b16 %v2935, %v2933
        %v2980 = vpack.c.b16 %v2938, %v2936
        %v2981 = vpack.c.b16 %v2939, %v2937
        %v2982 = vpack.c.b16 %v2942, %v2940
        %v2983 = vpack.c.b16 %v2943, %v2941
        %v2984 = vpack.c.b16 %v2946, %v2944
        %v2985 = vpack.c.b16 %v2947, %v2945
        %v2986 = vpack.c.b16 %v2950, %v2948
        %v2987 = vpack.c.b16 %v2951, %v2949
        %v2988 = vpack.c.b16 %v2954, %v2952
        %v2989 = vpack.c.b16 %v2955, %v2953
        %v2990 = vpack.c.b16 %v2958, %v2956
        %v2991 = vpack.c.b16 %v2959, %v2957
        %3024 = vmatprep.subr.bf16.mxu0 %v2801
        %3025 = vmatpush1.bf16.msra.mxu0 %v2800
        %3026 = vmatprep.subr.bf16.mxu0 %v2805
        %3027 = vmatpush1.bf16.msra.mxu0 %v2804
        %3028 = vmatprep.subr.bf16.mxu0 %v2809
        %3029 = vmatpush1.bf16.msra.mxu0 %v2808
        %3030 = vmatprep.subr.bf16.mxu0 %v2813
        %3031 = vmatpush1.bf16.msra.mxu0 %v2812
        %3032 = vmatprep.subr.bf16.mxu0 %v2817
        %3033 = vmatpush1.bf16.msra.mxu0 %v2816
        %3034 = vmatprep.subr.bf16.mxu0 %v2821
        %3035 = vmatpush1.bf16.msra.mxu0 %v2820
        %3036 = vmatprep.subr.bf16.mxu0 %v2825
        %3037 = vmatpush1.bf16.msra.mxu0 %v2824
        %3038 = vmatprep.subr.bf16.mxu0 %v2829
        %3039 = vmatpush1.bf16.msra.mxu0 %v2828
        %3040 = vmatprep.subr.bf16.mxu0 %v2833
        %3041 = vmatpush1.bf16.msra.mxu0 %v2832
        %3042 = vmatprep.subr.bf16.mxu0 %v2837
        %3043 = vmatpush1.bf16.msra.mxu0 %v2836
        %3044 = vmatprep.subr.bf16.mxu0 %v2841
        %3045 = vmatpush1.bf16.msra.mxu0 %v2840
        %3046 = vmatprep.subr.bf16.mxu0 %v2845
        %3047 = vmatpush1.bf16.msra.mxu0 %v2844
        %3048 = vmatprep.subr.bf16.mxu0 %v2849
        %3049 = vmatpush1.bf16.msra.mxu0 %v2848
        %3050 = vmatprep.subr.bf16.mxu0 %v2853
        %3051 = vmatpush1.bf16.msra.mxu0 %v2852
        %3052 = vmatprep.subr.bf16.mxu0 %v2857
        %3053 = vmatpush1.bf16.msra.mxu0 %v2856
        %3054 = vmatprep.subr.bf16.mxu0 %v2861
        %3055 = vmatpush1.bf16.msra.mxu0 %v2860
        %3056 = vmatprep.mubr.bf16.mxu0 %v2961
        %3057 = vmatmul.mubr.bf16.gmra.mrb[0].mxu0 %v2960
        %v3058 = vpop.f32.mrb[0].mxu0
        %v3059 = vadd.f32 0.0, %v3058
        %v3060 = vpop.f32.mrb[0].mxu0
        %v3061 = vadd.f32 0.0, %v3060
        %v3062 = vpop.f32.mrb[0].mxu0
        %v3063 = vadd.f32 0.0, %v3062
        %v3064 = vpop.f32.mrb[0].mxu0
        %v3065 = vadd.f32 0.0, %v3064
        %3066 = vmatprep.mubr.bf16.mxu0 %v2963
        %3067 = vmatmul.mubr.bf16.gmra.mrb[0].mxu0 %v2962
        %v3068 = vpop.f32.mrb[0].mxu0
        %v3069 = vadd.f32 0.0, %v3068
        %v3070 = vpop.f32.mrb[0].mxu0
        %v3071 = vadd.f32 0.0, %v3070
        %v3072 = vpop.f32.mrb[0].mxu0
        %v3073 = vadd.f32 0.0, %v3072
        %v3074 = vpop.f32.mrb[0].mxu0
        %v3075 = vadd.f32 0.0, %v3074
        %3076 = vmatprep.mubr.bf16.mxu0 %v2965
        %3077 = vmatmul.mubr.bf16.gmra.mrb[0].mxu0 %v2964
        %v3078 = vpop.f32.mrb[0].mxu0
        %v3079 = vadd.f32 0.0, %v3078
        %v3080 = vpop.f32.mrb[0].mxu0
        %v3081 = vadd.f32 0.0, %v3080
        %v3082 = vpop.f32.mrb[0].mxu0
        %v3083 = vadd.f32 0.0, %v3082
        %v3084 = vpop.f32.mrb[0].mxu0
        %v3085 = vadd.f32 0.0, %v3084
        %3086 = vmatprep.mubr.bf16.mxu0 %v2967
        %3087 = vmatmul.mubr.bf16.gmra.mrb[0].mxu0 %v2966
        %v3088 = vpop.f32.mrb[0].mxu0
        %v3089 = vadd.f32 0.0, %v3088
        %v3090 = vpop.f32.mrb[0].mxu0
        %v3091 = vadd.f32 0.0, %v3090
        %v3092 = vpop.f32.mrb[0].mxu0
        %v3093 = vadd.f32 0.0, %v3092
        %v3094 = vpop.f32.mrb[0].mxu0
        %v3095 = vadd.f32 0.0, %v3094
        %3096 = vmatprep.mubr.bf16.mxu0 %v2969
        %3097 = vmatmul.mubr.bf16.gmra.mrb[0].mxu0 %v2968
        %v3098 = vpop.f32.mrb[0].mxu0
        %v3099 = vadd.f32 0.0, %v3098
        %v3100 = vpop.f32.mrb[0].mxu0
        %v3101 = vadd.f32 0.0, %v3100
        %v3102 = vpop.f32.mrb[0].mxu0
        %v3103 = vadd.f32 0.0, %v3102
        %v3104 = vpop.f32.mrb[0].mxu0
        %v3105 = vadd.f32 0.0, %v3104
        %3106 = vmatprep.mubr.bf16.mxu0 %v2971
        %3107 = vmatmul.mubr.bf16.gmra.mrb[0].mxu0 %v2970
        %v3108 = vpop.f32.mrb[0].mxu0
        %v3109 = vadd.f32 0.0, %v3108
        %v3110 = vpop.f32.mrb[0].mxu0
        %v3111 = vadd.f32 0.0, %v3110
        %v3112 = vpop.f32.mrb[0].mxu0
        %v3113 = vadd.f32 0.0, %v3112
        %v3114 = vpop.f32.mrb[0].mxu0
        %v3115 = vadd.f32 0.0, %v3114
        %3116 = vmatprep.mubr.bf16.mxu0 %v2973
        %3117 = vmatmul.mubr.bf16.gmra.mrb[0].mxu0 %v2972
        %v3118 = vpop.f32.mrb[0].mxu0
        %v3119 = vadd.f32 0.0, %v3118
        %v3120 = vpop.f32.mrb[0].mxu0
        %v3121 = vadd.f32 0.0, %v3120
        %v3122 = vpop.f32.mrb[0].mxu0
        %v3123 = vadd.f32 0.0, %v3122
        %v3124 = vpop.f32.mrb[0].mxu0
        %v3125 = vadd.f32 0.0, %v3124
        %3126 = vmatprep.mubr.bf16.mxu0 %v2975
        %3127 = vmatmul.mubr.bf16.gmra.mrb[0].mxu0 %v2974
        %v3128 = vpop.f32.mrb[0].mxu0
        %v3129 = vadd.f32 0.0, %v3128
        %v3130 = vpop.f32.mrb[0].mxu0
        %v3131 = vadd.f32 0.0, %v3130
        %v3132 = vpop.f32.mrb[0].mxu0
        %v3133 = vadd.f32 0.0, %v3132
        %v3134 = vpop.f32.mrb[0].mxu0
        %v3135 = vadd.f32 0.0, %v3134
        %3136 = vmatprep.mubr.bf16.mxu0 %v2977
        %3137 = vmatmul.mubr.bf16.gmra.mrb[0].mxu0 %v2976
        %v3138 = vpop.f32.mrb[0].mxu0
        %v3139 = vadd.f32 0.0, %v3138
        %v3140 = vpop.f32.mrb[0].mxu0
        %v3141 = vadd.f32 0.0, %v3140
        %v3142 = vpop.f32.mrb[0].mxu0
        %v3143 = vadd.f32 0.0, %v3142
        %v3144 = vpop.f32.mrb[0].mxu0
        %v3145 = vadd.f32 0.0, %v3144
        %3146 = vmatprep.mubr.bf16.mxu0 %v2979
        %3147 = vmatmul.mubr.bf16.gmra.mrb[0].mxu0 %v2978
        %v3148 = vpop.f32.mrb[0].mxu0
        %v3149 = vadd.f32 0.0, %v3148
        %v3150 = vpop.f32.mrb[0].mxu0
        %v3151 = vadd.f32 0.0, %v3150
        %v3152 = vpop.f32.mrb[0].mxu0
        %v3153 = vadd.f32 0.0, %v3152
        %v3154 = vpop.f32.mrb[0].mxu0
        %v3155 = vadd.f32 0.0, %v3154
        %3156 = vmatprep.mubr.bf16.mxu0 %v2981
        %3157 = vmatmul.mubr.bf16.gmra.mrb[0].mxu0 %v2980
        %v3158 = vpop.f32.mrb[0].mxu0
        %v3159 = vadd.f32 0.0, %v3158
        %v3160 = vpop.f32.mrb[0].mxu0
        %v3161 = vadd.f32 0.0, %v3160
        %v3162 = vpop.f32.mrb[0].mxu0
        %v3163 = vadd.f32 0.0, %v3162
        %v3164 = vpop.f32.mrb[0].mxu0
        %v3165 = vadd.f32 0.0, %v3164
        %3166 = vmatprep.mubr.bf16.mxu0 %v2983
        %3167 = vmatmul.mubr.bf16.gmra.mrb[0].mxu0 %v2982
        %v3168 = vpop.f32.mrb[0].mxu0
        %v3169 = vadd.f32 0.0, %v3168
        %v3170 = vpop.f32.mrb[0].mxu0
        %v3171 = vadd.f32 0.0, %v3170
        %v3172 = vpop.f32.mrb[0].mxu0
        %v3173 = vadd.f32 0.0, %v3172
        %v3174 = vpop.f32.mrb[0].mxu0
        %v3175 = vadd.f32 0.0, %v3174
        %3176 = vmatprep.mubr.bf16.mxu0 %v2985
        %3177 = vmatmul.mubr.bf16.gmra.mrb[0].mxu0 %v2984
        %v3178 = vpop.f32.mrb[0].mxu0
        %v3179 = vadd.f32 0.0, %v3178
        %v3180 = vpop.f32.mrb[0].mxu0
        %v3181 = vadd.f32 0.0, %v3180
        %v3182 = vpop.f32.mrb[0].mxu0
        %v3183 = vadd.f32 0.0, %v3182
        %v3184 = vpop.f32.mrb[0].mxu0
        %v3185 = vadd.f32 0.0, %v3184
        %3186 = vmatprep.mubr.bf16.mxu0 %v2987
        %3187 = vmatmul.mubr.bf16.gmra.mrb[0].mxu0 %v2986
        %v3188 = vpop.f32.mrb[0].mxu0
        %v3189 = vadd.f32 0.0, %v3188
        %v3190 = vpop.f32.mrb[0].mxu0
        %v3191 = vadd.f32 0.0, %v3190
        %v3192 = vpop.f32.mrb[0].mxu0
        %v3193 = vadd.f32 0.0, %v3192
        %v3194 = vpop.f32.mrb[0].mxu0
        %v3195 = vadd.f32 0.0, %v3194
        %3196 = vmatprep.mubr.bf16.mxu0 %v2989
        %3197 = vmatmul.mubr.bf16.gmra.mrb[0].mxu0 %v2988
        %v3198 = vpop.f32.mrb[0].mxu0
        %v3199 = vadd.f32 0.0, %v3198
        %v3200 = vpop.f32.mrb[0].mxu0
        %v3201 = vadd.f32 0.0, %v3200
        %v3202 = vpop.f32.mrb[0].mxu0
        %v3203 = vadd.f32 0.0, %v3202
        %v3204 = vpop.f32.mrb[0].mxu0
        %v3205 = vadd.f32 0.0, %v3204
        %3206 = vmatprep.mubr.bf16.mxu0 %v2991
        %3207 = vmatmul.mubr.bf16.gmra.mrb[0].mxu0 %v2990
        %v3208 = vpop.f32.mrb[0].mxu0
        %v3209 = vadd.f32 0.0, %v3208
        %v3210 = vpop.f32.mrb[0].mxu0
        %v3211 = vadd.f32 0.0, %v3210
        %v3212 = vpop.f32.mrb[0].mxu0
        %v3213 = vadd.f32 0.0, %v3212
        %v3214 = vpop.f32.mrb[0].mxu0
        %v3215 = vadd.f32 0.0, %v3214
        %3216 = vdwg.mxu0
        %3217 = vmatprep.subr.bf16.mxu0 %v2803
        %3218 = vmatpush1.bf16.msra.mxu0 %v2802
        %3219 = vmatprep.subr.bf16.mxu0 %v2807
        %3220 = vmatpush1.bf16.msra.mxu0 %v2806
        %3221 = vmatprep.subr.bf16.mxu0 %v2811
        %3222 = vmatpush1.bf16.msra.mxu0 %v2810
        %3223 = vmatprep.subr.bf16.mxu0 %v2815
        %3224 = vmatpush1.bf16.msra.mxu0 %v2814
        %3225 = vmatprep.subr.bf16.mxu0 %v2819
        %3226 = vmatpush1.bf16.msra.mxu0 %v2818
        %3227 = vmatprep.subr.bf16.mxu0 %v2823
        %3228 = vmatpush1.bf16.msra.mxu0 %v2822
        %3229 = vmatprep.subr.bf16.mxu0 %v2827
        %3230 = vmatpush1.bf16.msra.mxu0 %v2826
        %3231 = vmatprep.subr.bf16.mxu0 %v2831
        %3232 = vmatpush1.bf16.msra.mxu0 %v2830
        %3233 = vmatprep.subr.bf16.mxu0 %v2835
        %3234 = vmatpush1.bf16.msra.mxu0 %v2834
        %3235 = vmatprep.subr.bf16.mxu0 %v2839
        %3236 = vmatpush1.bf16.msra.mxu0 %v2838
        %3237 = vmatprep.subr.bf16.mxu0 %v2843
        %3238 = vmatpush1.bf16.msra.mxu0 %v2842
        %3239 = vmatprep.subr.bf16.mxu0 %v2847
        %3240 = vmatpush1.bf16.msra.mxu0 %v2846
        %3241 = vmatprep.subr.bf16.mxu0 %v2851
        %3242 = vmatpush1.bf16.msra.mxu0 %v2850
        %3243 = vmatprep.subr.bf16.mxu0 %v2855
        %3244 = vmatpush1.bf16.msra.mxu0 %v2854
        %3245 = vmatprep.subr.bf16.mxu0 %v2859
        %3246 = vmatpush1.bf16.msra.mxu0 %v2858
        %3247 = vmatprep.subr.bf16.mxu0 %v2863
        %3248 = vmatpush1.bf16.msra.mxu0 %v2862
        %3249 = vmatprep.mubr.bf16.mxu0 %v2961
        %3250 = vmatmul.mubr.bf16.gmra.mrb[0].mxu0 %v2960
        %v3251 = vpop.f32.mrb[0].mxu0
        %v3252 = vadd.f32 0.0, %v3251
        %v3253 = vpop.f32.mrb[0].mxu0
        %v3254 = vadd.f32 0.0, %v3253
        %v3255 = vpop.f32.mrb[0].mxu0
        %v3256 = vadd.f32 0.0, %v3255
        %v3257 = vpop.f32.mrb[0].mxu0
        %v3258 = vadd.f32 0.0, %v3257
        %3259 = vmatprep.mubr.bf16.mxu0 %v2963
        %3260 = vmatmul.mubr.bf16.gmra.mrb[0].mxu0 %v2962
        %v3261 = vpop.f32.mrb[0].mxu0
        %v3262 = vadd.f32 0.0, %v3261
        %v3263 = vpop.f32.mrb[0].mxu0
        %v3264 = vadd.f32 0.0, %v3263
        %v3265 = vpop.f32.mrb[0].mxu0
        %v3266 = vadd.f32 0.0, %v3265
        %v3267 = vpop.f32.mrb[0].mxu0
        %v3268 = vadd.f32 0.0, %v3267
        %3269 = vmatprep.mubr.bf16.mxu0 %v2965
        %3270 = vmatmul.mubr.bf16.gmra.mrb[0].mxu0 %v2964
        %v3271 = vpop.f32.mrb[0].mxu0
        %v3272 = vadd.f32 0.0, %v3271
        %v3273 = vpop.f32.mrb[0].mxu0
        %v3274 = vadd.f32 0.0, %v3273
        %v3275 = vpop.f32.mrb[0].mxu0
        %v3276 = vadd.f32 0.0, %v3275
        %v3277 = vpop.f32.mrb[0].mxu0
        %v3278 = vadd.f32 0.0, %v3277
        %3279 = vmatprep.mubr.bf16.mxu0 %v2967
        %3280 = vmatmul.mubr.bf16.gmra.mrb[0].mxu0 %v2966
        %v3281 = vpop.f32.mrb[0].mxu0
        %v3282 = vadd.f32 0.0, %v3281
        %v3283 = vpop.f32.mrb[0].mxu0
        %v3284 = vadd.f32 0.0, %v3283
        %v3285 = vpop.f32.mrb[0].mxu0
        %v3286 = vadd.f32 0.0, %v3285
        %v3287 = vpop.f32.mrb[0].mxu0
        %v3288 = vadd.f32 0.0, %v3287
        %3289 = vmatprep.mubr.bf16.mxu0 %v2969
        %3290 = vmatmul.mubr.bf16.gmra.mrb[0].mxu0 %v2968
        %v3291 = vpop.f32.mrb[0].mxu0
        %v3292 = vadd.f32 0.0, %v3291
        %v3293 = vpop.f32.mrb[0].mxu0
        %v3294 = vadd.f32 0.0, %v3293
        %v3295 = vpop.f32.mrb[0].mxu0
        %v3296 = vadd.f32 0.0, %v3295
        %v3297 = vpop.f32.mrb[0].mxu0
        %v3298 = vadd.f32 0.0, %v3297
        %3299 = vmatprep.mubr.bf16.mxu0 %v2971
        %3300 = vmatmul.mubr.bf16.gmra.mrb[0].mxu0 %v2970
        %v3301 = vpop.f32.mrb[0].mxu0
        %v3302 = vadd.f32 0.0, %v3301
        %v3303 = vpop.f32.mrb[0].mxu0
        %v3304 = vadd.f32 0.0, %v3303
        %v3305 = vpop.f32.mrb[0].mxu0
        %v3306 = vadd.f32 0.0, %v3305
        %v3307 = vpop.f32.mrb[0].mxu0
        %v3308 = vadd.f32 0.0, %v3307
        %3309 = vmatprep.mubr.bf16.mxu0 %v2973
        %3310 = vmatmul.mubr.bf16.gmra.mrb[0].mxu0 %v2972
        %v3311 = vpop.f32.mrb[0].mxu0
        %v3312 = vadd.f32 0.0, %v3311
        %v3313 = vpop.f32.mrb[0].mxu0
        %v3314 = vadd.f32 0.0, %v3313
        %v3315 = vpop.f32.mrb[0].mxu0
        %v3316 = vadd.f32 0.0, %v3315
        %v3317 = vpop.f32.mrb[0].mxu0
        %v3318 = vadd.f32 0.0, %v3317
        %3319 = vmatprep.mubr.bf16.mxu0 %v2975
        %3320 = vmatmul.mubr.bf16.gmra.mrb[0].mxu0 %v2974
        %v3321 = vpop.f32.mrb[0].mxu0
        %v3322 = vadd.f32 0.0, %v3321
        %v3323 = vpop.f32.mrb[0].mxu0
        %v3324 = vadd.f32 0.0, %v3323
        %v3325 = vpop.f32.mrb[0].mxu0
        %v3326 = vadd.f32 0.0, %v3325
        %v3327 = vpop.f32.mrb[0].mxu0
        %v3328 = vadd.f32 0.0, %v3327
        %3329 = vmatprep.mubr.bf16.mxu0 %v2977
        %3330 = vmatmul.mubr.bf16.gmra.mrb[0].mxu0 %v2976
        %v3331 = vpop.f32.mrb[0].mxu0
        %v3332 = vadd.f32 0.0, %v3331
        %v3333 = vpop.f32.mrb[0].mxu0
        %v3334 = vadd.f32 0.0, %v3333
        %v3335 = vpop.f32.mrb[0].mxu0
        %v3336 = vadd.f32 0.0, %v3335
        %v3337 = vpop.f32.mrb[0].mxu0
        %v3338 = vadd.f32 0.0, %v3337
        %3339 = vmatprep.mubr.bf16.mxu0 %v2979
        %3340 = vmatmul.mubr.bf16.gmra.mrb[0].mxu0 %v2978
        %v3341 = vpop.f32.mrb[0].mxu0
        %v3342 = vadd.f32 0.0, %v3341
        %v3343 = vpop.f32.mrb[0].mxu0
        %v3344 = vadd.f32 0.0, %v3343
        %v3345 = vpop.f32.mrb[0].mxu0
        %v3346 = vadd.f32 0.0, %v3345
        %v3347 = vpop.f32.mrb[0].mxu0
        %v3348 = vadd.f32 0.0, %v3347
        %3349 = vmatprep.mubr.bf16.mxu0 %v2981
        %3350 = vmatmul.mubr.bf16.gmra.mrb[0].mxu0 %v2980
        %v3351 = vpop.f32.mrb[0].mxu0
        %v3352 = vadd.f32 0.0, %v3351
        %v3353 = vpop.f32.mrb[0].mxu0
        %v3354 = vadd.f32 0.0, %v3353
        %v3355 = vpop.f32.mrb[0].mxu0
        %v3356 = vadd.f32 0.0, %v3355
        %v3357 = vpop.f32.mrb[0].mxu0
        %v3358 = vadd.f32 0.0, %v3357
        %3359 = vmatprep.mubr.bf16.mxu0 %v2983
        %3360 = vmatmul.mubr.bf16.gmra.mrb[0].mxu0 %v2982
        %v3361 = vpop.f32.mrb[0].mxu0
        %v3362 = vadd.f32 0.0, %v3361
        %v3363 = vpop.f32.mrb[0].mxu0
        %v3364 = vadd.f32 0.0, %v3363
        %v3365 = vpop.f32.mrb[0].mxu0
        %v3366 = vadd.f32 0.0, %v3365
        %v3367 = vpop.f32.mrb[0].mxu0
        %v3368 = vadd.f32 0.0, %v3367
        %3369 = vmatprep.mubr.bf16.mxu0 %v2985
        %3370 = vmatmul.mubr.bf16.gmra.mrb[0].mxu0 %v2984
        %v3371 = vpop.f32.mrb[0].mxu0
        %v3372 = vadd.f32 0.0, %v3371
        %v3373 = vpop.f32.mrb[0].mxu0
        %v3374 = vadd.f32 0.0, %v3373
        %v3375 = vpop.f32.mrb[0].mxu0
        %v3376 = vadd.f32 0.0, %v3375
        %v3377 = vpop.f32.mrb[0].mxu0
        %v3378 = vadd.f32 0.0, %v3377
        %3379 = vmatprep.mubr.bf16.mxu0 %v2987
        %3380 = vmatmul.mubr.bf16.gmra.mrb[0].mxu0 %v2986
        %v3381 = vpop.f32.mrb[0].mxu0
        %v3382 = vadd.f32 0.0, %v3381
        %v3383 = vpop.f32.mrb[0].mxu0
        %v3384 = vadd.f32 0.0, %v3383
        %v3385 = vpop.f32.mrb[0].mxu0
        %v3386 = vadd.f32 0.0, %v3385
        %v3387 = vpop.f32.mrb[0].mxu0
        %v3388 = vadd.f32 0.0, %v3387
        %3389 = vmatprep.mubr.bf16.mxu0 %v2989
        %3390 = vmatmul.mubr.bf16.gmra.mrb[0].mxu0 %v2988
        %v3391 = vpop.f32.mrb[0].mxu0
        %v3392 = vadd.f32 0.0, %v3391
        %v3393 = vpop.f32.mrb[0].mxu0
        %v3394 = vadd.f32 0.0, %v3393
        %v3395 = vpop.f32.mrb[0].mxu0
        %v3396 = vadd.f32 0.0, %v3395
        %v3397 = vpop.f32.mrb[0].mxu0
        %v3398 = vadd.f32 0.0, %v3397
        %3399 = vmatprep.mubr.bf16.mxu0 %v2991
        %3400 = vmatmul.mubr.bf16.gmra.mrb[0].mxu0 %v2990
        %v3401 = vpop.f32.mrb[0].mxu0
        %v3402 = vadd.f32 0.0, %v3401
        %v3403 = vpop.f32.mrb[0].mxu0
        %v3404 = vadd.f32 0.0, %v3403
        %v3405 = vpop.f32.mrb[0].mxu0
        %v3406 = vadd.f32 0.0, %v3405
        %v3407 = vpop.f32.mrb[0].mxu0
        %v3408 = vadd.f32 0.0, %v3407
        %3409 = vdwg.mxu0
        %v3410 = vld [vmem:[#allocation3] sm:$0xff]
        %v3411 = vld [vmem:[#allocation3 + $0x8] sm:$0xff]
        %v3412 = vld [vmem:[#allocation3 + $0x10] sm:$0xff]
        %v3413 = vld [vmem:[#allocation3 + $0x18] sm:$0xff]
        %v3414 = vld [vmem:[#allocation3 + $0x20] sm:$0xff]
        %v3415 = vld [vmem:[#allocation3 + $0x28] sm:$0xff]
        %v3416 = vld [vmem:[#allocation3 + $0x30] sm:$0xff]
        %v3417 = vld [vmem:[#allocation3 + $0x38] sm:$0xff]
        %v3418 = vld [vmem:[#allocation3 + $0x40] sm:$0xff]
        %v3419 = vld [vmem:[#allocation3 + $0x48] sm:$0xff]
        %v3420 = vld [vmem:[#allocation3 + $0x50] sm:$0xff]
        %v3421 = vld [vmem:[#allocation3 + $0x58] sm:$0xff]
        %v3422 = vld [vmem:[#allocation3 + $0x60] sm:$0xff]
        %v3423 = vld [vmem:[#allocation3 + $0x68] sm:$0xff]
        %v3424 = vld [vmem:[#allocation3 + $0x70] sm:$0xff]
        %v3425 = vld [vmem:[#allocation3 + $0x78] sm:$0xff]
        %v3426 = vld [vmem:[#allocation3 + $0x80] sm:$0xff]
        %v3427 = vld [vmem:[#allocation3 + $0x88] sm:$0xff]
        %v3428 = vld [vmem:[#allocation3 + $0x90] sm:$0xff]
        %v3429 = vld [vmem:[#allocation3 + $0x98] sm:$0xff]
        %v3430 = vld [vmem:[#allocation3 + $0xa0] sm:$0xff]
        %v3431 = vld [vmem:[#allocation3 + $0xa8] sm:$0xff]
        %v3432 = vld [vmem:[#allocation3 + $0xb0] sm:$0xff]
        %v3433 = vld [vmem:[#allocation3 + $0xb8] sm:$0xff]
        %v3434 = vld [vmem:[#allocation3 + $0xc0] sm:$0xff]
        %v3435 = vld [vmem:[#allocation3 + $0xc8] sm:$0xff]
        %v3436 = vld [vmem:[#allocation3 + $0xd0] sm:$0xff]
        %v3437 = vld [vmem:[#allocation3 + $0xd8] sm:$0xff]
        %v3438 = vld [vmem:[#allocation3 + $0xe0] sm:$0xff]
        %v3439 = vld [vmem:[#allocation3 + $0xe8] sm:$0xff]
        %v3440 = vld [vmem:[#allocation3 + $0xf0] sm:$0xff]
        %v3441 = vld [vmem:[#allocation3 + $0xf8] sm:$0xff]
        %v3442 = vld [vmem:[#allocation3 + $0x100] sm:$0xff]
        %v3443 = vld [vmem:[#allocation3 + $0x108] sm:$0xff]
        %v3444 = vld [vmem:[#allocation3 + $0x110] sm:$0xff]
        %v3445 = vld [vmem:[#allocation3 + $0x118] sm:$0xff]
        %v3446 = vld [vmem:[#allocation3 + $0x120] sm:$0xff]
        %v3447 = vld [vmem:[#allocation3 + $0x128] sm:$0xff]
        %v3448 = vld [vmem:[#allocation3 + $0x130] sm:$0xff]
        %v3449 = vld [vmem:[#allocation3 + $0x138] sm:$0xff]
        %v3450 = vld [vmem:[#allocation3 + $0x140] sm:$0xff]
        %v3451 = vld [vmem:[#allocation3 + $0x148] sm:$0xff]
        %v3452 = vld [vmem:[#allocation3 + $0x150] sm:$0xff]
        %v3453 = vld [vmem:[#allocation3 + $0x158] sm:$0xff]
        %v3454 = vld [vmem:[#allocation3 + $0x160] sm:$0xff]
        %v3455 = vld [vmem:[#allocation3 + $0x168] sm:$0xff]
        %v3456 = vld [vmem:[#allocation3 + $0x170] sm:$0xff]
        %v3457 = vld [vmem:[#allocation3 + $0x178] sm:$0xff]
        %v3458 = vld [vmem:[#allocation3 + $0x180] sm:$0xff]
        %v3459 = vld [vmem:[#allocation3 + $0x188] sm:$0xff]
        %v3460 = vld [vmem:[#allocation3 + $0x190] sm:$0xff]
        %v3461 = vld [vmem:[#allocation3 + $0x198] sm:$0xff]
        %v3462 = vld [vmem:[#allocation3 + $0x1a0] sm:$0xff]
        %v3463 = vld [vmem:[#allocation3 + $0x1a8] sm:$0xff]
        %v3464 = vld [vmem:[#allocation3 + $0x1b0] sm:$0xff]
        %v3465 = vld [vmem:[#allocation3 + $0x1b8] sm:$0xff]
        %v3466 = vld [vmem:[#allocation3 + $0x1c0] sm:$0xff]
        %v3467 = vld [vmem:[#allocation3 + $0x1c8] sm:$0xff]
        %v3468 = vld [vmem:[#allocation3 + $0x1d0] sm:$0xff]
        %v3469 = vld [vmem:[#allocation3 + $0x1d8] sm:$0xff]
        %v3470 = vld [vmem:[#allocation3 + $0x1e0] sm:$0xff]
        %v3471 = vld [vmem:[#allocation3 + $0x1e8] sm:$0xff]
        %v3472 = vld [vmem:[#allocation3 + $0x1f0] sm:$0xff]
        %v3473 = vld [vmem:[#allocation3 + $0x1f8] sm:$0xff]
        %v3506 = vunpack.c.l.b16 %v2640
        %v3507 = vunpack.c.h.b16 %v2640
        %v3508 = vunpack.c.l.b16 %v2641
        %v3509 = vunpack.c.h.b16 %v2641
        %v3510 = vunpack.c.l.b16 %v2642
        %v3511 = vunpack.c.h.b16 %v2642
        %v3512 = vunpack.c.l.b16 %v2643
        %v3513 = vunpack.c.h.b16 %v2643
        %v3514 = vunpack.c.l.b16 %v2644
        %v3515 = vunpack.c.h.b16 %v2644
        %v3516 = vunpack.c.l.b16 %v2645
        %v3517 = vunpack.c.h.b16 %v2645
        %v3518 = vunpack.c.l.b16 %v2646
        %v3519 = vunpack.c.h.b16 %v2646
        %v3520 = vunpack.c.l.b16 %v2647
        %v3521 = vunpack.c.h.b16 %v2647
        %v3522 = vunpack.c.l.b16 %v2648
        %v3523 = vunpack.c.h.b16 %v2648
        %v3524 = vunpack.c.l.b16 %v2649
        %v3525 = vunpack.c.h.b16 %v2649
        %v3526 = vunpack.c.l.b16 %v2650
        %v3527 = vunpack.c.h.b16 %v2650
        %v3528 = vunpack.c.l.b16 %v2651
        %v3529 = vunpack.c.h.b16 %v2651
        %v3530 = vunpack.c.l.b16 %v2652
        %v3531 = vunpack.c.h.b16 %v2652
        %v3532 = vunpack.c.l.b16 %v2653
        %v3533 = vunpack.c.h.b16 %v2653
        %v3534 = vunpack.c.l.b16 %v2654
        %v3535 = vunpack.c.h.b16 %v2654
        %v3536 = vunpack.c.l.b16 %v2655
        %v3537 = vunpack.c.h.b16 %v2655
        %v3538 = vunpack.c.l.b16 %v2656
        %v3539 = vunpack.c.h.b16 %v2656
        %v3540 = vunpack.c.l.b16 %v2657
        %v3541 = vunpack.c.h.b16 %v2657
        %v3542 = vunpack.c.l.b16 %v2658
        %v3543 = vunpack.c.h.b16 %v2658
        %v3544 = vunpack.c.l.b16 %v2659
        %v3545 = vunpack.c.h.b16 %v2659
        %v3546 = vunpack.c.l.b16 %v2660
        %v3547 = vunpack.c.h.b16 %v2660
        %v3548 = vunpack.c.l.b16 %v2661
        %v3549 = vunpack.c.h.b16 %v2661
        %v3550 = vunpack.c.l.b16 %v2662
        %v3551 = vunpack.c.h.b16 %v2662
        %v3552 = vunpack.c.l.b16 %v2663
        %v3553 = vunpack.c.h.b16 %v2663
        %v3554 = vunpack.c.l.b16 %v2664
        %v3555 = vunpack.c.h.b16 %v2664
        %v3556 = vunpack.c.l.b16 %v2665
        %v3557 = vunpack.c.h.b16 %v2665
        %v3558 = vunpack.c.l.b16 %v2666
        %v3559 = vunpack.c.h.b16 %v2666
        %v3560 = vunpack.c.l.b16 %v2667
        %v3561 = vunpack.c.h.b16 %v2667
        %v3562 = vunpack.c.l.b16 %v2668
        %v3563 = vunpack.c.h.b16 %v2668
        %v3564 = vunpack.c.l.b16 %v2669
        %v3565 = vunpack.c.h.b16 %v2669
        %v3566 = vunpack.c.l.b16 %v2670
        %v3567 = vunpack.c.h.b16 %v2670
        %v3568 = vunpack.c.l.b16 %v2671
        %v3569 = vunpack.c.h.b16 %v2671
        %v3570 = vpack.c.b16 %v3508, %v3506
        %v3571 = vpack.c.b16 %v3509, %v3507
        %v3572 = vpack.c.b16 %v3512, %v3510
        %v3573 = vpack.c.b16 %v3513, %v3511
        %v3574 = vpack.c.b16 %v3516, %v3514
        %v3575 = vpack.c.b16 %v3517, %v3515
        %v3576 = vpack.c.b16 %v3520, %v3518
        %v3577 = vpack.c.b16 %v3521, %v3519
        %v3578 = vpack.c.b16 %v3524, %v3522
        %v3579 = vpack.c.b16 %v3525, %v3523
        %v3580 = vpack.c.b16 %v3528, %v3526
        %v3581 = vpack.c.b16 %v3529, %v3527
        %v3582 = vpack.c.b16 %v3532, %v3530
        %v3583 = vpack.c.b16 %v3533, %v3531
        %v3584 = vpack.c.b16 %v3536, %v3534
        %v3585 = vpack.c.b16 %v3537, %v3535
        %v3586 = vpack.c.b16 %v3540, %v3538
        %v3587 = vpack.c.b16 %v3541, %v3539
        %v3588 = vpack.c.b16 %v3544, %v3542
        %v3589 = vpack.c.b16 %v3545, %v3543
        %v3590 = vpack.c.b16 %v3548, %v3546
        %v3591 = vpack.c.b16 %v3549, %v3547
        %v3592 = vpack.c.b16 %v3552, %v3550
        %v3593 = vpack.c.b16 %v3553, %v3551
        %v3594 = vpack.c.b16 %v3556, %v3554
        %v3595 = vpack.c.b16 %v3557, %v3555
        %v3596 = vpack.c.b16 %v3560, %v3558
        %v3597 = vpack.c.b16 %v3561, %v3559
        %v3598 = vpack.c.b16 %v3564, %v3562
        %v3599 = vpack.c.b16 %v3565, %v3563
        %v3600 = vpack.c.b16 %v3568, %v3566
        %v3601 = vpack.c.b16 %v3569, %v3567
        %3634 = vmatprep.subr.bf16.mxu0 %v3411
        %3635 = vmatpush1.bf16.msra.mxu0 %v3410
        %3636 = vmatprep.subr.bf16.mxu0 %v3415
        %3637 = vmatpush1.bf16.msra.mxu0 %v3414
        %3638 = vmatprep.subr.bf16.mxu0 %v3419
        %3639 = vmatpush1.bf16.msra.mxu0 %v3418
        %3640 = vmatprep.subr.bf16.mxu0 %v3423
        %3641 = vmatpush1.bf16.msra.mxu0 %v3422
        %3642 = vmatprep.subr.bf16.mxu0 %v3427
        %3643 = vmatpush1.bf16.msra.mxu0 %v3426
        %3644 = vmatprep.subr.bf16.mxu0 %v3431
        %3645 = vmatpush1.bf16.msra.mxu0 %v3430
        %3646 = vmatprep.subr.bf16.mxu0 %v3435
        %3647 = vmatpush1.bf16.msra.mxu0 %v3434
        %3648 = vmatprep.subr.bf16.mxu0 %v3439
        %3649 = vmatpush1.bf16.msra.mxu0 %v3438
        %3650 = vmatprep.subr.bf16.mxu0 %v3443
        %3651 = vmatpush1.bf16.msra.mxu0 %v3442
        %3652 = vmatprep.subr.bf16.mxu0 %v3447
        %3653 = vmatpush1.bf16.msra.mxu0 %v3446
        %3654 = vmatprep.subr.bf16.mxu0 %v3451
        %3655 = vmatpush1.bf16.msra.mxu0 %v3450
        %3656 = vmatprep.subr.bf16.mxu0 %v3455
        %3657 = vmatpush1.bf16.msra.mxu0 %v3454
        %3658 = vmatprep.subr.bf16.mxu0 %v3459
        %3659 = vmatpush1.bf16.msra.mxu0 %v3458
        %3660 = vmatprep.subr.bf16.mxu0 %v3463
        %3661 = vmatpush1.bf16.msra.mxu0 %v3462
        %3662 = vmatprep.subr.bf16.mxu0 %v3467
        %3663 = vmatpush1.bf16.msra.mxu0 %v3466
        %3664 = vmatprep.subr.bf16.mxu0 %v3471
        %3665 = vmatpush1.bf16.msra.mxu0 %v3470
        %3666 = vmatprep.mubr.bf16.mxu0 %v3571
        %3667 = vmatmul.mubr.bf16.gmra.mrb[0].mxu0 %v3570
        %v3668 = vpop.f32.mrb[0].mxu0
        %v3669 = vadd.f32 0.0, %v3668
        %v3670 = vpop.f32.mrb[0].mxu0
        %v3671 = vadd.f32 0.0, %v3670
        %v3672 = vpop.f32.mrb[0].mxu0
        %v3673 = vadd.f32 0.0, %v3672
        %v3674 = vpop.f32.mrb[0].mxu0
        %v3675 = vadd.f32 0.0, %v3674
        %3676 = vmatprep.mubr.bf16.mxu0 %v3573
        %3677 = vmatmul.mubr.bf16.gmra.mrb[0].mxu0 %v3572
        %v3678 = vpop.f32.mrb[0].mxu0
        %v3679 = vadd.f32 0.0, %v3678
        %v3680 = vpop.f32.mrb[0].mxu0
        %v3681 = vadd.f32 0.0, %v3680
        %v3682 = vpop.f32.mrb[0].mxu0
        %v3683 = vadd.f32 0.0, %v3682
        %v3684 = vpop.f32.mrb[0].mxu0
        %v3685 = vadd.f32 0.0, %v3684
        %3686 = vmatprep.mubr.bf16.mxu0 %v3575
        %3687 = vmatmul.mubr.bf16.gmra.mrb[0].mxu0 %v3574
        %v3688 = vpop.f32.mrb[0].mxu0
        %v3689 = vadd.f32 0.0, %v3688
        %v3690 = vpop.f32.mrb[0].mxu0
        %v3691 = vadd.f32 0.0, %v3690
        %v3692 = vpop.f32.mrb[0].mxu0
        %v3693 = vadd.f32 0.0, %v3692
        %v3694 = vpop.f32.mrb[0].mxu0
        %v3695 = vadd.f32 0.0, %v3694
        %3696 = vmatprep.mubr.bf16.mxu0 %v3577
        %3697 = vmatmul.mubr.bf16.gmra.mrb[0].mxu0 %v3576
        %v3698 = vpop.f32.mrb[0].mxu0
        %v3699 = vadd.f32 0.0, %v3698
        %v3700 = vpop.f32.mrb[0].mxu0
        %v3701 = vadd.f32 0.0, %v3700
        %v3702 = vpop.f32.mrb[0].mxu0
        %v3703 = vadd.f32 0.0, %v3702
        %v3704 = vpop.f32.mrb[0].mxu0
        %v3705 = vadd.f32 0.0, %v3704
        %3706 = vmatprep.mubr.bf16.mxu0 %v3579
        %3707 = vmatmul.mubr.bf16.gmra.mrb[0].mxu0 %v3578
        %v3708 = vpop.f32.mrb[0].mxu0
        %v3709 = vadd.f32 0.0, %v3708
        %v3710 = vpop.f32.mrb[0].mxu0
        %v3711 = vadd.f32 0.0, %v3710
        %v3712 = vpop.f32.mrb[0].mxu0
        %v3713 = vadd.f32 0.0, %v3712
        %v3714 = vpop.f32.mrb[0].mxu0
        %v3715 = vadd.f32 0.0, %v3714
        %3716 = vmatprep.mubr.bf16.mxu0 %v3581
        %3717 = vmatmul.mubr.bf16.gmra.mrb[0].mxu0 %v3580
        %v3718 = vpop.f32.mrb[0].mxu0
        %v3719 = vadd.f32 0.0, %v3718
        %v3720 = vpop.f32.mrb[0].mxu0
        %v3721 = vadd.f32 0.0, %v3720
        %v3722 = vpop.f32.mrb[0].mxu0
        %v3723 = vadd.f32 0.0, %v3722
        %v3724 = vpop.f32.mrb[0].mxu0
        %v3725 = vadd.f32 0.0, %v3724
        %3726 = vmatprep.mubr.bf16.mxu0 %v3583
        %3727 = vmatmul.mubr.bf16.gmra.mrb[0].mxu0 %v3582
        %v3728 = vpop.f32.mrb[0].mxu0
        %v3729 = vadd.f32 0.0, %v3728
        %v3730 = vpop.f32.mrb[0].mxu0
        %v3731 = vadd.f32 0.0, %v3730
        %v3732 = vpop.f32.mrb[0].mxu0
        %v3733 = vadd.f32 0.0, %v3732
        %v3734 = vpop.f32.mrb[0].mxu0
        %v3735 = vadd.f32 0.0, %v3734
        %3736 = vmatprep.mubr.bf16.mxu0 %v3585
        %3737 = vmatmul.mubr.bf16.gmra.mrb[0].mxu0 %v3584
        %v3738 = vpop.f32.mrb[0].mxu0
        %v3739 = vadd.f32 0.0, %v3738
        %v3740 = vpop.f32.mrb[0].mxu0
        %v3741 = vadd.f32 0.0, %v3740
        %v3742 = vpop.f32.mrb[0].mxu0
        %v3743 = vadd.f32 0.0, %v3742
        %v3744 = vpop.f32.mrb[0].mxu0
        %v3745 = vadd.f32 0.0, %v3744
        %3746 = vmatprep.mubr.bf16.mxu0 %v3587
        %3747 = vmatmul.mubr.bf16.gmra.mrb[0].mxu0 %v3586
        %v3748 = vpop.f32.mrb[0].mxu0
        %v3749 = vadd.f32 0.0, %v3748
        %v3750 = vpop.f32.mrb[0].mxu0
        %v3751 = vadd.f32 0.0, %v3750
        %v3752 = vpop.f32.mrb[0].mxu0
        %v3753 = vadd.f32 0.0, %v3752
        %v3754 = vpop.f32.mrb[0].mxu0
        %v3755 = vadd.f32 0.0, %v3754
        %3756 = vmatprep.mubr.bf16.mxu0 %v3589
        %3757 = vmatmul.mubr.bf16.gmra.mrb[0].mxu0 %v3588
        %v3758 = vpop.f32.mrb[0].mxu0
        %v3759 = vadd.f32 0.0, %v3758
        %v3760 = vpop.f32.mrb[0].mxu0
        %v3761 = vadd.f32 0.0, %v3760
        %v3762 = vpop.f32.mrb[0].mxu0
        %v3763 = vadd.f32 0.0, %v3762
        %v3764 = vpop.f32.mrb[0].mxu0
        %v3765 = vadd.f32 0.0, %v3764
        %3766 = vmatprep.mubr.bf16.mxu0 %v3591
        %3767 = vmatmul.mubr.bf16.gmra.mrb[0].mxu0 %v3590
        %v3768 = vpop.f32.mrb[0].mxu0
        %v3769 = vadd.f32 0.0, %v3768
        %v3770 = vpop.f32.mrb[0].mxu0
        %v3771 = vadd.f32 0.0, %v3770
        %v3772 = vpop.f32.mrb[0].mxu0
        %v3773 = vadd.f32 0.0, %v3772
        %v3774 = vpop.f32.mrb[0].mxu0
        %v3775 = vadd.f32 0.0, %v3774
        %3776 = vmatprep.mubr.bf16.mxu0 %v3593
        %3777 = vmatmul.mubr.bf16.gmra.mrb[0].mxu0 %v3592
        %v3778 = vpop.f32.mrb[0].mxu0
        %v3779 = vadd.f32 0.0, %v3778
        %v3780 = vpop.f32.mrb[0].mxu0
        %v3781 = vadd.f32 0.0, %v3780
        %v3782 = vpop.f32.mrb[0].mxu0
        %v3783 = vadd.f32 0.0, %v3782
        %v3784 = vpop.f32.mrb[0].mxu0
        %v3785 = vadd.f32 0.0, %v3784
        %3786 = vmatprep.mubr.bf16.mxu0 %v3595
        %3787 = vmatmul.mubr.bf16.gmra.mrb[0].mxu0 %v3594
        %v3788 = vpop.f32.mrb[0].mxu0
        %v3789 = vadd.f32 0.0, %v3788
        %v3790 = vpop.f32.mrb[0].mxu0
        %v3791 = vadd.f32 0.0, %v3790
        %v3792 = vpop.f32.mrb[0].mxu0
        %v3793 = vadd.f32 0.0, %v3792
        %v3794 = vpop.f32.mrb[0].mxu0
        %v3795 = vadd.f32 0.0, %v3794
        %3796 = vmatprep.mubr.bf16.mxu0 %v3597
        %3797 = vmatmul.mubr.bf16.gmra.mrb[0].mxu0 %v3596
        %v3798 = vpop.f32.mrb[0].mxu0
        %v3799 = vadd.f32 0.0, %v3798
        %v3800 = vpop.f32.mrb[0].mxu0
        %v3801 = vadd.f32 0.0, %v3800
        %v3802 = vpop.f32.mrb[0].mxu0
        %v3803 = vadd.f32 0.0, %v3802
        %v3804 = vpop.f32.mrb[0].mxu0
        %v3805 = vadd.f32 0.0, %v3804
        %3806 = vmatprep.mubr.bf16.mxu0 %v3599
        %3807 = vmatmul.mubr.bf16.gmra.mrb[0].mxu0 %v3598
        %v3808 = vpop.f32.mrb[0].mxu0
        %v3809 = vadd.f32 0.0, %v3808
        %v3810 = vpop.f32.mrb[0].mxu0
        %v3811 = vadd.f32 0.0, %v3810
        %v3812 = vpop.f32.mrb[0].mxu0
        %v3813 = vadd.f32 0.0, %v3812
        %v3814 = vpop.f32.mrb[0].mxu0
        %v3815 = vadd.f32 0.0, %v3814
        %3816 = vmatprep.mubr.bf16.mxu0 %v3601
        %3817 = vmatmul.mubr.bf16.gmra.mrb[0].mxu0 %v3600
        %v3818 = vpop.f32.mrb[0].mxu0
        %v3819 = vadd.f32 0.0, %v3818
        %v3820 = vpop.f32.mrb[0].mxu0
        %v3821 = vadd.f32 0.0, %v3820
        %v3822 = vpop.f32.mrb[0].mxu0
        %v3823 = vadd.f32 0.0, %v3822
        %v3824 = vpop.f32.mrb[0].mxu0
        %v3825 = vadd.f32 0.0, %v3824
        %3826 = vdwg.mxu0
        %3827 = vmatprep.subr.bf16.mxu0 %v3413
        %3828 = vmatpush1.bf16.msra.mxu0 %v3412
        %3829 = vmatprep.subr.bf16.mxu0 %v3417
        %3830 = vmatpush1.bf16.msra.mxu0 %v3416
        %3831 = vmatprep.subr.bf16.mxu0 %v3421
        %3832 = vmatpush1.bf16.msra.mxu0 %v3420
        %3833 = vmatprep.subr.bf16.mxu0 %v3425
        %3834 = vmatpush1.bf16.msra.mxu0 %v3424
        %3835 = vmatprep.subr.bf16.mxu0 %v3429
        %3836 = vmatpush1.bf16.msra.mxu0 %v3428
        %3837 = vmatprep.subr.bf16.mxu0 %v3433
        %3838 = vmatpush1.bf16.msra.mxu0 %v3432
        %3839 = vmatprep.subr.bf16.mxu0 %v3437
        %3840 = vmatpush1.bf16.msra.mxu0 %v3436
        %3841 = vmatprep.subr.bf16.mxu0 %v3441
        %3842 = vmatpush1.bf16.msra.mxu0 %v3440
        %3843 = vmatprep.subr.bf16.mxu0 %v3445
        %3844 = vmatpush1.bf16.msra.mxu0 %v3444
        %3845 = vmatprep.subr.bf16.mxu0 %v3449
        %3846 = vmatpush1.bf16.msra.mxu0 %v3448
        %3847 = vmatprep.subr.bf16.mxu0 %v3453
        %3848 = vmatpush1.bf16.msra.mxu0 %v3452
        %3849 = vmatprep.subr.bf16.mxu0 %v3457
        %3850 = vmatpush1.bf16.msra.mxu0 %v3456
        %3851 = vmatprep.subr.bf16.mxu0 %v3461
        %3852 = vmatpush1.bf16.msra.mxu0 %v3460
        %3853 = vmatprep.subr.bf16.mxu0 %v3465
        %3854 = vmatpush1.bf16.msra.mxu0 %v3464
        %3855 = vmatprep.subr.bf16.mxu0 %v3469
        %3856 = vmatpush1.bf16.msra.mxu0 %v3468
        %3857 = vmatprep.subr.bf16.mxu0 %v3473
        %3858 = vmatpush1.bf16.msra.mxu0 %v3472
        %3859 = vmatprep.mubr.bf16.mxu0 %v3571
        %3860 = vmatmul.mubr.bf16.gmra.mrb[0].mxu0 %v3570
        %v3861 = vpop.f32.mrb[0].mxu0
        %v3862 = vadd.f32 0.0, %v3861
        %v3863 = vpop.f32.mrb[0].mxu0
        %v3864 = vadd.f32 0.0, %v3863
        %v3865 = vpop.f32.mrb[0].mxu0
        %v3866 = vadd.f32 0.0, %v3865
        %v3867 = vpop.f32.mrb[0].mxu0
        %v3868 = vadd.f32 0.0, %v3867
        %3869 = vmatprep.mubr.bf16.mxu0 %v3573
        %3870 = vmatmul.mubr.bf16.gmra.mrb[0].mxu0 %v3572
        %v3871 = vpop.f32.mrb[0].mxu0
        %v3872 = vadd.f32 0.0, %v3871
        %v3873 = vpop.f32.mrb[0].mxu0
        %v3874 = vadd.f32 0.0, %v3873
        %v3875 = vpop.f32.mrb[0].mxu0
        %v3876 = vadd.f32 0.0, %v3875
        %v3877 = vpop.f32.mrb[0].mxu0
        %v3878 = vadd.f32 0.0, %v3877
        %3879 = vmatprep.mubr.bf16.mxu0 %v3575
        %3880 = vmatmul.mubr.bf16.gmra.mrb[0].mxu0 %v3574
        %v3881 = vpop.f32.mrb[0].mxu0
        %v3882 = vadd.f32 0.0, %v3881
        %v3883 = vpop.f32.mrb[0].mxu0
        %v3884 = vadd.f32 0.0, %v3883
        %v3885 = vpop.f32.mrb[0].mxu0
        %v3886 = vadd.f32 0.0, %v3885
        %v3887 = vpop.f32.mrb[0].mxu0
        %v3888 = vadd.f32 0.0, %v3887
        %3889 = vmatprep.mubr.bf16.mxu0 %v3577
        %3890 = vmatmul.mubr.bf16.gmra.mrb[0].mxu0 %v3576
        %v3891 = vpop.f32.mrb[0].mxu0
        %v3892 = vadd.f32 0.0, %v3891
        %v3893 = vpop.f32.mrb[0].mxu0
        %v3894 = vadd.f32 0.0, %v3893
        %v3895 = vpop.f32.mrb[0].mxu0
        %v3896 = vadd.f32 0.0, %v3895
        %v3897 = vpop.f32.mrb[0].mxu0
        %v3898 = vadd.f32 0.0, %v3897
        %3899 = vmatprep.mubr.bf16.mxu0 %v3579
        %3900 = vmatmul.mubr.bf16.gmra.mrb[0].mxu0 %v3578
        %v3901 = vpop.f32.mrb[0].mxu0
        %v3902 = vadd.f32 0.0, %v3901
        %v3903 = vpop.f32.mrb[0].mxu0
        %v3904 = vadd.f32 0.0, %v3903
        %v3905 = vpop.f32.mrb[0].mxu0
        %v3906 = vadd.f32 0.0, %v3905
        %v3907 = vpop.f32.mrb[0].mxu0
        %v3908 = vadd.f32 0.0, %v3907
        %3909 = vmatprep.mubr.bf16.mxu0 %v3581
        %3910 = vmatmul.mubr.bf16.gmra.mrb[0].mxu0 %v3580
        %v3911 = vpop.f32.mrb[0].mxu0
        %v3912 = vadd.f32 0.0, %v3911
        %v3913 = vpop.f32.mrb[0].mxu0
        %v3914 = vadd.f32 0.0, %v3913
        %v3915 = vpop.f32.mrb[0].mxu0
        %v3916 = vadd.f32 0.0, %v3915
        %v3917 = vpop.f32.mrb[0].mxu0
        %v3918 = vadd.f32 0.0, %v3917
        %3919 = vmatprep.mubr.bf16.mxu0 %v3583
        %3920 = vmatmul.mubr.bf16.gmra.mrb[0].mxu0 %v3582
        %v3921 = vpop.f32.mrb[0].mxu0
        %v3922 = vadd.f32 0.0, %v3921
        %v3923 = vpop.f32.mrb[0].mxu0
        %v3924 = vadd.f32 0.0, %v3923
        %v3925 = vpop.f32.mrb[0].mxu0
        %v3926 = vadd.f32 0.0, %v3925
        %v3927 = vpop.f32.mrb[0].mxu0
        %v3928 = vadd.f32 0.0, %v3927
        %3929 = vmatprep.mubr.bf16.mxu0 %v3585
        %3930 = vmatmul.mubr.bf16.gmra.mrb[0].mxu0 %v3584
        %v3931 = vpop.f32.mrb[0].mxu0
        %v3932 = vadd.f32 0.0, %v3931
        %v3933 = vpop.f32.mrb[0].mxu0
        %v3934 = vadd.f32 0.0, %v3933
        %v3935 = vpop.f32.mrb[0].mxu0
        %v3936 = vadd.f32 0.0, %v3935
        %v3937 = vpop.f32.mrb[0].mxu0
        %v3938 = vadd.f32 0.0, %v3937
        %3939 = vmatprep.mubr.bf16.mxu0 %v3587
        %3940 = vmatmul.mubr.bf16.gmra.mrb[0].mxu0 %v3586
        %v3941 = vpop.f32.mrb[0].mxu0
        %v3942 = vadd.f32 0.0, %v3941
        %v3943 = vpop.f32.mrb[0].mxu0
        %v3944 = vadd.f32 0.0, %v3943
        %v3945 = vpop.f32.mrb[0].mxu0
        %v3946 = vadd.f32 0.0, %v3945
        %v3947 = vpop.f32.mrb[0].mxu0
        %v3948 = vadd.f32 0.0, %v3947
        %3949 = vmatprep.mubr.bf16.mxu0 %v3589
        %3950 = vmatmul.mubr.bf16.gmra.mrb[0].mxu0 %v3588
        %v3951 = vpop.f32.mrb[0].mxu0
        %v3952 = vadd.f32 0.0, %v3951
        %v3953 = vpop.f32.mrb[0].mxu0
        %v3954 = vadd.f32 0.0, %v3953
        %v3955 = vpop.f32.mrb[0].mxu0
        %v3956 = vadd.f32 0.0, %v3955
        %v3957 = vpop.f32.mrb[0].mxu0
        %v3958 = vadd.f32 0.0, %v3957
        %3959 = vmatprep.mubr.bf16.mxu0 %v3591
        %3960 = vmatmul.mubr.bf16.gmra.mrb[0].mxu0 %v3590
        %v3961 = vpop.f32.mrb[0].mxu0
        %v3962 = vadd.f32 0.0, %v3961
        %v3963 = vpop.f32.mrb[0].mxu0
        %v3964 = vadd.f32 0.0, %v3963
        %v3965 = vpop.f32.mrb[0].mxu0
        %v3966 = vadd.f32 0.0, %v3965
        %v3967 = vpop.f32.mrb[0].mxu0
        %v3968 = vadd.f32 0.0, %v3967
        %3969 = vmatprep.mubr.bf16.mxu0 %v3593
        %3970 = vmatmul.mubr.bf16.gmra.mrb[0].mxu0 %v3592
        %v3971 = vpop.f32.mrb[0].mxu0
        %v3972 = vadd.f32 0.0, %v3971
        %v3973 = vpop.f32.mrb[0].mxu0
        %v3974 = vadd.f32 0.0, %v3973
        %v3975 = vpop.f32.mrb[0].mxu0
        %v3976 = vadd.f32 0.0, %v3975
        %v3977 = vpop.f32.mrb[0].mxu0
        %v3978 = vadd.f32 0.0, %v3977
        %3979 = vmatprep.mubr.bf16.mxu0 %v3595
        %3980 = vmatmul.mubr.bf16.gmra.mrb[0].mxu0 %v3594
        %v3981 = vpop.f32.mrb[0].mxu0
        %v3982 = vadd.f32 0.0, %v3981
        %v3983 = vpop.f32.mrb[0].mxu0
        %v3984 = vadd.f32 0.0, %v3983
        %v3985 = vpop.f32.mrb[0].mxu0
        %v3986 = vadd.f32 0.0, %v3985
        %v3987 = vpop.f32.mrb[0].mxu0
        %v3988 = vadd.f32 0.0, %v3987
        %3989 = vmatprep.mubr.bf16.mxu0 %v3597
        %3990 = vmatmul.mubr.bf16.gmra.mrb[0].mxu0 %v3596
        %v3991 = vpop.f32.mrb[0].mxu0
        %v3992 = vadd.f32 0.0, %v3991
        %v3993 = vpop.f32.mrb[0].mxu0
        %v3994 = vadd.f32 0.0, %v3993
        %v3995 = vpop.f32.mrb[0].mxu0
        %v3996 = vadd.f32 0.0, %v3995
        %v3997 = vpop.f32.mrb[0].mxu0
        %v3998 = vadd.f32 0.0, %v3997
        %3999 = vmatprep.mubr.bf16.mxu0 %v3599
        %4000 = vmatmul.mubr.bf16.gmra.mrb[0].mxu0 %v3598
        %v4001 = vpop.f32.mrb[0].mxu0
        %v4002 = vadd.f32 0.0, %v4001
        %v4003 = vpop.f32.mrb[0].mxu0
        %v4004 = vadd.f32 0.0, %v4003
        %v4005 = vpop.f32.mrb[0].mxu0
        %v4006 = vadd.f32 0.0, %v4005
        %v4007 = vpop.f32.mrb[0].mxu0
        %v4008 = vadd.f32 0.0, %v4007
        %4009 = vmatprep.mubr.bf16.mxu0 %v3601
        %4010 = vmatmul.mubr.bf16.gmra.mrb[0].mxu0 %v3600
        %v4011 = vpop.f32.mrb[0].mxu0
        %v4012 = vadd.f32 0.0, %v4011
        %v4013 = vpop.f32.mrb[0].mxu0
        %v4014 = vadd.f32 0.0, %v4013
        %v4015 = vpop.f32.mrb[0].mxu0
        %v4016 = vadd.f32 0.0, %v4015
        %v4017 = vpop.f32.mrb[0].mxu0
        %v4018 = vadd.f32 0.0, %v4017
        %4019 = vdwg.mxu0
        %v4020 = vmul.f32 %v3059, %v3669
        %v4021 = vmul.f32 %v3061, %v3671
        %v4022 = vmul.f32 %v3252, %v3862
        %v4023 = vmul.f32 %v3254, %v3864
        %v4024 = vmul.f32 %v3063, %v3673
        %v4025 = vmul.f32 %v3065, %v3675
        %v4026 = vmul.f32 %v3256, %v3866
        %v4027 = vmul.f32 %v3258, %v3868
        %v4028 = vmul.f32 %v3069, %v3679
        %v4029 = vmul.f32 %v3071, %v3681
        %v4030 = vmul.f32 %v3262, %v3872
        %v4031 = vmul.f32 %v3264, %v3874
        %v4032 = vmul.f32 %v3073, %v3683
        %v4033 = vmul.f32 %v3075, %v3685
        %v4034 = vmul.f32 %v3266, %v3876
        %v4035 = vmul.f32 %v3268, %v3878
        %v4036 = vmul.f32 %v3079, %v3689
        %v4037 = vmul.f32 %v3081, %v3691
        %v4038 = vmul.f32 %v3272, %v3882
        %v4039 = vmul.f32 %v3274, %v3884
        %v4040 = vmul.f32 %v3083, %v3693
        %v4041 = vmul.f32 %v3085, %v3695
        %v4042 = vmul.f32 %v3276, %v3886
        %v4043 = vmul.f32 %v3278, %v3888
        %v4044 = vmul.f32 %v3089, %v3699
        %v4045 = vmul.f32 %v3091, %v3701
        %v4046 = vmul.f32 %v3282, %v3892
        %v4047 = vmul.f32 %v3284, %v3894
        %v4048 = vmul.f32 %v3093, %v3703
        %v4049 = vmul.f32 %v3095, %v3705
        %v4050 = vmul.f32 %v3286, %v3896
        %v4051 = vmul.f32 %v3288, %v3898
        %v4052 = vmul.f32 %v3099, %v3709
        %v4053 = vmul.f32 %v3101, %v3711
        %v4054 = vmul.f32 %v3292, %v3902
        %v4055 = vmul.f32 %v3294, %v3904
        %v4056 = vmul.f32 %v3103, %v3713
        %v4057 = vmul.f32 %v3105, %v3715
        %v4058 = vmul.f32 %v3296, %v3906
        %v4059 = vmul.f32 %v3298, %v3908
        %v4060 = vmul.f32 %v3109, %v3719
        %v4061 = vmul.f32 %v3111, %v3721
        %v4062 = vmul.f32 %v3302, %v3912
        %v4063 = vmul.f32 %v3304, %v3914
        %v4064 = vmul.f32 %v3113, %v3723
        %v4065 = vmul.f32 %v3115, %v3725
        %v4066 = vmul.f32 %v3306, %v3916
        %v4067 = vmul.f32 %v3308, %v3918
        %v4068 = vmul.f32 %v3119, %v3729
        %v4069 = vmul.f32 %v3121, %v3731
        %v4070 = vmul.f32 %v3312, %v3922
        %v4071 = vmul.f32 %v3314, %v3924
        %v4072 = vmul.f32 %v3123, %v3733
        %v4073 = vmul.f32 %v3125, %v3735
        %v4074 = vmul.f32 %v3316, %v3926
        %v4075 = vmul.f32 %v3318, %v3928
        %v4076 = vmul.f32 %v3129, %v3739
        %v4077 = vmul.f32 %v3131, %v3741
        %v4078 = vmul.f32 %v3322, %v3932
        %v4079 = vmul.f32 %v3324, %v3934
        %v4080 = vmul.f32 %v3133, %v3743
        %v4081 = vmul.f32 %v3135, %v3745
        %v4082 = vmul.f32 %v3326, %v3936
        %v4083 = vmul.f32 %v3328, %v3938
        %v4084 = vmul.f32 %v3139, %v3749
        %v4085 = vmul.f32 %v3141, %v3751
        %v4086 = vmul.f32 %v3332, %v3942
        %v4087 = vmul.f32 %v3334, %v3944
        %v4088 = vmul.f32 %v3143, %v3753
        %v4089 = vmul.f32 %v3145, %v3755
        %v4090 = vmul.f32 %v3336, %v3946
        %v4091 = vmul.f32 %v3338, %v3948
        %v4092 = vmul.f32 %v3149, %v3759
        %v4093 = vmul.f32 %v3151, %v3761
        %v4094 = vmul.f32 %v3342, %v3952
        %v4095 = vmul.f32 %v3344, %v3954
        %v4096 = vmul.f32 %v3153, %v3763
        %v4097 = vmul.f32 %v3155, %v3765
        %v4098 = vmul.f32 %v3346, %v3956
        %v4099 = vmul.f32 %v3348, %v3958
        %v4100 = vmul.f32 %v3159, %v3769
        %v4101 = vmul.f32 %v3161, %v3771
        %v4102 = vmul.f32 %v3352, %v3962
        %v4103 = vmul.f32 %v3354, %v3964
        %v4104 = vmul.f32 %v3163, %v3773
        %v4105 = vmul.f32 %v3165, %v3775
        %v4106 = vmul.f32 %v3356, %v3966
        %v4107 = vmul.f32 %v3358, %v3968
        %v4108 = vmul.f32 %v3169, %v3779
        %v4109 = vmul.f32 %v3171, %v3781
        %v4110 = vmul.f32 %v3362, %v3972
        %v4111 = vmul.f32 %v3364, %v3974
        %v4112 = vmul.f32 %v3173, %v3783
        %v4113 = vmul.f32 %v3175, %v3785
        %v4114 = vmul.f32 %v3366, %v3976
        %v4115 = vmul.f32 %v3368, %v3978
        %v4116 = vmul.f32 %v3179, %v3789
        %v4117 = vmul.f32 %v3181, %v3791
        %v4118 = vmul.f32 %v3372, %v3982
        %v4119 = vmul.f32 %v3374, %v3984
        %v4120 = vmul.f32 %v3183, %v3793
        %v4121 = vmul.f32 %v3185, %v3795
        %v4122 = vmul.f32 %v3376, %v3986
        %v4123 = vmul.f32 %v3378, %v3988
        %v4124 = vmul.f32 %v3189, %v3799
        %v4125 = vmul.f32 %v3191, %v3801
        %v4126 = vmul.f32 %v3382, %v3992
        %v4127 = vmul.f32 %v3384, %v3994
        %v4128 = vmul.f32 %v3193, %v3803
        %v4129 = vmul.f32 %v3195, %v3805
        %v4130 = vmul.f32 %v3386, %v3996
        %v4131 = vmul.f32 %v3388, %v3998
        %v4132 = vmul.f32 %v3199, %v3809
        %v4133 = vmul.f32 %v3201, %v3811
        %v4134 = vmul.f32 %v3392, %v4002
        %v4135 = vmul.f32 %v3394, %v4004
        %v4136 = vmul.f32 %v3203, %v3813
        %v4137 = vmul.f32 %v3205, %v3815
        %v4138 = vmul.f32 %v3396, %v4006
        %v4139 = vmul.f32 %v3398, %v4008
        %v4140 = vmul.f32 %v3209, %v3819
        %v4141 = vmul.f32 %v3211, %v3821
        %v4142 = vmul.f32 %v3402, %v4012
        %v4143 = vmul.f32 %v3404, %v4014
        %v4144 = vmul.f32 %v3213, %v3823
        %v4145 = vmul.f32 %v3215, %v3825
        %v4146 = vmul.f32 %v3406, %v4016
        %v4147 = vmul.f32 %v3408, %v4018
        %4148 = vmatprep.subr.mxu0 0.0
        %4149 = vmatpush1.msra.mxu0 %v258
        %4150 = vmatprep.subr.mxu0 0.0
        %4151 = vmatpush1.msra.mxu0 %v259
        %4152 = vmatprep.subr.mxu0 0.0
        %4153 = vmatpush1.msra.mxu0 %v260
        %4154 = vmatprep.subr.mxu0 0.0
        %4155 = vmatpush1.msra.mxu0 %v261
        %4156 = vmatprep.subr.mxu0 0.0
        %4157 = vmatpush1.msra.mxu0 %v262
        %4158 = vmatprep.subr.mxu0 0.0
        %4159 = vmatpush1.msra.mxu0 %v263
        %4160 = vmatprep.subr.mxu0 0.0
        %4161 = vmatpush1.msra.mxu0 %v264
        %4162 = vmatprep.subr.mxu0 0.0
        %4163 = vmatpush1.msra.mxu0 %v265
        %4164 = vmatprep.subr.mxu0 0.0
        %4165 = vmatpush1.msra.mxu0 %v266
        %4166 = vmatprep.subr.mxu0 0.0
        %4167 = vmatpush1.msra.mxu0 %v267
        %4168 = vmatprep.subr.mxu0 0.0
        %4169 = vmatpush1.msra.mxu0 %v268
        %4170 = vmatprep.subr.mxu0 0.0
        %4171 = vmatpush1.msra.mxu0 %v269
        %4172 = vmatprep.subr.mxu0 0.0
        %4173 = vmatpush1.msra.mxu0 %v270
        %4174 = vmatprep.subr.mxu0 0.0
        %4175 = vmatpush1.msra.mxu0 %v271
        %4176 = vmatprep.subr.mxu0 0.0
        %4177 = vmatpush1.msra.mxu0 %v272
        %4178 = vmatprep.subr.mxu0 0.0
        %4179 = vmatpush1.msra.mxu0 %v273
        %4180 = vmatprep.subr.mxu0 0.0
        %4181 = vmatpush1.msra.mxu0 %v274
        %4182 = vmatprep.subr.mxu0 0.0
        %4183 = vmatpush1.msra.mxu0 %v275
        %4184 = vmatprep.subr.mxu0 0.0
        %4185 = vmatpush1.msra.mxu0 %v276
        %4186 = vmatprep.subr.mxu0 0.0
        %4187 = vmatpush1.msra.mxu0 %v277
        %4188 = vmatprep.subr.mxu0 0.0
        %4189 = vmatpush1.msra.mxu0 %v278
        %4190 = vmatprep.subr.mxu0 0.0
        %4191 = vmatpush1.msra.mxu0 %v279
        %4192 = vmatprep.subr.mxu0 0.0
        %4193 = vmatpush1.msra.mxu0 %v280
        %4194 = vmatprep.subr.mxu0 0.0
        %4195 = vmatpush1.msra.mxu0 %v281
        %4196 = vmatprep.subr.mxu0 0.0
        %4197 = vmatpush1.msra.mxu0 %v282
        %4198 = vmatprep.subr.mxu0 0.0
        %4199 = vmatpush1.msra.mxu0 %v283
        %4200 = vmatprep.subr.mxu0 0.0
        %4201 = vmatpush1.msra.mxu0 %v284
        %4202 = vmatprep.subr.mxu0 0.0
        %4203 = vmatpush1.msra.mxu0 %v285
        %4204 = vmatprep.subr.mxu0 0.0
        %4205 = vmatpush1.msra.mxu0 %v286
        %4206 = vmatprep.subr.mxu0 0.0
        %4207 = vmatpush1.msra.mxu0 %v287
        %4208 = vmatprep.subr.mxu0 0.0
        %4209 = vmatpush1.msra.mxu0 %v288
        %4210 = vmatprep.subr.mxu0 0.0
        %4211 = vmatpush1.msra.mxu0 %v289
        %4212 = vmatprep.mubr.f32.mxu0 %v4021
        %4213 = vmatmul.mubr.f32.gmra.mrb[0].mxu0 %v4020
        %v4214 = vpop.f32.mrb[0].mxu0
        %v4215 = vadd.f32 0.0, %v4214
        %v4216 = vpop.f32.mrb[0].mxu0
        %4217 = vmatprep.mubr.f32.mxu0 %v4025
        %4218 = vmatmul.mubr.f32.gmra.mrb[0].mxu0 %v4024
        %v4219 = vpop.f32.mrb[0].mxu0
        %v4220 = vadd.f32 0.0, %v4219
        %v4221 = vpop.f32.mrb[0].mxu0
        %4222 = vmatprep.mubr.f32.mxu0 %v4029
        %4223 = vmatmul.mubr.f32.gmra.mrb[0].mxu0 %v4028
        %v4224 = vpop.f32.mrb[0].mxu0
        %v4225 = vadd.f32 0.0, %v4224
        %v4226 = vpop.f32.mrb[0].mxu0
        %4227 = vmatprep.mubr.f32.mxu0 %v4033
        %4228 = vmatmul.mubr.f32.gmra.mrb[0].mxu0 %v4032
        %v4229 = vpop.f32.mrb[0].mxu0
        %v4230 = vadd.f32 0.0, %v4229
        %v4231 = vpop.f32.mrb[0].mxu0
        %4232 = vmatprep.mubr.f32.mxu0 %v4037
        %4233 = vmatmul.mubr.f32.gmra.mrb[0].mxu0 %v4036
        %v4234 = vpop.f32.mrb[0].mxu0
        %v4235 = vadd.f32 0.0, %v4234
        %v4236 = vpop.f32.mrb[0].mxu0
        %4237 = vmatprep.mubr.f32.mxu0 %v4041
        %4238 = vmatmul.mubr.f32.gmra.mrb[0].mxu0 %v4040
        %v4239 = vpop.f32.mrb[0].mxu0
        %v4240 = vadd.f32 0.0, %v4239
        %v4241 = vpop.f32.mrb[0].mxu0
        %4242 = vmatprep.mubr.f32.mxu0 %v4045
        %4243 = vmatmul.mubr.f32.gmra.mrb[0].mxu0 %v4044
        %v4244 = vpop.f32.mrb[0].mxu0
        %v4245 = vadd.f32 0.0, %v4244
        %v4246 = vpop.f32.mrb[0].mxu0
        %4247 = vmatprep.mubr.f32.mxu0 %v4049
        %4248 = vmatmul.mubr.f32.gmra.mrb[0].mxu0 %v4048
        %v4249 = vpop.f32.mrb[0].mxu0
        %v4250 = vadd.f32 0.0, %v4249
        %v4251 = vpop.f32.mrb[0].mxu0
        %4252 = vmatprep.mubr.f32.mxu0 %v4053
        %4253 = vmatmul.mubr.f32.gmra.mrb[0].mxu0 %v4052
        %v4254 = vpop.f32.mrb[0].mxu0
        %v4255 = vadd.f32 0.0, %v4254
        %v4256 = vpop.f32.mrb[0].mxu0
        %4257 = vmatprep.mubr.f32.mxu0 %v4057
        %4258 = vmatmul.mubr.f32.gmra.mrb[0].mxu0 %v4056
        %v4259 = vpop.f32.mrb[0].mxu0
        %v4260 = vadd.f32 0.0, %v4259
        %v4261 = vpop.f32.mrb[0].mxu0
        %4262 = vmatprep.mubr.f32.mxu0 %v4061
        %4263 = vmatmul.mubr.f32.gmra.mrb[0].mxu0 %v4060
        %v4264 = vpop.f32.mrb[0].mxu0
        %v4265 = vadd.f32 0.0, %v4264
        %v4266 = vpop.f32.mrb[0].mxu0
        %4267 = vmatprep.mubr.f32.mxu0 %v4065
        %4268 = vmatmul.mubr.f32.gmra.mrb[0].mxu0 %v4064
        %v4269 = vpop.f32.mrb[0].mxu0
        %v4270 = vadd.f32 0.0, %v4269
        %v4271 = vpop.f32.mrb[0].mxu0
        %4272 = vmatprep.mubr.f32.mxu0 %v4069
        %4273 = vmatmul.mubr.f32.gmra.mrb[0].mxu0 %v4068
        %v4274 = vpop.f32.mrb[0].mxu0
        %v4275 = vadd.f32 0.0, %v4274
        %v4276 = vpop.f32.mrb[0].mxu0
        %4277 = vmatprep.mubr.f32.mxu0 %v4073
        %4278 = vmatmul.mubr.f32.gmra.mrb[0].mxu0 %v4072
        %v4279 = vpop.f32.mrb[0].mxu0
        %v4280 = vadd.f32 0.0, %v4279
        %v4281 = vpop.f32.mrb[0].mxu0
        %4282 = vmatprep.mubr.f32.mxu0 %v4077
        %4283 = vmatmul.mubr.f32.gmra.mrb[0].mxu0 %v4076
        %v4284 = vpop.f32.mrb[0].mxu0
        %v4285 = vadd.f32 0.0, %v4284
        %v4286 = vpop.f32.mrb[0].mxu0
        %4287 = vmatprep.mubr.f32.mxu0 %v4081
        %4288 = vmatmul.mubr.f32.gmra.mrb[0].mxu0 %v4080
        %v4289 = vpop.f32.mrb[0].mxu0
        %v4290 = vadd.f32 0.0, %v4289
        %v4291 = vpop.f32.mrb[0].mxu0
        %4292 = vmatprep.mubr.f32.mxu0 %v4085
        %4293 = vmatmul.mubr.f32.gmra.mrb[0].mxu0 %v4084
        %v4294 = vpop.f32.mrb[0].mxu0
        %v4295 = vadd.f32 0.0, %v4294
        %v4296 = vpop.f32.mrb[0].mxu0
        %4297 = vmatprep.mubr.f32.mxu0 %v4089
        %4298 = vmatmul.mubr.f32.gmra.mrb[0].mxu0 %v4088
        %v4299 = vpop.f32.mrb[0].mxu0
        %v4300 = vadd.f32 0.0, %v4299
        %v4301 = vpop.f32.mrb[0].mxu0
        %4302 = vmatprep.mubr.f32.mxu0 %v4093
        %4303 = vmatmul.mubr.f32.gmra.mrb[0].mxu0 %v4092
        %v4304 = vpop.f32.mrb[0].mxu0
        %v4305 = vadd.f32 0.0, %v4304
        %v4306 = vpop.f32.mrb[0].mxu0
        %4307 = vmatprep.mubr.f32.mxu0 %v4097
        %4308 = vmatmul.mubr.f32.gmra.mrb[0].mxu0 %v4096
        %v4309 = vpop.f32.mrb[0].mxu0
        %v4310 = vadd.f32 0.0, %v4309
        %v4311 = vpop.f32.mrb[0].mxu0
        %4312 = vmatprep.mubr.f32.mxu0 %v4101
        %4313 = vmatmul.mubr.f32.gmra.mrb[0].mxu0 %v4100
        %v4314 = vpop.f32.mrb[0].mxu0
        %v4315 = vadd.f32 0.0, %v4314
        %v4316 = vpop.f32.mrb[0].mxu0
        %4317 = vmatprep.mubr.f32.mxu0 %v4105
        %4318 = vmatmul.mubr.f32.gmra.mrb[0].mxu0 %v4104
        %v4319 = vpop.f32.mrb[0].mxu0
        %v4320 = vadd.f32 0.0, %v4319
        %v4321 = vpop.f32.mrb[0].mxu0
        %4322 = vmatprep.mubr.f32.mxu0 %v4109
        %4323 = vmatmul.mubr.f32.gmra.mrb[0].mxu0 %v4108
        %v4324 = vpop.f32.mrb[0].mxu0
        %v4325 = vadd.f32 0.0, %v4324
        %v4326 = vpop.f32.mrb[0].mxu0
        %4327 = vmatprep.mubr.f32.mxu0 %v4113
        %4328 = vmatmul.mubr.f32.gmra.mrb[0].mxu0 %v4112
        %v4329 = vpop.f32.mrb[0].mxu0
        %v4330 = vadd.f32 0.0, %v4329
        %v4331 = vpop.f32.mrb[0].mxu0
        %4332 = vmatprep.mubr.f32.mxu0 %v4117
        %4333 = vmatmul.mubr.f32.gmra.mrb[0].mxu0 %v4116
        %v4334 = vpop.f32.mrb[0].mxu0
        %v4335 = vadd.f32 0.0, %v4334
        %v4336 = vpop.f32.mrb[0].mxu0
        %4337 = vmatprep.mubr.f32.mxu0 %v4121
        %4338 = vmatmul.mubr.f32.gmra.mrb[0].mxu0 %v4120
        %v4339 = vpop.f32.mrb[0].mxu0
        %v4340 = vadd.f32 0.0, %v4339
        %v4341 = vpop.f32.mrb[0].mxu0
        %4342 = vmatprep.mubr.f32.mxu0 %v4125
        %4343 = vmatmul.mubr.f32.gmra.mrb[0].mxu0 %v4124
        %v4344 = vpop.f32.mrb[0].mxu0
        %v4345 = vadd.f32 0.0, %v4344
        %v4346 = vpop.f32.mrb[0].mxu0
        %4347 = vmatprep.mubr.f32.mxu0 %v4129
        %4348 = vmatmul.mubr.f32.gmra.mrb[0].mxu0 %v4128
        %v4349 = vpop.f32.mrb[0].mxu0
        %v4350 = vadd.f32 0.0, %v4349
        %v4351 = vpop.f32.mrb[0].mxu0
        %4352 = vmatprep.mubr.f32.mxu0 %v4133
        %4353 = vmatmul.mubr.f32.gmra.mrb[0].mxu0 %v4132
        %v4354 = vpop.f32.mrb[0].mxu0
        %v4355 = vadd.f32 0.0, %v4354
        %v4356 = vpop.f32.mrb[0].mxu0
        %4357 = vmatprep.mubr.f32.mxu0 %v4137
        %4358 = vmatmul.mubr.f32.gmra.mrb[0].mxu0 %v4136
        %v4359 = vpop.f32.mrb[0].mxu0
        %v4360 = vadd.f32 0.0, %v4359
        %v4361 = vpop.f32.mrb[0].mxu0
        %4362 = vmatprep.mubr.f32.mxu0 %v4141
        %4363 = vmatmul.mubr.f32.gmra.mrb[0].mxu0 %v4140
        %v4364 = vpop.f32.mrb[0].mxu0
        %v4365 = vadd.f32 0.0, %v4364
        %v4366 = vpop.f32.mrb[0].mxu0
        %4367 = vmatprep.mubr.f32.mxu0 %v4145
        %4368 = vmatmul.mubr.f32.gmra.mrb[0].mxu0 %v4144
        %v4369 = vpop.f32.mrb[0].mxu0
        %v4370 = vadd.f32 0.0, %v4369
        %v4371 = vpop.f32.mrb[0].mxu0
        %4372 = vdwg.mxu0
        %4373 = vmatprep.subr.mxu0 0.0
        %4374 = vmatpush1.msra.mxu0 %v290
        %4375 = vmatprep.subr.mxu0 0.0
        %4376 = vmatpush1.msra.mxu0 %v291
        %4377 = vmatprep.subr.mxu0 0.0
        %4378 = vmatpush1.msra.mxu0 %v292
        %4379 = vmatprep.subr.mxu0 0.0
        %4380 = vmatpush1.msra.mxu0 %v293
        %4381 = vmatprep.subr.mxu0 0.0
        %4382 = vmatpush1.msra.mxu0 %v294
        %4383 = vmatprep.subr.mxu0 0.0
        %4384 = vmatpush1.msra.mxu0 %v295
        %4385 = vmatprep.subr.mxu0 0.0
        %4386 = vmatpush1.msra.mxu0 %v296
        %4387 = vmatprep.subr.mxu0 0.0
        %4388 = vmatpush1.msra.mxu0 %v297
        %4389 = vmatprep.subr.mxu0 0.0
        %4390 = vmatpush1.msra.mxu0 %v298
        %4391 = vmatprep.subr.mxu0 0.0
        %4392 = vmatpush1.msra.mxu0 %v299
        %4393 = vmatprep.subr.mxu0 0.0
        %4394 = vmatpush1.msra.mxu0 %v300
        %4395 = vmatprep.subr.mxu0 0.0
        %4396 = vmatpush1.msra.mxu0 %v301
        %4397 = vmatprep.subr.mxu0 0.0
        %4398 = vmatpush1.msra.mxu0 %v302
        %4399 = vmatprep.subr.mxu0 0.0
        %4400 = vmatpush1.msra.mxu0 %v303
        %4401 = vmatprep.subr.mxu0 0.0
        %4402 = vmatpush1.msra.mxu0 %v304
        %4403 = vmatprep.subr.mxu0 0.0
        %4404 = vmatpush1.msra.mxu0 %v305
        %4405 = vmatprep.subr.mxu0 0.0
        %4406 = vmatpush1.msra.mxu0 %v306
        %4407 = vmatprep.subr.mxu0 0.0
        %4408 = vmatpush1.msra.mxu0 %v307
        %4409 = vmatprep.subr.mxu0 0.0
        %4410 = vmatpush1.msra.mxu0 %v308
        %4411 = vmatprep.subr.mxu0 0.0
        %4412 = vmatpush1.msra.mxu0 %v309
        %4413 = vmatprep.subr.mxu0 0.0
        %4414 = vmatpush1.msra.mxu0 %v310
        %4415 = vmatprep.subr.mxu0 0.0
        %4416 = vmatpush1.msra.mxu0 %v311
        %4417 = vmatprep.subr.mxu0 0.0
        %4418 = vmatpush1.msra.mxu0 %v312
        %4419 = vmatprep.subr.mxu0 0.0
        %4420 = vmatpush1.msra.mxu0 %v313
        %4421 = vmatprep.subr.mxu0 0.0
        %4422 = vmatpush1.msra.mxu0 %v314
        %4423 = vmatprep.subr.mxu0 0.0
        %4424 = vmatpush1.msra.mxu0 %v315
        %4425 = vmatprep.subr.mxu0 0.0
        %4426 = vmatpush1.msra.mxu0 %v316
        %4427 = vmatprep.subr.mxu0 0.0
        %4428 = vmatpush1.msra.mxu0 %v317
        %4429 = vmatprep.subr.mxu0 0.0
        %4430 = vmatpush1.msra.mxu0 %v318
        %4431 = vmatprep.subr.mxu0 0.0
        %4432 = vmatpush1.msra.mxu0 %v319
        %4433 = vmatprep.subr.mxu0 0.0
        %4434 = vmatpush1.msra.mxu0 %v320
        %4435 = vmatprep.subr.mxu0 0.0
        %4436 = vmatpush1.msra.mxu0 %v321
        %4437 = vmatprep.mubr.f32.mxu0 %v4023
        %4438 = vmatmul.mubr.f32.gmra.mrb[0].mxu0 %v4022
        %v4439 = vpop.f32.mrb[0].mxu0
        %v4440 = vadd.f32 %v4215, %v4439
        %v4441 = vpop.f32.mrb[0].mxu0
        %4442 = vmatprep.mubr.f32.mxu0 %v4027
        %4443 = vmatmul.mubr.f32.gmra.mrb[0].mxu0 %v4026
        %v4444 = vpop.f32.mrb[0].mxu0
        %v4445 = vadd.f32 %v4220, %v4444
        %v4446 = vpop.f32.mrb[0].mxu0
        %4447 = vmatprep.mubr.f32.mxu0 %v4031
        %4448 = vmatmul.mubr.f32.gmra.mrb[0].mxu0 %v4030
        %v4449 = vpop.f32.mrb[0].mxu0
        %v4450 = vadd.f32 %v4225, %v4449
        %v4451 = vpop.f32.mrb[0].mxu0
        %4452 = vmatprep.mubr.f32.mxu0 %v4035
        %4453 = vmatmul.mubr.f32.gmra.mrb[0].mxu0 %v4034
        %v4454 = vpop.f32.mrb[0].mxu0
        %v4455 = vadd.f32 %v4230, %v4454
        %v4456 = vpop.f32.mrb[0].mxu0
        %4457 = vmatprep.mubr.f32.mxu0 %v4039
        %4458 = vmatmul.mubr.f32.gmra.mrb[0].mxu0 %v4038
        %v4459 = vpop.f32.mrb[0].mxu0
        %v4460 = vadd.f32 %v4235, %v4459
        %v4461 = vpop.f32.mrb[0].mxu0
        %4462 = vmatprep.mubr.f32.mxu0 %v4043
        %4463 = vmatmul.mubr.f32.gmra.mrb[0].mxu0 %v4042
        %v4464 = vpop.f32.mrb[0].mxu0
        %v4465 = vadd.f32 %v4240, %v4464
        %v4466 = vpop.f32.mrb[0].mxu0
        %4467 = vmatprep.mubr.f32.mxu0 %v4047
        %4468 = vmatmul.mubr.f32.gmra.mrb[0].mxu0 %v4046
        %v4469 = vpop.f32.mrb[0].mxu0
        %v4470 = vadd.f32 %v4245, %v4469
        %v4471 = vpop.f32.mrb[0].mxu0
        %4472 = vmatprep.mubr.f32.mxu0 %v4051
        %4473 = vmatmul.mubr.f32.gmra.mrb[0].mxu0 %v4050
        %v4474 = vpop.f32.mrb[0].mxu0
        %v4475 = vadd.f32 %v4250, %v4474
        %v4476 = vpop.f32.mrb[0].mxu0
        %4477 = vmatprep.mubr.f32.mxu0 %v4055
        %4478 = vmatmul.mubr.f32.gmra.mrb[0].mxu0 %v4054
        %v4479 = vpop.f32.mrb[0].mxu0
        %v4480 = vadd.f32 %v4255, %v4479
        %v4481 = vpop.f32.mrb[0].mxu0
        %4482 = vmatprep.mubr.f32.mxu0 %v4059
        %4483 = vmatmul.mubr.f32.gmra.mrb[0].mxu0 %v4058
        %v4484 = vpop.f32.mrb[0].mxu0
        %v4485 = vadd.f32 %v4260, %v4484
        %v4486 = vpop.f32.mrb[0].mxu0
        %4487 = vmatprep.mubr.f32.mxu0 %v4063
        %4488 = vmatmul.mubr.f32.gmra.mrb[0].mxu0 %v4062
        %v4489 = vpop.f32.mrb[0].mxu0
        %v4490 = vadd.f32 %v4265, %v4489
        %v4491 = vpop.f32.mrb[0].mxu0
        %4492 = vmatprep.mubr.f32.mxu0 %v4067
        %4493 = vmatmul.mubr.f32.gmra.mrb[0].mxu0 %v4066
        %v4494 = vpop.f32.mrb[0].mxu0
        %v4495 = vadd.f32 %v4270, %v4494
        %v4496 = vpop.f32.mrb[0].mxu0
        %4497 = vmatprep.mubr.f32.mxu0 %v4071
        %4498 = vmatmul.mubr.f32.gmra.mrb[0].mxu0 %v4070
        %v4499 = vpop.f32.mrb[0].mxu0
        %v4500 = vadd.f32 %v4275, %v4499
        %v4501 = vpop.f32.mrb[0].mxu0
        %4502 = vmatprep.mubr.f32.mxu0 %v4075
        %4503 = vmatmul.mubr.f32.gmra.mrb[0].mxu0 %v4074
        %v4504 = vpop.f32.mrb[0].mxu0
        %v4505 = vadd.f32 %v4280, %v4504
        %v4506 = vpop.f32.mrb[0].mxu0
        %4507 = vmatprep.mubr.f32.mxu0 %v4079
        %4508 = vmatmul.mubr.f32.gmra.mrb[0].mxu0 %v4078
        %v4509 = vpop.f32.mrb[0].mxu0
        %v4510 = vadd.f32 %v4285, %v4509
        %v4511 = vpop.f32.mrb[0].mxu0
        %4512 = vmatprep.mubr.f32.mxu0 %v4083
        %4513 = vmatmul.mubr.f32.gmra.mrb[0].mxu0 %v4082
        %v4514 = vpop.f32.mrb[0].mxu0
        %v4515 = vadd.f32 %v4290, %v4514
        %v4516 = vpop.f32.mrb[0].mxu0
        %4517 = vmatprep.mubr.f32.mxu0 %v4087
        %4518 = vmatmul.mubr.f32.gmra.mrb[0].mxu0 %v4086
        %v4519 = vpop.f32.mrb[0].mxu0
        %v4520 = vadd.f32 %v4295, %v4519
        %v4521 = vpop.f32.mrb[0].mxu0
        %4522 = vmatprep.mubr.f32.mxu0 %v4091
        %4523 = vmatmul.mubr.f32.gmra.mrb[0].mxu0 %v4090
        %v4524 = vpop.f32.mrb[0].mxu0
        %v4525 = vadd.f32 %v4300, %v4524
        %v4526 = vpop.f32.mrb[0].mxu0
        %4527 = vmatprep.mubr.f32.mxu0 %v4095
        %4528 = vmatmul.mubr.f32.gmra.mrb[0].mxu0 %v4094
        %v4529 = vpop.f32.mrb[0].mxu0
        %v4530 = vadd.f32 %v4305, %v4529
        %v4531 = vpop.f32.mrb[0].mxu0
        %4532 = vmatprep.mubr.f32.mxu0 %v4099
        %4533 = vmatmul.mubr.f32.gmra.mrb[0].mxu0 %v4098
        %v4534 = vpop.f32.mrb[0].mxu0
        %v4535 = vadd.f32 %v4310, %v4534
        %v4536 = vpop.f32.mrb[0].mxu0
        %4537 = vmatprep.mubr.f32.mxu0 %v4103
        %4538 = vmatmul.mubr.f32.gmra.mrb[0].mxu0 %v4102
        %v4539 = vpop.f32.mrb[0].mxu0
        %v4540 = vadd.f32 %v4315, %v4539
        %v4541 = vpop.f32.mrb[0].mxu0
        %4542 = vmatprep.mubr.f32.mxu0 %v4107
        %4543 = vmatmul.mubr.f32.gmra.mrb[0].mxu0 %v4106
        %v4544 = vpop.f32.mrb[0].mxu0
        %v4545 = vadd.f32 %v4320, %v4544
        %v4546 = vpop.f32.mrb[0].mxu0
        %4547 = vmatprep.mubr.f32.mxu0 %v4111
        %4548 = vmatmul.mubr.f32.gmra.mrb[0].mxu0 %v4110
        %v4549 = vpop.f32.mrb[0].mxu0
        %v4550 = vadd.f32 %v4325, %v4549
        %v4551 = vpop.f32.mrb[0].mxu0
        %4552 = vmatprep.mubr.f32.mxu0 %v4115
        %4553 = vmatmul.mubr.f32.gmra.mrb[0].mxu0 %v4114
        %v4554 = vpop.f32.mrb[0].mxu0
        %v4555 = vadd.f32 %v4330, %v4554
        %v4556 = vpop.f32.mrb[0].mxu0
        %4557 = vmatprep.mubr.f32.mxu0 %v4119
        %4558 = vmatmul.mubr.f32.gmra.mrb[0].mxu0 %v4118
        %v4559 = vpop.f32.mrb[0].mxu0
        %v4560 = vadd.f32 %v4335, %v4559
        %v4561 = vpop.f32.mrb[0].mxu0
        %4562 = vmatprep.mubr.f32.mxu0 %v4123
        %4563 = vmatmul.mubr.f32.gmra.mrb[0].mxu0 %v4122
        %v4564 = vpop.f32.mrb[0].mxu0
        %v4565 = vadd.f32 %v4340, %v4564
        %v4566 = vpop.f32.mrb[0].mxu0
        %4567 = vmatprep.mubr.f32.mxu0 %v4127
        %4568 = vmatmul.mubr.f32.gmra.mrb[0].mxu0 %v4126
        %v4569 = vpop.f32.mrb[0].mxu0
        %v4570 = vadd.f32 %v4345, %v4569
        %v4571 = vpop.f32.mrb[0].mxu0
        %4572 = vmatprep.mubr.f32.mxu0 %v4131
        %4573 = vmatmul.mubr.f32.gmra.mrb[0].mxu0 %v4130
        %v4574 = vpop.f32.mrb[0].mxu0
        %v4575 = vadd.f32 %v4350, %v4574
        %v4576 = vpop.f32.mrb[0].mxu0
        %4577 = vmatprep.mubr.f32.mxu0 %v4135
        %4578 = vmatmul.mubr.f32.gmra.mrb[0].mxu0 %v4134
        %v4579 = vpop.f32.mrb[0].mxu0
        %v4580 = vadd.f32 %v4355, %v4579
        %v4581 = vpop.f32.mrb[0].mxu0
        %4582 = vmatprep.mubr.f32.mxu0 %v4139
        %4583 = vmatmul.mubr.f32.gmra.mrb[0].mxu0 %v4138
        %v4584 = vpop.f32.mrb[0].mxu0
        %v4585 = vadd.f32 %v4360, %v4584
        %v4586 = vpop.f32.mrb[0].mxu0
        %4587 = vmatprep.mubr.f32.mxu0 %v4143
        %4588 = vmatmul.mubr.f32.gmra.mrb[0].mxu0 %v4142
        %v4589 = vpop.f32.mrb[0].mxu0
        %v4590 = vadd.f32 %v4365, %v4589
        %v4591 = vpop.f32.mrb[0].mxu0
        %4592 = vmatprep.mubr.f32.mxu0 %v4147
        %4593 = vmatmul.mubr.f32.gmra.mrb[0].mxu0 %v4146
        %v4594 = vpop.f32.mrb[0].mxu0
        %v4595 = vadd.f32 %v4370, %v4594
        %v4596 = vpop.f32.mrb[0].mxu0
        %4597 = vdwg.mxu0
        %vm4598 = vcmask 31744
        %v4599 = vsel %vm4598, %v4440, -inf
        %4600 = vmax.xlane.f32.xlu0 %v4599
        %v4601 = vpop.xlane.xlu0 %4600
        %v4602 = vsel %vm4598, %v4445, -inf
        %4603 = vmax.xlane.f32.xlu0 %v4602
        %v4604 = vpop.xlane.xlu0 %4603
        %v4605 = vsel %vm4598, %v4450, -inf
        %4606 = vmax.xlane.f32.xlu0 %v4605
        %v4607 = vpop.xlane.xlu0 %4606
        %v4608 = vsel %vm4598, %v4455, -inf
        %4609 = vmax.xlane.f32.xlu0 %v4608
        %v4610 = vpop.xlane.xlu0 %4609
        %v4611 = vsel %vm4598, %v4460, -inf
        %4612 = vmax.xlane.f32.xlu0 %v4611
        %v4613 = vpop.xlane.xlu0 %4612
        %v4614 = vsel %vm4598, %v4465, -inf
        %4615 = vmax.xlane.f32.xlu0 %v4614
        %v4616 = vpop.xlane.xlu0 %4615
        %v4617 = vsel %vm4598, %v4470, -inf
        %4618 = vmax.xlane.f32.xlu0 %v4617
        %v4619 = vpop.xlane.xlu0 %4618
        %v4620 = vsel %vm4598, %v4475, -inf
        %4621 = vmax.xlane.f32.xlu0 %v4620
        %v4622 = vpop.xlane.xlu0 %4621
        %v4623 = vsel %vm4598, %v4480, -inf
        %4624 = vmax.xlane.f32.xlu0 %v4623
        %v4625 = vpop.xlane.xlu0 %4624
        %v4626 = vsel %vm4598, %v4485, -inf
        %4627 = vmax.xlane.f32.xlu0 %v4626
        %v4628 = vpop.xlane.xlu0 %4627
        %v4629 = vsel %vm4598, %v4490, -inf
        %4630 = vmax.xlane.f32.xlu0 %v4629
        %v4631 = vpop.xlane.xlu0 %4630
        %v4632 = vsel %vm4598, %v4495, -inf
        %4633 = vmax.xlane.f32.xlu0 %v4632
        %v4634 = vpop.xlane.xlu0 %4633
        %v4635 = vsel %vm4598, %v4500, -inf
        %4636 = vmax.xlane.f32.xlu0 %v4635
        %v4637 = vpop.xlane.xlu0 %4636
        %v4638 = vsel %vm4598, %v4505, -inf
        %4639 = vmax.xlane.f32.xlu0 %v4638
        %v4640 = vpop.xlane.xlu0 %4639
        %v4641 = vsel %vm4598, %v4510, -inf
        %4642 = vmax.xlane.f32.xlu0 %v4641
        %v4643 = vpop.xlane.xlu0 %4642
        %v4644 = vsel %vm4598, %v4515, -inf
        %4645 = vmax.xlane.f32.xlu0 %v4644
        %v4646 = vpop.xlane.xlu0 %4645
        %v4647 = vsel %vm4598, %v4520, -inf
        %4648 = vmax.xlane.f32.xlu0 %v4647
        %v4649 = vpop.xlane.xlu0 %4648
        %v4650 = vsel %vm4598, %v4525, -inf
        %4651 = vmax.xlane.f32.xlu0 %v4650
        %v4652 = vpop.xlane.xlu0 %4651
        %v4653 = vsel %vm4598, %v4530, -inf
        %4654 = vmax.xlane.f32.xlu0 %v4653
        %v4655 = vpop.xlane.xlu0 %4654
        %v4656 = vsel %vm4598, %v4535, -inf
        %4657 = vmax.xlane.f32.xlu0 %v4656
        %v4658 = vpop.xlane.xlu0 %4657
        %v4659 = vsel %vm4598, %v4540, -inf
        %4660 = vmax.xlane.f32.xlu0 %v4659
        %v4661 = vpop.xlane.xlu0 %4660
        %v4662 = vsel %vm4598, %v4545, -inf
        %4663 = vmax.xlane.f32.xlu0 %v4662
        %v4664 = vpop.xlane.xlu0 %4663
        %v4665 = vsel %vm4598, %v4550, -inf
        %4666 = vmax.xlane.f32.xlu0 %v4665
        %v4667 = vpop.xlane.xlu0 %4666
        %v4668 = vsel %vm4598, %v4555, -inf
        %4669 = vmax.xlane.f32.xlu0 %v4668
        %v4670 = vpop.xlane.xlu0 %4669
        %v4671 = vsel %vm4598, %v4560, -inf
        %4672 = vmax.xlane.f32.xlu0 %v4671
        %v4673 = vpop.xlane.xlu0 %4672
        %v4674 = vsel %vm4598, %v4565, -inf
        %4675 = vmax.xlane.f32.xlu0 %v4674
        %v4676 = vpop.xlane.xlu0 %4675
        %v4677 = vsel %vm4598, %v4570, -inf
        %4678 = vmax.xlane.f32.xlu0 %v4677
        %v4679 = vpop.xlane.xlu0 %4678
        %v4680 = vsel %vm4598, %v4575, -inf
        %4681 = vmax.xlane.f32.xlu0 %v4680
        %v4682 = vpop.xlane.xlu0 %4681
        %v4683 = vsel %vm4598, %v4580, -inf
        %4684 = vmax.xlane.f32.xlu0 %v4683
        %v4685 = vpop.xlane.xlu0 %4684
        %v4686 = vsel %vm4598, %v4585, -inf
        %4687 = vmax.xlane.f32.xlu0 %v4686
        %v4688 = vpop.xlane.xlu0 %4687
        %v4689 = vsel %vm4598, %v4590, -inf
        %4690 = vmax.xlane.f32.xlu0 %v4689
        %v4691 = vpop.xlane.xlu0 %4690
        %v4692 = vsel %vm4598, %v4595, -inf
        %4693 = vmax.xlane.f32.xlu0 %v4692
        %v4694 = vpop.xlane.xlu0 %4693
        %v4695 = vsub.f32 %v4440, %v4601
        %v4696 = vsub.f32 %v4445, %v4604
        %v4697 = vsub.f32 %v4450, %v4607
        %v4698 = vsub.f32 %v4455, %v4610
        %v4699 = vsub.f32 %v4460, %v4613
        %v4700 = vsub.f32 %v4465, %v4616
        %v4701 = vsub.f32 %v4470, %v4619
        %v4702 = vsub.f32 %v4475, %v4622
        %v4703 = vsub.f32 %v4480, %v4625
        %v4704 = vsub.f32 %v4485, %v4628
        %v4705 = vsub.f32 %v4490, %v4631
        %v4706 = vsub.f32 %v4495, %v4634
        %v4707 = vsub.f32 %v4500, %v4637
        %v4708 = vsub.f32 %v4505, %v4640
        %v4709 = vsub.f32 %v4510, %v4643
        %v4710 = vsub.f32 %v4515, %v4646
        %v4711 = vsub.f32 %v4520, %v4649
        %v4712 = vsub.f32 %v4525, %v4652
        %v4713 = vsub.f32 %v4530, %v4655
        %v4714 = vsub.f32 %v4535, %v4658
        %v4715 = vsub.f32 %v4540, %v4661
        %v4716 = vsub.f32 %v4545, %v4664
        %v4717 = vsub.f32 %v4550, %v4667
        %v4718 = vsub.f32 %v4555, %v4670
        %v4719 = vsub.f32 %v4560, %v4673
        %v4720 = vsub.f32 %v4565, %v4676
        %v4721 = vsub.f32 %v4570, %v4679
        %v4722 = vsub.f32 %v4575, %v4682
        %v4723 = vsub.f32 %v4580, %v4685
        %v4724 = vsub.f32 %v4585, %v4688
        %v4725 = vsub.f32 %v4590, %v4691
        %v4726 = vsub.f32 %v4595, %v4694
        %v4727 = vmul.f32 %v4695, 1.442695
        %v4728 = vpow.pop %v4727
        %v4729 = vmul.f32 %v4696, 1.442695
        %v4730 = vpow.pop %v4729
        %v4731 = vmul.f32 %v4697, 1.442695
        %v4732 = vpow.pop %v4731
        %v4733 = vmul.f32 %v4698, 1.442695
        %v4734 = vpow.pop %v4733
        %v4735 = vmul.f32 %v4699, 1.442695
        %v4736 = vpow.pop %v4735
        %v4737 = vmul.f32 %v4700, 1.442695
        %v4738 = vpow.pop %v4737
        %v4739 = vmul.f32 %v4701, 1.442695
        %v4740 = vpow.pop %v4739
        %v4741 = vmul.f32 %v4702, 1.442695
        %v4742 = vpow.pop %v4741
        %v4743 = vmul.f32 %v4703, 1.442695
        %v4744 = vpow.pop %v4743
        %v4745 = vmul.f32 %v4704, 1.442695
        %v4746 = vpow.pop %v4745
        %v4747 = vmul.f32 %v4705, 1.442695
        %v4748 = vpow.pop %v4747
        %v4749 = vmul.f32 %v4706, 1.442695
        %v4750 = vpow.pop %v4749
        %v4751 = vmul.f32 %v4707, 1.442695
        %v4752 = vpow.pop %v4751
        %v4753 = vmul.f32 %v4708, 1.442695
        %v4754 = vpow.pop %v4753
        %v4755 = vmul.f32 %v4709, 1.442695
        %v4756 = vpow.pop %v4755
        %v4757 = vmul.f32 %v4710, 1.442695
        %v4758 = vpow.pop %v4757
        %v4759 = vmul.f32 %v4711, 1.442695
        %v4760 = vpow.pop %v4759
        %v4761 = vmul.f32 %v4712, 1.442695
        %v4762 = vpow.pop %v4761
        %v4763 = vmul.f32 %v4713, 1.442695
        %v4764 = vpow.pop %v4763
        %v4765 = vmul.f32 %v4714, 1.442695
        %v4766 = vpow.pop %v4765
        %v4767 = vmul.f32 %v4715, 1.442695
        %v4768 = vpow.pop %v4767
        %v4769 = vmul.f32 %v4716, 1.442695
        %v4770 = vpow.pop %v4769
        %v4771 = vmul.f32 %v4717, 1.442695
        %v4772 = vpow.pop %v4771
        %v4773 = vmul.f32 %v4718, 1.442695
        %v4774 = vpow.pop %v4773
        %v4775 = vmul.f32 %v4719, 1.442695
        %v4776 = vpow.pop %v4775
        %v4777 = vmul.f32 %v4720, 1.442695
        %v4778 = vpow.pop %v4777
        %v4779 = vmul.f32 %v4721, 1.442695
        %v4780 = vpow.pop %v4779
        %v4781 = vmul.f32 %v4722, 1.442695
        %v4782 = vpow.pop %v4781
        %v4783 = vmul.f32 %v4723, 1.442695
        %v4784 = vpow.pop %v4783
        %v4785 = vmul.f32 %v4724, 1.442695
        %v4786 = vpow.pop %v4785
        %v4787 = vmul.f32 %v4725, 1.442695
        %v4788 = vpow.pop %v4787
        %v4789 = vmul.f32 %v4726, 1.442695
        %v4790 = vpow.pop %v4789
        %v4791 = vsel %vm4598, %v4728, 0.0
        %4792 = vadd.xlane.f32.xlu0 %v4791
        %v4793 = vpop.xlane.xlu0 %4792
        %v4794 = vsel %vm4598, %v4730, 0.0
        %4795 = vadd.xlane.f32.xlu0 %v4794
        %v4796 = vpop.xlane.xlu0 %4795
        %v4797 = vsel %vm4598, %v4732, 0.0
        %4798 = vadd.xlane.f32.xlu0 %v4797
        %v4799 = vpop.xlane.xlu0 %4798
        %v4800 = vsel %vm4598, %v4734, 0.0
        %4801 = vadd.xlane.f32.xlu0 %v4800
        %v4802 = vpop.xlane.xlu0 %4801
        %v4803 = vsel %vm4598, %v4736, 0.0
        %4804 = vadd.xlane.f32.xlu0 %v4803
        %v4805 = vpop.xlane.xlu0 %4804
        %v4806 = vsel %vm4598, %v4738, 0.0
        %4807 = vadd.xlane.f32.xlu0 %v4806
        %v4808 = vpop.xlane.xlu0 %4807
        %v4809 = vsel %vm4598, %v4740, 0.0
        %4810 = vadd.xlane.f32.xlu0 %v4809
        %v4811 = vpop.xlane.xlu0 %4810
        %v4812 = vsel %vm4598, %v4742, 0.0
        %4813 = vadd.xlane.f32.xlu0 %v4812
        %v4814 = vpop.xlane.xlu0 %4813
        %v4815 = vsel %vm4598, %v4744, 0.0
        %4816 = vadd.xlane.f32.xlu0 %v4815
        %v4817 = vpop.xlane.xlu0 %4816
        %v4818 = vsel %vm4598, %v4746, 0.0
        %4819 = vadd.xlane.f32.xlu0 %v4818
        %v4820 = vpop.xlane.xlu0 %4819
        %v4821 = vsel %vm4598, %v4748, 0.0
        %4822 = vadd.xlane.f32.xlu0 %v4821
        %v4823 = vpop.xlane.xlu0 %4822
        %v4824 = vsel %vm4598, %v4750, 0.0
        %4825 = vadd.xlane.f32.xlu0 %v4824
        %v4826 = vpop.xlane.xlu0 %4825
        %v4827 = vsel %vm4598, %v4752, 0.0
        %4828 = vadd.xlane.f32.xlu0 %v4827
        %v4829 = vpop.xlane.xlu0 %4828
        %v4830 = vsel %vm4598, %v4754, 0.0
        %4831 = vadd.xlane.f32.xlu0 %v4830
        %v4832 = vpop.xlane.xlu0 %4831
        %v4833 = vsel %vm4598, %v4756, 0.0
        %4834 = vadd.xlane.f32.xlu0 %v4833
        %v4835 = vpop.xlane.xlu0 %4834
        %v4836 = vsel %vm4598, %v4758, 0.0
        %4837 = vadd.xlane.f32.xlu0 %v4836
        %v4838 = vpop.xlane.xlu0 %4837
        %v4839 = vsel %vm4598, %v4760, 0.0
        %4840 = vadd.xlane.f32.xlu0 %v4839
        %v4841 = vpop.xlane.xlu0 %4840
        %v4842 = vsel %vm4598, %v4762, 0.0
        %4843 = vadd.xlane.f32.xlu0 %v4842
        %v4844 = vpop.xlane.xlu0 %4843
        %v4845 = vsel %vm4598, %v4764, 0.0
        %4846 = vadd.xlane.f32.xlu0 %v4845
        %v4847 = vpop.xlane.xlu0 %4846
        %v4848 = vsel %vm4598, %v4766, 0.0
        %4849 = vadd.xlane.f32.xlu0 %v4848
        %v4850 = vpop.xlane.xlu0 %4849
        %v4851 = vsel %vm4598, %v4768, 0.0
        %4852 = vadd.xlane.f32.xlu0 %v4851
        %v4853 = vpop.xlane.xlu0 %4852
        %v4854 = vsel %vm4598, %v4770, 0.0
        %4855 = vadd.xlane.f32.xlu0 %v4854
        %v4856 = vpop.xlane.xlu0 %4855
        %v4857 = vsel %vm4598, %v4772, 0.0
        %4858 = vadd.xlane.f32.xlu0 %v4857
        %v4859 = vpop.xlane.xlu0 %4858
        %v4860 = vsel %vm4598, %v4774, 0.0
        %4861 = vadd.xlane.f32.xlu0 %v4860
        %v4862 = vpop.xlane.xlu0 %4861
        %v4863 = vsel %vm4598, %v4776, 0.0
        %4864 = vadd.xlane.f32.xlu0 %v4863
        %v4865 = vpop.xlane.xlu0 %4864
        %v4866 = vsel %vm4598, %v4778, 0.0
        %4867 = vadd.xlane.f32.xlu0 %v4866
        %v4868 = vpop.xlane.xlu0 %4867
        %v4869 = vsel %vm4598, %v4780, 0.0
        %4870 = vadd.xlane.f32.xlu0 %v4869
        %v4871 = vpop.xlane.xlu0 %4870
        %v4872 = vsel %vm4598, %v4782, 0.0
        %4873 = vadd.xlane.f32.xlu0 %v4872
        %v4874 = vpop.xlane.xlu0 %4873
        %v4875 = vsel %vm4598, %v4784, 0.0
        %4876 = vadd.xlane.f32.xlu0 %v4875
        %v4877 = vpop.xlane.xlu0 %4876
        %v4878 = vsel %vm4598, %v4786, 0.0
        %4879 = vadd.xlane.f32.xlu0 %v4878
        %v4880 = vpop.xlane.xlu0 %4879
        %v4881 = vsel %vm4598, %v4788, 0.0
        %4882 = vadd.xlane.f32.xlu0 %v4881
        %v4883 = vpop.xlane.xlu0 %4882
        %v4884 = vsel %vm4598, %v4790, 0.0
        %4885 = vadd.xlane.f32.xlu0 %v4884
        %v4886 = vpop.xlane.xlu0 %4885
        %v4887 = vrcp.pop %v4793
        %v4888 = vrcp.pop %v4796
        %v4889 = vrcp.pop %v4799
        %v4890 = vrcp.pop %v4802
        %v4891 = vrcp.pop %v4805
        %v4892 = vrcp.pop %v4808
        %v4893 = vrcp.pop %v4811
        %v4894 = vrcp.pop %v4814
        %v4895 = vrcp.pop %v4817
        %v4896 = vrcp.pop %v4820
        %v4897 = vrcp.pop %v4823
        %v4898 = vrcp.pop %v4826
        %v4899 = vrcp.pop %v4829
        %v4900 = vrcp.pop %v4832
        %v4901 = vrcp.pop %v4835
        %v4902 = vrcp.pop %v4838
        %v4903 = vrcp.pop %v4841
        %v4904 = vrcp.pop %v4844
        %v4905 = vrcp.pop %v4847
        %v4906 = vrcp.pop %v4850
        %v4907 = vrcp.pop %v4853
        %v4908 = vrcp.pop %v4856
        %v4909 = vrcp.pop %v4859
        %v4910 = vrcp.pop %v4862
        %v4911 = vrcp.pop %v4865
        %v4912 = vrcp.pop %v4868
        %v4913 = vrcp.pop %v4871
        %v4914 = vrcp.pop %v4874
        %v4915 = vrcp.pop %v4877
        %v4916 = vrcp.pop %v4880
        %v4917 = vrcp.pop %v4883
        %v4918 = vrcp.pop %v4886
        %v4919 = vmul.f32 %v4728, %v4887
        %v4920 = vmul.f32 %v4730, %v4888
        %v4921 = vmul.f32 %v4732, %v4889
        %v4922 = vmul.f32 %v4734, %v4890
        %v4923 = vmul.f32 %v4736, %v4891
        %v4924 = vmul.f32 %v4738, %v4892
        %v4925 = vmul.f32 %v4740, %v4893
        %v4926 = vmul.f32 %v4742, %v4894
        %v4927 = vmul.f32 %v4744, %v4895
        %v4928 = vmul.f32 %v4746, %v4896
        %v4929 = vmul.f32 %v4748, %v4897
        %v4930 = vmul.f32 %v4750, %v4898
        %v4931 = vmul.f32 %v4752, %v4899
        %v4932 = vmul.f32 %v4754, %v4900
        %v4933 = vmul.f32 %v4756, %v4901
        %v4934 = vmul.f32 %v4758, %v4902
        %v4935 = vmul.f32 %v4760, %v4903
        %v4936 = vmul.f32 %v4762, %v4904
        %v4937 = vmul.f32 %v4764, %v4905
        %v4938 = vmul.f32 %v4766, %v4906
        %v4939 = vmul.f32 %v4768, %v4907
        %v4940 = vmul.f32 %v4770, %v4908
        %v4941 = vmul.f32 %v4772, %v4909
        %v4942 = vmul.f32 %v4774, %v4910
        %v4943 = vmul.f32 %v4776, %v4911
        %v4944 = vmul.f32 %v4778, %v4912
        %v4945 = vmul.f32 %v4780, %v4913
        %v4946 = vmul.f32 %v4782, %v4914
        %v4947 = vmul.f32 %v4784, %v4915
        %v4948 = vmul.f32 %v4786, %v4916
        %v4949 = vmul.f32 %v4788, %v4917
        %v4950 = vmul.f32 %v4790, %v4918
        %v4952 = vsel %vm4598, %v4919, 0
        %v4955 = vsel %vm4598, %v4920, 0
        %v4958 = vsel %vm4598, %v4921, 0
        %v4961 = vsel %vm4598, %v4922, 0
        %v4964 = vsel %vm4598, %v4923, 0
        %v4967 = vsel %vm4598, %v4924, 0
        %v4970 = vsel %vm4598, %v4925, 0
        %v4973 = vsel %vm4598, %v4926, 0
        %v4976 = vsel %vm4598, %v4927, 0
        %v4979 = vsel %vm4598, %v4928, 0
        %v4982 = vsel %vm4598, %v4929, 0
        %v4985 = vsel %vm4598, %v4930, 0
        %v4988 = vsel %vm4598, %v4931, 0
        %v4991 = vsel %vm4598, %v4932, 0
        %v4994 = vsel %vm4598, %v4933, 0
        %v4997 = vsel %vm4598, %v4934, 0
        %v5000 = vsel %vm4598, %v4935, 0
        %v5003 = vsel %vm4598, %v4936, 0
        %v5006 = vsel %vm4598, %v4937, 0
        %v5009 = vsel %vm4598, %v4938, 0
        %v5012 = vsel %vm4598, %v4939, 0
        %v5015 = vsel %vm4598, %v4940, 0
        %v5018 = vsel %vm4598, %v4941, 0
        %v5021 = vsel %vm4598, %v4942, 0
        %v5024 = vsel %vm4598, %v4943, 0
        %v5027 = vsel %vm4598, %v4944, 0
        %v5030 = vsel %vm4598, %v4945, 0
        %v5033 = vsel %vm4598, %v4946, 0
        %v5036 = vsel %vm4598, %v4947, 0
        %v5039 = vsel %vm4598, %v4948, 0
        %v5042 = vsel %vm4598, %v4949, 0
        %v5045 = vsel %vm4598, %v4950, 0
        %v5048 = vsel %vm4598, %v258, 0
        %v5051 = vsel %vm4598, %v259, 0
        %v5054 = vsel %vm4598, %v260, 0
        %v5057 = vsel %vm4598, %v261, 0
        %v5060 = vsel %vm4598, %v262, 0
        %v5063 = vsel %vm4598, %v263, 0
        %v5066 = vsel %vm4598, %v264, 0
        %v5069 = vsel %vm4598, %v265, 0
        %v5072 = vsel %vm4598, %v266, 0
        %v5075 = vsel %vm4598, %v267, 0
        %v5078 = vsel %vm4598, %v268, 0
        %v5081 = vsel %vm4598, %v269, 0
        %v5084 = vsel %vm4598, %v270, 0
        %v5087 = vsel %vm4598, %v271, 0
        %v5090 = vsel %vm4598, %v272, 0
        %v5093 = vsel %vm4598, %v273, 0
        %v5096 = vsel %vm4598, %v274, 0
        %v5099 = vsel %vm4598, %v275, 0
        %v5102 = vsel %vm4598, %v276, 0
        %v5105 = vsel %vm4598, %v277, 0
        %v5108 = vsel %vm4598, %v278, 0
        %v5111 = vsel %vm4598, %v279, 0
        %v5114 = vsel %vm4598, %v280, 0
        %v5117 = vsel %vm4598, %v281, 0
        %v5120 = vsel %vm4598, %v282, 0
        %v5123 = vsel %vm4598, %v283, 0
        %v5126 = vsel %vm4598, %v284, 0
        %v5129 = vsel %vm4598, %v285, 0
        %v5132 = vsel %vm4598, %v286, 0
        %v5135 = vsel %vm4598, %v287, 0
        %v5138 = vsel %vm4598, %v288, 0
        %v5141 = vsel %vm4598, %v289, 0
        %v5144 = vsel %vm4598, %v290, 0
        %v5147 = vsel %vm4598, %v291, 0
        %v5150 = vsel %vm4598, %v292, 0
        %v5153 = vsel %vm4598, %v293, 0
        %v5156 = vsel %vm4598, %v294, 0
        %v5159 = vsel %vm4598, %v295, 0
        %v5162 = vsel %vm4598, %v296, 0
        %v5165 = vsel %vm4598, %v297, 0
        %v5168 = vsel %vm4598, %v298, 0
        %v5171 = vsel %vm4598, %v299, 0
        %v5174 = vsel %vm4598, %v300, 0
        %v5177 = vsel %vm4598, %v301, 0
        %v5180 = vsel %vm4598, %v302, 0
        %v5183 = vsel %vm4598, %v303, 0
        %v5186 = vsel %vm4598, %v304, 0
        %v5189 = vsel %vm4598, %v305, 0
        %v5192 = vsel %vm4598, %v306, 0
        %v5195 = vsel %vm4598, %v307, 0
        %v5198 = vsel %vm4598, %v308, 0
        %v5201 = vsel %vm4598, %v309, 0
        %v5204 = vsel %vm4598, %v310, 0
        %v5207 = vsel %vm4598, %v311, 0
        %v5210 = vsel %vm4598, %v312, 0
        %v5213 = vsel %vm4598, %v313, 0
        %v5216 = vsel %vm4598, %v314, 0
        %v5219 = vsel %vm4598, %v315, 0
        %v5222 = vsel %vm4598, %v316, 0
        %v5225 = vsel %vm4598, %v317, 0
        %v5228 = vsel %vm4598, %v318, 0
        %v5231 = vsel %vm4598, %v319, 0
        %v5234 = vsel %vm4598, %v320, 0
        %v5237 = vsel %vm4598, %v321, 0
        %5239 = vmatprep.subr.mxu0 0.0
        %5240 = vmatpush1.xpose.msra.mxu0 %v5048
        %5241 = vmatprep.subr.mxu0 0.0
        %5242 = vmatpush1.xpose.msra.mxu0 %v5051
        %5243 = vmatprep.subr.mxu0 0.0
        %5244 = vmatpush1.xpose.msra.mxu0 %v5054
        %5245 = vmatprep.subr.mxu0 0.0
        %5246 = vmatpush1.xpose.msra.mxu0 %v5057
        %5247 = vmatprep.subr.mxu0 0.0
        %5248 = vmatpush1.xpose.msra.mxu0 %v5060
        %5249 = vmatprep.subr.mxu0 0.0
        %5250 = vmatpush1.xpose.msra.mxu0 %v5063
        %5251 = vmatprep.subr.mxu0 0.0
        %5252 = vmatpush1.xpose.msra.mxu0 %v5066
        %5253 = vmatprep.subr.mxu0 0.0
        %5254 = vmatpush1.xpose.msra.mxu0 %v5069
        %5255 = vmatprep.subr.mxu0 0.0
        %5256 = vmatpush1.xpose.msra.mxu0 %v5072
        %5257 = vmatprep.subr.mxu0 0.0
        %5258 = vmatpush1.xpose.msra.mxu0 %v5075
        %5259 = vmatprep.subr.mxu0 0.0
        %5260 = vmatpush1.xpose.msra.mxu0 %v5078
        %5261 = vmatprep.subr.mxu0 0.0
        %5262 = vmatpush1.xpose.msra.mxu0 %v5081
        %5263 = vmatprep.subr.mxu0 0.0
        %5264 = vmatpush1.xpose.msra.mxu0 %v5084
        %5265 = vmatprep.subr.mxu0 0.0
        %5266 = vmatpush1.xpose.msra.mxu0 %v5087
        %5267 = vmatprep.subr.mxu0 0.0
        %5268 = vmatpush1.xpose.msra.mxu0 %v5090
        %5269 = vmatprep.subr.mxu0 0.0
        %5270 = vmatpush1.xpose.msra.mxu0 %v5093
        %5271 = vmatprep.subr.mxu0 0.0
        %5272 = vmatpush1.xpose.msra.mxu0 %v5096
        %5273 = vmatprep.subr.mxu0 0.0
        %5274 = vmatpush1.xpose.msra.mxu0 %v5099
        %5275 = vmatprep.subr.mxu0 0.0
        %5276 = vmatpush1.xpose.msra.mxu0 %v5102
        %5277 = vmatprep.subr.mxu0 0.0
        %5278 = vmatpush1.xpose.msra.mxu0 %v5105
        %5279 = vmatprep.subr.mxu0 0.0
        %5280 = vmatpush1.xpose.msra.mxu0 %v5108
        %5281 = vmatprep.subr.mxu0 0.0
        %5282 = vmatpush1.xpose.msra.mxu0 %v5111
        %5283 = vmatprep.subr.mxu0 0.0
        %5284 = vmatpush1.xpose.msra.mxu0 %v5114
        %5285 = vmatprep.subr.mxu0 0.0
        %5286 = vmatpush1.xpose.msra.mxu0 %v5117
        %5287 = vmatprep.subr.mxu0 0.0
        %5288 = vmatpush1.xpose.msra.mxu0 %v5120
        %5289 = vmatprep.subr.mxu0 0.0
        %5290 = vmatpush1.xpose.msra.mxu0 %v5123
        %5291 = vmatprep.subr.mxu0 0.0
        %5292 = vmatpush1.xpose.msra.mxu0 %v5126
        %5293 = vmatprep.subr.mxu0 0.0
        %5294 = vmatpush1.xpose.msra.mxu0 %v5129
        %5295 = vmatprep.subr.mxu0 0.0
        %5296 = vmatpush1.xpose.msra.mxu0 %v5132
        %5297 = vmatprep.subr.mxu0 0.0
        %5298 = vmatpush1.xpose.msra.mxu0 %v5135
        %5299 = vmatprep.subr.mxu0 0.0
        %5300 = vmatpush1.xpose.msra.mxu0 %v5138
        %5301 = vmatprep.subr.mxu0 0.0
        %5302 = vmatpush1.xpose.msra.mxu0 %v5141
        %5303 = vmatprep.mubr.f32.mxu0 0.0
        %5304 = vmatmul.mubr.f32.gmra.mrb[0].mxu0 %v4952
        %v5305 = vpop.f32.mrb[0].mxu0
        %v5306 = vadd.f32 0.0, %v5305
        %v5307 = vpop.f32.mrb[0].mxu0
        %v5308 = vadd.f32 0.0, %v5307
        %5309 = vmatprep.mubr.f32.mxu0 0.0
        %5310 = vmatmul.mubr.f32.gmra.mrb[0].mxu0 %v4955
        %v5311 = vpop.f32.mrb[0].mxu0
        %v5312 = vadd.f32 0.0, %v5311
        %v5313 = vpop.f32.mrb[0].mxu0
        %v5314 = vadd.f32 0.0, %v5313
        %5315 = vmatprep.mubr.f32.mxu0 0.0
        %5316 = vmatmul.mubr.f32.gmra.mrb[0].mxu0 %v4958
        %v5317 = vpop.f32.mrb[0].mxu0
        %v5318 = vadd.f32 0.0, %v5317
        %v5319 = vpop.f32.mrb[0].mxu0
        %v5320 = vadd.f32 0.0, %v5319
        %5321 = vmatprep.mubr.f32.mxu0 0.0
        %5322 = vmatmul.mubr.f32.gmra.mrb[0].mxu0 %v4961
        %v5323 = vpop.f32.mrb[0].mxu0
        %v5324 = vadd.f32 0.0, %v5323
        %v5325 = vpop.f32.mrb[0].mxu0
        %v5326 = vadd.f32 0.0, %v5325
        %5327 = vmatprep.mubr.f32.mxu0 0.0
        %5328 = vmatmul.mubr.f32.gmra.mrb[0].mxu0 %v4964
        %v5329 = vpop.f32.mrb[0].mxu0
        %v5330 = vadd.f32 0.0, %v5329
        %v5331 = vpop.f32.mrb[0].mxu0
        %v5332 = vadd.f32 0.0, %v5331
        %5333 = vmatprep.mubr.f32.mxu0 0.0
        %5334 = vmatmul.mubr.f32.gmra.mrb[0].mxu0 %v4967
        %v5335 = vpop.f32.mrb[0].mxu0
        %v5336 = vadd.f32 0.0, %v5335
        %v5337 = vpop.f32.mrb[0].mxu0
        %v5338 = vadd.f32 0.0, %v5337
        %5339 = vmatprep.mubr.f32.mxu0 0.0
        %5340 = vmatmul.mubr.f32.gmra.mrb[0].mxu0 %v4970
        %v5341 = vpop.f32.mrb[0].mxu0
        %v5342 = vadd.f32 0.0, %v5341
        %v5343 = vpop.f32.mrb[0].mxu0
        %v5344 = vadd.f32 0.0, %v5343
        %5345 = vmatprep.mubr.f32.mxu0 0.0
        %5346 = vmatmul.mubr.f32.gmra.mrb[0].mxu0 %v4973
        %v5347 = vpop.f32.mrb[0].mxu0
        %v5348 = vadd.f32 0.0, %v5347
        %v5349 = vpop.f32.mrb[0].mxu0
        %v5350 = vadd.f32 0.0, %v5349
        %5351 = vmatprep.mubr.f32.mxu0 0.0
        %5352 = vmatmul.mubr.f32.gmra.mrb[0].mxu0 %v4976
        %v5353 = vpop.f32.mrb[0].mxu0
        %v5354 = vadd.f32 0.0, %v5353
        %v5355 = vpop.f32.mrb[0].mxu0
        %v5356 = vadd.f32 0.0, %v5355
        %5357 = vmatprep.mubr.f32.mxu0 0.0
        %5358 = vmatmul.mubr.f32.gmra.mrb[0].mxu0 %v4979
        %v5359 = vpop.f32.mrb[0].mxu0
        %v5360 = vadd.f32 0.0, %v5359
        %v5361 = vpop.f32.mrb[0].mxu0
        %v5362 = vadd.f32 0.0, %v5361
        %5363 = vmatprep.mubr.f32.mxu0 0.0
        %5364 = vmatmul.mubr.f32.gmra.mrb[0].mxu0 %v4982
        %v5365 = vpop.f32.mrb[0].mxu0
        %v5366 = vadd.f32 0.0, %v5365
        %v5367 = vpop.f32.mrb[0].mxu0
        %v5368 = vadd.f32 0.0, %v5367
        %5369 = vmatprep.mubr.f32.mxu0 0.0
        %5370 = vmatmul.mubr.f32.gmra.mrb[0].mxu0 %v4985
        %v5371 = vpop.f32.mrb[0].mxu0
        %v5372 = vadd.f32 0.0, %v5371
        %v5373 = vpop.f32.mrb[0].mxu0
        %v5374 = vadd.f32 0.0, %v5373
        %5375 = vmatprep.mubr.f32.mxu0 0.0
        %5376 = vmatmul.mubr.f32.gmra.mrb[0].mxu0 %v4988
        %v5377 = vpop.f32.mrb[0].mxu0
        %v5378 = vadd.f32 0.0, %v5377
        %v5379 = vpop.f32.mrb[0].mxu0
        %v5380 = vadd.f32 0.0, %v5379
        %5381 = vmatprep.mubr.f32.mxu0 0.0
        %5382 = vmatmul.mubr.f32.gmra.mrb[0].mxu0 %v4991
        %v5383 = vpop.f32.mrb[0].mxu0
        %v5384 = vadd.f32 0.0, %v5383
        %v5385 = vpop.f32.mrb[0].mxu0
        %v5386 = vadd.f32 0.0, %v5385
        %5387 = vmatprep.mubr.f32.mxu0 0.0
        %5388 = vmatmul.mubr.f32.gmra.mrb[0].mxu0 %v4994
        %v5389 = vpop.f32.mrb[0].mxu0
        %v5390 = vadd.f32 0.0, %v5389
        %v5391 = vpop.f32.mrb[0].mxu0
        %v5392 = vadd.f32 0.0, %v5391
        %5393 = vmatprep.mubr.f32.mxu0 0.0
        %5394 = vmatmul.mubr.f32.gmra.mrb[0].mxu0 %v4997
        %v5395 = vpop.f32.mrb[0].mxu0
        %v5396 = vadd.f32 0.0, %v5395
        %v5397 = vpop.f32.mrb[0].mxu0
        %v5398 = vadd.f32 0.0, %v5397
        %5399 = vmatprep.mubr.f32.mxu0 0.0
        %5400 = vmatmul.mubr.f32.gmra.mrb[0].mxu0 %v5000
        %v5401 = vpop.f32.mrb[0].mxu0
        %v5402 = vadd.f32 0.0, %v5401
        %v5403 = vpop.f32.mrb[0].mxu0
        %v5404 = vadd.f32 0.0, %v5403
        %5405 = vmatprep.mubr.f32.mxu0 0.0
        %5406 = vmatmul.mubr.f32.gmra.mrb[0].mxu0 %v5003
        %v5407 = vpop.f32.mrb[0].mxu0
        %v5408 = vadd.f32 0.0, %v5407
        %v5409 = vpop.f32.mrb[0].mxu0
        %v5410 = vadd.f32 0.0, %v5409
        %5411 = vmatprep.mubr.f32.mxu0 0.0
        %5412 = vmatmul.mubr.f32.gmra.mrb[0].mxu0 %v5006
        %v5413 = vpop.f32.mrb[0].mxu0
        %v5414 = vadd.f32 0.0, %v5413
        %v5415 = vpop.f32.mrb[0].mxu0
        %v5416 = vadd.f32 0.0, %v5415
        %5417 = vmatprep.mubr.f32.mxu0 0.0
        %5418 = vmatmul.mubr.f32.gmra.mrb[0].mxu0 %v5009
        %v5419 = vpop.f32.mrb[0].mxu0
        %v5420 = vadd.f32 0.0, %v5419
        %v5421 = vpop.f32.mrb[0].mxu0
        %v5422 = vadd.f32 0.0, %v5421
        %5423 = vmatprep.mubr.f32.mxu0 0.0
        %5424 = vmatmul.mubr.f32.gmra.mrb[0].mxu0 %v5012
        %v5425 = vpop.f32.mrb[0].mxu0
        %v5426 = vadd.f32 0.0, %v5425
        %v5427 = vpop.f32.mrb[0].mxu0
        %v5428 = vadd.f32 0.0, %v5427
        %5429 = vmatprep.mubr.f32.mxu0 0.0
        %5430 = vmatmul.mubr.f32.gmra.mrb[0].mxu0 %v5015
        %v5431 = vpop.f32.mrb[0].mxu0
        %v5432 = vadd.f32 0.0, %v5431
        %v5433 = vpop.f32.mrb[0].mxu0
        %v5434 = vadd.f32 0.0, %v5433
        %5435 = vmatprep.mubr.f32.mxu0 0.0
        %5436 = vmatmul.mubr.f32.gmra.mrb[0].mxu0 %v5018
        %v5437 = vpop.f32.mrb[0].mxu0
        %v5438 = vadd.f32 0.0, %v5437
        %v5439 = vpop.f32.mrb[0].mxu0
        %v5440 = vadd.f32 0.0, %v5439
        %5441 = vmatprep.mubr.f32.mxu0 0.0
        %5442 = vmatmul.mubr.f32.gmra.mrb[0].mxu0 %v5021
        %v5443 = vpop.f32.mrb[0].mxu0
        %v5444 = vadd.f32 0.0, %v5443
        %v5445 = vpop.f32.mrb[0].mxu0
        %v5446 = vadd.f32 0.0, %v5445
        %5447 = vmatprep.mubr.f32.mxu0 0.0
        %5448 = vmatmul.mubr.f32.gmra.mrb[0].mxu0 %v5024
        %v5449 = vpop.f32.mrb[0].mxu0
        %v5450 = vadd.f32 0.0, %v5449
        %v5451 = vpop.f32.mrb[0].mxu0
        %v5452 = vadd.f32 0.0, %v5451
        %5453 = vmatprep.mubr.f32.mxu0 0.0
        %5454 = vmatmul.mubr.f32.gmra.mrb[0].mxu0 %v5027
        %v5455 = vpop.f32.mrb[0].mxu0
        %v5456 = vadd.f32 0.0, %v5455
        %v5457 = vpop.f32.mrb[0].mxu0
        %v5458 = vadd.f32 0.0, %v5457
        %5459 = vmatprep.mubr.f32.mxu0 0.0
        %5460 = vmatmul.mubr.f32.gmra.mrb[0].mxu0 %v5030
        %v5461 = vpop.f32.mrb[0].mxu0
        %v5462 = vadd.f32 0.0, %v5461
        %v5463 = vpop.f32.mrb[0].mxu0
        %v5464 = vadd.f32 0.0, %v5463
        %5465 = vmatprep.mubr.f32.mxu0 0.0
        %5466 = vmatmul.mubr.f32.gmra.mrb[0].mxu0 %v5033
        %v5467 = vpop.f32.mrb[0].mxu0
        %v5468 = vadd.f32 0.0, %v5467
        %v5469 = vpop.f32.mrb[0].mxu0
        %v5470 = vadd.f32 0.0, %v5469
        %5471 = vmatprep.mubr.f32.mxu0 0.0
        %5472 = vmatmul.mubr.f32.gmra.mrb[0].mxu0 %v5036
        %v5473 = vpop.f32.mrb[0].mxu0
        %v5474 = vadd.f32 0.0, %v5473
        %v5475 = vpop.f32.mrb[0].mxu0
        %v5476 = vadd.f32 0.0, %v5475
        %5477 = vmatprep.mubr.f32.mxu0 0.0
        %5478 = vmatmul.mubr.f32.gmra.mrb[0].mxu0 %v5039
        %v5479 = vpop.f32.mrb[0].mxu0
        %v5480 = vadd.f32 0.0, %v5479
        %v5481 = vpop.f32.mrb[0].mxu0
        %v5482 = vadd.f32 0.0, %v5481
        %5483 = vmatprep.mubr.f32.mxu0 0.0
        %5484 = vmatmul.mubr.f32.gmra.mrb[0].mxu0 %v5042
        %v5485 = vpop.f32.mrb[0].mxu0
        %v5486 = vadd.f32 0.0, %v5485
        %v5487 = vpop.f32.mrb[0].mxu0
        %v5488 = vadd.f32 0.0, %v5487
        %5489 = vmatprep.mubr.f32.mxu0 0.0
        %5490 = vmatmul.mubr.f32.gmra.mrb[0].mxu0 %v5045
        %v5491 = vpop.f32.mrb[0].mxu0
        %v5492 = vadd.f32 0.0, %v5491
        %v5493 = vpop.f32.mrb[0].mxu0
        %v5494 = vadd.f32 0.0, %v5493
        %5495 = vdwg.mxu0
        %5496 = vmatprep.subr.mxu0 0.0
        %5497 = vmatpush1.xpose.msra.mxu0 %v5144
        %5498 = vmatprep.subr.mxu0 0.0
        %5499 = vmatpush1.xpose.msra.mxu0 %v5147
        %5500 = vmatprep.subr.mxu0 0.0
        %5501 = vmatpush1.xpose.msra.mxu0 %v5150
        %5502 = vmatprep.subr.mxu0 0.0
        %5503 = vmatpush1.xpose.msra.mxu0 %v5153
        %5504 = vmatprep.subr.mxu0 0.0
        %5505 = vmatpush1.xpose.msra.mxu0 %v5156
        %5506 = vmatprep.subr.mxu0 0.0
        %5507 = vmatpush1.xpose.msra.mxu0 %v5159
        %5508 = vmatprep.subr.mxu0 0.0
        %5509 = vmatpush1.xpose.msra.mxu0 %v5162
        %5510 = vmatprep.subr.mxu0 0.0
        %5511 = vmatpush1.xpose.msra.mxu0 %v5165
        %5512 = vmatprep.subr.mxu0 0.0
        %5513 = vmatpush1.xpose.msra.mxu0 %v5168
        %5514 = vmatprep.subr.mxu0 0.0
        %5515 = vmatpush1.xpose.msra.mxu0 %v5171
        %5516 = vmatprep.subr.mxu0 0.0
        %5517 = vmatpush1.xpose.msra.mxu0 %v5174
        %5518 = vmatprep.subr.mxu0 0.0
        %5519 = vmatpush1.xpose.msra.mxu0 %v5177
        %5520 = vmatprep.subr.mxu0 0.0
        %5521 = vmatpush1.xpose.msra.mxu0 %v5180
        %5522 = vmatprep.subr.mxu0 0.0
        %5523 = vmatpush1.xpose.msra.mxu0 %v5183
        %5524 = vmatprep.subr.mxu0 0.0
        %5525 = vmatpush1.xpose.msra.mxu0 %v5186
        %5526 = vmatprep.subr.mxu0 0.0
        %5527 = vmatpush1.xpose.msra.mxu0 %v5189
        %5528 = vmatprep.subr.mxu0 0.0
        %5529 = vmatpush1.xpose.msra.mxu0 %v5192
        %5530 = vmatprep.subr.mxu0 0.0
        %5531 = vmatpush1.xpose.msra.mxu0 %v5195
        %5532 = vmatprep.subr.mxu0 0.0
        %5533 = vmatpush1.xpose.msra.mxu0 %v5198
        %5534 = vmatprep.subr.mxu0 0.0
        %5535 = vmatpush1.xpose.msra.mxu0 %v5201
        %5536 = vmatprep.subr.mxu0 0.0
        %5537 = vmatpush1.xpose.msra.mxu0 %v5204
        %5538 = vmatprep.subr.mxu0 0.0
        %5539 = vmatpush1.xpose.msra.mxu0 %v5207
        %5540 = vmatprep.subr.mxu0 0.0
        %5541 = vmatpush1.xpose.msra.mxu0 %v5210
        %5542 = vmatprep.subr.mxu0 0.0
        %5543 = vmatpush1.xpose.msra.mxu0 %v5213
        %5544 = vmatprep.subr.mxu0 0.0
        %5545 = vmatpush1.xpose.msra.mxu0 %v5216
        %5546 = vmatprep.subr.mxu0 0.0
        %5547 = vmatpush1.xpose.msra.mxu0 %v5219
        %5548 = vmatprep.subr.mxu0 0.0
        %5549 = vmatpush1.xpose.msra.mxu0 %v5222
        %5550 = vmatprep.subr.mxu0 0.0
        %5551 = vmatpush1.xpose.msra.mxu0 %v5225
        %5552 = vmatprep.subr.mxu0 0.0
        %5553 = vmatpush1.xpose.msra.mxu0 %v5228
        %5554 = vmatprep.subr.mxu0 0.0
        %5555 = vmatpush1.xpose.msra.mxu0 %v5231
        %5556 = vmatprep.subr.mxu0 0.0
        %5557 = vmatpush1.xpose.msra.mxu0 %v5234
        %5558 = vmatprep.subr.mxu0 0.0
        %5559 = vmatpush1.xpose.msra.mxu0 %v5237
        %5560 = vmatprep.mubr.f32.mxu0 0.0
        %5561 = vmatmul.mubr.f32.gmra.mrb[0].mxu0 %v4952
        %v5562 = vpop.f32.mrb[0].mxu0
        %v5563 = vadd.f32 0.0, %v5562
        %v5564 = vpop.f32.mrb[0].mxu0
        %v5565 = vadd.f32 0.0, %v5564
        %5566 = vmatprep.mubr.f32.mxu0 0.0
        %5567 = vmatmul.mubr.f32.gmra.mrb[0].mxu0 %v4955
        %v5568 = vpop.f32.mrb[0].mxu0
        %v5569 = vadd.f32 0.0, %v5568
        %v5570 = vpop.f32.mrb[0].mxu0
        %v5571 = vadd.f32 0.0, %v5570
        %5572 = vmatprep.mubr.f32.mxu0 0.0
        %5573 = vmatmul.mubr.f32.gmra.mrb[0].mxu0 %v4958
        %v5574 = vpop.f32.mrb[0].mxu0
        %v5575 = vadd.f32 0.0, %v5574
        %v5576 = vpop.f32.mrb[0].mxu0
        %v5577 = vadd.f32 0.0, %v5576
        %5578 = vmatprep.mubr.f32.mxu0 0.0
        %5579 = vmatmul.mubr.f32.gmra.mrb[0].mxu0 %v4961
        %v5580 = vpop.f32.mrb[0].mxu0
        %v5581 = vadd.f32 0.0, %v5580
        %v5582 = vpop.f32.mrb[0].mxu0
        %v5583 = vadd.f32 0.0, %v5582
        %5584 = vmatprep.mubr.f32.mxu0 0.0
        %5585 = vmatmul.mubr.f32.gmra.mrb[0].mxu0 %v4964
        %v5586 = vpop.f32.mrb[0].mxu0
        %v5587 = vadd.f32 0.0, %v5586
        %v5588 = vpop.f32.mrb[0].mxu0
        %v5589 = vadd.f32 0.0, %v5588
        %5590 = vmatprep.mubr.f32.mxu0 0.0
        %5591 = vmatmul.mubr.f32.gmra.mrb[0].mxu0 %v4967
        %v5592 = vpop.f32.mrb[0].mxu0
        %v5593 = vadd.f32 0.0, %v5592
        %v5594 = vpop.f32.mrb[0].mxu0
        %v5595 = vadd.f32 0.0, %v5594
        %5596 = vmatprep.mubr.f32.mxu0 0.0
        %5597 = vmatmul.mubr.f32.gmra.mrb[0].mxu0 %v4970
        %v5598 = vpop.f32.mrb[0].mxu0
        %v5599 = vadd.f32 0.0, %v5598
        %v5600 = vpop.f32.mrb[0].mxu0
        %v5601 = vadd.f32 0.0, %v5600
        %5602 = vmatprep.mubr.f32.mxu0 0.0
        %5603 = vmatmul.mubr.f32.gmra.mrb[0].mxu0 %v4973
        %v5604 = vpop.f32.mrb[0].mxu0
        %v5605 = vadd.f32 0.0, %v5604
        %v5606 = vpop.f32.mrb[0].mxu0
        %v5607 = vadd.f32 0.0, %v5606
        %5608 = vmatprep.mubr.f32.mxu0 0.0
        %5609 = vmatmul.mubr.f32.gmra.mrb[0].mxu0 %v4976
        %v5610 = vpop.f32.mrb[0].mxu0
        %v5611 = vadd.f32 0.0, %v5610
        %v5612 = vpop.f32.mrb[0].mxu0
        %v5613 = vadd.f32 0.0, %v5612
        %5614 = vmatprep.mubr.f32.mxu0 0.0
        %5615 = vmatmul.mubr.f32.gmra.mrb[0].mxu0 %v4979
        %v5616 = vpop.f32.mrb[0].mxu0
        %v5617 = vadd.f32 0.0, %v5616
        %v5618 = vpop.f32.mrb[0].mxu0
        %v5619 = vadd.f32 0.0, %v5618
        %5620 = vmatprep.mubr.f32.mxu0 0.0
        %5621 = vmatmul.mubr.f32.gmra.mrb[0].mxu0 %v4982
        %v5622 = vpop.f32.mrb[0].mxu0
        %v5623 = vadd.f32 0.0, %v5622
        %v5624 = vpop.f32.mrb[0].mxu0
        %v5625 = vadd.f32 0.0, %v5624
        %5626 = vmatprep.mubr.f32.mxu0 0.0
        %5627 = vmatmul.mubr.f32.gmra.mrb[0].mxu0 %v4985
        %v5628 = vpop.f32.mrb[0].mxu0
        %v5629 = vadd.f32 0.0, %v5628
        %v5630 = vpop.f32.mrb[0].mxu0
        %v5631 = vadd.f32 0.0, %v5630
        %5632 = vmatprep.mubr.f32.mxu0 0.0
        %5633 = vmatmul.mubr.f32.gmra.mrb[0].mxu0 %v4988
        %v5634 = vpop.f32.mrb[0].mxu0
        %v5635 = vadd.f32 0.0, %v5634
        %v5636 = vpop.f32.mrb[0].mxu0
        %v5637 = vadd.f32 0.0, %v5636
        %5638 = vmatprep.mubr.f32.mxu0 0.0
        %5639 = vmatmul.mubr.f32.gmra.mrb[0].mxu0 %v4991
        %v5640 = vpop.f32.mrb[0].mxu0
        %v5641 = vadd.f32 0.0, %v5640
        %v5642 = vpop.f32.mrb[0].mxu0
        %v5643 = vadd.f32 0.0, %v5642
        %5644 = vmatprep.mubr.f32.mxu0 0.0
        %5645 = vmatmul.mubr.f32.gmra.mrb[0].mxu0 %v4994
        %v5646 = vpop.f32.mrb[0].mxu0
        %v5647 = vadd.f32 0.0, %v5646
        %v5648 = vpop.f32.mrb[0].mxu0
        %v5649 = vadd.f32 0.0, %v5648
        %5650 = vmatprep.mubr.f32.mxu0 0.0
        %5651 = vmatmul.mubr.f32.gmra.mrb[0].mxu0 %v4997
        %v5652 = vpop.f32.mrb[0].mxu0
        %v5653 = vadd.f32 0.0, %v5652
        %v5654 = vpop.f32.mrb[0].mxu0
        %v5655 = vadd.f32 0.0, %v5654
        %5656 = vmatprep.mubr.f32.mxu0 0.0
        %5657 = vmatmul.mubr.f32.gmra.mrb[0].mxu0 %v5000
        %v5658 = vpop.f32.mrb[0].mxu0
        %v5659 = vadd.f32 0.0, %v5658
        %v5660 = vpop.f32.mrb[0].mxu0
        %v5661 = vadd.f32 0.0, %v5660
        %5662 = vmatprep.mubr.f32.mxu0 0.0
        %5663 = vmatmul.mubr.f32.gmra.mrb[0].mxu0 %v5003
        %v5664 = vpop.f32.mrb[0].mxu0
        %v5665 = vadd.f32 0.0, %v5664
        %v5666 = vpop.f32.mrb[0].mxu0
        %v5667 = vadd.f32 0.0, %v5666
        %5668 = vmatprep.mubr.f32.mxu0 0.0
        %5669 = vmatmul.mubr.f32.gmra.mrb[0].mxu0 %v5006
        %v5670 = vpop.f32.mrb[0].mxu0
        %v5671 = vadd.f32 0.0, %v5670
        %v5672 = vpop.f32.mrb[0].mxu0
        %v5673 = vadd.f32 0.0, %v5672
        %5674 = vmatprep.mubr.f32.mxu0 0.0
        %5675 = vmatmul.mubr.f32.gmra.mrb[0].mxu0 %v5009
        %v5676 = vpop.f32.mrb[0].mxu0
        %v5677 = vadd.f32 0.0, %v5676
        %v5678 = vpop.f32.mrb[0].mxu0
        %v5679 = vadd.f32 0.0, %v5678
        %5680 = vmatprep.mubr.f32.mxu0 0.0
        %5681 = vmatmul.mubr.f32.gmra.mrb[0].mxu0 %v5012
        %v5682 = vpop.f32.mrb[0].mxu0
        %v5683 = vadd.f32 0.0, %v5682
        %v5684 = vpop.f32.mrb[0].mxu0
        %v5685 = vadd.f32 0.0, %v5684
        %5686 = vmatprep.mubr.f32.mxu0 0.0
        %5687 = vmatmul.mubr.f32.gmra.mrb[0].mxu0 %v5015
        %v5688 = vpop.f32.mrb[0].mxu0
        %v5689 = vadd.f32 0.0, %v5688
        %v5690 = vpop.f32.mrb[0].mxu0
        %v5691 = vadd.f32 0.0, %v5690
        %5692 = vmatprep.mubr.f32.mxu0 0.0
        %5693 = vmatmul.mubr.f32.gmra.mrb[0].mxu0 %v5018
        %v5694 = vpop.f32.mrb[0].mxu0
        %v5695 = vadd.f32 0.0, %v5694
        %v5696 = vpop.f32.mrb[0].mxu0
        %v5697 = vadd.f32 0.0, %v5696
        %5698 = vmatprep.mubr.f32.mxu0 0.0
        %5699 = vmatmul.mubr.f32.gmra.mrb[0].mxu0 %v5021
        %v5700 = vpop.f32.mrb[0].mxu0
        %v5701 = vadd.f32 0.0, %v5700
        %v5702 = vpop.f32.mrb[0].mxu0
        %v5703 = vadd.f32 0.0, %v5702
        %5704 = vmatprep.mubr.f32.mxu0 0.0
        %5705 = vmatmul.mubr.f32.gmra.mrb[0].mxu0 %v5024
        %v5706 = vpop.f32.mrb[0].mxu0
        %v5707 = vadd.f32 0.0, %v5706
        %v5708 = vpop.f32.mrb[0].mxu0
        %v5709 = vadd.f32 0.0, %v5708
        %5710 = vmatprep.mubr.f32.mxu0 0.0
        %5711 = vmatmul.mubr.f32.gmra.mrb[0].mxu0 %v5027
        %v5712 = vpop.f32.mrb[0].mxu0
        %v5713 = vadd.f32 0.0, %v5712
        %v5714 = vpop.f32.mrb[0].mxu0
        %v5715 = vadd.f32 0.0, %v5714
        %5716 = vmatprep.mubr.f32.mxu0 0.0
        %5717 = vmatmul.mubr.f32.gmra.mrb[0].mxu0 %v5030
        %v5718 = vpop.f32.mrb[0].mxu0
        %v5719 = vadd.f32 0.0, %v5718
        %v5720 = vpop.f32.mrb[0].mxu0
        %v5721 = vadd.f32 0.0, %v5720
        %5722 = vmatprep.mubr.f32.mxu0 0.0
        %5723 = vmatmul.mubr.f32.gmra.mrb[0].mxu0 %v5033
        %v5724 = vpop.f32.mrb[0].mxu0
        %v5725 = vadd.f32 0.0, %v5724
        %v5726 = vpop.f32.mrb[0].mxu0
        %v5727 = vadd.f32 0.0, %v5726
        %5728 = vmatprep.mubr.f32.mxu0 0.0
        %5729 = vmatmul.mubr.f32.gmra.mrb[0].mxu0 %v5036
        %v5730 = vpop.f32.mrb[0].mxu0
        %v5731 = vadd.f32 0.0, %v5730
        %v5732 = vpop.f32.mrb[0].mxu0
        %v5733 = vadd.f32 0.0, %v5732
        %5734 = vmatprep.mubr.f32.mxu0 0.0
        %5735 = vmatmul.mubr.f32.gmra.mrb[0].mxu0 %v5039
        %v5736 = vpop.f32.mrb[0].mxu0
        %v5737 = vadd.f32 0.0, %v5736
        %v5738 = vpop.f32.mrb[0].mxu0
        %v5739 = vadd.f32 0.0, %v5738
        %5740 = vmatprep.mubr.f32.mxu0 0.0
        %5741 = vmatmul.mubr.f32.gmra.mrb[0].mxu0 %v5042
        %v5742 = vpop.f32.mrb[0].mxu0
        %v5743 = vadd.f32 0.0, %v5742
        %v5744 = vpop.f32.mrb[0].mxu0
        %v5745 = vadd.f32 0.0, %v5744
        %5746 = vmatprep.mubr.f32.mxu0 0.0
        %5747 = vmatmul.mubr.f32.gmra.mrb[0].mxu0 %v5045
        %v5748 = vpop.f32.mrb[0].mxu0
        %v5749 = vadd.f32 0.0, %v5748
        %v5750 = vpop.f32.mrb[0].mxu0
        %v5751 = vadd.f32 0.0, %v5750
        %5752 = vdwg.mxu0
        %v5753 = vmul.f32 %v3059, %v5306
        %v5754 = vmul.f32 %v3061, %v5308
        %v5755 = vmul.f32 %v3252, %v5563
        %v5756 = vmul.f32 %v3254, %v5565
        %v5757 = vmul.f32 %v3063, %v5312
        %v5758 = vmul.f32 %v3065, %v5314
        %v5759 = vmul.f32 %v3256, %v5569
        %v5760 = vmul.f32 %v3258, %v5571
        %v5761 = vmul.f32 %v3069, %v5318
        %v5762 = vmul.f32 %v3071, %v5320
        %v5763 = vmul.f32 %v3262, %v5575
        %v5764 = vmul.f32 %v3264, %v5577
        %v5765 = vmul.f32 %v3073, %v5324
        %v5766 = vmul.f32 %v3075, %v5326
        %v5767 = vmul.f32 %v3266, %v5581
        %v5768 = vmul.f32 %v3268, %v5583
        %v5769 = vmul.f32 %v3079, %v5330
        %v5770 = vmul.f32 %v3081, %v5332
        %v5771 = vmul.f32 %v3272, %v5587
        %v5772 = vmul.f32 %v3274, %v5589
        %v5773 = vmul.f32 %v3083, %v5336
        %v5774 = vmul.f32 %v3085, %v5338
        %v5775 = vmul.f32 %v3276, %v5593
        %v5776 = vmul.f32 %v3278, %v5595
        %v5777 = vmul.f32 %v3089, %v5342
        %v5778 = vmul.f32 %v3091, %v5344
        %v5779 = vmul.f32 %v3282, %v5599
        %v5780 = vmul.f32 %v3284, %v5601
        %v5781 = vmul.f32 %v3093, %v5348
        %v5782 = vmul.f32 %v3095, %v5350
        %v5783 = vmul.f32 %v3286, %v5605
        %v5784 = vmul.f32 %v3288, %v5607
        %v5785 = vmul.f32 %v3099, %v5354
        %v5786 = vmul.f32 %v3101, %v5356
        %v5787 = vmul.f32 %v3292, %v5611
        %v5788 = vmul.f32 %v3294, %v5613
        %v5789 = vmul.f32 %v3103, %v5360
        %v5790 = vmul.f32 %v3105, %v5362
        %v5791 = vmul.f32 %v3296, %v5617
        %v5792 = vmul.f32 %v3298, %v5619
        %v5793 = vmul.f32 %v3109, %v5366
        %v5794 = vmul.f32 %v3111, %v5368
        %v5795 = vmul.f32 %v3302, %v5623
        %v5796 = vmul.f32 %v3304, %v5625
        %v5797 = vmul.f32 %v3113, %v5372
        %v5798 = vmul.f32 %v3115, %v5374
        %v5799 = vmul.f32 %v3306, %v5629
        %v5800 = vmul.f32 %v3308, %v5631
        %v5801 = vmul.f32 %v3119, %v5378
        %v5802 = vmul.f32 %v3121, %v5380
        %v5803 = vmul.f32 %v3312, %v5635
        %v5804 = vmul.f32 %v3314, %v5637
        %v5805 = vmul.f32 %v3123, %v5384
        %v5806 = vmul.f32 %v3125, %v5386
        %v5807 = vmul.f32 %v3316, %v5641
        %v5808 = vmul.f32 %v3318, %v5643
        %v5809 = vmul.f32 %v3129, %v5390
        %v5810 = vmul.f32 %v3131, %v5392
        %v5811 = vmul.f32 %v3322, %v5647
        %v5812 = vmul.f32 %v3324, %v5649
        %v5813 = vmul.f32 %v3133, %v5396
        %v5814 = vmul.f32 %v3135, %v5398
        %v5815 = vmul.f32 %v3326, %v5653
        %v5816 = vmul.f32 %v3328, %v5655
        %v5817 = vmul.f32 %v3139, %v5402
        %v5818 = vmul.f32 %v3141, %v5404
        %v5819 = vmul.f32 %v3332, %v5659
        %v5820 = vmul.f32 %v3334, %v5661
        %v5821 = vmul.f32 %v3143, %v5408
        %v5822 = vmul.f32 %v3145, %v5410
        %v5823 = vmul.f32 %v3336, %v5665
        %v5824 = vmul.f32 %v3338, %v5667
        %v5825 = vmul.f32 %v3149, %v5414
        %v5826 = vmul.f32 %v3151, %v5416
        %v5827 = vmul.f32 %v3342, %v5671
        %v5828 = vmul.f32 %v3344, %v5673
        %v5829 = vmul.f32 %v3153, %v5420
        %v5830 = vmul.f32 %v3155, %v5422
        %v5831 = vmul.f32 %v3346, %v5677
        %v5832 = vmul.f32 %v3348, %v5679
        %v5833 = vmul.f32 %v3159, %v5426
        %v5834 = vmul.f32 %v3161, %v5428
        %v5835 = vmul.f32 %v3352, %v5683
        %v5836 = vmul.f32 %v3354, %v5685
        %v5837 = vmul.f32 %v3163, %v5432
        %v5838 = vmul.f32 %v3165, %v5434
        %v5839 = vmul.f32 %v3356, %v5689
        %v5840 = vmul.f32 %v3358, %v5691
        %v5841 = vmul.f32 %v3169, %v5438
        %v5842 = vmul.f32 %v3171, %v5440
        %v5843 = vmul.f32 %v3362, %v5695
        %v5844 = vmul.f32 %v3364, %v5697
        %v5845 = vmul.f32 %v3173, %v5444
        %v5846 = vmul.f32 %v3175, %v5446
        %v5847 = vmul.f32 %v3366, %v5701
        %v5848 = vmul.f32 %v3368, %v5703
        %v5849 = vmul.f32 %v3179, %v5450
        %v5850 = vmul.f32 %v3181, %v5452
        %v5851 = vmul.f32 %v3372, %v5707
        %v5852 = vmul.f32 %v3374, %v5709
        %v5853 = vmul.f32 %v3183, %v5456
        %v5854 = vmul.f32 %v3185, %v5458
        %v5855 = vmul.f32 %v3376, %v5713
        %v5856 = vmul.f32 %v3378, %v5715
        %v5857 = vmul.f32 %v3189, %v5462
        %v5858 = vmul.f32 %v3191, %v5464
        %v5859 = vmul.f32 %v3382, %v5719
        %v5860 = vmul.f32 %v3384, %v5721
        %v5861 = vmul.f32 %v3193, %v5468
        %v5862 = vmul.f32 %v3195, %v5470
        %v5863 = vmul.f32 %v3386, %v5725
        %v5864 = vmul.f32 %v3388, %v5727
        %v5865 = vmul.f32 %v3199, %v5474
        %v5866 = vmul.f32 %v3201, %v5476
        %v5867 = vmul.f32 %v3392, %v5731
        %v5868 = vmul.f32 %v3394, %v5733
        %v5869 = vmul.f32 %v3203, %v5480
        %v5870 = vmul.f32 %v3205, %v5482
        %v5871 = vmul.f32 %v3396, %v5737
        %v5872 = vmul.f32 %v3398, %v5739
        %v5873 = vmul.f32 %v3209, %v5486
        %v5874 = vmul.f32 %v3211, %v5488
        %v5875 = vmul.f32 %v3402, %v5743
        %v5876 = vmul.f32 %v3404, %v5745
        %v5877 = vmul.f32 %v3213, %v5492
        %v5878 = vmul.f32 %v3215, %v5494
        %v5879 = vmul.f32 %v3406, %v5749
        %v5880 = vmul.f32 %v3408, %v5751
        %v5881 = vpack.c.bf16 %v5757, %v5753
        %v5882 = vpack.c.bf16 %v5758, %v5754
        %v5883 = vpack.c.bf16 %v5759, %v5755
        %v5884 = vpack.c.bf16 %v5760, %v5756
        %v5885 = vpack.c.bf16 %v5765, %v5761
        %v5886 = vpack.c.bf16 %v5766, %v5762
        %v5887 = vpack.c.bf16 %v5767, %v5763
        %v5888 = vpack.c.bf16 %v5768, %v5764
        %v5889 = vpack.c.bf16 %v5773, %v5769
        %v5890 = vpack.c.bf16 %v5774, %v5770
        %v5891 = vpack.c.bf16 %v5775, %v5771
        %v5892 = vpack.c.bf16 %v5776, %v5772
        %v5893 = vpack.c.bf16 %v5781, %v5777
        %v5894 = vpack.c.bf16 %v5782, %v5778
        %v5895 = vpack.c.bf16 %v5783, %v5779
        %v5896 = vpack.c.bf16 %v5784, %v5780
        %v5897 = vpack.c.bf16 %v5789, %v5785
        %v5898 = vpack.c.bf16 %v5790, %v5786
        %v5899 = vpack.c.bf16 %v5791, %v5787
        %v5900 = vpack.c.bf16 %v5792, %v5788
        %v5901 = vpack.c.bf16 %v5797, %v5793
        %v5902 = vpack.c.bf16 %v5798, %v5794
        %v5903 = vpack.c.bf16 %v5799, %v5795
        %v5904 = vpack.c.bf16 %v5800, %v5796
        %v5905 = vpack.c.bf16 %v5805, %v5801
        %v5906 = vpack.c.bf16 %v5806, %v5802
        %v5907 = vpack.c.bf16 %v5807, %v5803
        %v5908 = vpack.c.bf16 %v5808, %v5804
        %v5909 = vpack.c.bf16 %v5813, %v5809
        %v5910 = vpack.c.bf16 %v5814, %v5810
        %v5911 = vpack.c.bf16 %v5815, %v5811
        %v5912 = vpack.c.bf16 %v5816, %v5812
        %v5913 = vpack.c.bf16 %v5821, %v5817
        %v5914 = vpack.c.bf16 %v5822, %v5818
        %v5915 = vpack.c.bf16 %v5823, %v5819
        %v5916 = vpack.c.bf16 %v5824, %v5820
        %v5917 = vpack.c.bf16 %v5829, %v5825
        %v5918 = vpack.c.bf16 %v5830, %v5826
        %v5919 = vpack.c.bf16 %v5831, %v5827
        %v5920 = vpack.c.bf16 %v5832, %v5828
        %v5921 = vpack.c.bf16 %v5837, %v5833
        %v5922 = vpack.c.bf16 %v5838, %v5834
        %v5923 = vpack.c.bf16 %v5839, %v5835
        %v5924 = vpack.c.bf16 %v5840, %v5836
        %v5925 = vpack.c.bf16 %v5845, %v5841
        %v5926 = vpack.c.bf16 %v5846, %v5842
        %v5927 = vpack.c.bf16 %v5847, %v5843
        %v5928 = vpack.c.bf16 %v5848, %v5844
        %v5929 = vpack.c.bf16 %v5853, %v5849
        %v5930 = vpack.c.bf16 %v5854, %v5850
        %v5931 = vpack.c.bf16 %v5855, %v5851
        %v5932 = vpack.c.bf16 %v5856, %v5852
        %v5933 = vpack.c.bf16 %v5861, %v5857
        %v5934 = vpack.c.bf16 %v5862, %v5858
        %v5935 = vpack.c.bf16 %v5863, %v5859
        %v5936 = vpack.c.bf16 %v5864, %v5860
        %v5937 = vpack.c.bf16 %v5869, %v5865
        %v5938 = vpack.c.bf16 %v5870, %v5866
        %v5939 = vpack.c.bf16 %v5871, %v5867
        %v5940 = vpack.c.bf16 %v5872, %v5868
        %v5941 = vpack.c.bf16 %v5877, %v5873
        %v5942 = vpack.c.bf16 %v5878, %v5874
        %v5943 = vpack.c.bf16 %v5879, %v5875
        %v5944 = vpack.c.bf16 %v5880, %v5876
        %v5945 = vld [vmem:[#allocation4] sm:$0xff]
        %v5946 = vld [vmem:[#allocation4 + $0x8] sm:$0xff]
        %v5947 = vld [vmem:[#allocation4 + $0x10] sm:$0xff]
        %v5948 = vld [vmem:[#allocation4 + $0x18] sm:$0xff]
        %v5949 = vld [vmem:[#allocation4 + $0x20] sm:$0xff]
        %v5950 = vld [vmem:[#allocation4 + $0x28] sm:$0xff]
        %v5951 = vld [vmem:[#allocation4 + $0x30] sm:$0xff]
        %v5952 = vld [vmem:[#allocation4 + $0x38] sm:$0xff]
        %v5953 = vld [vmem:[#allocation4 + $0x40] sm:$0xff]
        %v5954 = vld [vmem:[#allocation4 + $0x48] sm:$0xff]
        %v5955 = vld [vmem:[#allocation4 + $0x50] sm:$0xff]
        %v5956 = vld [vmem:[#allocation4 + $0x58] sm:$0xff]
        %v5957 = vld [vmem:[#allocation4 + $0x60] sm:$0xff]
        %v5958 = vld [vmem:[#allocation4 + $0x68] sm:$0xff]
        %v5959 = vld [vmem:[#allocation4 + $0x70] sm:$0xff]
        %v5960 = vld [vmem:[#allocation4 + $0x78] sm:$0xff]
        %v5961 = vld [vmem:[#allocation4 + $0x80] sm:$0xff]
        %v5962 = vld [vmem:[#allocation4 + $0x88] sm:$0xff]
        %v5963 = vld [vmem:[#allocation4 + $0x90] sm:$0xff]
        %v5964 = vld [vmem:[#allocation4 + $0x98] sm:$0xff]
        %v5965 = vld [vmem:[#allocation4 + $0xa0] sm:$0xff]
        %v5966 = vld [vmem:[#allocation4 + $0xa8] sm:$0xff]
        %v5967 = vld [vmem:[#allocation4 + $0xb0] sm:$0xff]
        %v5968 = vld [vmem:[#allocation4 + $0xb8] sm:$0xff]
        %v5969 = vld [vmem:[#allocation4 + $0xc0] sm:$0xff]
        %v5970 = vld [vmem:[#allocation4 + $0xc8] sm:$0xff]
        %v5971 = vld [vmem:[#allocation4 + $0xd0] sm:$0xff]
        %v5972 = vld [vmem:[#allocation4 + $0xd8] sm:$0xff]
        %v5973 = vld [vmem:[#allocation4 + $0xe0] sm:$0xff]
        %v5974 = vld [vmem:[#allocation4 + $0xe8] sm:$0xff]
        %v5975 = vld [vmem:[#allocation4 + $0xf0] sm:$0xff]
        %v5976 = vld [vmem:[#allocation4 + $0xf8] sm:$0xff]
        %v5977 = vld [vmem:[#allocation4 + $0x100] sm:$0xff]
        %v5978 = vld [vmem:[#allocation4 + $0x108] sm:$0xff]
        %v5979 = vld [vmem:[#allocation4 + $0x110] sm:$0xff]
        %v5980 = vld [vmem:[#allocation4 + $0x118] sm:$0xff]
        %v5981 = vld [vmem:[#allocation4 + $0x120] sm:$0xff]
        %v5982 = vld [vmem:[#allocation4 + $0x128] sm:$0xff]
        %v5983 = vld [vmem:[#allocation4 + $0x130] sm:$0xff]
        %v5984 = vld [vmem:[#allocation4 + $0x138] sm:$0xff]
        %v5985 = vld [vmem:[#allocation4 + $0x140] sm:$0xff]
        %v5986 = vld [vmem:[#allocation4 + $0x148] sm:$0xff]
        %v5987 = vld [vmem:[#allocation4 + $0x150] sm:$0xff]
        %v5988 = vld [vmem:[#allocation4 + $0x158] sm:$0xff]
        %v5989 = vld [vmem:[#allocation4 + $0x160] sm:$0xff]
        %v5990 = vld [vmem:[#allocation4 + $0x168] sm:$0xff]
        %v5991 = vld [vmem:[#allocation4 + $0x170] sm:$0xff]
        %v5992 = vld [vmem:[#allocation4 + $0x178] sm:$0xff]
        %v5993 = vld [vmem:[#allocation4 + $0x180] sm:$0xff]
        %v5994 = vld [vmem:[#allocation4 + $0x188] sm:$0xff]
        %v5995 = vld [vmem:[#allocation4 + $0x190] sm:$0xff]
        %v5996 = vld [vmem:[#allocation4 + $0x198] sm:$0xff]
        %v5997 = vld [vmem:[#allocation4 + $0x1a0] sm:$0xff]
        %v5998 = vld [vmem:[#allocation4 + $0x1a8] sm:$0xff]
        %v5999 = vld [vmem:[#allocation4 + $0x1b0] sm:$0xff]
        %v6000 = vld [vmem:[#allocation4 + $0x1b8] sm:$0xff]
        %v6001 = vld [vmem:[#allocation4 + $0x1c0] sm:$0xff]
        %v6002 = vld [vmem:[#allocation4 + $0x1c8] sm:$0xff]
        %v6003 = vld [vmem:[#allocation4 + $0x1d0] sm:$0xff]
        %v6004 = vld [vmem:[#allocation4 + $0x1d8] sm:$0xff]
        %v6005 = vld [vmem:[#allocation4 + $0x1e0] sm:$0xff]
        %v6006 = vld [vmem:[#allocation4 + $0x1e8] sm:$0xff]
        %v6007 = vld [vmem:[#allocation4 + $0x1f0] sm:$0xff]
        %v6008 = vld [vmem:[#allocation4 + $0x1f8] sm:$0xff]
        %v6009 = vld [vmem:[#allocation4 + $0x200] sm:$0xff]
        %v6010 = vld [vmem:[#allocation4 + $0x208] sm:$0xff]
        %v6011 = vld [vmem:[#allocation4 + $0x210] sm:$0xff]
        %v6012 = vld [vmem:[#allocation4 + $0x218] sm:$0xff]
        %v6013 = vld [vmem:[#allocation4 + $0x220] sm:$0xff]
        %v6014 = vld [vmem:[#allocation4 + $0x228] sm:$0xff]
        %v6015 = vld [vmem:[#allocation4 + $0x230] sm:$0xff]
        %v6016 = vld [vmem:[#allocation4 + $0x238] sm:$0xff]
        %v6017 = vld [vmem:[#allocation4 + $0x240] sm:$0xff]
        %v6018 = vld [vmem:[#allocation4 + $0x248] sm:$0xff]
        %v6019 = vld [vmem:[#allocation4 + $0x250] sm:$0xff]
        %v6020 = vld [vmem:[#allocation4 + $0x258] sm:$0xff]
        %v6021 = vld [vmem:[#allocation4 + $0x260] sm:$0xff]
        %v6022 = vld [vmem:[#allocation4 + $0x268] sm:$0xff]
        %v6023 = vld [vmem:[#allocation4 + $0x270] sm:$0xff]
        %v6024 = vld [vmem:[#allocation4 + $0x278] sm:$0xff]
        %v6025 = vld [vmem:[#allocation4 + $0x280] sm:$0xff]
        %v6026 = vld [vmem:[#allocation4 + $0x288] sm:$0xff]
        %v6027 = vld [vmem:[#allocation4 + $0x290] sm:$0xff]
        %v6028 = vld [vmem:[#allocation4 + $0x298] sm:$0xff]
        %v6029 = vld [vmem:[#allocation4 + $0x2a0] sm:$0xff]
        %v6030 = vld [vmem:[#allocation4 + $0x2a8] sm:$0xff]
        %v6031 = vld [vmem:[#allocation4 + $0x2b0] sm:$0xff]
        %v6032 = vld [vmem:[#allocation4 + $0x2b8] sm:$0xff]
        %v6033 = vld [vmem:[#allocation4 + $0x2c0] sm:$0xff]
        %v6034 = vld [vmem:[#allocation4 + $0x2c8] sm:$0xff]
        %v6035 = vld [vmem:[#allocation4 + $0x2d0] sm:$0xff]
        %v6036 = vld [vmem:[#allocation4 + $0x2d8] sm:$0xff]
        %v6037 = vld [vmem:[#allocation4 + $0x2e0] sm:$0xff]
        %v6038 = vld [vmem:[#allocation4 + $0x2e8] sm:$0xff]
        %v6039 = vld [vmem:[#allocation4 + $0x2f0] sm:$0xff]
        %v6040 = vld [vmem:[#allocation4 + $0x2f8] sm:$0xff]
        %v6041 = vld [vmem:[#allocation4 + $0x300] sm:$0xff]
        %v6042 = vld [vmem:[#allocation4 + $0x308] sm:$0xff]
        %v6043 = vld [vmem:[#allocation4 + $0x310] sm:$0xff]
        %v6044 = vld [vmem:[#allocation4 + $0x318] sm:$0xff]
        %v6045 = vld [vmem:[#allocation4 + $0x320] sm:$0xff]
        %v6046 = vld [vmem:[#allocation4 + $0x328] sm:$0xff]
        %v6047 = vld [vmem:[#allocation4 + $0x330] sm:$0xff]
        %v6048 = vld [vmem:[#allocation4 + $0x338] sm:$0xff]
        %v6049 = vld [vmem:[#allocation4 + $0x340] sm:$0xff]
        %v6050 = vld [vmem:[#allocation4 + $0x348] sm:$0xff]
        %v6051 = vld [vmem:[#allocation4 + $0x350] sm:$0xff]
        %v6052 = vld [vmem:[#allocation4 + $0x358] sm:$0xff]
        %v6053 = vld [vmem:[#allocation4 + $0x360] sm:$0xff]
        %v6054 = vld [vmem:[#allocation4 + $0x368] sm:$0xff]
        %v6055 = vld [vmem:[#allocation4 + $0x370] sm:$0xff]
        %v6056 = vld [vmem:[#allocation4 + $0x378] sm:$0xff]
        %v6057 = vld [vmem:[#allocation4 + $0x380] sm:$0xff]
        %v6058 = vld [vmem:[#allocation4 + $0x388] sm:$0xff]
        %v6059 = vld [vmem:[#allocation4 + $0x390] sm:$0xff]
        %v6060 = vld [vmem:[#allocation4 + $0x398] sm:$0xff]
        %v6061 = vld [vmem:[#allocation4 + $0x3a0] sm:$0xff]
        %v6062 = vld [vmem:[#allocation4 + $0x3a8] sm:$0xff]
        %v6063 = vld [vmem:[#allocation4 + $0x3b0] sm:$0xff]
        %v6064 = vld [vmem:[#allocation4 + $0x3b8] sm:$0xff]
        %v6065 = vld [vmem:[#allocation4 + $0x3c0] sm:$0xff]
        %v6066 = vld [vmem:[#allocation4 + $0x3c8] sm:$0xff]
        %v6067 = vld [vmem:[#allocation4 + $0x3d0] sm:$0xff]
        %v6068 = vld [vmem:[#allocation4 + $0x3d8] sm:$0xff]
        %v6069 = vld [vmem:[#allocation4 + $0x3e0] sm:$0xff]
        %v6070 = vld [vmem:[#allocation4 + $0x3e8] sm:$0xff]
        %v6071 = vld [vmem:[#allocation4 + $0x3f0] sm:$0xff]
        %v6072 = vld [vmem:[#allocation4 + $0x3f8] sm:$0xff]
        %6073 = vxpose.xlu0.c.b16.start [1/8] %v3570, 128
        %6074 = vxpose.xlu0.c.b16.cont [2/8] %v3572, 128
        %6075 = vxpose.xlu0.c.b16.cont [3/8] %v3574, 128
        %6076 = vxpose.xlu0.c.b16.cont [4/8] %v3576, 128
        %6077 = vxpose.xlu0.c.b16.cont [5/8] %v3578, 128
        %6078 = vxpose.xlu0.c.b16.cont [6/8] %v3580, 128
        %6079 = vxpose.xlu0.c.b16.cont [7/8] %v3582, 128
        %6080 = vxpose.xlu0.c.b16.end [8/8] %v3584, 128
        %v6081 = vpop.trf.xlu0
        %v6082 = vpop.trf.xlu0
        %v6083 = vpop.trf.xlu0
        %v6084 = vpop.trf.xlu0
        %v6085 = vpop.trf.xlu0
        %v6086 = vpop.trf.xlu0
        %v6087 = vpop.trf.xlu0
        %v6088 = vpop.trf.xlu0
        %6089 = vxpose.xlu0.c.b16.start [1/8] %v3571, 128
        %6090 = vxpose.xlu0.c.b16.cont [2/8] %v3573, 128
        %6091 = vxpose.xlu0.c.b16.cont [3/8] %v3575, 128
        %6092 = vxpose.xlu0.c.b16.cont [4/8] %v3577, 128
        %6093 = vxpose.xlu0.c.b16.cont [5/8] %v3579, 128
        %6094 = vxpose.xlu0.c.b16.cont [6/8] %v3581, 128
        %6095 = vxpose.xlu0.c.b16.cont [7/8] %v3583, 128
        %6096 = vxpose.xlu0.c.b16.end [8/8] %v3585, 128
        %v6097 = vpop.trf.xlu0
        %v6098 = vpop.trf.xlu0
        %v6099 = vpop.trf.xlu0
        %v6100 = vpop.trf.xlu0
        %v6101 = vpop.trf.xlu0
        %v6102 = vpop.trf.xlu0
        %v6103 = vpop.trf.xlu0
        %v6104 = vpop.trf.xlu0
        %6105 = vxpose.xlu0.c.b16.start [1/8] %v3586, 128
        %6106 = vxpose.xlu0.c.b16.cont [2/8] %v3588, 128
        %6107 = vxpose.xlu0.c.b16.cont [3/8] %v3590, 128
        %6108 = vxpose.xlu0.c.b16.cont [4/8] %v3592, 128
        %6109 = vxpose.xlu0.c.b16.cont [5/8] %v3594, 128
        %6110 = vxpose.xlu0.c.b16.cont [6/8] %v3596, 128
        %6111 = vxpose.xlu0.c.b16.cont [7/8] %v3598, 128
        %6112 = vxpose.xlu0.c.b16.end [8/8] %v3600, 128
        %v6113 = vpop.trf.xlu0
        %v6114 = vpop.trf.xlu0
        %v6115 = vpop.trf.xlu0
        %v6116 = vpop.trf.xlu0
        %v6117 = vpop.trf.xlu0
        %v6118 = vpop.trf.xlu0
        %v6119 = vpop.trf.xlu0
        %v6120 = vpop.trf.xlu0
        %6121 = vxpose.xlu0.c.b16.start [1/8] %v3587, 128
        %6122 = vxpose.xlu0.c.b16.cont [2/8] %v3589, 128
        %6123 = vxpose.xlu0.c.b16.cont [3/8] %v3591, 128
        %6124 = vxpose.xlu0.c.b16.cont [4/8] %v3593, 128
        %6125 = vxpose.xlu0.c.b16.cont [5/8] %v3595, 128
        %6126 = vxpose.xlu0.c.b16.cont [6/8] %v3597, 128
        %6127 = vxpose.xlu0.c.b16.cont [7/8] %v3599, 128
        %6128 = vxpose.xlu0.c.b16.end [8/8] %v3601, 128
        %v6129 = vpop.trf.xlu0
        %v6130 = vpop.trf.xlu0
        %v6131 = vpop.trf.xlu0
        %v6132 = vpop.trf.xlu0
        %v6133 = vpop.trf.xlu0
        %v6134 = vpop.trf.xlu0
        %v6135 = vpop.trf.xlu0
        %v6136 = vpop.trf.xlu0
        %6137 = vmatprep.subr.bf16.mxu0 %v5882
        %6138 = vmatpush1.bf16.msra.mxu0 %v5881
        %6139 = vmatprep.subr.bf16.mxu0 %v5886
        %6140 = vmatpush1.bf16.msra.mxu0 %v5885
        %6141 = vmatprep.subr.bf16.mxu0 %v5890
        %6142 = vmatpush1.bf16.msra.mxu0 %v5889
        %6143 = vmatprep.subr.bf16.mxu0 %v5894
        %6144 = vmatpush1.bf16.msra.mxu0 %v5893
        %6145 = vmatprep.subr.bf16.mxu0 %v5898
        %6146 = vmatpush1.bf16.msra.mxu0 %v5897
        %6147 = vmatprep.subr.bf16.mxu0 %v5902
        %6148 = vmatpush1.bf16.msra.mxu0 %v5901
        %6149 = vmatprep.subr.bf16.mxu0 %v5906
        %6150 = vmatpush1.bf16.msra.mxu0 %v5905
        %6151 = vmatprep.subr.bf16.mxu0 %v5910
        %6152 = vmatpush1.bf16.msra.mxu0 %v5909
        %6153 = vmatprep.subr.bf16.mxu0 %v5914
        %6154 = vmatpush1.bf16.msra.mxu0 %v5913
        %6155 = vmatprep.subr.bf16.mxu0 %v5918
        %6156 = vmatpush1.bf16.msra.mxu0 %v5917
        %6157 = vmatprep.subr.bf16.mxu0 %v5922
        %6158 = vmatpush1.bf16.msra.mxu0 %v5921
        %6159 = vmatprep.subr.bf16.mxu0 %v5926
        %6160 = vmatpush1.bf16.msra.mxu0 %v5925
        %6161 = vmatprep.subr.bf16.mxu0 %v5930
        %6162 = vmatpush1.bf16.msra.mxu0 %v5929
        %6163 = vmatprep.subr.bf16.mxu0 %v5934
        %6164 = vmatpush1.bf16.msra.mxu0 %v5933
        %6165 = vmatprep.subr.bf16.mxu0 %v5938
        %6166 = vmatpush1.bf16.msra.mxu0 %v5937
        %6167 = vmatprep.subr.bf16.mxu0 %v5942
        %6168 = vmatpush1.bf16.msra.mxu0 %v5941
        %6169 = vmatprep.mubr.bf16.mxu0 %v6113
        %6170 = vmatmul.mubr.bf16.gmra.mrb[0].mxu0 %v6081
        %v6171 = vpop.f32.mrb[0].mxu0
        %v6172 = vadd.f32 0.0, %v6171
        %v6173 = vpop.f32.mrb[0].mxu0
        %v6174 = vadd.f32 0.0, %v6173
        %v6175 = vpop.f32.mrb[0].mxu0
        %v6176 = vadd.f32 0.0, %v6175
        %v6177 = vpop.f32.mrb[0].mxu0
        %v6178 = vadd.f32 0.0, %v6177
        %6179 = vmatprep.mubr.bf16.mxu0 %v6114
        %6180 = vmatmul.mubr.bf16.gmra.mrb[0].mxu0 %v6082
        %v6181 = vpop.f32.mrb[0].mxu0
        %v6182 = vadd.f32 0.0, %v6181
        %v6183 = vpop.f32.mrb[0].mxu0
        %v6184 = vadd.f32 0.0, %v6183
        %v6185 = vpop.f32.mrb[0].mxu0
        %v6186 = vadd.f32 0.0, %v6185
        %v6187 = vpop.f32.mrb[0].mxu0
        %v6188 = vadd.f32 0.0, %v6187
        %6189 = vmatprep.mubr.bf16.mxu0 %v6115
        %6190 = vmatmul.mubr.bf16.gmra.mrb[0].mxu0 %v6083
        %v6191 = vpop.f32.mrb[0].mxu0
        %v6192 = vadd.f32 0.0, %v6191
        %v6193 = vpop.f32.mrb[0].mxu0
        %v6194 = vadd.f32 0.0, %v6193
        %v6195 = vpop.f32.mrb[0].mxu0
        %v6196 = vadd.f32 0.0, %v6195
        %v6197 = vpop.f32.mrb[0].mxu0
        %v6198 = vadd.f32 0.0, %v6197
        %6199 = vmatprep.mubr.bf16.mxu0 %v6116
        %6200 = vmatmul.mubr.bf16.gmra.mrb[0].mxu0 %v6084
        %v6201 = vpop.f32.mrb[0].mxu0
        %v6202 = vadd.f32 0.0, %v6201
        %v6203 = vpop.f32.mrb[0].mxu0
        %v6204 = vadd.f32 0.0, %v6203
        %v6205 = vpop.f32.mrb[0].mxu0
        %v6206 = vadd.f32 0.0, %v6205
        %v6207 = vpop.f32.mrb[0].mxu0
        %v6208 = vadd.f32 0.0, %v6207
        %6209 = vmatprep.mubr.bf16.mxu0 %v6117
        %6210 = vmatmul.mubr.bf16.gmra.mrb[0].mxu0 %v6085
        %v6211 = vpop.f32.mrb[0].mxu0
        %v6212 = vadd.f32 0.0, %v6211
        %v6213 = vpop.f32.mrb[0].mxu0
        %v6214 = vadd.f32 0.0, %v6213
        %v6215 = vpop.f32.mrb[0].mxu0
        %v6216 = vadd.f32 0.0, %v6215
        %v6217 = vpop.f32.mrb[0].mxu0
        %v6218 = vadd.f32 0.0, %v6217
        %6219 = vmatprep.mubr.bf16.mxu0 %v6118
        %6220 = vmatmul.mubr.bf16.gmra.mrb[0].mxu0 %v6086
        %v6221 = vpop.f32.mrb[0].mxu0
        %v6222 = vadd.f32 0.0, %v6221
        %v6223 = vpop.f32.mrb[0].mxu0
        %v6224 = vadd.f32 0.0, %v6223
        %v6225 = vpop.f32.mrb[0].mxu0
        %v6226 = vadd.f32 0.0, %v6225
        %v6227 = vpop.f32.mrb[0].mxu0
        %v6228 = vadd.f32 0.0, %v6227
        %6229 = vmatprep.mubr.bf16.mxu0 %v6119
        %6230 = vmatmul.mubr.bf16.gmra.mrb[0].mxu0 %v6087
        %v6231 = vpop.f32.mrb[0].mxu0
        %v6232 = vadd.f32 0.0, %v6231
        %v6233 = vpop.f32.mrb[0].mxu0
        %v6234 = vadd.f32 0.0, %v6233
        %v6235 = vpop.f32.mrb[0].mxu0
        %v6236 = vadd.f32 0.0, %v6235
        %v6237 = vpop.f32.mrb[0].mxu0
        %v6238 = vadd.f32 0.0, %v6237
        %6239 = vmatprep.mubr.bf16.mxu0 %v6120
        %6240 = vmatmul.mubr.bf16.gmra.mrb[0].mxu0 %v6088
        %v6241 = vpop.f32.mrb[0].mxu0
        %v6242 = vadd.f32 0.0, %v6241
        %v6243 = vpop.f32.mrb[0].mxu0
        %v6244 = vadd.f32 0.0, %v6243
        %v6245 = vpop.f32.mrb[0].mxu0
        %v6246 = vadd.f32 0.0, %v6245
        %v6247 = vpop.f32.mrb[0].mxu0
        %v6248 = vadd.f32 0.0, %v6247
        %6249 = vmatprep.mubr.bf16.mxu0 %v6129
        %6250 = vmatmul.mubr.bf16.gmra.mrb[0].mxu0 %v6097
        %v6251 = vpop.f32.mrb[0].mxu0
        %v6252 = vadd.f32 0.0, %v6251
        %v6253 = vpop.f32.mrb[0].mxu0
        %v6254 = vadd.f32 0.0, %v6253
        %v6255 = vpop.f32.mrb[0].mxu0
        %v6256 = vadd.f32 0.0, %v6255
        %v6257 = vpop.f32.mrb[0].mxu0
        %v6258 = vadd.f32 0.0, %v6257
        %6259 = vmatprep.mubr.bf16.mxu0 %v6130
        %6260 = vmatmul.mubr.bf16.gmra.mrb[0].mxu0 %v6098
        %v6261 = vpop.f32.mrb[0].mxu0
        %v6262 = vadd.f32 0.0, %v6261
        %v6263 = vpop.f32.mrb[0].mxu0
        %v6264 = vadd.f32 0.0, %v6263
        %v6265 = vpop.f32.mrb[0].mxu0
        %v6266 = vadd.f32 0.0, %v6265
        %v6267 = vpop.f32.mrb[0].mxu0
        %v6268 = vadd.f32 0.0, %v6267
        %6269 = vmatprep.mubr.bf16.mxu0 %v6131
        %6270 = vmatmul.mubr.bf16.gmra.mrb[0].mxu0 %v6099
        %v6271 = vpop.f32.mrb[0].mxu0
        %v6272 = vadd.f32 0.0, %v6271
        %v6273 = vpop.f32.mrb[0].mxu0
        %v6274 = vadd.f32 0.0, %v6273
        %v6275 = vpop.f32.mrb[0].mxu0
        %v6276 = vadd.f32 0.0, %v6275
        %v6277 = vpop.f32.mrb[0].mxu0
        %v6278 = vadd.f32 0.0, %v6277
        %6279 = vmatprep.mubr.bf16.mxu0 %v6132
        %6280 = vmatmul.mubr.bf16.gmra.mrb[0].mxu0 %v6100
        %v6281 = vpop.f32.mrb[0].mxu0
        %v6282 = vadd.f32 0.0, %v6281
        %v6283 = vpop.f32.mrb[0].mxu0
        %v6284 = vadd.f32 0.0, %v6283
        %v6285 = vpop.f32.mrb[0].mxu0
        %v6286 = vadd.f32 0.0, %v6285
        %v6287 = vpop.f32.mrb[0].mxu0
        %v6288 = vadd.f32 0.0, %v6287
        %6289 = vmatprep.mubr.bf16.mxu0 %v6133
        %6290 = vmatmul.mubr.bf16.gmra.mrb[0].mxu0 %v6101
        %v6291 = vpop.f32.mrb[0].mxu0
        %v6292 = vadd.f32 0.0, %v6291
        %v6293 = vpop.f32.mrb[0].mxu0
        %v6294 = vadd.f32 0.0, %v6293
        %v6295 = vpop.f32.mrb[0].mxu0
        %v6296 = vadd.f32 0.0, %v6295
        %v6297 = vpop.f32.mrb[0].mxu0
        %v6298 = vadd.f32 0.0, %v6297
        %6299 = vmatprep.mubr.bf16.mxu0 %v6134
        %6300 = vmatmul.mubr.bf16.gmra.mrb[0].mxu0 %v6102
        %v6301 = vpop.f32.mrb[0].mxu0
        %v6302 = vadd.f32 0.0, %v6301
        %v6303 = vpop.f32.mrb[0].mxu0
        %v6304 = vadd.f32 0.0, %v6303
        %v6305 = vpop.f32.mrb[0].mxu0
        %v6306 = vadd.f32 0.0, %v6305
        %v6307 = vpop.f32.mrb[0].mxu0
        %v6308 = vadd.f32 0.0, %v6307
        %6309 = vmatprep.mubr.bf16.mxu0 %v6135
        %6310 = vmatmul.mubr.bf16.gmra.mrb[0].mxu0 %v6103
        %v6311 = vpop.f32.mrb[0].mxu0
        %v6312 = vadd.f32 0.0, %v6311
        %v6313 = vpop.f32.mrb[0].mxu0
        %v6314 = vadd.f32 0.0, %v6313
        %v6315 = vpop.f32.mrb[0].mxu0
        %v6316 = vadd.f32 0.0, %v6315
        %v6317 = vpop.f32.mrb[0].mxu0
        %v6318 = vadd.f32 0.0, %v6317
        %6319 = vmatprep.mubr.bf16.mxu0 %v6136
        %6320 = vmatmul.mubr.bf16.gmra.mrb[0].mxu0 %v6104
        %v6321 = vpop.f32.mrb[0].mxu0
        %v6322 = vadd.f32 0.0, %v6321
        %v6323 = vpop.f32.mrb[0].mxu0
        %v6324 = vadd.f32 0.0, %v6323
        %v6325 = vpop.f32.mrb[0].mxu0
        %v6326 = vadd.f32 0.0, %v6325
        %v6327 = vpop.f32.mrb[0].mxu0
        %v6328 = vadd.f32 0.0, %v6327
        %6329 = vdwg.mxu0
        %6330 = vmatprep.subr.bf16.mxu0 %v5884
        %6331 = vmatpush1.bf16.msra.mxu0 %v5883
        %6332 = vmatprep.subr.bf16.mxu0 %v5888
        %6333 = vmatpush1.bf16.msra.mxu0 %v5887
        %6334 = vmatprep.subr.bf16.mxu0 %v5892
        %6335 = vmatpush1.bf16.msra.mxu0 %v5891
        %6336 = vmatprep.subr.bf16.mxu0 %v5896
        %6337 = vmatpush1.bf16.msra.mxu0 %v5895
        %6338 = vmatprep.subr.bf16.mxu0 %v5900
        %6339 = vmatpush1.bf16.msra.mxu0 %v5899
        %6340 = vmatprep.subr.bf16.mxu0 %v5904
        %6341 = vmatpush1.bf16.msra.mxu0 %v5903
        %6342 = vmatprep.subr.bf16.mxu0 %v5908
        %6343 = vmatpush1.bf16.msra.mxu0 %v5907
        %6344 = vmatprep.subr.bf16.mxu0 %v5912
        %6345 = vmatpush1.bf16.msra.mxu0 %v5911
        %6346 = vmatprep.subr.bf16.mxu0 %v5916
        %6347 = vmatpush1.bf16.msra.mxu0 %v5915
        %6348 = vmatprep.subr.bf16.mxu0 %v5920
        %6349 = vmatpush1.bf16.msra.mxu0 %v5919
        %6350 = vmatprep.subr.bf16.mxu0 %v5924
        %6351 = vmatpush1.bf16.msra.mxu0 %v5923
        %6352 = vmatprep.subr.bf16.mxu0 %v5928
        %6353 = vmatpush1.bf16.msra.mxu0 %v5927
        %6354 = vmatprep.subr.bf16.mxu0 %v5932
        %6355 = vmatpush1.bf16.msra.mxu0 %v5931
        %6356 = vmatprep.subr.bf16.mxu0 %v5936
        %6357 = vmatpush1.bf16.msra.mxu0 %v5935
        %6358 = vmatprep.subr.bf16.mxu0 %v5940
        %6359 = vmatpush1.bf16.msra.mxu0 %v5939
        %6360 = vmatprep.subr.bf16.mxu0 %v5944
        %6361 = vmatpush1.bf16.msra.mxu0 %v5943
        %6362 = vmatprep.mubr.bf16.mxu0 %v6113
        %6363 = vmatmul.mubr.bf16.gmra.mrb[0].mxu0 %v6081
        %v6364 = vpop.f32.mrb[0].mxu0
        %v6365 = vadd.f32 0.0, %v6364
        %v6366 = vpop.f32.mrb[0].mxu0
        %v6367 = vadd.f32 0.0, %v6366
        %v6368 = vpop.f32.mrb[0].mxu0
        %v6369 = vadd.f32 0.0, %v6368
        %v6370 = vpop.f32.mrb[0].mxu0
        %v6371 = vadd.f32 0.0, %v6370
        %6372 = vmatprep.mubr.bf16.mxu0 %v6114
        %6373 = vmatmul.mubr.bf16.gmra.mrb[0].mxu0 %v6082
        %v6374 = vpop.f32.mrb[0].mxu0
        %v6375 = vadd.f32 0.0, %v6374
        %v6376 = vpop.f32.mrb[0].mxu0
        %v6377 = vadd.f32 0.0, %v6376
        %v6378 = vpop.f32.mrb[0].mxu0
        %v6379 = vadd.f32 0.0, %v6378
        %v6380 = vpop.f32.mrb[0].mxu0
        %v6381 = vadd.f32 0.0, %v6380
        %6382 = vmatprep.mubr.bf16.mxu0 %v6115
        %6383 = vmatmul.mubr.bf16.gmra.mrb[0].mxu0 %v6083
        %v6384 = vpop.f32.mrb[0].mxu0
        %v6385 = vadd.f32 0.0, %v6384
        %v6386 = vpop.f32.mrb[0].mxu0
        %v6387 = vadd.f32 0.0, %v6386
        %v6388 = vpop.f32.mrb[0].mxu0
        %v6389 = vadd.f32 0.0, %v6388
        %v6390 = vpop.f32.mrb[0].mxu0
        %v6391 = vadd.f32 0.0, %v6390
        %6392 = vmatprep.mubr.bf16.mxu0 %v6116
        %6393 = vmatmul.mubr.bf16.gmra.mrb[0].mxu0 %v6084
        %v6394 = vpop.f32.mrb[0].mxu0
        %v6395 = vadd.f32 0.0, %v6394
        %v6396 = vpop.f32.mrb[0].mxu0
        %v6397 = vadd.f32 0.0, %v6396
        %v6398 = vpop.f32.mrb[0].mxu0
        %v6399 = vadd.f32 0.0, %v6398
        %v6400 = vpop.f32.mrb[0].mxu0
        %v6401 = vadd.f32 0.0, %v6400
        %6402 = vmatprep.mubr.bf16.mxu0 %v6117
        %6403 = vmatmul.mubr.bf16.gmra.mrb[0].mxu0 %v6085
        %v6404 = vpop.f32.mrb[0].mxu0
        %v6405 = vadd.f32 0.0, %v6404
        %v6406 = vpop.f32.mrb[0].mxu0
        %v6407 = vadd.f32 0.0, %v6406
        %v6408 = vpop.f32.mrb[0].mxu0
        %v6409 = vadd.f32 0.0, %v6408
        %v6410 = vpop.f32.mrb[0].mxu0
        %v6411 = vadd.f32 0.0, %v6410
        %6412 = vmatprep.mubr.bf16.mxu0 %v6118
        %6413 = vmatmul.mubr.bf16.gmra.mrb[0].mxu0 %v6086
        %v6414 = vpop.f32.mrb[0].mxu0
        %v6415 = vadd.f32 0.0, %v6414
        %v6416 = vpop.f32.mrb[0].mxu0
        %v6417 = vadd.f32 0.0, %v6416
        %v6418 = vpop.f32.mrb[0].mxu0
        %v6419 = vadd.f32 0.0, %v6418
        %v6420 = vpop.f32.mrb[0].mxu0
        %v6421 = vadd.f32 0.0, %v6420
        %6422 = vmatprep.mubr.bf16.mxu0 %v6119
        %6423 = vmatmul.mubr.bf16.gmra.mrb[0].mxu0 %v6087
        %v6424 = vpop.f32.mrb[0].mxu0
        %v6425 = vadd.f32 0.0, %v6424
        %v6426 = vpop.f32.mrb[0].mxu0
        %v6427 = vadd.f32 0.0, %v6426
        %v6428 = vpop.f32.mrb[0].mxu0
        %v6429 = vadd.f32 0.0, %v6428
        %v6430 = vpop.f32.mrb[0].mxu0
        %v6431 = vadd.f32 0.0, %v6430
        %6432 = vmatprep.mubr.bf16.mxu0 %v6120
        %6433 = vmatmul.mubr.bf16.gmra.mrb[0].mxu0 %v6088
        %v6434 = vpop.f32.mrb[0].mxu0
        %v6435 = vadd.f32 0.0, %v6434
        %v6436 = vpop.f32.mrb[0].mxu0
        %v6437 = vadd.f32 0.0, %v6436
        %v6438 = vpop.f32.mrb[0].mxu0
        %v6439 = vadd.f32 0.0, %v6438
        %v6440 = vpop.f32.mrb[0].mxu0
        %v6441 = vadd.f32 0.0, %v6440
        %6442 = vmatprep.mubr.bf16.mxu0 %v6129
        %6443 = vmatmul.mubr.bf16.gmra.mrb[0].mxu0 %v6097
        %v6444 = vpop.f32.mrb[0].mxu0
        %v6445 = vadd.f32 0.0, %v6444
        %v6446 = vpop.f32.mrb[0].mxu0
        %v6447 = vadd.f32 0.0, %v6446
        %v6448 = vpop.f32.mrb[0].mxu0
        %v6449 = vadd.f32 0.0, %v6448
        %v6450 = vpop.f32.mrb[0].mxu0
        %v6451 = vadd.f32 0.0, %v6450
        %6452 = vmatprep.mubr.bf16.mxu0 %v6130
        %6453 = vmatmul.mubr.bf16.gmra.mrb[0].mxu0 %v6098
        %v6454 = vpop.f32.mrb[0].mxu0
        %v6455 = vadd.f32 0.0, %v6454
        %v6456 = vpop.f32.mrb[0].mxu0
        %v6457 = vadd.f32 0.0, %v6456
        %v6458 = vpop.f32.mrb[0].mxu0
        %v6459 = vadd.f32 0.0, %v6458
        %v6460 = vpop.f32.mrb[0].mxu0
        %v6461 = vadd.f32 0.0, %v6460
        %6462 = vmatprep.mubr.bf16.mxu0 %v6131
        %6463 = vmatmul.mubr.bf16.gmra.mrb[0].mxu0 %v6099
        %v6464 = vpop.f32.mrb[0].mxu0
        %v6465 = vadd.f32 0.0, %v6464
        %v6466 = vpop.f32.mrb[0].mxu0
        %v6467 = vadd.f32 0.0, %v6466
        %v6468 = vpop.f32.mrb[0].mxu0
        %v6469 = vadd.f32 0.0, %v6468
        %v6470 = vpop.f32.mrb[0].mxu0
        %v6471 = vadd.f32 0.0, %v6470
        %6472 = vmatprep.mubr.bf16.mxu0 %v6132
        %6473 = vmatmul.mubr.bf16.gmra.mrb[0].mxu0 %v6100
        %v6474 = vpop.f32.mrb[0].mxu0
        %v6475 = vadd.f32 0.0, %v6474
        %v6476 = vpop.f32.mrb[0].mxu0
        %v6477 = vadd.f32 0.0, %v6476
        %v6478 = vpop.f32.mrb[0].mxu0
        %v6479 = vadd.f32 0.0, %v6478
        %v6480 = vpop.f32.mrb[0].mxu0
        %v6481 = vadd.f32 0.0, %v6480
        %6482 = vmatprep.mubr.bf16.mxu0 %v6133
        %6483 = vmatmul.mubr.bf16.gmra.mrb[0].mxu0 %v6101
        %v6484 = vpop.f32.mrb[0].mxu0
        %v6485 = vadd.f32 0.0, %v6484
        %v6486 = vpop.f32.mrb[0].mxu0
        %v6487 = vadd.f32 0.0, %v6486
        %v6488 = vpop.f32.mrb[0].mxu0
        %v6489 = vadd.f32 0.0, %v6488
        %v6490 = vpop.f32.mrb[0].mxu0
        %v6491 = vadd.f32 0.0, %v6490
        %6492 = vmatprep.mubr.bf16.mxu0 %v6134
        %6493 = vmatmul.mubr.bf16.gmra.mrb[0].mxu0 %v6102
        %v6494 = vpop.f32.mrb[0].mxu0
        %v6495 = vadd.f32 0.0, %v6494
        %v6496 = vpop.f32.mrb[0].mxu0
        %v6497 = vadd.f32 0.0, %v6496
        %v6498 = vpop.f32.mrb[0].mxu0
        %v6499 = vadd.f32 0.0, %v6498
        %v6500 = vpop.f32.mrb[0].mxu0
        %v6501 = vadd.f32 0.0, %v6500
        %6502 = vmatprep.mubr.bf16.mxu0 %v6135
        %6503 = vmatmul.mubr.bf16.gmra.mrb[0].mxu0 %v6103
        %v6504 = vpop.f32.mrb[0].mxu0
        %v6505 = vadd.f32 0.0, %v6504
        %v6506 = vpop.f32.mrb[0].mxu0
        %v6507 = vadd.f32 0.0, %v6506
        %v6508 = vpop.f32.mrb[0].mxu0
        %v6509 = vadd.f32 0.0, %v6508
        %v6510 = vpop.f32.mrb[0].mxu0
        %v6511 = vadd.f32 0.0, %v6510
        %6512 = vmatprep.mubr.bf16.mxu0 %v6136
        %6513 = vmatmul.mubr.bf16.gmra.mrb[0].mxu0 %v6104
        %v6514 = vpop.f32.mrb[0].mxu0
        %v6515 = vadd.f32 0.0, %v6514
        %v6516 = vpop.f32.mrb[0].mxu0
        %v6517 = vadd.f32 0.0, %v6516
        %v6518 = vpop.f32.mrb[0].mxu0
        %v6519 = vadd.f32 0.0, %v6518
        %v6520 = vpop.f32.mrb[0].mxu0
        %v6521 = vadd.f32 0.0, %v6520
        %6522 = vdwg.mxu0
        %v6523 = vadd.f32 %v5945, %v6172
        %v6524 = vadd.f32 %v5946, %v6174
        %v6525 = vadd.f32 %v5947, %v6365
        %v6526 = vadd.f32 %v5948, %v6367
        %v6527 = vadd.f32 %v5949, %v6176
        %v6528 = vadd.f32 %v5950, %v6178
        %v6529 = vadd.f32 %v5951, %v6369
        %v6530 = vadd.f32 %v5952, %v6371
        %v6531 = vadd.f32 %v5953, %v6182
        %v6532 = vadd.f32 %v5954, %v6184
        %v6533 = vadd.f32 %v5955, %v6375
        %v6534 = vadd.f32 %v5956, %v6377
        %v6535 = vadd.f32 %v5957, %v6186
        %v6536 = vadd.f32 %v5958, %v6188
        %v6537 = vadd.f32 %v5959, %v6379
        %v6538 = vadd.f32 %v5960, %v6381
        %v6539 = vadd.f32 %v5961, %v6192
        %v6540 = vadd.f32 %v5962, %v6194
        %v6541 = vadd.f32 %v5963, %v6385
        %v6542 = vadd.f32 %v5964, %v6387
        %v6543 = vadd.f32 %v5965, %v6196
        %v6544 = vadd.f32 %v5966, %v6198
        %v6545 = vadd.f32 %v5967, %v6389
        %v6546 = vadd.f32 %v5968, %v6391
        %v6547 = vadd.f32 %v5969, %v6202
        %v6548 = vadd.f32 %v5970, %v6204
        %v6549 = vadd.f32 %v5971, %v6395
        %v6550 = vadd.f32 %v5972, %v6397
        %v6551 = vadd.f32 %v5973, %v6206
        %v6552 = vadd.f32 %v5974, %v6208
        %v6553 = vadd.f32 %v5975, %v6399
        %v6554 = vadd.f32 %v5976, %v6401
        %v6555 = vadd.f32 %v5977, %v6212
        %v6556 = vadd.f32 %v5978, %v6214
        %v6557 = vadd.f32 %v5979, %v6405
        %v6558 = vadd.f32 %v5980, %v6407
        %v6559 = vadd.f32 %v5981, %v6216
        %v6560 = vadd.f32 %v5982, %v6218
        %v6561 = vadd.f32 %v5983, %v6409
        %v6562 = vadd.f32 %v5984, %v6411
        %v6563 = vadd.f32 %v5985, %v6222
        %v6564 = vadd.f32 %v5986, %v6224
        %v6565 = vadd.f32 %v5987, %v6415
        %v6566 = vadd.f32 %v5988, %v6417
        %v6567 = vadd.f32 %v5989, %v6226
        %v6568 = vadd.f32 %v5990, %v6228
        %v6569 = vadd.f32 %v5991, %v6419
        %v6570 = vadd.f32 %v5992, %v6421
        %v6571 = vadd.f32 %v5993, %v6232
        %v6572 = vadd.f32 %v5994, %v6234
        %v6573 = vadd.f32 %v5995, %v6425
        %v6574 = vadd.f32 %v5996, %v6427
        %v6575 = vadd.f32 %v5997, %v6236
        %v6576 = vadd.f32 %v5998, %v6238
        %v6577 = vadd.f32 %v5999, %v6429
        %v6578 = vadd.f32 %v6000, %v6431
        %v6579 = vadd.f32 %v6001, %v6242
        %v6580 = vadd.f32 %v6002, %v6244
        %v6581 = vadd.f32 %v6003, %v6435
        %v6582 = vadd.f32 %v6004, %v6437
        %v6583 = vadd.f32 %v6005, %v6246
        %v6584 = vadd.f32 %v6006, %v6248
        %v6585 = vadd.f32 %v6007, %v6439
        %v6586 = vadd.f32 %v6008, %v6441
        %v6587 = vadd.f32 %v6009, %v6252
        %v6588 = vadd.f32 %v6010, %v6254
        %v6589 = vadd.f32 %v6011, %v6445
        %v6590 = vadd.f32 %v6012, %v6447
        %v6591 = vadd.f32 %v6013, %v6256
        %v6592 = vadd.f32 %v6014, %v6258
        %v6593 = vadd.f32 %v6015, %v6449
        %v6594 = vadd.f32 %v6016, %v6451
        %v6595 = vadd.f32 %v6017, %v6262
        %v6596 = vadd.f32 %v6018, %v6264
        %v6597 = vadd.f32 %v6019, %v6455
        %v6598 = vadd.f32 %v6020, %v6457
        %v6599 = vadd.f32 %v6021, %v6266
        %v6600 = vadd.f32 %v6022, %v6268
        %v6601 = vadd.f32 %v6023, %v6459
        %v6602 = vadd.f32 %v6024, %v6461
        %v6603 = vadd.f32 %v6025, %v6272
        %v6604 = vadd.f32 %v6026, %v6274
        %v6605 = vadd.f32 %v6027, %v6465
        %v6606 = vadd.f32 %v6028, %v6467
        %v6607 = vadd.f32 %v6029, %v6276
        %v6608 = vadd.f32 %v6030, %v6278
        %v6609 = vadd.f32 %v6031, %v6469
        %v6610 = vadd.f32 %v6032, %v6471
        %v6611 = vadd.f32 %v6033, %v6282
        %v6612 = vadd.f32 %v6034, %v6284
        %v6613 = vadd.f32 %v6035, %v6475
        %v6614 = vadd.f32 %v6036, %v6477
        %v6615 = vadd.f32 %v6037, %v6286
        %v6616 = vadd.f32 %v6038, %v6288
        %v6617 = vadd.f32 %v6039, %v6479
        %v6618 = vadd.f32 %v6040, %v6481
        %v6619 = vadd.f32 %v6041, %v6292
        %v6620 = vadd.f32 %v6042, %v6294
        %v6621 = vadd.f32 %v6043, %v6485
        %v6622 = vadd.f32 %v6044, %v6487
        %v6623 = vadd.f32 %v6045, %v6296
        %v6624 = vadd.f32 %v6046, %v6298
        %v6625 = vadd.f32 %v6047, %v6489
        %v6626 = vadd.f32 %v6048, %v6491
        %v6627 = vadd.f32 %v6049, %v6302
        %v6628 = vadd.f32 %v6050, %v6304
        %v6629 = vadd.f32 %v6051, %v6495
        %v6630 = vadd.f32 %v6052, %v6497
        %v6631 = vadd.f32 %v6053, %v6306
        %v6632 = vadd.f32 %v6054, %v6308
        %v6633 = vadd.f32 %v6055, %v6499
        %v6634 = vadd.f32 %v6056, %v6501
        %v6635 = vadd.f32 %v6057, %v6312
        %v6636 = vadd.f32 %v6058, %v6314
        %v6637 = vadd.f32 %v6059, %v6505
        %v6638 = vadd.f32 %v6060, %v6507
        %v6639 = vadd.f32 %v6061, %v6316
        %v6640 = vadd.f32 %v6062, %v6318
        %v6641 = vadd.f32 %v6063, %v6509
        %v6642 = vadd.f32 %v6064, %v6511
        %v6643 = vadd.f32 %v6065, %v6322
        %v6644 = vadd.f32 %v6066, %v6324
        %v6645 = vadd.f32 %v6067, %v6515
        %v6646 = vadd.f32 %v6068, %v6517
        %v6647 = vadd.f32 %v6069, %v6326
        %v6648 = vadd.f32 %v6070, %v6328
        %v6649 = vadd.f32 %v6071, %v6519
        %v6650 = vadd.f32 %v6072, %v6521
        %6651 = vst [vmem:[#allocation4] sm:$0xff] %v6523
        %6652 = vst [vmem:[#allocation4 + $0x8] sm:$0xff] %v6524
        %6653 = vst [vmem:[#allocation4 + $0x10] sm:$0xff] %v6525
        %6654 = vst [vmem:[#allocation4 + $0x18] sm:$0xff] %v6526
        %6655 = vst [vmem:[#allocation4 + $0x20] sm:$0xff] %v6527
        %6656 = vst [vmem:[#allocation4 + $0x28] sm:$0xff] %v6528
        %6657 = vst [vmem:[#allocation4 + $0x30] sm:$0xff] %v6529
        %6658 = vst [vmem:[#allocation4 + $0x38] sm:$0xff] %v6530
        %6659 = vst [vmem:[#allocation4 + $0x40] sm:$0xff] %v6531
        %6660 = vst [vmem:[#allocation4 + $0x48] sm:$0xff] %v6532
        %6661 = vst [vmem:[#allocation4 + $0x50] sm:$0xff] %v6533
        %6662 = vst [vmem:[#allocation4 + $0x58] sm:$0xff] %v6534
        %6663 = vst [vmem:[#allocation4 + $0x60] sm:$0xff] %v6535
        %6664 = vst [vmem:[#allocation4 + $0x68] sm:$0xff] %v6536
        %6665 = vst [vmem:[#allocation4 + $0x70] sm:$0xff] %v6537
        %6666 = vst [vmem:[#allocation4 + $0x78] sm:$0xff] %v6538
        %6667 = vst [vmem:[#allocation4 + $0x80] sm:$0xff] %v6539
        %6668 = vst [vmem:[#allocation4 + $0x88] sm:$0xff] %v6540
        %6669 = vst [vmem:[#allocation4 + $0x90] sm:$0xff] %v6541
        %6670 = vst [vmem:[#allocation4 + $0x98] sm:$0xff] %v6542
        %6671 = vst [vmem:[#allocation4 + $0xa0] sm:$0xff] %v6543
        %6672 = vst [vmem:[#allocation4 + $0xa8] sm:$0xff] %v6544
        %6673 = vst [vmem:[#allocation4 + $0xb0] sm:$0xff] %v6545
        %6674 = vst [vmem:[#allocation4 + $0xb8] sm:$0xff] %v6546
        %6675 = vst [vmem:[#allocation4 + $0xc0] sm:$0xff] %v6547
        %6676 = vst [vmem:[#allocation4 + $0xc8] sm:$0xff] %v6548
        %6677 = vst [vmem:[#allocation4 + $0xd0] sm:$0xff] %v6549
        %6678 = vst [vmem:[#allocation4 + $0xd8] sm:$0xff] %v6550
        %6679 = vst [vmem:[#allocation4 + $0xe0] sm:$0xff] %v6551
        %6680 = vst [vmem:[#allocation4 + $0xe8] sm:$0xff] %v6552
        %6681 = vst [vmem:[#allocation4 + $0xf0] sm:$0xff] %v6553
        %6682 = vst [vmem:[#allocation4 + $0xf8] sm:$0xff] %v6554
        %6683 = vst [vmem:[#allocation4 + $0x100] sm:$0xff] %v6555
        %6684 = vst [vmem:[#allocation4 + $0x108] sm:$0xff] %v6556
        %6685 = vst [vmem:[#allocation4 + $0x110] sm:$0xff] %v6557
        %6686 = vst [vmem:[#allocation4 + $0x118] sm:$0xff] %v6558
        %6687 = vst [vmem:[#allocation4 + $0x120] sm:$0xff] %v6559
        %6688 = vst [vmem:[#allocation4 + $0x128] sm:$0xff] %v6560
        %6689 = vst [vmem:[#allocation4 + $0x130] sm:$0xff] %v6561
        %6690 = vst [vmem:[#allocation4 + $0x138] sm:$0xff] %v6562
        %6691 = vst [vmem:[#allocation4 + $0x140] sm:$0xff] %v6563
        %6692 = vst [vmem:[#allocation4 + $0x148] sm:$0xff] %v6564
        %6693 = vst [vmem:[#allocation4 + $0x150] sm:$0xff] %v6565
        %6694 = vst [vmem:[#allocation4 + $0x158] sm:$0xff] %v6566
        %6695 = vst [vmem:[#allocation4 + $0x160] sm:$0xff] %v6567
        %6696 = vst [vmem:[#allocation4 + $0x168] sm:$0xff] %v6568
        %6697 = vst [vmem:[#allocation4 + $0x170] sm:$0xff] %v6569
        %6698 = vst [vmem:[#allocation4 + $0x178] sm:$0xff] %v6570
        %6699 = vst [vmem:[#allocation4 + $0x180] sm:$0xff] %v6571
        %6700 = vst [vmem:[#allocation4 + $0x188] sm:$0xff] %v6572
        %6701 = vst [vmem:[#allocation4 + $0x190] sm:$0xff] %v6573
        %6702 = vst [vmem:[#allocation4 + $0x198] sm:$0xff] %v6574
        %6703 = vst [vmem:[#allocation4 + $0x1a0] sm:$0xff] %v6575
        %6704 = vst [vmem:[#allocation4 + $0x1a8] sm:$0xff] %v6576
        %6705 = vst [vmem:[#allocation4 + $0x1b0] sm:$0xff] %v6577
        %6706 = vst [vmem:[#allocation4 + $0x1b8] sm:$0xff] %v6578
        %6707 = vst [vmem:[#allocation4 + $0x1c0] sm:$0xff] %v6579
        %6708 = vst [vmem:[#allocation4 + $0x1c8] sm:$0xff] %v6580
        %6709 = vst [vmem:[#allocation4 + $0x1d0] sm:$0xff] %v6581
        %6710 = vst [vmem:[#allocation4 + $0x1d8] sm:$0xff] %v6582
        %6711 = vst [vmem:[#allocation4 + $0x1e0] sm:$0xff] %v6583
        %6712 = vst [vmem:[#allocation4 + $0x1e8] sm:$0xff] %v6584
        %6713 = vst [vmem:[#allocation4 + $0x1f0] sm:$0xff] %v6585
        %6714 = vst [vmem:[#allocation4 + $0x1f8] sm:$0xff] %v6586
        %6715 = vst [vmem:[#allocation4 + $0x200] sm:$0xff] %v6587
        %6716 = vst [vmem:[#allocation4 + $0x208] sm:$0xff] %v6588
        %6717 = vst [vmem:[#allocation4 + $0x210] sm:$0xff] %v6589
        %6718 = vst [vmem:[#allocation4 + $0x218] sm:$0xff] %v6590
        %6719 = vst [vmem:[#allocation4 + $0x220] sm:$0xff] %v6591
        %6720 = vst [vmem:[#allocation4 + $0x228] sm:$0xff] %v6592
        %6721 = vst [vmem:[#allocation4 + $0x230] sm:$0xff] %v6593
        %6722 = vst [vmem:[#allocation4 + $0x238] sm:$0xff] %v6594
        %6723 = vst [vmem:[#allocation4 + $0x240] sm:$0xff] %v6595
        %6724 = vst [vmem:[#allocation4 + $0x248] sm:$0xff] %v6596
        %6725 = vst [vmem:[#allocation4 + $0x250] sm:$0xff] %v6597
        %6726 = vst [vmem:[#allocation4 + $0x258] sm:$0xff] %v6598
        %6727 = vst [vmem:[#allocation4 + $0x260] sm:$0xff] %v6599
        %6728 = vst [vmem:[#allocation4 + $0x268] sm:$0xff] %v6600
        %6729 = vst [vmem:[#allocation4 + $0x270] sm:$0xff] %v6601
        %6730 = vst [vmem:[#allocation4 + $0x278] sm:$0xff] %v6602
        %6731 = vst [vmem:[#allocation4 + $0x280] sm:$0xff] %v6603
        %6732 = vst [vmem:[#allocation4 + $0x288] sm:$0xff] %v6604
        %6733 = vst [vmem:[#allocation4 + $0x290] sm:$0xff] %v6605
        %6734 = vst [vmem:[#allocation4 + $0x298] sm:$0xff] %v6606
        %6735 = vst [vmem:[#allocation4 + $0x2a0] sm:$0xff] %v6607
        %6736 = vst [vmem:[#allocation4 + $0x2a8] sm:$0xff] %v6608
        %6737 = vst [vmem:[#allocation4 + $0x2b0] sm:$0xff] %v6609
        %6738 = vst [vmem:[#allocation4 + $0x2b8] sm:$0xff] %v6610
        %6739 = vst [vmem:[#allocation4 + $0x2c0] sm:$0xff] %v6611
        %6740 = vst [vmem:[#allocation4 + $0x2c8] sm:$0xff] %v6612
        %6741 = vst [vmem:[#allocation4 + $0x2d0] sm:$0xff] %v6613
        %6742 = vst [vmem:[#allocation4 + $0x2d8] sm:$0xff] %v6614
        %6743 = vst [vmem:[#allocation4 + $0x2e0] sm:$0xff] %v6615
        %6744 = vst [vmem:[#allocation4 + $0x2e8] sm:$0xff] %v6616
        %6745 = vst [vmem:[#allocation4 + $0x2f0] sm:$0xff] %v6617
        %6746 = vst [vmem:[#allocation4 + $0x2f8] sm:$0xff] %v6618
        %6747 = vst [vmem:[#allocation4 + $0x300] sm:$0xff] %v6619
        %6748 = vst [vmem:[#allocation4 + $0x308] sm:$0xff] %v6620
        %6749 = vst [vmem:[#allocation4 + $0x310] sm:$0xff] %v6621
        %6750 = vst [vmem:[#allocation4 + $0x318] sm:$0xff] %v6622
        %6751 = vst [vmem:[#allocation4 + $0x320] sm:$0xff] %v6623
        %6752 = vst [vmem:[#allocation4 + $0x328] sm:$0xff] %v6624
        %6753 = vst [vmem:[#allocation4 + $0x330] sm:$0xff] %v6625
        %6754 = vst [vmem:[#allocation4 + $0x338] sm:$0xff] %v6626
        %6755 = vst [vmem:[#allocation4 + $0x340] sm:$0xff] %v6627
        %6756 = vst [vmem:[#allocation4 + $0x348] sm:$0xff] %v6628
        %6757 = vst [vmem:[#allocation4 + $0x350] sm:$0xff] %v6629
        %6758 = vst [vmem:[#allocation4 + $0x358] sm:$0xff] %v6630
        %6759 = vst [vmem:[#allocation4 + $0x360] sm:$0xff] %v6631
        %6760 = vst [vmem:[#allocation4 + $0x368] sm:$0xff] %v6632
        %6761 = vst [vmem:[#allocation4 + $0x370] sm:$0xff] %v6633
        %6762 = vst [vmem:[#allocation4 + $0x378] sm:$0xff] %v6634
        %6763 = vst [vmem:[#allocation4 + $0x380] sm:$0xff] %v6635
        %6764 = vst [vmem:[#allocation4 + $0x388] sm:$0xff] %v6636
        %6765 = vst [vmem:[#allocation4 + $0x390] sm:$0xff] %v6637
        %6766 = vst [vmem:[#allocation4 + $0x398] sm:$0xff] %v6638
        %6767 = vst [vmem:[#allocation4 + $0x3a0] sm:$0xff] %v6639
        %6768 = vst [vmem:[#allocation4 + $0x3a8] sm:$0xff] %v6640
        %6769 = vst [vmem:[#allocation4 + $0x3b0] sm:$0xff] %v6641
        %6770 = vst [vmem:[#allocation4 + $0x3b8] sm:$0xff] %v6642
        %6771 = vst [vmem:[#allocation4 + $0x3c0] sm:$0xff] %v6643
        %6772 = vst [vmem:[#allocation4 + $0x3c8] sm:$0xff] %v6644
        %6773 = vst [vmem:[#allocation4 + $0x3d0] sm:$0xff] %v6645
        %6774 = vst [vmem:[#allocation4 + $0x3d8] sm:$0xff] %v6646
        %6775 = vst [vmem:[#allocation4 + $0x3e0] sm:$0xff] %v6647
        %6776 = vst [vmem:[#allocation4 + $0x3e8] sm:$0xff] %v6648
        %6777 = vst [vmem:[#allocation4 + $0x3f0] sm:$0xff] %v6649
        %6778 = vst [vmem:[#allocation4 + $0x3f8] sm:$0xff] %v6650
        %p6779 = scmp.eq.s32.totalorder %s25, 1
        // Predicated region
        $region53: #{tpu_custom_call.1} parent=35 // pred_check
          %p6780 = pneg %p6779
        $region54: #{tpu_custom_call.1} parent=35 // pred_check_branch
          %6782 = sbr.rel (%p6780) target = $region56
        $region55: #{tpu_custom_call.1} parent=35 // pred_region
          %v6783 = vld [vmem:[#allocation4] sm:$0xff]
          %v6784 = vld [vmem:[#allocation4 + $0x8] sm:$0xff]
          %v6785 = vld [vmem:[#allocation4 + $0x10] sm:$0xff]
          %v6786 = vld [vmem:[#allocation4 + $0x18] sm:$0xff]
          %v6787 = vld [vmem:[#allocation4 + $0x20] sm:$0xff]
          %v6788 = vld [vmem:[#allocation4 + $0x28] sm:$0xff]
          %v6789 = vld [vmem:[#allocation4 + $0x30] sm:$0xff]
          %v6790 = vld [vmem:[#allocation4 + $0x38] sm:$0xff]
          %v6791 = vld [vmem:[#allocation4 + $0x40] sm:$0xff]
          %v6792 = vld [vmem:[#allocation4 + $0x48] sm:$0xff]
          %v6793 = vld [vmem:[#allocation4 + $0x50] sm:$0xff]
          %v6794 = vld [vmem:[#allocation4 + $0x58] sm:$0xff]
          %v6795 = vld [vmem:[#allocation4 + $0x60] sm:$0xff]
          %v6796 = vld [vmem:[#allocation4 + $0x68] sm:$0xff]
          %v6797 = vld [vmem:[#allocation4 + $0x70] sm:$0xff]
          %v6798 = vld [vmem:[#allocation4 + $0x78] sm:$0xff]
          %v6799 = vld [vmem:[#allocation4 + $0x80] sm:$0xff]
          %v6800 = vld [vmem:[#allocation4 + $0x88] sm:$0xff]
          %v6801 = vld [vmem:[#allocation4 + $0x90] sm:$0xff]
          %v6802 = vld [vmem:[#allocation4 + $0x98] sm:$0xff]
          %v6803 = vld [vmem:[#allocation4 + $0xa0] sm:$0xff]
          %v6804 = vld [vmem:[#allocation4 + $0xa8] sm:$0xff]
          %v6805 = vld [vmem:[#allocation4 + $0xb0] sm:$0xff]
          %v6806 = vld [vmem:[#allocation4 + $0xb8] sm:$0xff]
          %v6807 = vld [vmem:[#allocation4 + $0xc0] sm:$0xff]
          %v6808 = vld [vmem:[#allocation4 + $0xc8] sm:$0xff]
          %v6809 = vld [vmem:[#allocation4 + $0xd0] sm:$0xff]
          %v6810 = vld [vmem:[#allocation4 + $0xd8] sm:$0xff]
          %v6811 = vld [vmem:[#allocation4 + $0xe0] sm:$0xff]
          %v6812 = vld [vmem:[#allocation4 + $0xe8] sm:$0xff]
          %v6813 = vld [vmem:[#allocation4 + $0xf0] sm:$0xff]
          %v6814 = vld [vmem:[#allocation4 + $0xf8] sm:$0xff]
          %v6815 = vld [vmem:[#allocation4 + $0x100] sm:$0xff]
          %v6816 = vld [vmem:[#allocation4 + $0x108] sm:$0xff]
          %v6817 = vld [vmem:[#allocation4 + $0x110] sm:$0xff]
          %v6818 = vld [vmem:[#allocation4 + $0x118] sm:$0xff]
          %v6819 = vld [vmem:[#allocation4 + $0x120] sm:$0xff]
          %v6820 = vld [vmem:[#allocation4 + $0x128] sm:$0xff]
          %v6821 = vld [vmem:[#allocation4 + $0x130] sm:$0xff]
          %v6822 = vld [vmem:[#allocation4 + $0x138] sm:$0xff]
          %v6823 = vld [vmem:[#allocation4 + $0x140] sm:$0xff]
          %v6824 = vld [vmem:[#allocation4 + $0x148] sm:$0xff]
          %v6825 = vld [vmem:[#allocation4 + $0x150] sm:$0xff]
          %v6826 = vld [vmem:[#allocation4 + $0x158] sm:$0xff]
          %v6827 = vld [vmem:[#allocation4 + $0x160] sm:$0xff]
          %v6828 = vld [vmem:[#allocation4 + $0x168] sm:$0xff]
          %v6829 = vld [vmem:[#allocation4 + $0x170] sm:$0xff]
          %v6830 = vld [vmem:[#allocation4 + $0x178] sm:$0xff]
          %v6831 = vld [vmem:[#allocation4 + $0x180] sm:$0xff]
          %v6832 = vld [vmem:[#allocation4 + $0x188] sm:$0xff]
          %v6833 = vld [vmem:[#allocation4 + $0x190] sm:$0xff]
          %v6834 = vld [vmem:[#allocation4 + $0x198] sm:$0xff]
          %v6835 = vld [vmem:[#allocation4 + $0x1a0] sm:$0xff]
          %v6836 = vld [vmem:[#allocation4 + $0x1a8] sm:$0xff]
          %v6837 = vld [vmem:[#allocation4 + $0x1b0] sm:$0xff]
          %v6838 = vld [vmem:[#allocation4 + $0x1b8] sm:$0xff]
          %v6839 = vld [vmem:[#allocation4 + $0x1c0] sm:$0xff]
          %v6840 = vld [vmem:[#allocation4 + $0x1c8] sm:$0xff]
          %v6841 = vld [vmem:[#allocation4 + $0x1d0] sm:$0xff]
          %v6842 = vld [vmem:[#allocation4 + $0x1d8] sm:$0xff]
          %v6843 = vld [vmem:[#allocation4 + $0x1e0] sm:$0xff]
          %v6844 = vld [vmem:[#allocation4 + $0x1e8] sm:$0xff]
          %v6845 = vld [vmem:[#allocation4 + $0x1f0] sm:$0xff]
          %v6846 = vld [vmem:[#allocation4 + $0x1f8] sm:$0xff]
          %v6847 = vld [vmem:[#allocation4 + $0x200] sm:$0xff]
          %v6848 = vld [vmem:[#allocation4 + $0x208] sm:$0xff]
          %v6849 = vld [vmem:[#allocation4 + $0x210] sm:$0xff]
          %v6850 = vld [vmem:[#allocation4 + $0x218] sm:$0xff]
          %v6851 = vld [vmem:[#allocation4 + $0x220] sm:$0xff]
          %v6852 = vld [vmem:[#allocation4 + $0x228] sm:$0xff]
          %v6853 = vld [vmem:[#allocation4 + $0x230] sm:$0xff]
          %v6854 = vld [vmem:[#allocation4 + $0x238] sm:$0xff]
          %v6855 = vld [vmem:[#allocation4 + $0x240] sm:$0xff]
          %v6856 = vld [vmem:[#allocation4 + $0x248] sm:$0xff]
          %v6857 = vld [vmem:[#allocation4 + $0x250] sm:$0xff]
          %v6858 = vld [vmem:[#allocation4 + $0x258] sm:$0xff]
          %v6859 = vld [vmem:[#allocation4 + $0x260] sm:$0xff]
          %v6860 = vld [vmem:[#allocation4 + $0x268] sm:$0xff]
          %v6861 = vld [vmem:[#allocation4 + $0x270] sm:$0xff]
          %v6862 = vld [vmem:[#allocation4 + $0x278] sm:$0xff]
          %v6863 = vld [vmem:[#allocation4 + $0x280] sm:$0xff]
          %v6864 = vld [vmem:[#allocation4 + $0x288] sm:$0xff]
          %v6865 = vld [vmem:[#allocation4 + $0x290] sm:$0xff]
          %v6866 = vld [vmem:[#allocation4 + $0x298] sm:$0xff]
          %v6867 = vld [vmem:[#allocation4 + $0x2a0] sm:$0xff]
          %v6868 = vld [vmem:[#allocation4 + $0x2a8] sm:$0xff]
          %v6869 = vld [vmem:[#allocation4 + $0x2b0] sm:$0xff]
          %v6870 = vld [vmem:[#allocation4 + $0x2b8] sm:$0xff]
          %v6871 = vld [vmem:[#allocation4 + $0x2c0] sm:$0xff]
          %v6872 = vld [vmem:[#allocation4 + $0x2c8] sm:$0xff]
          %v6873 = vld [vmem:[#allocation4 + $0x2d0] sm:$0xff]
          %v6874 = vld [vmem:[#allocation4 + $0x2d8] sm:$0xff]
          %v6875 = vld [vmem:[#allocation4 + $0x2e0] sm:$0xff]
          %v6876 = vld [vmem:[#allocation4 + $0x2e8] sm:$0xff]
          %v6877 = vld [vmem:[#allocation4 + $0x2f0] sm:$0xff]
          %v6878 = vld [vmem:[#allocation4 + $0x2f8] sm:$0xff]
          %v6879 = vld [vmem:[#allocation4 + $0x300] sm:$0xff]
          %v6880 = vld [vmem:[#allocation4 + $0x308] sm:$0xff]
          %v6881 = vld [vmem:[#allocation4 + $0x310] sm:$0xff]
          %v6882 = vld [vmem:[#allocation4 + $0x318] sm:$0xff]
          %v6883 = vld [vmem:[#allocation4 + $0x320] sm:$0xff]
          %v6884 = vld [vmem:[#allocation4 + $0x328] sm:$0xff]
          %v6885 = vld [vmem:[#allocation4 + $0x330] sm:$0xff]
          %v6886 = vld [vmem:[#allocation4 + $0x338] sm:$0xff]
          %v6887 = vld [vmem:[#allocation4 + $0x340] sm:$0xff]
          %v6888 = vld [vmem:[#allocation4 + $0x348] sm:$0xff]
          %v6889 = vld [vmem:[#allocation4 + $0x350] sm:$0xff]
          %v6890 = vld [vmem:[#allocation4 + $0x358] sm:$0xff]
          %v6891 = vld [vmem:[#allocation4 + $0x360] sm:$0xff]
          %v6892 = vld [vmem:[#allocation4 + $0x368] sm:$0xff]
          %v6893 = vld [vmem:[#allocation4 + $0x370] sm:$0xff]
          %v6894 = vld [vmem:[#allocation4 + $0x378] sm:$0xff]
          %v6895 = vld [vmem:[#allocation4 + $0x380] sm:$0xff]
          %v6896 = vld [vmem:[#allocation4 + $0x388] sm:$0xff]
          %v6897 = vld [vmem:[#allocation4 + $0x390] sm:$0xff]
          %v6898 = vld [vmem:[#allocation4 + $0x398] sm:$0xff]
          %v6899 = vld [vmem:[#allocation4 + $0x3a0] sm:$0xff]
          %v6900 = vld [vmem:[#allocation4 + $0x3a8] sm:$0xff]
          %v6901 = vld [vmem:[#allocation4 + $0x3b0] sm:$0xff]
          %v6902 = vld [vmem:[#allocation4 + $0x3b8] sm:$0xff]
          %v6903 = vld [vmem:[#allocation4 + $0x3c0] sm:$0xff]
          %v6904 = vld [vmem:[#allocation4 + $0x3c8] sm:$0xff]
          %v6905 = vld [vmem:[#allocation4 + $0x3d0] sm:$0xff]
          %v6906 = vld [vmem:[#allocation4 + $0x3d8] sm:$0xff]
          %v6907 = vld [vmem:[#allocation4 + $0x3e0] sm:$0xff]
          %v6908 = vld [vmem:[#allocation4 + $0x3e8] sm:$0xff]
          %v6909 = vld [vmem:[#allocation4 + $0x3f0] sm:$0xff]
          %v6910 = vld [vmem:[#allocation4 + $0x3f8] sm:$0xff]
          %v6911 = vld [vmem:[#allocation2] sm:$0xff]
          %v6912 = vld [vmem:[#allocation2 + $0x8] sm:$0xff]
          %v6913 = vld [vmem:[#allocation2 + $0x10] sm:$0xff]
          %v6914 = vld [vmem:[#allocation2 + $0x18] sm:$0xff]
          %v6915 = vld [vmem:[#allocation2 + $0x20] sm:$0xff]
          %v6916 = vld [vmem:[#allocation2 + $0x28] sm:$0xff]
          %v6917 = vld [vmem:[#allocation2 + $0x30] sm:$0xff]
          %v6918 = vld [vmem:[#allocation2 + $0x38] sm:$0xff]
          %v6919 = vld [vmem:[#allocation2 + $0x40] sm:$0xff]
          %v6920 = vld [vmem:[#allocation2 + $0x48] sm:$0xff]
          %v6921 = vld [vmem:[#allocation2 + $0x50] sm:$0xff]
          %v6922 = vld [vmem:[#allocation2 + $0x58] sm:$0xff]
          %v6923 = vld [vmem:[#allocation2 + $0x60] sm:$0xff]
          %v6924 = vld [vmem:[#allocation2 + $0x68] sm:$0xff]
          %v6925 = vld [vmem:[#allocation2 + $0x70] sm:$0xff]
          %v6926 = vld [vmem:[#allocation2 + $0x78] sm:$0xff]
          %v6927 = vld [vmem:[#allocation2 + $0x80] sm:$0xff]
          %v6928 = vld [vmem:[#allocation2 + $0x88] sm:$0xff]
          %v6929 = vld [vmem:[#allocation2 + $0x90] sm:$0xff]
          %v6930 = vld [vmem:[#allocation2 + $0x98] sm:$0xff]
          %v6931 = vld [vmem:[#allocation2 + $0xa0] sm:$0xff]
          %v6932 = vld [vmem:[#allocation2 + $0xa8] sm:$0xff]
          %v6933 = vld [vmem:[#allocation2 + $0xb0] sm:$0xff]
          %v6934 = vld [vmem:[#allocation2 + $0xb8] sm:$0xff]
          %v6935 = vld [vmem:[#allocation2 + $0xc0] sm:$0xff]
          %v6936 = vld [vmem:[#allocation2 + $0xc8] sm:$0xff]
          %v6937 = vld [vmem:[#allocation2 + $0xd0] sm:$0xff]
          %v6938 = vld [vmem:[#allocation2 + $0xd8] sm:$0xff]
          %v6939 = vld [vmem:[#allocation2 + $0xe0] sm:$0xff]
          %v6940 = vld [vmem:[#allocation2 + $0xe8] sm:$0xff]
          %v6941 = vld [vmem:[#allocation2 + $0xf0] sm:$0xff]
          %v6942 = vld [vmem:[#allocation2 + $0xf8] sm:$0xff]
          %v6943 = vld [vmem:[#allocation2 + $0x100] sm:$0xff]
          %v6944 = vld [vmem:[#allocation2 + $0x108] sm:$0xff]
          %v6945 = vld [vmem:[#allocation2 + $0x110] sm:$0xff]
          %v6946 = vld [vmem:[#allocation2 + $0x118] sm:$0xff]
          %v6947 = vld [vmem:[#allocation2 + $0x120] sm:$0xff]
          %v6948 = vld [vmem:[#allocation2 + $0x128] sm:$0xff]
          %v6949 = vld [vmem:[#allocation2 + $0x130] sm:$0xff]
          %v6950 = vld [vmem:[#allocation2 + $0x138] sm:$0xff]
          %v6951 = vld [vmem:[#allocation2 + $0x140] sm:$0xff]
          %v6952 = vld [vmem:[#allocation2 + $0x148] sm:$0xff]
          %v6953 = vld [vmem:[#allocation2 + $0x150] sm:$0xff]
          %v6954 = vld [vmem:[#allocation2 + $0x158] sm:$0xff]
          %v6955 = vld [vmem:[#allocation2 + $0x160] sm:$0xff]
          %v6956 = vld [vmem:[#allocation2 + $0x168] sm:$0xff]
          %v6957 = vld [vmem:[#allocation2 + $0x170] sm:$0xff]
          %v6958 = vld [vmem:[#allocation2 + $0x178] sm:$0xff]
          %v6959 = vld [vmem:[#allocation2 + $0x180] sm:$0xff]
          %v6960 = vld [vmem:[#allocation2 + $0x188] sm:$0xff]
          %v6961 = vld [vmem:[#allocation2 + $0x190] sm:$0xff]
          %v6962 = vld [vmem:[#allocation2 + $0x198] sm:$0xff]
          %v6963 = vld [vmem:[#allocation2 + $0x1a0] sm:$0xff]
          %v6964 = vld [vmem:[#allocation2 + $0x1a8] sm:$0xff]
          %v6965 = vld [vmem:[#allocation2 + $0x1b0] sm:$0xff]
          %v6966 = vld [vmem:[#allocation2 + $0x1b8] sm:$0xff]
          %v6967 = vld [vmem:[#allocation2 + $0x1c0] sm:$0xff]
          %v6968 = vld [vmem:[#allocation2 + $0x1c8] sm:$0xff]
          %v6969 = vld [vmem:[#allocation2 + $0x1d0] sm:$0xff]
          %v6970 = vld [vmem:[#allocation2 + $0x1d8] sm:$0xff]
          %v6971 = vld [vmem:[#allocation2 + $0x1e0] sm:$0xff]
          %v6972 = vld [vmem:[#allocation2 + $0x1e8] sm:$0xff]
          %v6973 = vld [vmem:[#allocation2 + $0x1f0] sm:$0xff]
          %v6974 = vld [vmem:[#allocation2 + $0x1f8] sm:$0xff]
          %v6975 = vld [vmem:[#allocation2 + $0x200] sm:$0xff]
          %v6976 = vld [vmem:[#allocation2 + $0x208] sm:$0xff]
          %v6977 = vld [vmem:[#allocation2 + $0x210] sm:$0xff]
          %v6978 = vld [vmem:[#allocation2 + $0x218] sm:$0xff]
          %v6979 = vld [vmem:[#allocation2 + $0x220] sm:$0xff]
          %v6980 = vld [vmem:[#allocation2 + $0x228] sm:$0xff]
          %v6981 = vld [vmem:[#allocation2 + $0x230] sm:$0xff]
          %v6982 = vld [vmem:[#allocation2 + $0x238] sm:$0xff]
          %v6983 = vld [vmem:[#allocation2 + $0x240] sm:$0xff]
          %v6984 = vld [vmem:[#allocation2 + $0x248] sm:$0xff]
          %v6985 = vld [vmem:[#allocation2 + $0x250] sm:$0xff]
          %v6986 = vld [vmem:[#allocation2 + $0x258] sm:$0xff]
          %v6987 = vld [vmem:[#allocation2 + $0x260] sm:$0xff]
          %v6988 = vld [vmem:[#allocation2 + $0x268] sm:$0xff]
          %v6989 = vld [vmem:[#allocation2 + $0x270] sm:$0xff]
          %v6990 = vld [vmem:[#allocation2 + $0x278] sm:$0xff]
          %v6991 = vld [vmem:[#allocation2 + $0x280] sm:$0xff]
          %v6992 = vld [vmem:[#allocation2 + $0x288] sm:$0xff]
          %v6993 = vld [vmem:[#allocation2 + $0x290] sm:$0xff]
          %v6994 = vld [vmem:[#allocation2 + $0x298] sm:$0xff]
          %v6995 = vld [vmem:[#allocation2 + $0x2a0] sm:$0xff]
          %v6996 = vld [vmem:[#allocation2 + $0x2a8] sm:$0xff]
          %v6997 = vld [vmem:[#allocation2 + $0x2b0] sm:$0xff]
          %v6998 = vld [vmem:[#allocation2 + $0x2b8] sm:$0xff]
          %v6999 = vld [vmem:[#allocation2 + $0x2c0] sm:$0xff]
          %v7000 = vld [vmem:[#allocation2 + $0x2c8] sm:$0xff]
          %v7001 = vld [vmem:[#allocation2 + $0x2d0] sm:$0xff]
          %v7002 = vld [vmem:[#allocation2 + $0x2d8] sm:$0xff]
          %v7003 = vld [vmem:[#allocation2 + $0x2e0] sm:$0xff]
          %v7004 = vld [vmem:[#allocation2 + $0x2e8] sm:$0xff]
          %v7005 = vld [vmem:[#allocation2 + $0x2f0] sm:$0xff]
          %v7006 = vld [vmem:[#allocation2 + $0x2f8] sm:$0xff]
          %v7007 = vld [vmem:[#allocation2 + $0x300] sm:$0xff]
          %v7008 = vld [vmem:[#allocation2 + $0x308] sm:$0xff]
          %v7009 = vld [vmem:[#allocation2 + $0x310] sm:$0xff]
          %v7010 = vld [vmem:[#allocation2 + $0x318] sm:$0xff]
          %v7011 = vld [vmem:[#allocation2 + $0x320] sm:$0xff]
          %v7012 = vld [vmem:[#allocation2 + $0x328] sm:$0xff]
          %v7013 = vld [vmem:[#allocation2 + $0x330] sm:$0xff]
          %v7014 = vld [vmem:[#allocation2 + $0x338] sm:$0xff]
          %v7015 = vld [vmem:[#allocation2 + $0x340] sm:$0xff]
          %v7016 = vld [vmem:[#allocation2 + $0x348] sm:$0xff]
          %v7017 = vld [vmem:[#allocation2 + $0x350] sm:$0xff]
          %v7018 = vld [vmem:[#allocation2 + $0x358] sm:$0xff]
          %v7019 = vld [vmem:[#allocation2 + $0x360] sm:$0xff]
          %v7020 = vld [vmem:[#allocation2 + $0x368] sm:$0xff]
          %v7021 = vld [vmem:[#allocation2 + $0x370] sm:$0xff]
          %v7022 = vld [vmem:[#allocation2 + $0x378] sm:$0xff]
          %v7023 = vld [vmem:[#allocation2 + $0x380] sm:$0xff]
          %v7024 = vld [vmem:[#allocation2 + $0x388] sm:$0xff]
          %v7025 = vld [vmem:[#allocation2 + $0x390] sm:$0xff]
          %v7026 = vld [vmem:[#allocation2 + $0x398] sm:$0xff]
          %v7027 = vld [vmem:[#allocation2 + $0x3a0] sm:$0xff]
          %v7028 = vld [vmem:[#allocation2 + $0x3a8] sm:$0xff]
          %v7029 = vld [vmem:[#allocation2 + $0x3b0] sm:$0xff]
          %v7030 = vld [vmem:[#allocation2 + $0x3b8] sm:$0xff]
          %v7031 = vld [vmem:[#allocation2 + $0x3c0] sm:$0xff]
          %v7032 = vld [vmem:[#allocation2 + $0x3c8] sm:$0xff]
          %v7033 = vld [vmem:[#allocation2 + $0x3d0] sm:$0xff]
          %v7034 = vld [vmem:[#allocation2 + $0x3d8] sm:$0xff]
          %v7035 = vld [vmem:[#allocation2 + $0x3e0] sm:$0xff]
          %v7036 = vld [vmem:[#allocation2 + $0x3e8] sm:$0xff]
          %v7037 = vld [vmem:[#allocation2 + $0x3f0] sm:$0xff]
          %v7038 = vld [vmem:[#allocation2 + $0x3f8] sm:$0xff]
          %v7039 = vadd.f32 %v6783, %v6911
          %v7040 = vadd.f32 %v6784, %v6912
          %v7041 = vadd.f32 %v6785, %v6913
          %v7042 = vadd.f32 %v6786, %v6914
          %v7043 = vadd.f32 %v6787, %v6915
          %v7044 = vadd.f32 %v6788, %v6916
          %v7045 = vadd.f32 %v6789, %v6917
          %v7046 = vadd.f32 %v6790, %v6918
          %v7047 = vadd.f32 %v6791, %v6919
          %v7048 = vadd.f32 %v6792, %v6920
          %v7049 = vadd.f32 %v6793, %v6921
          %v7050 = vadd.f32 %v6794, %v6922
          %v7051 = vadd.f32 %v6795, %v6923
          %v7052 = vadd.f32 %v6796, %v6924
          %v7053 = vadd.f32 %v6797, %v6925
          %v7054 = vadd.f32 %v6798, %v6926
          %v7055 = vadd.f32 %v6799, %v6927
          %v7056 = vadd.f32 %v6800, %v6928
          %v7057 = vadd.f32 %v6801, %v6929
          %v7058 = vadd.f32 %v6802, %v6930
          %v7059 = vadd.f32 %v6803, %v6931
          %v7060 = vadd.f32 %v6804, %v6932
          %v7061 = vadd.f32 %v6805, %v6933
          %v7062 = vadd.f32 %v6806, %v6934
          %v7063 = vadd.f32 %v6807, %v6935
          %v7064 = vadd.f32 %v6808, %v6936
          %v7065 = vadd.f32 %v6809, %v6937
          %v7066 = vadd.f32 %v6810, %v6938
          %v7067 = vadd.f32 %v6811, %v6939
          %v7068 = vadd.f32 %v6812, %v6940
          %v7069 = vadd.f32 %v6813, %v6941
          %v7070 = vadd.f32 %v6814, %v6942
          %v7071 = vadd.f32 %v6815, %v6943
          %v7072 = vadd.f32 %v6816, %v6944
          %v7073 = vadd.f32 %v6817, %v6945
          %v7074 = vadd.f32 %v6818, %v6946
          %v7075 = vadd.f32 %v6819, %v6947
          %v7076 = vadd.f32 %v6820, %v6948
          %v7077 = vadd.f32 %v6821, %v6949
          %v7078 = vadd.f32 %v6822, %v6950
          %v7079 = vadd.f32 %v6823, %v6951
          %v7080 = vadd.f32 %v6824, %v6952
          %v7081 = vadd.f32 %v6825, %v6953
          %v7082 = vadd.f32 %v6826, %v6954
          %v7083 = vadd.f32 %v6827, %v6955
          %v7084 = vadd.f32 %v6828, %v6956
          %v7085 = vadd.f32 %v6829, %v6957
          %v7086 = vadd.f32 %v6830, %v6958
          %v7087 = vadd.f32 %v6831, %v6959
          %v7088 = vadd.f32 %v6832, %v6960
          %v7089 = vadd.f32 %v6833, %v6961
          %v7090 = vadd.f32 %v6834, %v6962
          %v7091 = vadd.f32 %v6835, %v6963
          %v7092 = vadd.f32 %v6836, %v6964
          %v7093 = vadd.f32 %v6837, %v6965
          %v7094 = vadd.f32 %v6838, %v6966
          %v7095 = vadd.f32 %v6839, %v6967
          %v7096 = vadd.f32 %v6840, %v6968
          %v7097 = vadd.f32 %v6841, %v6969
          %v7098 = vadd.f32 %v6842, %v6970
          %v7099 = vadd.f32 %v6843, %v6971
          %v7100 = vadd.f32 %v6844, %v6972
          %v7101 = vadd.f32 %v6845, %v6973
          %v7102 = vadd.f32 %v6846, %v6974
          %v7103 = vadd.f32 %v6847, %v6975
          %v7104 = vadd.f32 %v6848, %v6976
          %v7105 = vadd.f32 %v6849, %v6977
          %v7106 = vadd.f32 %v6850, %v6978
          %v7107 = vadd.f32 %v6851, %v6979
          %v7108 = vadd.f32 %v6852, %v6980
          %v7109 = vadd.f32 %v6853, %v6981
          %v7110 = vadd.f32 %v6854, %v6982
          %v7111 = vadd.f32 %v6855, %v6983
          %v7112 = vadd.f32 %v6856, %v6984
          %v7113 = vadd.f32 %v6857, %v6985
          %v7114 = vadd.f32 %v6858, %v6986
          %v7115 = vadd.f32 %v6859, %v6987
          %v7116 = vadd.f32 %v6860, %v6988
          %v7117 = vadd.f32 %v6861, %v6989
          %v7118 = vadd.f32 %v6862, %v6990
          %v7119 = vadd.f32 %v6863, %v6991
          %v7120 = vadd.f32 %v6864, %v6992
          %v7121 = vadd.f32 %v6865, %v6993
          %v7122 = vadd.f32 %v6866, %v6994
          %v7123 = vadd.f32 %v6867, %v6995
          %v7124 = vadd.f32 %v6868, %v6996
          %v7125 = vadd.f32 %v6869, %v6997
          %v7126 = vadd.f32 %v6870, %v6998
          %v7127 = vadd.f32 %v6871, %v6999
          %v7128 = vadd.f32 %v6872, %v7000
          %v7129 = vadd.f32 %v6873, %v7001
          %v7130 = vadd.f32 %v6874, %v7002
          %v7131 = vadd.f32 %v6875, %v7003
          %v7132 = vadd.f32 %v6876, %v7004
          %v7133 = vadd.f32 %v6877, %v7005
          %v7134 = vadd.f32 %v6878, %v7006
          %v7135 = vadd.f32 %v6879, %v7007
          %v7136 = vadd.f32 %v6880, %v7008
          %v7137 = vadd.f32 %v6881, %v7009
          %v7138 = vadd.f32 %v6882, %v7010
          %v7139 = vadd.f32 %v6883, %v7011
          %v7140 = vadd.f32 %v6884, %v7012
          %v7141 = vadd.f32 %v6885, %v7013
          %v7142 = vadd.f32 %v6886, %v7014
          %v7143 = vadd.f32 %v6887, %v7015
          %v7144 = vadd.f32 %v6888, %v7016
          %v7145 = vadd.f32 %v6889, %v7017
          %v7146 = vadd.f32 %v6890, %v7018
          %v7147 = vadd.f32 %v6891, %v7019
          %v7148 = vadd.f32 %v6892, %v7020
          %v7149 = vadd.f32 %v6893, %v7021
          %v7150 = vadd.f32 %v6894, %v7022
          %v7151 = vadd.f32 %v6895, %v7023
          %v7152 = vadd.f32 %v6896, %v7024
          %v7153 = vadd.f32 %v6897, %v7025
          %v7154 = vadd.f32 %v6898, %v7026
          %v7155 = vadd.f32 %v6899, %v7027
          %v7156 = vadd.f32 %v6900, %v7028
          %v7157 = vadd.f32 %v6901, %v7029
          %v7158 = vadd.f32 %v6902, %v7030
          %v7159 = vadd.f32 %v6903, %v7031
          %v7160 = vadd.f32 %v6904, %v7032
          %v7161 = vadd.f32 %v6905, %v7033
          %v7162 = vadd.f32 %v6906, %v7034
          %v7163 = vadd.f32 %v6907, %v7035
          %v7164 = vadd.f32 %v6908, %v7036
          %v7165 = vadd.f32 %v6909, %v7037
          %v7166 = vadd.f32 %v6910, %v7038
          %v7167 = vmul.f32 %v7039, %v7039
          %v7168 = vmul.f32 %v7040, %v7040
          %v7169 = vmul.f32 %v7041, %v7041
          %v7170 = vmul.f32 %v7042, %v7042
          %v7171 = vmul.f32 %v7043, %v7043
          %v7172 = vmul.f32 %v7044, %v7044
          %v7173 = vmul.f32 %v7045, %v7045
          %v7174 = vmul.f32 %v7046, %v7046
          %v7175 = vmul.f32 %v7047, %v7047
          %v7176 = vmul.f32 %v7048, %v7048
          %v7177 = vmul.f32 %v7049, %v7049
          %v7178 = vmul.f32 %v7050, %v7050
          %v7179 = vmul.f32 %v7051, %v7051
          %v7180 = vmul.f32 %v7052, %v7052
          %v7181 = vmul.f32 %v7053, %v7053
          %v7182 = vmul.f32 %v7054, %v7054
          %v7183 = vmul.f32 %v7055, %v7055
          %v7184 = vmul.f32 %v7056, %v7056
          %v7185 = vmul.f32 %v7057, %v7057
          %v7186 = vmul.f32 %v7058, %v7058
          %v7187 = vmul.f32 %v7059, %v7059
          %v7188 = vmul.f32 %v7060, %v7060
          %v7189 = vmul.f32 %v7061, %v7061
          %v7190 = vmul.f32 %v7062, %v7062
          %v7191 = vmul.f32 %v7063, %v7063
          %v7192 = vmul.f32 %v7064, %v7064
          %v7193 = vmul.f32 %v7065, %v7065
          %v7194 = vmul.f32 %v7066, %v7066
          %v7195 = vmul.f32 %v7067, %v7067
          %v7196 = vmul.f32 %v7068, %v7068
          %v7197 = vmul.f32 %v7069, %v7069
          %v7198 = vmul.f32 %v7070, %v7070
          %v7199 = vmul.f32 %v7071, %v7071
          %v7200 = vmul.f32 %v7072, %v7072
          %v7201 = vmul.f32 %v7073, %v7073
          %v7202 = vmul.f32 %v7074, %v7074
          %v7203 = vmul.f32 %v7075, %v7075
          %v7204 = vmul.f32 %v7076, %v7076
          %v7205 = vmul.f32 %v7077, %v7077
          %v7206 = vmul.f32 %v7078, %v7078
          %v7207 = vmul.f32 %v7079, %v7079
          %v7208 = vmul.f32 %v7080, %v7080
          %v7209 = vmul.f32 %v7081, %v7081
          %v7210 = vmul.f32 %v7082, %v7082
          %v7211 = vmul.f32 %v7083, %v7083
          %v7212 = vmul.f32 %v7084, %v7084
          %v7213 = vmul.f32 %v7085, %v7085
          %v7214 = vmul.f32 %v7086, %v7086
          %v7215 = vmul.f32 %v7087, %v7087
          %v7216 = vmul.f32 %v7088, %v7088
          %v7217 = vmul.f32 %v7089, %v7089
          %v7218 = vmul.f32 %v7090, %v7090
          %v7219 = vmul.f32 %v7091, %v7091
          %v7220 = vmul.f32 %v7092, %v7092
          %v7221 = vmul.f32 %v7093, %v7093
          %v7222 = vmul.f32 %v7094, %v7094
          %v7223 = vmul.f32 %v7095, %v7095
          %v7224 = vmul.f32 %v7096, %v7096
          %v7225 = vmul.f32 %v7097, %v7097
          %v7226 = vmul.f32 %v7098, %v7098
          %v7227 = vmul.f32 %v7099, %v7099
          %v7228 = vmul.f32 %v7100, %v7100
          %v7229 = vmul.f32 %v7101, %v7101
          %v7230 = vmul.f32 %v7102, %v7102
          %v7231 = vmul.f32 %v7103, %v7103
          %v7232 = vmul.f32 %v7104, %v7104
          %v7233 = vmul.f32 %v7105, %v7105
          %v7234 = vmul.f32 %v7106, %v7106
          %v7235 = vmul.f32 %v7107, %v7107
          %v7236 = vmul.f32 %v7108, %v7108
          %v7237 = vmul.f32 %v7109, %v7109
          %v7238 = vmul.f32 %v7110, %v7110
          %v7239 = vmul.f32 %v7111, %v7111
          %v7240 = vmul.f32 %v7112, %v7112
          %v7241 = vmul.f32 %v7113, %v7113
          %v7242 = vmul.f32 %v7114, %v7114
          %v7243 = vmul.f32 %v7115, %v7115
          %v7244 = vmul.f32 %v7116, %v7116
          %v7245 = vmul.f32 %v7117, %v7117
          %v7246 = vmul.f32 %v7118, %v7118
          %v7247 = vmul.f32 %v7119, %v7119
          %v7248 = vmul.f32 %v7120, %v7120
          %v7249 = vmul.f32 %v7121, %v7121
          %v7250 = vmul.f32 %v7122, %v7122
          %v7251 = vmul.f32 %v7123, %v7123
          %v7252 = vmul.f32 %v7124, %v7124
          %v7253 = vmul.f32 %v7125, %v7125
          %v7254 = vmul.f32 %v7126, %v7126
          %v7255 = vmul.f32 %v7127, %v7127
          %v7256 = vmul.f32 %v7128, %v7128
          %v7257 = vmul.f32 %v7129, %v7129
          %v7258 = vmul.f32 %v7130, %v7130
          %v7259 = vmul.f32 %v7131, %v7131
          %v7260 = vmul.f32 %v7132, %v7132
          %v7261 = vmul.f32 %v7133, %v7133
          %v7262 = vmul.f32 %v7134, %v7134
          %v7263 = vmul.f32 %v7135, %v7135
          %v7264 = vmul.f32 %v7136, %v7136
          %v7265 = vmul.f32 %v7137, %v7137
          %v7266 = vmul.f32 %v7138, %v7138
          %v7267 = vmul.f32 %v7139, %v7139
          %v7268 = vmul.f32 %v7140, %v7140
          %v7269 = vmul.f32 %v7141, %v7141
          %v7270 = vmul.f32 %v7142, %v7142
          %v7271 = vmul.f32 %v7143, %v7143
          %v7272 = vmul.f32 %v7144, %v7144
          %v7273 = vmul.f32 %v7145, %v7145
          %v7274 = vmul.f32 %v7146, %v7146
          %v7275 = vmul.f32 %v7147, %v7147
          %v7276 = vmul.f32 %v7148, %v7148
          %v7277 = vmul.f32 %v7149, %v7149
          %v7278 = vmul.f32 %v7150, %v7150
          %v7279 = vmul.f32 %v7151, %v7151
          %v7280 = vmul.f32 %v7152, %v7152
          %v7281 = vmul.f32 %v7153, %v7153
          %v7282 = vmul.f32 %v7154, %v7154
          %v7283 = vmul.f32 %v7155, %v7155
          %v7284 = vmul.f32 %v7156, %v7156
          %v7285 = vmul.f32 %v7157, %v7157
          %v7286 = vmul.f32 %v7158, %v7158
          %v7287 = vmul.f32 %v7159, %v7159
          %v7288 = vmul.f32 %v7160, %v7160
          %v7289 = vmul.f32 %v7161, %v7161
          %v7290 = vmul.f32 %v7162, %v7162
          %v7291 = vmul.f32 %v7163, %v7163
          %v7292 = vmul.f32 %v7164, %v7164
          %v7293 = vmul.f32 %v7165, %v7165
          %v7294 = vmul.f32 %v7166, %v7166
          %7295 = vmatprep.subr.mxu0 0.0
          %7296 = vmatpush1.msra.mxu0 %v258
          %7297 = vmatprep.subr.mxu0 0.0
          %7298 = vmatpush1.msra.mxu0 %v259
          %7299 = vmatprep.subr.mxu0 0.0
          %7300 = vmatpush1.msra.mxu0 %v260
          %7301 = vmatprep.subr.mxu0 0.0
          %7302 = vmatpush1.msra.mxu0 %v261
          %7303 = vmatprep.subr.mxu0 0.0
          %7304 = vmatpush1.msra.mxu0 %v262
          %7305 = vmatprep.subr.mxu0 0.0
          %7306 = vmatpush1.msra.mxu0 %v263
          %7307 = vmatprep.subr.mxu0 0.0
          %7308 = vmatpush1.msra.mxu0 %v264
          %7309 = vmatprep.subr.mxu0 0.0
          %7310 = vmatpush1.msra.mxu0 %v265
          %7311 = vmatprep.subr.mxu0 0.0
          %7312 = vmatpush1.msra.mxu0 %v266
          %7313 = vmatprep.subr.mxu0 0.0
          %7314 = vmatpush1.msra.mxu0 %v267
          %7315 = vmatprep.subr.mxu0 0.0
          %7316 = vmatpush1.msra.mxu0 %v268
          %7317 = vmatprep.subr.mxu0 0.0
          %7318 = vmatpush1.msra.mxu0 %v269
          %7319 = vmatprep.subr.mxu0 0.0
          %7320 = vmatpush1.msra.mxu0 %v270
          %7321 = vmatprep.subr.mxu0 0.0
          %7322 = vmatpush1.msra.mxu0 %v271
          %7323 = vmatprep.subr.mxu0 0.0
          %7324 = vmatpush1.msra.mxu0 %v272
          %7325 = vmatprep.subr.mxu0 0.0
          %7326 = vmatpush1.msra.mxu0 %v273
          %7327 = vmatprep.subr.mxu0 0.0
          %7328 = vmatpush1.msra.mxu0 %v274
          %7329 = vmatprep.subr.mxu0 0.0
          %7330 = vmatpush1.msra.mxu0 %v275
          %7331 = vmatprep.subr.mxu0 0.0
          %7332 = vmatpush1.msra.mxu0 %v276
          %7333 = vmatprep.subr.mxu0 0.0
          %7334 = vmatpush1.msra.mxu0 %v277
          %7335 = vmatprep.subr.mxu0 0.0
          %7336 = vmatpush1.msra.mxu0 %v278
          %7337 = vmatprep.subr.mxu0 0.0
          %7338 = vmatpush1.msra.mxu0 %v279
          %7339 = vmatprep.subr.mxu0 0.0
          %7340 = vmatpush1.msra.mxu0 %v280
          %7341 = vmatprep.subr.mxu0 0.0
          %7342 = vmatpush1.msra.mxu0 %v281
          %7343 = vmatprep.subr.mxu0 0.0
          %7344 = vmatpush1.msra.mxu0 %v282
          %7345 = vmatprep.subr.mxu0 0.0
          %7346 = vmatpush1.msra.mxu0 %v283
          %7347 = vmatprep.subr.mxu0 0.0
          %7348 = vmatpush1.msra.mxu0 %v284
          %7349 = vmatprep.subr.mxu0 0.0
          %7350 = vmatpush1.msra.mxu0 %v285
          %7351 = vmatprep.subr.mxu0 0.0
          %7352 = vmatpush1.msra.mxu0 %v286
          %7353 = vmatprep.subr.mxu0 0.0
          %7354 = vmatpush1.msra.mxu0 %v287
          %7355 = vmatprep.subr.mxu0 0.0
          %7356 = vmatpush1.msra.mxu0 %v288
          %7357 = vmatprep.subr.mxu0 0.0
          %7358 = vmatpush1.msra.mxu0 %v289
          %7359 = vmatprep.mubr.f32.mxu0 %v7168
          %7360 = vmatmul.mubr.f32.gmra.mrb[0].mxu0 %v7167
          %v7361 = vpop.f32.mrb[0].mxu0
          %v7362 = vadd.f32 0.0, %v7361
          %v7363 = vpop.f32.mrb[0].mxu0
          %7364 = vmatprep.mubr.f32.mxu0 %v7172
          %7365 = vmatmul.mubr.f32.gmra.mrb[0].mxu0 %v7171
          %v7366 = vpop.f32.mrb[0].mxu0
          %v7367 = vadd.f32 0.0, %v7366
          %v7368 = vpop.f32.mrb[0].mxu0
          %7369 = vmatprep.mubr.f32.mxu0 %v7176
          %7370 = vmatmul.mubr.f32.gmra.mrb[0].mxu0 %v7175
          %v7371 = vpop.f32.mrb[0].mxu0
          %v7372 = vadd.f32 0.0, %v7371
          %v7373 = vpop.f32.mrb[0].mxu0
          %7374 = vmatprep.mubr.f32.mxu0 %v7180
          %7375 = vmatmul.mubr.f32.gmra.mrb[0].mxu0 %v7179
          %v7376 = vpop.f32.mrb[0].mxu0
          %v7377 = vadd.f32 0.0, %v7376
          %v7378 = vpop.f32.mrb[0].mxu0
          %7379 = vmatprep.mubr.f32.mxu0 %v7184
          %7380 = vmatmul.mubr.f32.gmra.mrb[0].mxu0 %v7183
          %v7381 = vpop.f32.mrb[0].mxu0
          %v7382 = vadd.f32 0.0, %v7381
          %v7383 = vpop.f32.mrb[0].mxu0
          %7384 = vmatprep.mubr.f32.mxu0 %v7188
          %7385 = vmatmul.mubr.f32.gmra.mrb[0].mxu0 %v7187
          %v7386 = vpop.f32.mrb[0].mxu0
          %v7387 = vadd.f32 0.0, %v7386
          %v7388 = vpop.f32.mrb[0].mxu0
          %7389 = vmatprep.mubr.f32.mxu0 %v7192
          %7390 = vmatmul.mubr.f32.gmra.mrb[0].mxu0 %v7191
          %v7391 = vpop.f32.mrb[0].mxu0
          %v7392 = vadd.f32 0.0, %v7391
          %v7393 = vpop.f32.mrb[0].mxu0
          %7394 = vmatprep.mubr.f32.mxu0 %v7196
          %7395 = vmatmul.mubr.f32.gmra.mrb[0].mxu0 %v7195
          %v7396 = vpop.f32.mrb[0].mxu0
          %v7397 = vadd.f32 0.0, %v7396
          %v7398 = vpop.f32.mrb[0].mxu0
          %7399 = vmatprep.mubr.f32.mxu0 %v7200
          %7400 = vmatmul.mubr.f32.gmra.mrb[0].mxu0 %v7199
          %v7401 = vpop.f32.mrb[0].mxu0
          %v7402 = vadd.f32 0.0, %v7401
          %v7403 = vpop.f32.mrb[0].mxu0
          %7404 = vmatprep.mubr.f32.mxu0 %v7204
          %7405 = vmatmul.mubr.f32.gmra.mrb[0].mxu0 %v7203
          %v7406 = vpop.f32.mrb[0].mxu0
          %v7407 = vadd.f32 0.0, %v7406
          %v7408 = vpop.f32.mrb[0].mxu0
          %7409 = vmatprep.mubr.f32.mxu0 %v7208
          %7410 = vmatmul.mubr.f32.gmra.mrb[0].mxu0 %v7207
          %v7411 = vpop.f32.mrb[0].mxu0
          %v7412 = vadd.f32 0.0, %v7411
          %v7413 = vpop.f32.mrb[0].mxu0
          %7414 = vmatprep.mubr.f32.mxu0 %v7212
          %7415 = vmatmul.mubr.f32.gmra.mrb[0].mxu0 %v7211
          %v7416 = vpop.f32.mrb[0].mxu0
          %v7417 = vadd.f32 0.0, %v7416
          %v7418 = vpop.f32.mrb[0].mxu0
          %7419 = vmatprep.mubr.f32.mxu0 %v7216
          %7420 = vmatmul.mubr.f32.gmra.mrb[0].mxu0 %v7215
          %v7421 = vpop.f32.mrb[0].mxu0
          %v7422 = vadd.f32 0.0, %v7421
          %v7423 = vpop.f32.mrb[0].mxu0
          %7424 = vmatprep.mubr.f32.mxu0 %v7220
          %7425 = vmatmul.mubr.f32.gmra.mrb[0].mxu0 %v7219
          %v7426 = vpop.f32.mrb[0].mxu0
          %v7427 = vadd.f32 0.0, %v7426
          %v7428 = vpop.f32.mrb[0].mxu0
          %7429 = vmatprep.mubr.f32.mxu0 %v7224
          %7430 = vmatmul.mubr.f32.gmra.mrb[0].mxu0 %v7223
          %v7431 = vpop.f32.mrb[0].mxu0
          %v7432 = vadd.f32 0.0, %v7431
          %v7433 = vpop.f32.mrb[0].mxu0
          %7434 = vmatprep.mubr.f32.mxu0 %v7228
          %7435 = vmatmul.mubr.f32.gmra.mrb[0].mxu0 %v7227
          %v7436 = vpop.f32.mrb[0].mxu0
          %v7437 = vadd.f32 0.0, %v7436
          %v7438 = vpop.f32.mrb[0].mxu0
          %7439 = vmatprep.mubr.f32.mxu0 %v7232
          %7440 = vmatmul.mubr.f32.gmra.mrb[0].mxu0 %v7231
          %v7441 = vpop.f32.mrb[0].mxu0
          %v7442 = vadd.f32 0.0, %v7441
          %v7443 = vpop.f32.mrb[0].mxu0
          %7444 = vmatprep.mubr.f32.mxu0 %v7236
          %7445 = vmatmul.mubr.f32.gmra.mrb[0].mxu0 %v7235
          %v7446 = vpop.f32.mrb[0].mxu0
          %v7447 = vadd.f32 0.0, %v7446
          %v7448 = vpop.f32.mrb[0].mxu0
          %7449 = vmatprep.mubr.f32.mxu0 %v7240
          %7450 = vmatmul.mubr.f32.gmra.mrb[0].mxu0 %v7239
          %v7451 = vpop.f32.mrb[0].mxu0
          %v7452 = vadd.f32 0.0, %v7451
          %v7453 = vpop.f32.mrb[0].mxu0
          %7454 = vmatprep.mubr.f32.mxu0 %v7244
          %7455 = vmatmul.mubr.f32.gmra.mrb[0].mxu0 %v7243
          %v7456 = vpop.f32.mrb[0].mxu0
          %v7457 = vadd.f32 0.0, %v7456
          %v7458 = vpop.f32.mrb[0].mxu0
          %7459 = vmatprep.mubr.f32.mxu0 %v7248
          %7460 = vmatmul.mubr.f32.gmra.mrb[0].mxu0 %v7247
          %v7461 = vpop.f32.mrb[0].mxu0
          %v7462 = vadd.f32 0.0, %v7461
          %v7463 = vpop.f32.mrb[0].mxu0
          %7464 = vmatprep.mubr.f32.mxu0 %v7252
          %7465 = vmatmul.mubr.f32.gmra.mrb[0].mxu0 %v7251
          %v7466 = vpop.f32.mrb[0].mxu0
          %v7467 = vadd.f32 0.0, %v7466
          %v7468 = vpop.f32.mrb[0].mxu0
          %7469 = vmatprep.mubr.f32.mxu0 %v7256
          %7470 = vmatmul.mubr.f32.gmra.mrb[0].mxu0 %v7255
          %v7471 = vpop.f32.mrb[0].mxu0
          %v7472 = vadd.f32 0.0, %v7471
          %v7473 = vpop.f32.mrb[0].mxu0
          %7474 = vmatprep.mubr.f32.mxu0 %v7260
          %7475 = vmatmul.mubr.f32.gmra.mrb[0].mxu0 %v7259
          %v7476 = vpop.f32.mrb[0].mxu0
          %v7477 = vadd.f32 0.0, %v7476
          %v7478 = vpop.f32.mrb[0].mxu0
          %7479 = vmatprep.mubr.f32.mxu0 %v7264
          %7480 = vmatmul.mubr.f32.gmra.mrb[0].mxu0 %v7263
          %v7481 = vpop.f32.mrb[0].mxu0
          %v7482 = vadd.f32 0.0, %v7481
          %v7483 = vpop.f32.mrb[0].mxu0
          %7484 = vmatprep.mubr.f32.mxu0 %v7268
          %7485 = vmatmul.mubr.f32.gmra.mrb[0].mxu0 %v7267
          %v7486 = vpop.f32.mrb[0].mxu0
          %v7487 = vadd.f32 0.0, %v7486
          %v7488 = vpop.f32.mrb[0].mxu0
          %7489 = vmatprep.mubr.f32.mxu0 %v7272
          %7490 = vmatmul.mubr.f32.gmra.mrb[0].mxu0 %v7271
          %v7491 = vpop.f32.mrb[0].mxu0
          %v7492 = vadd.f32 0.0, %v7491
          %v7493 = vpop.f32.mrb[0].mxu0
          %7494 = vmatprep.mubr.f32.mxu0 %v7276
          %7495 = vmatmul.mubr.f32.gmra.mrb[0].mxu0 %v7275
          %v7496 = vpop.f32.mrb[0].mxu0
          %v7497 = vadd.f32 0.0, %v7496
          %v7498 = vpop.f32.mrb[0].mxu0
          %7499 = vmatprep.mubr.f32.mxu0 %v7280
          %7500 = vmatmul.mubr.f32.gmra.mrb[0].mxu0 %v7279
          %v7501 = vpop.f32.mrb[0].mxu0
          %v7502 = vadd.f32 0.0, %v7501
          %v7503 = vpop.f32.mrb[0].mxu0
          %7504 = vmatprep.mubr.f32.mxu0 %v7284
          %7505 = vmatmul.mubr.f32.gmra.mrb[0].mxu0 %v7283
          %v7506 = vpop.f32.mrb[0].mxu0
          %v7507 = vadd.f32 0.0, %v7506
          %v7508 = vpop.f32.mrb[0].mxu0
          %7509 = vmatprep.mubr.f32.mxu0 %v7288
          %7510 = vmatmul.mubr.f32.gmra.mrb[0].mxu0 %v7287
          %v7511 = vpop.f32.mrb[0].mxu0
          %v7512 = vadd.f32 0.0, %v7511
          %v7513 = vpop.f32.mrb[0].mxu0
          %7514 = vmatprep.mubr.f32.mxu0 %v7292
          %7515 = vmatmul.mubr.f32.gmra.mrb[0].mxu0 %v7291
          %v7516 = vpop.f32.mrb[0].mxu0
          %v7517 = vadd.f32 0.0, %v7516
          %v7518 = vpop.f32.mrb[0].mxu0
          %7519 = vdwg.mxu0
          %7520 = vmatprep.subr.mxu0 0.0
          %7521 = vmatpush1.msra.mxu0 %v290
          %7522 = vmatprep.subr.mxu0 0.0
          %7523 = vmatpush1.msra.mxu0 %v291
          %7524 = vmatprep.subr.mxu0 0.0
          %7525 = vmatpush1.msra.mxu0 %v292
          %7526 = vmatprep.subr.mxu0 0.0
          %7527 = vmatpush1.msra.mxu0 %v293
          %7528 = vmatprep.subr.mxu0 0.0
          %7529 = vmatpush1.msra.mxu0 %v294
          %7530 = vmatprep.subr.mxu0 0.0
          %7531 = vmatpush1.msra.mxu0 %v295
          %7532 = vmatprep.subr.mxu0 0.0
          %7533 = vmatpush1.msra.mxu0 %v296
          %7534 = vmatprep.subr.mxu0 0.0
          %7535 = vmatpush1.msra.mxu0 %v297
          %7536 = vmatprep.subr.mxu0 0.0
          %7537 = vmatpush1.msra.mxu0 %v298
          %7538 = vmatprep.subr.mxu0 0.0
          %7539 = vmatpush1.msra.mxu0 %v299
          %7540 = vmatprep.subr.mxu0 0.0
          %7541 = vmatpush1.msra.mxu0 %v300
          %7542 = vmatprep.subr.mxu0 0.0
          %7543 = vmatpush1.msra.mxu0 %v301
          %7544 = vmatprep.subr.mxu0 0.0
          %7545 = vmatpush1.msra.mxu0 %v302
          %7546 = vmatprep.subr.mxu0 0.0
          %7547 = vmatpush1.msra.mxu0 %v303
          %7548 = vmatprep.subr.mxu0 0.0
          %7549 = vmatpush1.msra.mxu0 %v304
          %7550 = vmatprep.subr.mxu0 0.0
          %7551 = vmatpush1.msra.mxu0 %v305
          %7552 = vmatprep.subr.mxu0 0.0
          %7553 = vmatpush1.msra.mxu0 %v306
          %7554 = vmatprep.subr.mxu0 0.0
          %7555 = vmatpush1.msra.mxu0 %v307
          %7556 = vmatprep.subr.mxu0 0.0
          %7557 = vmatpush1.msra.mxu0 %v308
          %7558 = vmatprep.subr.mxu0 0.0
          %7559 = vmatpush1.msra.mxu0 %v309
          %7560 = vmatprep.subr.mxu0 0.0
          %7561 = vmatpush1.msra.mxu0 %v310
          %7562 = vmatprep.subr.mxu0 0.0
          %7563 = vmatpush1.msra.mxu0 %v311
          %7564 = vmatprep.subr.mxu0 0.0
          %7565 = vmatpush1.msra.mxu0 %v312
          %7566 = vmatprep.subr.mxu0 0.0
          %7567 = vmatpush1.msra.mxu0 %v313
          %7568 = vmatprep.subr.mxu0 0.0
          %7569 = vmatpush1.msra.mxu0 %v314
          %7570 = vmatprep.subr.mxu0 0.0
          %7571 = vmatpush1.msra.mxu0 %v315
          %7572 = vmatprep.subr.mxu0 0.0
          %7573 = vmatpush1.msra.mxu0 %v316
          %7574 = vmatprep.subr.mxu0 0.0
          %7575 = vmatpush1.msra.mxu0 %v317
          %7576 = vmatprep.subr.mxu0 0.0
          %7577 = vmatpush1.msra.mxu0 %v318
          %7578 = vmatprep.subr.mxu0 0.0
          %7579 = vmatpush1.msra.mxu0 %v319
          %7580 = vmatprep.subr.mxu0 0.0
          %7581 = vmatpush1.msra.mxu0 %v320
          %7582 = vmatprep.subr.mxu0 0.0
          %7583 = vmatpush1.msra.mxu0 %v321
          %7584 = vmatprep.mubr.f32.mxu0 %v7170
          %7585 = vmatmul.mubr.f32.gmra.mrb[0].mxu0 %v7169
          %v7586 = vpop.f32.mrb[0].mxu0
          %v7587 = vadd.f32 %v7362, %v7586
          %v7588 = vpop.f32.mrb[0].mxu0
          %7589 = vmatprep.mubr.f32.mxu0 %v7174
          %7590 = vmatmul.mubr.f32.gmra.mrb[0].mxu0 %v7173
          %v7591 = vpop.f32.mrb[0].mxu0
          %v7592 = vadd.f32 %v7367, %v7591
          %v7593 = vpop.f32.mrb[0].mxu0
          %7594 = vmatprep.mubr.f32.mxu0 %v7178
          %7595 = vmatmul.mubr.f32.gmra.mrb[0].mxu0 %v7177
          %v7596 = vpop.f32.mrb[0].mxu0
          %v7597 = vadd.f32 %v7372, %v7596
          %v7598 = vpop.f32.mrb[0].mxu0
          %7599 = vmatprep.mubr.f32.mxu0 %v7182
          %7600 = vmatmul.mubr.f32.gmra.mrb[0].mxu0 %v7181
          %v7601 = vpop.f32.mrb[0].mxu0
          %v7602 = vadd.f32 %v7377, %v7601
          %v7603 = vpop.f32.mrb[0].mxu0
          %7604 = vmatprep.mubr.f32.mxu0 %v7186
          %7605 = vmatmul.mubr.f32.gmra.mrb[0].mxu0 %v7185
          %v7606 = vpop.f32.mrb[0].mxu0
          %v7607 = vadd.f32 %v7382, %v7606
          %v7608 = vpop.f32.mrb[0].mxu0
          %7609 = vmatprep.mubr.f32.mxu0 %v7190
          %7610 = vmatmul.mubr.f32.gmra.mrb[0].mxu0 %v7189
          %v7611 = vpop.f32.mrb[0].mxu0
          %v7612 = vadd.f32 %v7387, %v7611
          %v7613 = vpop.f32.mrb[0].mxu0
          %7614 = vmatprep.mubr.f32.mxu0 %v7194
          %7615 = vmatmul.mubr.f32.gmra.mrb[0].mxu0 %v7193
          %v7616 = vpop.f32.mrb[0].mxu0
          %v7617 = vadd.f32 %v7392, %v7616
          %v7618 = vpop.f32.mrb[0].mxu0
          %7619 = vmatprep.mubr.f32.mxu0 %v7198
          %7620 = vmatmul.mubr.f32.gmra.mrb[0].mxu0 %v7197
          %v7621 = vpop.f32.mrb[0].mxu0
          %v7622 = vadd.f32 %v7397, %v7621
          %v7623 = vpop.f32.mrb[0].mxu0
          %7624 = vmatprep.mubr.f32.mxu0 %v7202
          %7625 = vmatmul.mubr.f32.gmra.mrb[0].mxu0 %v7201
          %v7626 = vpop.f32.mrb[0].mxu0
          %v7627 = vadd.f32 %v7402, %v7626
          %v7628 = vpop.f32.mrb[0].mxu0
          %7629 = vmatprep.mubr.f32.mxu0 %v7206
          %7630 = vmatmul.mubr.f32.gmra.mrb[0].mxu0 %v7205
          %v7631 = vpop.f32.mrb[0].mxu0
          %v7632 = vadd.f32 %v7407, %v7631
          %v7633 = vpop.f32.mrb[0].mxu0
          %7634 = vmatprep.mubr.f32.mxu0 %v7210
          %7635 = vmatmul.mubr.f32.gmra.mrb[0].mxu0 %v7209
          %v7636 = vpop.f32.mrb[0].mxu0
          %v7637 = vadd.f32 %v7412, %v7636
          %v7638 = vpop.f32.mrb[0].mxu0
          %7639 = vmatprep.mubr.f32.mxu0 %v7214
          %7640 = vmatmul.mubr.f32.gmra.mrb[0].mxu0 %v7213
          %v7641 = vpop.f32.mrb[0].mxu0
          %v7642 = vadd.f32 %v7417, %v7641
          %v7643 = vpop.f32.mrb[0].mxu0
          %7644 = vmatprep.mubr.f32.mxu0 %v7218
          %7645 = vmatmul.mubr.f32.gmra.mrb[0].mxu0 %v7217
          %v7646 = vpop.f32.mrb[0].mxu0
          %v7647 = vadd.f32 %v7422, %v7646
          %v7648 = vpop.f32.mrb[0].mxu0
          %7649 = vmatprep.mubr.f32.mxu0 %v7222
          %7650 = vmatmul.mubr.f32.gmra.mrb[0].mxu0 %v7221
          %v7651 = vpop.f32.mrb[0].mxu0
          %v7652 = vadd.f32 %v7427, %v7651
          %v7653 = vpop.f32.mrb[0].mxu0
          %7654 = vmatprep.mubr.f32.mxu0 %v7226
          %7655 = vmatmul.mubr.f32.gmra.mrb[0].mxu0 %v7225
          %v7656 = vpop.f32.mrb[0].mxu0
          %v7657 = vadd.f32 %v7432, %v7656
          %v7658 = vpop.f32.mrb[0].mxu0
          %7659 = vmatprep.mubr.f32.mxu0 %v7230
          %7660 = vmatmul.mubr.f32.gmra.mrb[0].mxu0 %v7229
          %v7661 = vpop.f32.mrb[0].mxu0
          %v7662 = vadd.f32 %v7437, %v7661
          %v7663 = vpop.f32.mrb[0].mxu0
          %7664 = vmatprep.mubr.f32.mxu0 %v7234
          %7665 = vmatmul.mubr.f32.gmra.mrb[0].mxu0 %v7233
          %v7666 = vpop.f32.mrb[0].mxu0
          %v7667 = vadd.f32 %v7442, %v7666
          %v7668 = vpop.f32.mrb[0].mxu0
          %7669 = vmatprep.mubr.f32.mxu0 %v7238
          %7670 = vmatmul.mubr.f32.gmra.mrb[0].mxu0 %v7237
          %v7671 = vpop.f32.mrb[0].mxu0
          %v7672 = vadd.f32 %v7447, %v7671
          %v7673 = vpop.f32.mrb[0].mxu0
          %7674 = vmatprep.mubr.f32.mxu0 %v7242
          %7675 = vmatmul.mubr.f32.gmra.mrb[0].mxu0 %v7241
          %v7676 = vpop.f32.mrb[0].mxu0
          %v7677 = vadd.f32 %v7452, %v7676
          %v7678 = vpop.f32.mrb[0].mxu0
          %7679 = vmatprep.mubr.f32.mxu0 %v7246
          %7680 = vmatmul.mubr.f32.gmra.mrb[0].mxu0 %v7245
          %v7681 = vpop.f32.mrb[0].mxu0
          %v7682 = vadd.f32 %v7457, %v7681
          %v7683 = vpop.f32.mrb[0].mxu0
          %7684 = vmatprep.mubr.f32.mxu0 %v7250
          %7685 = vmatmul.mubr.f32.gmra.mrb[0].mxu0 %v7249
          %v7686 = vpop.f32.mrb[0].mxu0
          %v7687 = vadd.f32 %v7462, %v7686
          %v7688 = vpop.f32.mrb[0].mxu0
          %7689 = vmatprep.mubr.f32.mxu0 %v7254
          %7690 = vmatmul.mubr.f32.gmra.mrb[0].mxu0 %v7253
          %v7691 = vpop.f32.mrb[0].mxu0
          %v7692 = vadd.f32 %v7467, %v7691
          %v7693 = vpop.f32.mrb[0].mxu0
          %7694 = vmatprep.mubr.f32.mxu0 %v7258
          %7695 = vmatmul.mubr.f32.gmra.mrb[0].mxu0 %v7257
          %v7696 = vpop.f32.mrb[0].mxu0
          %v7697 = vadd.f32 %v7472, %v7696
          %v7698 = vpop.f32.mrb[0].mxu0
          %7699 = vmatprep.mubr.f32.mxu0 %v7262
          %7700 = vmatmul.mubr.f32.gmra.mrb[0].mxu0 %v7261
          %v7701 = vpop.f32.mrb[0].mxu0
          %v7702 = vadd.f32 %v7477, %v7701
          %v7703 = vpop.f32.mrb[0].mxu0
          %7704 = vmatprep.mubr.f32.mxu0 %v7266
          %7705 = vmatmul.mubr.f32.gmra.mrb[0].mxu0 %v7265
          %v7706 = vpop.f32.mrb[0].mxu0
          %v7707 = vadd.f32 %v7482, %v7706
          %v7708 = vpop.f32.mrb[0].mxu0
          %7709 = vmatprep.mubr.f32.mxu0 %v7270
          %7710 = vmatmul.mubr.f32.gmra.mrb[0].mxu0 %v7269
          %v7711 = vpop.f32.mrb[0].mxu0
          %v7712 = vadd.f32 %v7487, %v7711
          %v7713 = vpop.f32.mrb[0].mxu0
          %7714 = vmatprep.mubr.f32.mxu0 %v7274
          %7715 = vmatmul.mubr.f32.gmra.mrb[0].mxu0 %v7273
          %v7716 = vpop.f32.mrb[0].mxu0
          %v7717 = vadd.f32 %v7492, %v7716
          %v7718 = vpop.f32.mrb[0].mxu0
          %7719 = vmatprep.mubr.f32.mxu0 %v7278
          %7720 = vmatmul.mubr.f32.gmra.mrb[0].mxu0 %v7277
          %v7721 = vpop.f32.mrb[0].mxu0
          %v7722 = vadd.f32 %v7497, %v7721
          %v7723 = vpop.f32.mrb[0].mxu0
          %7724 = vmatprep.mubr.f32.mxu0 %v7282
          %7725 = vmatmul.mubr.f32.gmra.mrb[0].mxu0 %v7281
          %v7726 = vpop.f32.mrb[0].mxu0
          %v7727 = vadd.f32 %v7502, %v7726
          %v7728 = vpop.f32.mrb[0].mxu0
          %7729 = vmatprep.mubr.f32.mxu0 %v7286
          %7730 = vmatmul.mubr.f32.gmra.mrb[0].mxu0 %v7285
          %v7731 = vpop.f32.mrb[0].mxu0
          %v7732 = vadd.f32 %v7507, %v7731
          %v7733 = vpop.f32.mrb[0].mxu0
          %7734 = vmatprep.mubr.f32.mxu0 %v7290
          %7735 = vmatmul.mubr.f32.gmra.mrb[0].mxu0 %v7289
          %v7736 = vpop.f32.mrb[0].mxu0
          %v7737 = vadd.f32 %v7512, %v7736
          %v7738 = vpop.f32.mrb[0].mxu0
          %7739 = vmatprep.mubr.f32.mxu0 %v7294
          %7740 = vmatmul.mubr.f32.gmra.mrb[0].mxu0 %v7293
          %v7741 = vpop.f32.mrb[0].mxu0
          %v7742 = vadd.f32 %v7517, %v7741
          %v7743 = vpop.f32.mrb[0].mxu0
          %7744 = vdwg.mxu0
          %v7746 = vsel %vm4598, %v7587, 0
          %v7749 = vsel %vm4598, %v7592, 0
          %v7752 = vsel %vm4598, %v7597, 0
          %v7755 = vsel %vm4598, %v7602, 0
          %v7758 = vsel %vm4598, %v7607, 0
          %v7761 = vsel %vm4598, %v7612, 0
          %v7764 = vsel %vm4598, %v7617, 0
          %v7767 = vsel %vm4598, %v7622, 0
          %v7770 = vsel %vm4598, %v7627, 0
          %v7773 = vsel %vm4598, %v7632, 0
          %v7776 = vsel %vm4598, %v7637, 0
          %v7779 = vsel %vm4598, %v7642, 0
          %v7782 = vsel %vm4598, %v7647, 0
          %v7785 = vsel %vm4598, %v7652, 0
          %v7788 = vsel %vm4598, %v7657, 0
          %v7791 = vsel %vm4598, %v7662, 0
          %v7794 = vsel %vm4598, %v7667, 0
          %v7797 = vsel %vm4598, %v7672, 0
          %v7800 = vsel %vm4598, %v7677, 0
          %v7803 = vsel %vm4598, %v7682, 0
          %v7806 = vsel %vm4598, %v7687, 0
          %v7809 = vsel %vm4598, %v7692, 0
          %v7812 = vsel %vm4598, %v7697, 0
          %v7815 = vsel %vm4598, %v7702, 0
          %v7818 = vsel %vm4598, %v7707, 0
          %v7821 = vsel %vm4598, %v7712, 0
          %v7824 = vsel %vm4598, %v7717, 0
          %v7827 = vsel %vm4598, %v7722, 0
          %v7830 = vsel %vm4598, %v7727, 0
          %v7833 = vsel %vm4598, %v7732, 0
          %v7836 = vsel %vm4598, %v7737, 0
          %v7839 = vsel %vm4598, %v7742, 0
          %7841 = vmatprep.subr.mxu0 0.0
          %7842 = vmatpush1.xpose.msra.mxu0 %v5048
          %7843 = vmatprep.subr.mxu0 0.0
          %7844 = vmatpush1.xpose.msra.mxu0 %v5051
          %7845 = vmatprep.subr.mxu0 0.0
          %7846 = vmatpush1.xpose.msra.mxu0 %v5054
          %7847 = vmatprep.subr.mxu0 0.0
          %7848 = vmatpush1.xpose.msra.mxu0 %v5057
          %7849 = vmatprep.subr.mxu0 0.0
          %7850 = vmatpush1.xpose.msra.mxu0 %v5060
          %7851 = vmatprep.subr.mxu0 0.0
          %7852 = vmatpush1.xpose.msra.mxu0 %v5063
          %7853 = vmatprep.subr.mxu0 0.0
          %7854 = vmatpush1.xpose.msra.mxu0 %v5066
          %7855 = vmatprep.subr.mxu0 0.0
          %7856 = vmatpush1.xpose.msra.mxu0 %v5069
          %7857 = vmatprep.subr.mxu0 0.0
          %7858 = vmatpush1.xpose.msra.mxu0 %v5072
          %7859 = vmatprep.subr.mxu0 0.0
          %7860 = vmatpush1.xpose.msra.mxu0 %v5075
          %7861 = vmatprep.subr.mxu0 0.0
          %7862 = vmatpush1.xpose.msra.mxu0 %v5078
          %7863 = vmatprep.subr.mxu0 0.0
          %7864 = vmatpush1.xpose.msra.mxu0 %v5081
          %7865 = vmatprep.subr.mxu0 0.0
          %7866 = vmatpush1.xpose.msra.mxu0 %v5084
          %7867 = vmatprep.subr.mxu0 0.0
          %7868 = vmatpush1.xpose.msra.mxu0 %v5087
          %7869 = vmatprep.subr.mxu0 0.0
          %7870 = vmatpush1.xpose.msra.mxu0 %v5090
          %7871 = vmatprep.subr.mxu0 0.0
          %7872 = vmatpush1.xpose.msra.mxu0 %v5093
          %7873 = vmatprep.subr.mxu0 0.0
          %7874 = vmatpush1.xpose.msra.mxu0 %v5096
          %7875 = vmatprep.subr.mxu0 0.0
          %7876 = vmatpush1.xpose.msra.mxu0 %v5099
          %7877 = vmatprep.subr.mxu0 0.0
          %7878 = vmatpush1.xpose.msra.mxu0 %v5102
          %7879 = vmatprep.subr.mxu0 0.0
          %7880 = vmatpush1.xpose.msra.mxu0 %v5105
          %7881 = vmatprep.subr.mxu0 0.0
          %7882 = vmatpush1.xpose.msra.mxu0 %v5108
          %7883 = vmatprep.subr.mxu0 0.0
          %7884 = vmatpush1.xpose.msra.mxu0 %v5111
          %7885 = vmatprep.subr.mxu0 0.0
          %7886 = vmatpush1.xpose.msra.mxu0 %v5114
          %7887 = vmatprep.subr.mxu0 0.0
          %7888 = vmatpush1.xpose.msra.mxu0 %v5117
          %7889 = vmatprep.subr.mxu0 0.0
          %7890 = vmatpush1.xpose.msra.mxu0 %v5120
          %7891 = vmatprep.subr.mxu0 0.0
          %7892 = vmatpush1.xpose.msra.mxu0 %v5123
          %7893 = vmatprep.subr.mxu0 0.0
          %7894 = vmatpush1.xpose.msra.mxu0 %v5126
          %7895 = vmatprep.subr.mxu0 0.0
          %7896 = vmatpush1.xpose.msra.mxu0 %v5129
          %7897 = vmatprep.subr.mxu0 0.0
          %7898 = vmatpush1.xpose.msra.mxu0 %v5132
          %7899 = vmatprep.subr.mxu0 0.0
          %7900 = vmatpush1.xpose.msra.mxu0 %v5135
          %7901 = vmatprep.subr.mxu0 0.0
          %7902 = vmatpush1.xpose.msra.mxu0 %v5138
          %7903 = vmatprep.subr.mxu0 0.0
          %7904 = vmatpush1.xpose.msra.mxu0 %v5141
          %7905 = vmatprep.mubr.f32.mxu0 0.0
          %7906 = vmatmul.mubr.f32.gmra.mrb[0].mxu0 %v7746
          %v7907 = vpop.f32.mrb[0].mxu0
          %v7908 = vadd.f32 0.0, %v7907
          %v7909 = vpop.f32.mrb[0].mxu0
          %v7910 = vadd.f32 0.0, %v7909
          %7911 = vmatprep.mubr.f32.mxu0 0.0
          %7912 = vmatmul.mubr.f32.gmra.mrb[0].mxu0 %v7749
          %v7913 = vpop.f32.mrb[0].mxu0
          %v7914 = vadd.f32 0.0, %v7913
          %v7915 = vpop.f32.mrb[0].mxu0
          %v7916 = vadd.f32 0.0, %v7915
          %7917 = vmatprep.mubr.f32.mxu0 0.0
          %7918 = vmatmul.mubr.f32.gmra.mrb[0].mxu0 %v7752
          %v7919 = vpop.f32.mrb[0].mxu0
          %v7920 = vadd.f32 0.0, %v7919
          %v7921 = vpop.f32.mrb[0].mxu0
          %v7922 = vadd.f32 0.0, %v7921
          %7923 = vmatprep.mubr.f32.mxu0 0.0
          %7924 = vmatmul.mubr.f32.gmra.mrb[0].mxu0 %v7755
          %v7925 = vpop.f32.mrb[0].mxu0
          %v7926 = vadd.f32 0.0, %v7925
          %v7927 = vpop.f32.mrb[0].mxu0
          %v7928 = vadd.f32 0.0, %v7927
          %7929 = vmatprep.mubr.f32.mxu0 0.0
          %7930 = vmatmul.mubr.f32.gmra.mrb[0].mxu0 %v7758
          %v7931 = vpop.f32.mrb[0].mxu0
          %v7932 = vadd.f32 0.0, %v7931
          %v7933 = vpop.f32.mrb[0].mxu0
          %v7934 = vadd.f32 0.0, %v7933
          %7935 = vmatprep.mubr.f32.mxu0 0.0
          %7936 = vmatmul.mubr.f32.gmra.mrb[0].mxu0 %v7761
          %v7937 = vpop.f32.mrb[0].mxu0
          %v7938 = vadd.f32 0.0, %v7937
          %v7939 = vpop.f32.mrb[0].mxu0
          %v7940 = vadd.f32 0.0, %v7939
          %7941 = vmatprep.mubr.f32.mxu0 0.0
          %7942 = vmatmul.mubr.f32.gmra.mrb[0].mxu0 %v7764
          %v7943 = vpop.f32.mrb[0].mxu0
          %v7944 = vadd.f32 0.0, %v7943
          %v7945 = vpop.f32.mrb[0].mxu0
          %v7946 = vadd.f32 0.0, %v7945
          %7947 = vmatprep.mubr.f32.mxu0 0.0
          %7948 = vmatmul.mubr.f32.gmra.mrb[0].mxu0 %v7767
          %v7949 = vpop.f32.mrb[0].mxu0
          %v7950 = vadd.f32 0.0, %v7949
          %v7951 = vpop.f32.mrb[0].mxu0
          %v7952 = vadd.f32 0.0, %v7951
          %7953 = vmatprep.mubr.f32.mxu0 0.0
          %7954 = vmatmul.mubr.f32.gmra.mrb[0].mxu0 %v7770
          %v7955 = vpop.f32.mrb[0].mxu0
          %v7956 = vadd.f32 0.0, %v7955
          %v7957 = vpop.f32.mrb[0].mxu0
          %v7958 = vadd.f32 0.0, %v7957
          %7959 = vmatprep.mubr.f32.mxu0 0.0
          %7960 = vmatmul.mubr.f32.gmra.mrb[0].mxu0 %v7773
          %v7961 = vpop.f32.mrb[0].mxu0
          %v7962 = vadd.f32 0.0, %v7961
          %v7963 = vpop.f32.mrb[0].mxu0
          %v7964 = vadd.f32 0.0, %v7963
          %7965 = vmatprep.mubr.f32.mxu0 0.0
          %7966 = vmatmul.mubr.f32.gmra.mrb[0].mxu0 %v7776
          %v7967 = vpop.f32.mrb[0].mxu0
          %v7968 = vadd.f32 0.0, %v7967
          %v7969 = vpop.f32.mrb[0].mxu0
          %v7970 = vadd.f32 0.0, %v7969
          %7971 = vmatprep.mubr.f32.mxu0 0.0
          %7972 = vmatmul.mubr.f32.gmra.mrb[0].mxu0 %v7779
          %v7973 = vpop.f32.mrb[0].mxu0
          %v7974 = vadd.f32 0.0, %v7973
          %v7975 = vpop.f32.mrb[0].mxu0
          %v7976 = vadd.f32 0.0, %v7975
          %7977 = vmatprep.mubr.f32.mxu0 0.0
          %7978 = vmatmul.mubr.f32.gmra.mrb[0].mxu0 %v7782
          %v7979 = vpop.f32.mrb[0].mxu0
          %v7980 = vadd.f32 0.0, %v7979
          %v7981 = vpop.f32.mrb[0].mxu0
          %v7982 = vadd.f32 0.0, %v7981
          %7983 = vmatprep.mubr.f32.mxu0 0.0
          %7984 = vmatmul.mubr.f32.gmra.mrb[0].mxu0 %v7785
          %v7985 = vpop.f32.mrb[0].mxu0
          %v7986 = vadd.f32 0.0, %v7985
          %v7987 = vpop.f32.mrb[0].mxu0
          %v7988 = vadd.f32 0.0, %v7987
          %7989 = vmatprep.mubr.f32.mxu0 0.0
          %7990 = vmatmul.mubr.f32.gmra.mrb[0].mxu0 %v7788
          %v7991 = vpop.f32.mrb[0].mxu0
          %v7992 = vadd.f32 0.0, %v7991
          %v7993 = vpop.f32.mrb[0].mxu0
          %v7994 = vadd.f32 0.0, %v7993
          %7995 = vmatprep.mubr.f32.mxu0 0.0
          %7996 = vmatmul.mubr.f32.gmra.mrb[0].mxu0 %v7791
          %v7997 = vpop.f32.mrb[0].mxu0
          %v7998 = vadd.f32 0.0, %v7997
          %v7999 = vpop.f32.mrb[0].mxu0
          %v8000 = vadd.f32 0.0, %v7999
          %8001 = vmatprep.mubr.f32.mxu0 0.0
          %8002 = vmatmul.mubr.f32.gmra.mrb[0].mxu0 %v7794
          %v8003 = vpop.f32.mrb[0].mxu0
          %v8004 = vadd.f32 0.0, %v8003
          %v8005 = vpop.f32.mrb[0].mxu0
          %v8006 = vadd.f32 0.0, %v8005
          %8007 = vmatprep.mubr.f32.mxu0 0.0
          %8008 = vmatmul.mubr.f32.gmra.mrb[0].mxu0 %v7797
          %v8009 = vpop.f32.mrb[0].mxu0
          %v8010 = vadd.f32 0.0, %v8009
          %v8011 = vpop.f32.mrb[0].mxu0
          %v8012 = vadd.f32 0.0, %v8011
          %8013 = vmatprep.mubr.f32.mxu0 0.0
          %8014 = vmatmul.mubr.f32.gmra.mrb[0].mxu0 %v7800
          %v8015 = vpop.f32.mrb[0].mxu0
          %v8016 = vadd.f32 0.0, %v8015
          %v8017 = vpop.f32.mrb[0].mxu0
          %v8018 = vadd.f32 0.0, %v8017
          %8019 = vmatprep.mubr.f32.mxu0 0.0
          %8020 = vmatmul.mubr.f32.gmra.mrb[0].mxu0 %v7803
          %v8021 = vpop.f32.mrb[0].mxu0
          %v8022 = vadd.f32 0.0, %v8021
          %v8023 = vpop.f32.mrb[0].mxu0
          %v8024 = vadd.f32 0.0, %v8023
          %8025 = vmatprep.mubr.f32.mxu0 0.0
          %8026 = vmatmul.mubr.f32.gmra.mrb[0].mxu0 %v7806
          %v8027 = vpop.f32.mrb[0].mxu0
          %v8028 = vadd.f32 0.0, %v8027
          %v8029 = vpop.f32.mrb[0].mxu0
          %v8030 = vadd.f32 0.0, %v8029
          %8031 = vmatprep.mubr.f32.mxu0 0.0
          %8032 = vmatmul.mubr.f32.gmra.mrb[0].mxu0 %v7809
          %v8033 = vpop.f32.mrb[0].mxu0
          %v8034 = vadd.f32 0.0, %v8033
          %v8035 = vpop.f32.mrb[0].mxu0
          %v8036 = vadd.f32 0.0, %v8035
          %8037 = vmatprep.mubr.f32.mxu0 0.0
          %8038 = vmatmul.mubr.f32.gmra.mrb[0].mxu0 %v7812
          %v8039 = vpop.f32.mrb[0].mxu0
          %v8040 = vadd.f32 0.0, %v8039
          %v8041 = vpop.f32.mrb[0].mxu0
          %v8042 = vadd.f32 0.0, %v8041
          %8043 = vmatprep.mubr.f32.mxu0 0.0
          %8044 = vmatmul.mubr.f32.gmra.mrb[0].mxu0 %v7815
          %v8045 = vpop.f32.mrb[0].mxu0
          %v8046 = vadd.f32 0.0, %v8045
          %v8047 = vpop.f32.mrb[0].mxu0
          %v8048 = vadd.f32 0.0, %v8047
          %8049 = vmatprep.mubr.f32.mxu0 0.0
          %8050 = vmatmul.mubr.f32.gmra.mrb[0].mxu0 %v7818
          %v8051 = vpop.f32.mrb[0].mxu0
          %v8052 = vadd.f32 0.0, %v8051
          %v8053 = vpop.f32.mrb[0].mxu0
          %v8054 = vadd.f32 0.0, %v8053
          %8055 = vmatprep.mubr.f32.mxu0 0.0
          %8056 = vmatmul.mubr.f32.gmra.mrb[0].mxu0 %v7821
          %v8057 = vpop.f32.mrb[0].mxu0
          %v8058 = vadd.f32 0.0, %v8057
          %v8059 = vpop.f32.mrb[0].mxu0
          %v8060 = vadd.f32 0.0, %v8059
          %8061 = vmatprep.mubr.f32.mxu0 0.0
          %8062 = vmatmul.mubr.f32.gmra.mrb[0].mxu0 %v7824
          %v8063 = vpop.f32.mrb[0].mxu0
          %v8064 = vadd.f32 0.0, %v8063
          %v8065 = vpop.f32.mrb[0].mxu0
          %v8066 = vadd.f32 0.0, %v8065
          %8067 = vmatprep.mubr.f32.mxu0 0.0
          %8068 = vmatmul.mubr.f32.gmra.mrb[0].mxu0 %v7827
          %v8069 = vpop.f32.mrb[0].mxu0
          %v8070 = vadd.f32 0.0, %v8069
          %v8071 = vpop.f32.mrb[0].mxu0
          %v8072 = vadd.f32 0.0, %v8071
          %8073 = vmatprep.mubr.f32.mxu0 0.0
          %8074 = vmatmul.mubr.f32.gmra.mrb[0].mxu0 %v7830
          %v8075 = vpop.f32.mrb[0].mxu0
          %v8076 = vadd.f32 0.0, %v8075
          %v8077 = vpop.f32.mrb[0].mxu0
          %v8078 = vadd.f32 0.0, %v8077
          %8079 = vmatprep.mubr.f32.mxu0 0.0
          %8080 = vmatmul.mubr.f32.gmra.mrb[0].mxu0 %v7833
          %v8081 = vpop.f32.mrb[0].mxu0
          %v8082 = vadd.f32 0.0, %v8081
          %v8083 = vpop.f32.mrb[0].mxu0
          %v8084 = vadd.f32 0.0, %v8083
          %8085 = vmatprep.mubr.f32.mxu0 0.0
          %8086 = vmatmul.mubr.f32.gmra.mrb[0].mxu0 %v7836
          %v8087 = vpop.f32.mrb[0].mxu0
          %v8088 = vadd.f32 0.0, %v8087
          %v8089 = vpop.f32.mrb[0].mxu0
          %v8090 = vadd.f32 0.0, %v8089
          %8091 = vmatprep.mubr.f32.mxu0 0.0
          %8092 = vmatmul.mubr.f32.gmra.mrb[0].mxu0 %v7839
          %v8093 = vpop.f32.mrb[0].mxu0
          %v8094 = vadd.f32 0.0, %v8093
          %v8095 = vpop.f32.mrb[0].mxu0
          %v8096 = vadd.f32 0.0, %v8095
          %8097 = vdwg.mxu0
          %8098 = vmatprep.subr.mxu0 0.0
          %8099 = vmatpush1.xpose.msra.mxu0 %v5144
          %8100 = vmatprep.subr.mxu0 0.0
          %8101 = vmatpush1.xpose.msra.mxu0 %v5147
          %8102 = vmatprep.subr.mxu0 0.0
          %8103 = vmatpush1.xpose.msra.mxu0 %v5150
          %8104 = vmatprep.subr.mxu0 0.0
          %8105 = vmatpush1.xpose.msra.mxu0 %v5153
          %8106 = vmatprep.subr.mxu0 0.0
          %8107 = vmatpush1.xpose.msra.mxu0 %v5156
          %8108 = vmatprep.subr.mxu0 0.0
          %8109 = vmatpush1.xpose.msra.mxu0 %v5159
          %8110 = vmatprep.subr.mxu0 0.0
          %8111 = vmatpush1.xpose.msra.mxu0 %v5162
          %8112 = vmatprep.subr.mxu0 0.0
          %8113 = vmatpush1.xpose.msra.mxu0 %v5165
          %8114 = vmatprep.subr.mxu0 0.0
          %8115 = vmatpush1.xpose.msra.mxu0 %v5168
          %8116 = vmatprep.subr.mxu0 0.0
          %8117 = vmatpush1.xpose.msra.mxu0 %v5171
          %8118 = vmatprep.subr.mxu0 0.0
          %8119 = vmatpush1.xpose.msra.mxu0 %v5174
          %8120 = vmatprep.subr.mxu0 0.0
          %8121 = vmatpush1.xpose.msra.mxu0 %v5177
          %8122 = vmatprep.subr.mxu0 0.0
          %8123 = vmatpush1.xpose.msra.mxu0 %v5180
          %8124 = vmatprep.subr.mxu0 0.0
          %8125 = vmatpush1.xpose.msra.mxu0 %v5183
          %8126 = vmatprep.subr.mxu0 0.0
          %8127 = vmatpush1.xpose.msra.mxu0 %v5186
          %8128 = vmatprep.subr.mxu0 0.0
          %8129 = vmatpush1.xpose.msra.mxu0 %v5189
          %8130 = vmatprep.subr.mxu0 0.0
          %8131 = vmatpush1.xpose.msra.mxu0 %v5192
          %8132 = vmatprep.subr.mxu0 0.0
          %8133 = vmatpush1.xpose.msra.mxu0 %v5195
          %8134 = vmatprep.subr.mxu0 0.0
          %8135 = vmatpush1.xpose.msra.mxu0 %v5198
          %8136 = vmatprep.subr.mxu0 0.0
          %8137 = vmatpush1.xpose.msra.mxu0 %v5201
          %8138 = vmatprep.subr.mxu0 0.0
          %8139 = vmatpush1.xpose.msra.mxu0 %v5204
          %8140 = vmatprep.subr.mxu0 0.0
          %8141 = vmatpush1.xpose.msra.mxu0 %v5207
          %8142 = vmatprep.subr.mxu0 0.0
          %8143 = vmatpush1.xpose.msra.mxu0 %v5210
          %8144 = vmatprep.subr.mxu0 0.0
          %8145 = vmatpush1.xpose.msra.mxu0 %v5213
          %8146 = vmatprep.subr.mxu0 0.0
          %8147 = vmatpush1.xpose.msra.mxu0 %v5216
          %8148 = vmatprep.subr.mxu0 0.0
          %8149 = vmatpush1.xpose.msra.mxu0 %v5219
          %8150 = vmatprep.subr.mxu0 0.0
          %8151 = vmatpush1.xpose.msra.mxu0 %v5222
          %8152 = vmatprep.subr.mxu0 0.0
          %8153 = vmatpush1.xpose.msra.mxu0 %v5225
          %8154 = vmatprep.subr.mxu0 0.0
          %8155 = vmatpush1.xpose.msra.mxu0 %v5228
          %8156 = vmatprep.subr.mxu0 0.0
          %8157 = vmatpush1.xpose.msra.mxu0 %v5231
          %8158 = vmatprep.subr.mxu0 0.0
          %8159 = vmatpush1.xpose.msra.mxu0 %v5234
          %8160 = vmatprep.subr.mxu0 0.0
          %8161 = vmatpush1.xpose.msra.mxu0 %v5237
          %8162 = vmatprep.mubr.f32.mxu0 0.0
          %8163 = vmatmul.mubr.f32.gmra.mrb[0].mxu0 %v7746
          %v8164 = vpop.f32.mrb[0].mxu0
          %v8165 = vadd.f32 0.0, %v8164
          %v8166 = vpop.f32.mrb[0].mxu0
          %v8167 = vadd.f32 0.0, %v8166
          %8168 = vmatprep.mubr.f32.mxu0 0.0
          %8169 = vmatmul.mubr.f32.gmra.mrb[0].mxu0 %v7749
          %v8170 = vpop.f32.mrb[0].mxu0
          %v8171 = vadd.f32 0.0, %v8170
          %v8172 = vpop.f32.mrb[0].mxu0
          %v8173 = vadd.f32 0.0, %v8172
          %8174 = vmatprep.mubr.f32.mxu0 0.0
          %8175 = vmatmul.mubr.f32.gmra.mrb[0].mxu0 %v7752
          %v8176 = vpop.f32.mrb[0].mxu0
          %v8177 = vadd.f32 0.0, %v8176
          %v8178 = vpop.f32.mrb[0].mxu0
          %v8179 = vadd.f32 0.0, %v8178
          %8180 = vmatprep.mubr.f32.mxu0 0.0
          %8181 = vmatmul.mubr.f32.gmra.mrb[0].mxu0 %v7755
          %v8182 = vpop.f32.mrb[0].mxu0
          %v8183 = vadd.f32 0.0, %v8182
          %v8184 = vpop.f32.mrb[0].mxu0
          %v8185 = vadd.f32 0.0, %v8184
          %8186 = vmatprep.mubr.f32.mxu0 0.0
          %8187 = vmatmul.mubr.f32.gmra.mrb[0].mxu0 %v7758
          %v8188 = vpop.f32.mrb[0].mxu0
          %v8189 = vadd.f32 0.0, %v8188
          %v8190 = vpop.f32.mrb[0].mxu0
          %v8191 = vadd.f32 0.0, %v8190
          %8192 = vmatprep.mubr.f32.mxu0 0.0
          %8193 = vmatmul.mubr.f32.gmra.mrb[0].mxu0 %v7761
          %v8194 = vpop.f32.mrb[0].mxu0
          %v8195 = vadd.f32 0.0, %v8194
          %v8196 = vpop.f32.mrb[0].mxu0
          %v8197 = vadd.f32 0.0, %v8196
          %8198 = vmatprep.mubr.f32.mxu0 0.0
          %8199 = vmatmul.mubr.f32.gmra.mrb[0].mxu0 %v7764
          %v8200 = vpop.f32.mrb[0].mxu0
          %v8201 = vadd.f32 0.0, %v8200
          %v8202 = vpop.f32.mrb[0].mxu0
          %v8203 = vadd.f32 0.0, %v8202
          %8204 = vmatprep.mubr.f32.mxu0 0.0
          %8205 = vmatmul.mubr.f32.gmra.mrb[0].mxu0 %v7767
          %v8206 = vpop.f32.mrb[0].mxu0
          %v8207 = vadd.f32 0.0, %v8206
          %v8208 = vpop.f32.mrb[0].mxu0
          %v8209 = vadd.f32 0.0, %v8208
          %8210 = vmatprep.mubr.f32.mxu0 0.0
          %8211 = vmatmul.mubr.f32.gmra.mrb[0].mxu0 %v7770
          %v8212 = vpop.f32.mrb[0].mxu0
          %v8213 = vadd.f32 0.0, %v8212
          %v8214 = vpop.f32.mrb[0].mxu0
          %v8215 = vadd.f32 0.0, %v8214
          %8216 = vmatprep.mubr.f32.mxu0 0.0
          %8217 = vmatmul.mubr.f32.gmra.mrb[0].mxu0 %v7773
          %v8218 = vpop.f32.mrb[0].mxu0
          %v8219 = vadd.f32 0.0, %v8218
          %v8220 = vpop.f32.mrb[0].mxu0
          %v8221 = vadd.f32 0.0, %v8220
          %8222 = vmatprep.mubr.f32.mxu0 0.0
          %8223 = vmatmul.mubr.f32.gmra.mrb[0].mxu0 %v7776
          %v8224 = vpop.f32.mrb[0].mxu0
          %v8225 = vadd.f32 0.0, %v8224
          %v8226 = vpop.f32.mrb[0].mxu0
          %v8227 = vadd.f32 0.0, %v8226
          %8228 = vmatprep.mubr.f32.mxu0 0.0
          %8229 = vmatmul.mubr.f32.gmra.mrb[0].mxu0 %v7779
          %v8230 = vpop.f32.mrb[0].mxu0
          %v8231 = vadd.f32 0.0, %v8230
          %v8232 = vpop.f32.mrb[0].mxu0
          %v8233 = vadd.f32 0.0, %v8232
          %8234 = vmatprep.mubr.f32.mxu0 0.0
          %8235 = vmatmul.mubr.f32.gmra.mrb[0].mxu0 %v7782
          %v8236 = vpop.f32.mrb[0].mxu0
          %v8237 = vadd.f32 0.0, %v8236
          %v8238 = vpop.f32.mrb[0].mxu0
          %v8239 = vadd.f32 0.0, %v8238
          %8240 = vmatprep.mubr.f32.mxu0 0.0
          %8241 = vmatmul.mubr.f32.gmra.mrb[0].mxu0 %v7785
          %v8242 = vpop.f32.mrb[0].mxu0
          %v8243 = vadd.f32 0.0, %v8242
          %v8244 = vpop.f32.mrb[0].mxu0
          %v8245 = vadd.f32 0.0, %v8244
          %8246 = vmatprep.mubr.f32.mxu0 0.0
          %8247 = vmatmul.mubr.f32.gmra.mrb[0].mxu0 %v7788
          %v8248 = vpop.f32.mrb[0].mxu0
          %v8249 = vadd.f32 0.0, %v8248
          %v8250 = vpop.f32.mrb[0].mxu0
          %v8251 = vadd.f32 0.0, %v8250
          %8252 = vmatprep.mubr.f32.mxu0 0.0
          %8253 = vmatmul.mubr.f32.gmra.mrb[0].mxu0 %v7791
          %v8254 = vpop.f32.mrb[0].mxu0
          %v8255 = vadd.f32 0.0, %v8254
          %v8256 = vpop.f32.mrb[0].mxu0
          %v8257 = vadd.f32 0.0, %v8256
          %8258 = vmatprep.mubr.f32.mxu0 0.0
          %8259 = vmatmul.mubr.f32.gmra.mrb[0].mxu0 %v7794
          %v8260 = vpop.f32.mrb[0].mxu0
          %v8261 = vadd.f32 0.0, %v8260
          %v8262 = vpop.f32.mrb[0].mxu0
          %v8263 = vadd.f32 0.0, %v8262
          %8264 = vmatprep.mubr.f32.mxu0 0.0
          %8265 = vmatmul.mubr.f32.gmra.mrb[0].mxu0 %v7797
          %v8266 = vpop.f32.mrb[0].mxu0
          %v8267 = vadd.f32 0.0, %v8266
          %v8268 = vpop.f32.mrb[0].mxu0
          %v8269 = vadd.f32 0.0, %v8268
          %8270 = vmatprep.mubr.f32.mxu0 0.0
          %8271 = vmatmul.mubr.f32.gmra.mrb[0].mxu0 %v7800
          %v8272 = vpop.f32.mrb[0].mxu0
          %v8273 = vadd.f32 0.0, %v8272
          %v8274 = vpop.f32.mrb[0].mxu0
          %v8275 = vadd.f32 0.0, %v8274
          %8276 = vmatprep.mubr.f32.mxu0 0.0
          %8277 = vmatmul.mubr.f32.gmra.mrb[0].mxu0 %v7803
          %v8278 = vpop.f32.mrb[0].mxu0
          %v8279 = vadd.f32 0.0, %v8278
          %v8280 = vpop.f32.mrb[0].mxu0
          %v8281 = vadd.f32 0.0, %v8280
          %8282 = vmatprep.mubr.f32.mxu0 0.0
          %8283 = vmatmul.mubr.f32.gmra.mrb[0].mxu0 %v7806
          %v8284 = vpop.f32.mrb[0].mxu0
          %v8285 = vadd.f32 0.0, %v8284
          %v8286 = vpop.f32.mrb[0].mxu0
          %v8287 = vadd.f32 0.0, %v8286
          %8288 = vmatprep.mubr.f32.mxu0 0.0
          %8289 = vmatmul.mubr.f32.gmra.mrb[0].mxu0 %v7809
          %v8290 = vpop.f32.mrb[0].mxu0
          %v8291 = vadd.f32 0.0, %v8290
          %v8292 = vpop.f32.mrb[0].mxu0
          %v8293 = vadd.f32 0.0, %v8292
          %8294 = vmatprep.mubr.f32.mxu0 0.0
          %8295 = vmatmul.mubr.f32.gmra.mrb[0].mxu0 %v7812
          %v8296 = vpop.f32.mrb[0].mxu0
          %v8297 = vadd.f32 0.0, %v8296
          %v8298 = vpop.f32.mrb[0].mxu0
          %v8299 = vadd.f32 0.0, %v8298
          %8300 = vmatprep.mubr.f32.mxu0 0.0
          %8301 = vmatmul.mubr.f32.gmra.mrb[0].mxu0 %v7815
          %v8302 = vpop.f32.mrb[0].mxu0
          %v8303 = vadd.f32 0.0, %v8302
          %v8304 = vpop.f32.mrb[0].mxu0
          %v8305 = vadd.f32 0.0, %v8304
          %8306 = vmatprep.mubr.f32.mxu0 0.0
          %8307 = vmatmul.mubr.f32.gmra.mrb[0].mxu0 %v7818
          %v8308 = vpop.f32.mrb[0].mxu0
          %v8309 = vadd.f32 0.0, %v8308
          %v8310 = vpop.f32.mrb[0].mxu0
          %v8311 = vadd.f32 0.0, %v8310
          %8312 = vmatprep.mubr.f32.mxu0 0.0
          %8313 = vmatmul.mubr.f32.gmra.mrb[0].mxu0 %v7821
          %v8314 = vpop.f32.mrb[0].mxu0
          %v8315 = vadd.f32 0.0, %v8314
          %v8316 = vpop.f32.mrb[0].mxu0
          %v8317 = vadd.f32 0.0, %v8316
          %8318 = vmatprep.mubr.f32.mxu0 0.0
          %8319 = vmatmul.mubr.f32.gmra.mrb[0].mxu0 %v7824
          %v8320 = vpop.f32.mrb[0].mxu0
          %v8321 = vadd.f32 0.0, %v8320
          %v8322 = vpop.f32.mrb[0].mxu0
          %v8323 = vadd.f32 0.0, %v8322
          %8324 = vmatprep.mubr.f32.mxu0 0.0
          %8325 = vmatmul.mubr.f32.gmra.mrb[0].mxu0 %v7827
          %v8326 = vpop.f32.mrb[0].mxu0
          %v8327 = vadd.f32 0.0, %v8326
          %v8328 = vpop.f32.mrb[0].mxu0
          %v8329 = vadd.f32 0.0, %v8328
          %8330 = vmatprep.mubr.f32.mxu0 0.0
          %8331 = vmatmul.mubr.f32.gmra.mrb[0].mxu0 %v7830
          %v8332 = vpop.f32.mrb[0].mxu0
          %v8333 = vadd.f32 0.0, %v8332
          %v8334 = vpop.f32.mrb[0].mxu0
          %v8335 = vadd.f32 0.0, %v8334
          %8336 = vmatprep.mubr.f32.mxu0 0.0
          %8337 = vmatmul.mubr.f32.gmra.mrb[0].mxu0 %v7833
          %v8338 = vpop.f32.mrb[0].mxu0
          %v8339 = vadd.f32 0.0, %v8338
          %v8340 = vpop.f32.mrb[0].mxu0
          %v8341 = vadd.f32 0.0, %v8340
          %8342 = vmatprep.mubr.f32.mxu0 0.0
          %8343 = vmatmul.mubr.f32.gmra.mrb[0].mxu0 %v7836
          %v8344 = vpop.f32.mrb[0].mxu0
          %v8345 = vadd.f32 0.0, %v8344
          %v8346 = vpop.f32.mrb[0].mxu0
          %v8347 = vadd.f32 0.0, %v8346
          %8348 = vmatprep.mubr.f32.mxu0 0.0
          %8349 = vmatmul.mubr.f32.gmra.mrb[0].mxu0 %v7839
          %v8350 = vpop.f32.mrb[0].mxu0
          %v8351 = vadd.f32 0.0, %v8350
          %v8352 = vpop.f32.mrb[0].mxu0
          %v8353 = vadd.f32 0.0, %v8352
          %8354 = vdwg.mxu0
          %v8355 = vmax.f32 %v7908, 1e-24
          %v8356 = vmax.f32 %v7910, 1e-24
          %v8357 = vmax.f32 %v8165, 1e-24
          %v8358 = vmax.f32 %v8167, 1e-24
          %v8359 = vmax.f32 %v7914, 1e-24
          %v8360 = vmax.f32 %v7916, 1e-24
          %v8361 = vmax.f32 %v8171, 1e-24
          %v8362 = vmax.f32 %v8173, 1e-24
          %v8363 = vmax.f32 %v7920, 1e-24
          %v8364 = vmax.f32 %v7922, 1e-24
          %v8365 = vmax.f32 %v8177, 1e-24
          %v8366 = vmax.f32 %v8179, 1e-24
          %v8367 = vmax.f32 %v7926, 1e-24
          %v8368 = vmax.f32 %v7928, 1e-24
          %v8369 = vmax.f32 %v8183, 1e-24
          %v8370 = vmax.f32 %v8185, 1e-24
          %v8371 = vmax.f32 %v7932, 1e-24
          %v8372 = vmax.f32 %v7934, 1e-24
          %v8373 = vmax.f32 %v8189, 1e-24
          %v8374 = vmax.f32 %v8191, 1e-24
          %v8375 = vmax.f32 %v7938, 1e-24
          %v8376 = vmax.f32 %v7940, 1e-24
          %v8377 = vmax.f32 %v8195, 1e-24
          %v8378 = vmax.f32 %v8197, 1e-24
          %v8379 = vmax.f32 %v7944, 1e-24
          %v8380 = vmax.f32 %v7946, 1e-24
          %v8381 = vmax.f32 %v8201, 1e-24
          %v8382 = vmax.f32 %v8203, 1e-24
          %v8383 = vmax.f32 %v7950, 1e-24
          %v8384 = vmax.f32 %v7952, 1e-24
          %v8385 = vmax.f32 %v8207, 1e-24
          %v8386 = vmax.f32 %v8209, 1e-24
          %v8387 = vmax.f32 %v7956, 1e-24
          %v8388 = vmax.f32 %v7958, 1e-24
          %v8389 = vmax.f32 %v8213, 1e-24
          %v8390 = vmax.f32 %v8215, 1e-24
          %v8391 = vmax.f32 %v7962, 1e-24
          %v8392 = vmax.f32 %v7964, 1e-24
          %v8393 = vmax.f32 %v8219, 1e-24
          %v8394 = vmax.f32 %v8221, 1e-24
          %v8395 = vmax.f32 %v7968, 1e-24
          %v8396 = vmax.f32 %v7970, 1e-24
          %v8397 = vmax.f32 %v8225, 1e-24
          %v8398 = vmax.f32 %v8227, 1e-24
          %v8399 = vmax.f32 %v7974, 1e-24
          %v8400 = vmax.f32 %v7976, 1e-24
          %v8401 = vmax.f32 %v8231, 1e-24
          %v8402 = vmax.f32 %v8233, 1e-24
          %v8403 = vmax.f32 %v7980, 1e-24
          %v8404 = vmax.f32 %v7982, 1e-24
          %v8405 = vmax.f32 %v8237, 1e-24
          %v8406 = vmax.f32 %v8239, 1e-24
          %v8407 = vmax.f32 %v7986, 1e-24
          %v8408 = vmax.f32 %v7988, 1e-24
          %v8409 = vmax.f32 %v8243, 1e-24
          %v8410 = vmax.f32 %v8245, 1e-24
          %v8411 = vmax.f32 %v7992, 1e-24
          %v8412 = vmax.f32 %v7994, 1e-24
          %v8413 = vmax.f32 %v8249, 1e-24
          %v8414 = vmax.f32 %v8251, 1e-24
          %v8415 = vmax.f32 %v7998, 1e-24
          %v8416 = vmax.f32 %v8000, 1e-24
          %v8417 = vmax.f32 %v8255, 1e-24
          %v8418 = vmax.f32 %v8257, 1e-24
          %v8419 = vmax.f32 %v8004, 1e-24
          %v8420 = vmax.f32 %v8006, 1e-24
          %v8421 = vmax.f32 %v8261, 1e-24
          %v8422 = vmax.f32 %v8263, 1e-24
          %v8423 = vmax.f32 %v8010, 1e-24
          %v8424 = vmax.f32 %v8012, 1e-24
          %v8425 = vmax.f32 %v8267, 1e-24
          %v8426 = vmax.f32 %v8269, 1e-24
          %v8427 = vmax.f32 %v8016, 1e-24
          %v8428 = vmax.f32 %v8018, 1e-24
          %v8429 = vmax.f32 %v8273, 1e-24
          %v8430 = vmax.f32 %v8275, 1e-24
          %v8431 = vmax.f32 %v8022, 1e-24
          %v8432 = vmax.f32 %v8024, 1e-24
          %v8433 = vmax.f32 %v8279, 1e-24
          %v8434 = vmax.f32 %v8281, 1e-24
          %v8435 = vmax.f32 %v8028, 1e-24
          %v8436 = vmax.f32 %v8030, 1e-24
          %v8437 = vmax.f32 %v8285, 1e-24
          %v8438 = vmax.f32 %v8287, 1e-24
          %v8439 = vmax.f32 %v8034, 1e-24
          %v8440 = vmax.f32 %v8036, 1e-24
          %v8441 = vmax.f32 %v8291, 1e-24
          %v8442 = vmax.f32 %v8293, 1e-24
          %v8443 = vmax.f32 %v8040, 1e-24
          %v8444 = vmax.f32 %v8042, 1e-24
          %v8445 = vmax.f32 %v8297, 1e-24
          %v8446 = vmax.f32 %v8299, 1e-24
          %v8447 = vmax.f32 %v8046, 1e-24
          %v8448 = vmax.f32 %v8048, 1e-24
          %v8449 = vmax.f32 %v8303, 1e-24
          %v8450 = vmax.f32 %v8305, 1e-24
          %v8451 = vmax.f32 %v8052, 1e-24
          %v8452 = vmax.f32 %v8054, 1e-24
          %v8453 = vmax.f32 %v8309, 1e-24
          %v8454 = vmax.f32 %v8311, 1e-24
          %v8455 = vmax.f32 %v8058, 1e-24
          %v8456 = vmax.f32 %v8060, 1e-24
          %v8457 = vmax.f32 %v8315, 1e-24
          %v8458 = vmax.f32 %v8317, 1e-24
          %v8459 = vmax.f32 %v8064, 1e-24
          %v8460 = vmax.f32 %v8066, 1e-24
          %v8461 = vmax.f32 %v8321, 1e-24
          %v8462 = vmax.f32 %v8323, 1e-24
          %v8463 = vmax.f32 %v8070, 1e-24
          %v8464 = vmax.f32 %v8072, 1e-24
          %v8465 = vmax.f32 %v8327, 1e-24
          %v8466 = vmax.f32 %v8329, 1e-24
          %v8467 = vmax.f32 %v8076, 1e-24
          %v8468 = vmax.f32 %v8078, 1e-24
          %v8469 = vmax.f32 %v8333, 1e-24
          %v8470 = vmax.f32 %v8335, 1e-24
          %v8471 = vmax.f32 %v8082, 1e-24
          %v8472 = vmax.f32 %v8084, 1e-24
          %v8473 = vmax.f32 %v8339, 1e-24
          %v8474 = vmax.f32 %v8341, 1e-24
          %v8475 = vmax.f32 %v8088, 1e-24
          %v8476 = vmax.f32 %v8090, 1e-24
          %v8477 = vmax.f32 %v8345, 1e-24
          %v8478 = vmax.f32 %v8347, 1e-24
          %v8479 = vmax.f32 %v8094, 1e-24
          %v8480 = vmax.f32 %v8096, 1e-24
          %v8481 = vmax.f32 %v8351, 1e-24
          %v8482 = vmax.f32 %v8353, 1e-24
          %v8483 = vrsqrt.pop %v8355
          %v8484 = vrsqrt.pop %v8356
          %v8485 = vrsqrt.pop %v8357
          %v8486 = vrsqrt.pop %v8358
          %v8487 = vrsqrt.pop %v8359
          %v8488 = vrsqrt.pop %v8360
          %v8489 = vrsqrt.pop %v8361
          %v8490 = vrsqrt.pop %v8362
          %v8491 = vrsqrt.pop %v8363
          %v8492 = vrsqrt.pop %v8364
          %v8493 = vrsqrt.pop %v8365
          %v8494 = vrsqrt.pop %v8366
          %v8495 = vrsqrt.pop %v8367
          %v8496 = vrsqrt.pop %v8368
          %v8497 = vrsqrt.pop %v8369
          %v8498 = vrsqrt.pop %v8370
          %v8499 = vrsqrt.pop %v8371
          %v8500 = vrsqrt.pop %v8372
          %v8501 = vrsqrt.pop %v8373
          %v8502 = vrsqrt.pop %v8374
          %v8503 = vrsqrt.pop %v8375
          %v8504 = vrsqrt.pop %v8376
          %v8505 = vrsqrt.pop %v8377
          %v8506 = vrsqrt.pop %v8378
          %v8507 = vrsqrt.pop %v8379
          %v8508 = vrsqrt.pop %v8380
          %v8509 = vrsqrt.pop %v8381
          %v8510 = vrsqrt.pop %v8382
          %v8511 = vrsqrt.pop %v8383
          %v8512 = vrsqrt.pop %v8384
          %v8513 = vrsqrt.pop %v8385
          %v8514 = vrsqrt.pop %v8386
          %v8515 = vrsqrt.pop %v8387
          %v8516 = vrsqrt.pop %v8388
          %v8517 = vrsqrt.pop %v8389
          %v8518 = vrsqrt.pop %v8390
          %v8519 = vrsqrt.pop %v8391
          %v8520 = vrsqrt.pop %v8392
          %v8521 = vrsqrt.pop %v8393
          %v8522 = vrsqrt.pop %v8394
          %v8523 = vrsqrt.pop %v8395
          %v8524 = vrsqrt.pop %v8396
          %v8525 = vrsqrt.pop %v8397
          %v8526 = vrsqrt.pop %v8398
          %v8527 = vrsqrt.pop %v8399
          %v8528 = vrsqrt.pop %v8400
          %v8529 = vrsqrt.pop %v8401
          %v8530 = vrsqrt.pop %v8402
          %v8531 = vrsqrt.pop %v8403
          %v8532 = vrsqrt.pop %v8404
          %v8533 = vrsqrt.pop %v8405
          %v8534 = vrsqrt.pop %v8406
          %v8535 = vrsqrt.pop %v8407
          %v8536 = vrsqrt.pop %v8408
          %v8537 = vrsqrt.pop %v8409
          %v8538 = vrsqrt.pop %v8410
          %v8539 = vrsqrt.pop %v8411
          %v8540 = vrsqrt.pop %v8412
          %v8541 = vrsqrt.pop %v8413
          %v8542 = vrsqrt.pop %v8414
          %v8543 = vrsqrt.pop %v8415
          %v8544 = vrsqrt.pop %v8416
          %v8545 = vrsqrt.pop %v8417
          %v8546 = vrsqrt.pop %v8418
          %v8547 = vrsqrt.pop %v8419
          %v8548 = vrsqrt.pop %v8420
          %v8549 = vrsqrt.pop %v8421
          %v8550 = vrsqrt.pop %v8422
          %v8551 = vrsqrt.pop %v8423
          %v8552 = vrsqrt.pop %v8424
          %v8553 = vrsqrt.pop %v8425
          %v8554 = vrsqrt.pop %v8426
          %v8555 = vrsqrt.pop %v8427
          %v8556 = vrsqrt.pop %v8428
          %v8557 = vrsqrt.pop %v8429
          %v8558 = vrsqrt.pop %v8430
          %v8559 = vrsqrt.pop %v8431
          %v8560 = vrsqrt.pop %v8432
          %v8561 = vrsqrt.pop %v8433
          %v8562 = vrsqrt.pop %v8434
          %v8563 = vrsqrt.pop %v8435
          %v8564 = vrsqrt.pop %v8436
          %v8565 = vrsqrt.pop %v8437
          %v8566 = vrsqrt.pop %v8438
          %v8567 = vrsqrt.pop %v8439
          %v8568 = vrsqrt.pop %v8440
          %v8569 = vrsqrt.pop %v8441
          %v8570 = vrsqrt.pop %v8442
          %v8571 = vrsqrt.pop %v8443
          %v8572 = vrsqrt.pop %v8444
          %v8573 = vrsqrt.pop %v8445
          %v8574 = vrsqrt.pop %v8446
          %v8575 = vrsqrt.pop %v8447
          %v8576 = vrsqrt.pop %v8448
          %v8577 = vrsqrt.pop %v8449
          %v8578 = vrsqrt.pop %v8450
          %v8579 = vrsqrt.pop %v8451
          %v8580 = vrsqrt.pop %v8452
          %v8581 = vrsqrt.pop %v8453
          %v8582 = vrsqrt.pop %v8454
          %v8583 = vrsqrt.pop %v8455
          %v8584 = vrsqrt.pop %v8456
          %v8585 = vrsqrt.pop %v8457
          %v8586 = vrsqrt.pop %v8458
          %v8587 = vrsqrt.pop %v8459
          %v8588 = vrsqrt.pop %v8460
          %v8589 = vrsqrt.pop %v8461
          %v8590 = vrsqrt.pop %v8462
          %v8591 = vrsqrt.pop %v8463
          %v8592 = vrsqrt.pop %v8464
          %v8593 = vrsqrt.pop %v8465
          %v8594 = vrsqrt.pop %v8466
          %v8595 = vrsqrt.pop %v8467
          %v8596 = vrsqrt.pop %v8468
          %v8597 = vrsqrt.pop %v8469
          %v8598 = vrsqrt.pop %v8470
          %v8599 = vrsqrt.pop %v8471
          %v8600 = vrsqrt.pop %v8472
          %v8601 = vrsqrt.pop %v8473
          %v8602 = vrsqrt.pop %v8474
          %v8603 = vrsqrt.pop %v8475
          %v8604 = vrsqrt.pop %v8476
          %v8605 = vrsqrt.pop %v8477
          %v8606 = vrsqrt.pop %v8478
          %v8607 = vrsqrt.pop %v8479
          %v8608 = vrsqrt.pop %v8480
          %v8609 = vrsqrt.pop %v8481
          %v8610 = vrsqrt.pop %v8482
          %v8611 = vmul.f32 %v7039, %v8483
          %v8612 = vmul.f32 %v7040, %v8484
          %v8613 = vmul.f32 %v7041, %v8485
          %v8614 = vmul.f32 %v7042, %v8486
          %v8615 = vmul.f32 %v7043, %v8487
          %v8616 = vmul.f32 %v7044, %v8488
          %v8617 = vmul.f32 %v7045, %v8489
          %v8618 = vmul.f32 %v7046, %v8490
          %v8619 = vmul.f32 %v7047, %v8491
          %v8620 = vmul.f32 %v7048, %v8492
          %v8621 = vmul.f32 %v7049, %v8493
          %v8622 = vmul.f32 %v7050, %v8494
          %v8623 = vmul.f32 %v7051, %v8495
          %v8624 = vmul.f32 %v7052, %v8496
          %v8625 = vmul.f32 %v7053, %v8497
          %v8626 = vmul.f32 %v7054, %v8498
          %v8627 = vmul.f32 %v7055, %v8499
          %v8628 = vmul.f32 %v7056, %v8500
          %v8629 = vmul.f32 %v7057, %v8501
          %v8630 = vmul.f32 %v7058, %v8502
          %v8631 = vmul.f32 %v7059, %v8503
          %v8632 = vmul.f32 %v7060, %v8504
          %v8633 = vmul.f32 %v7061, %v8505
          %v8634 = vmul.f32 %v7062, %v8506
          %v8635 = vmul.f32 %v7063, %v8507
          %v8636 = vmul.f32 %v7064, %v8508
          %v8637 = vmul.f32 %v7065, %v8509
          %v8638 = vmul.f32 %v7066, %v8510
          %v8639 = vmul.f32 %v7067, %v8511
          %v8640 = vmul.f32 %v7068, %v8512
          %v8641 = vmul.f32 %v7069, %v8513
          %v8642 = vmul.f32 %v7070, %v8514
          %v8643 = vmul.f32 %v7071, %v8515
          %v8644 = vmul.f32 %v7072, %v8516
          %v8645 = vmul.f32 %v7073, %v8517
          %v8646 = vmul.f32 %v7074, %v8518
          %v8647 = vmul.f32 %v7075, %v8519
          %v8648 = vmul.f32 %v7076, %v8520
          %v8649 = vmul.f32 %v7077, %v8521
          %v8650 = vmul.f32 %v7078, %v8522
          %v8651 = vmul.f32 %v7079, %v8523
          %v8652 = vmul.f32 %v7080, %v8524
          %v8653 = vmul.f32 %v7081, %v8525
          %v8654 = vmul.f32 %v7082, %v8526
          %v8655 = vmul.f32 %v7083, %v8527
          %v8656 = vmul.f32 %v7084, %v8528
          %v8657 = vmul.f32 %v7085, %v8529
          %v8658 = vmul.f32 %v7086, %v8530
          %v8659 = vmul.f32 %v7087, %v8531
          %v8660 = vmul.f32 %v7088, %v8532
          %v8661 = vmul.f32 %v7089, %v8533
          %v8662 = vmul.f32 %v7090, %v8534
          %v8663 = vmul.f32 %v7091, %v8535
          %v8664 = vmul.f32 %v7092, %v8536
          %v8665 = vmul.f32 %v7093, %v8537
          %v8666 = vmul.f32 %v7094, %v8538
          %v8667 = vmul.f32 %v7095, %v8539
          %v8668 = vmul.f32 %v7096, %v8540
          %v8669 = vmul.f32 %v7097, %v8541
          %v8670 = vmul.f32 %v7098, %v8542
          %v8671 = vmul.f32 %v7099, %v8543
          %v8672 = vmul.f32 %v7100, %v8544
          %v8673 = vmul.f32 %v7101, %v8545
          %v8674 = vmul.f32 %v7102, %v8546
          %v8675 = vmul.f32 %v7103, %v8547
          %v8676 = vmul.f32 %v7104, %v8548
          %v8677 = vmul.f32 %v7105, %v8549
          %v8678 = vmul.f32 %v7106, %v8550
          %v8679 = vmul.f32 %v7107, %v8551
          %v8680 = vmul.f32 %v7108, %v8552
          %v8681 = vmul.f32 %v7109, %v8553
          %v8682 = vmul.f32 %v7110, %v8554
          %v8683 = vmul.f32 %v7111, %v8555
          %v8684 = vmul.f32 %v7112, %v8556
          %v8685 = vmul.f32 %v7113, %v8557
          %v8686 = vmul.f32 %v7114, %v8558
          %v8687 = vmul.f32 %v7115, %v8559
          %v8688 = vmul.f32 %v7116, %v8560
          %v8689 = vmul.f32 %v7117, %v8561
          %v8690 = vmul.f32 %v7118, %v8562
          %v8691 = vmul.f32 %v7119, %v8563
          %v8692 = vmul.f32 %v7120, %v8564
          %v8693 = vmul.f32 %v7121, %v8565
          %v8694 = vmul.f32 %v7122, %v8566
          %v8695 = vmul.f32 %v7123, %v8567
          %v8696 = vmul.f32 %v7124, %v8568
          %v8697 = vmul.f32 %v7125, %v8569
          %v8698 = vmul.f32 %v7126, %v8570
          %v8699 = vmul.f32 %v7127, %v8571
          %v8700 = vmul.f32 %v7128, %v8572
          %v8701 = vmul.f32 %v7129, %v8573
          %v8702 = vmul.f32 %v7130, %v8574
          %v8703 = vmul.f32 %v7131, %v8575
          %v8704 = vmul.f32 %v7132, %v8576
          %v8705 = vmul.f32 %v7133, %v8577
          %v8706 = vmul.f32 %v7134, %v8578
          %v8707 = vmul.f32 %v7135, %v8579
          %v8708 = vmul.f32 %v7136, %v8580
          %v8709 = vmul.f32 %v7137, %v8581
          %v8710 = vmul.f32 %v7138, %v8582
          %v8711 = vmul.f32 %v7139, %v8583
          %v8712 = vmul.f32 %v7140, %v8584
          %v8713 = vmul.f32 %v7141, %v8585
          %v8714 = vmul.f32 %v7142, %v8586
          %v8715 = vmul.f32 %v7143, %v8587
          %v8716 = vmul.f32 %v7144, %v8588
          %v8717 = vmul.f32 %v7145, %v8589
          %v8718 = vmul.f32 %v7146, %v8590
          %v8719 = vmul.f32 %v7147, %v8591
          %v8720 = vmul.f32 %v7148, %v8592
          %v8721 = vmul.f32 %v7149, %v8593
          %v8722 = vmul.f32 %v7150, %v8594
          %v8723 = vmul.f32 %v7151, %v8595
          %v8724 = vmul.f32 %v7152, %v8596
          %v8725 = vmul.f32 %v7153, %v8597
          %v8726 = vmul.f32 %v7154, %v8598
          %v8727 = vmul.f32 %v7155, %v8599
          %v8728 = vmul.f32 %v7156, %v8600
          %v8729 = vmul.f32 %v7157, %v8601
          %v8730 = vmul.f32 %v7158, %v8602
          %v8731 = vmul.f32 %v7159, %v8603
          %v8732 = vmul.f32 %v7160, %v8604
          %v8733 = vmul.f32 %v7161, %v8605
          %v8734 = vmul.f32 %v7162, %v8606
          %v8735 = vmul.f32 %v7163, %v8607
          %v8736 = vmul.f32 %v7164, %v8608
          %v8737 = vmul.f32 %v7165, %v8609
          %v8738 = vmul.f32 %v7166, %v8610
          %v8739 = vpack.c.bf16 %v8615, %v8611
          %v8740 = vpack.c.bf16 %v8616, %v8612
          %v8741 = vpack.c.bf16 %v8617, %v8613
          %v8742 = vpack.c.bf16 %v8618, %v8614
          %v8743 = vpack.c.bf16 %v8623, %v8619
          %v8744 = vpack.c.bf16 %v8624, %v8620
          %v8745 = vpack.c.bf16 %v8625, %v8621
          %v8746 = vpack.c.bf16 %v8626, %v8622
          %v8747 = vpack.c.bf16 %v8631, %v8627
          %v8748 = vpack.c.bf16 %v8632, %v8628
          %v8749 = vpack.c.bf16 %v8633, %v8629
          %v8750 = vpack.c.bf16 %v8634, %v8630
          %v8751 = vpack.c.bf16 %v8639, %v8635
          %v8752 = vpack.c.bf16 %v8640, %v8636
          %v8753 = vpack.c.bf16 %v8641, %v8637
          %v8754 = vpack.c.bf16 %v8642, %v8638
          %v8755 = vpack.c.bf16 %v8647, %v8643
          %v8756 = vpack.c.bf16 %v8648, %v8644
          %v8757 = vpack.c.bf16 %v8649, %v8645
          %v8758 = vpack.c.bf16 %v8650, %v8646
          %v8759 = vpack.c.bf16 %v8655, %v8651
          %v8760 = vpack.c.bf16 %v8656, %v8652
          %v8761 = vpack.c.bf16 %v8657, %v8653
          %v8762 = vpack.c.bf16 %v8658, %v8654
          %v8763 = vpack.c.bf16 %v8663, %v8659
          %v8764 = vpack.c.bf16 %v8664, %v8660
          %v8765 = vpack.c.bf16 %v8665, %v8661
          %v8766 = vpack.c.bf16 %v8666, %v8662
          %v8767 = vpack.c.bf16 %v8671, %v8667
          %v8768 = vpack.c.bf16 %v8672, %v8668
          %v8769 = vpack.c.bf16 %v8673, %v8669
          %v8770 = vpack.c.bf16 %v8674, %v8670
          %v8771 = vpack.c.bf16 %v8679, %v8675
          %v8772 = vpack.c.bf16 %v8680, %v8676
          %v8773 = vpack.c.bf16 %v8681, %v8677
          %v8774 = vpack.c.bf16 %v8682, %v8678
          %v8775 = vpack.c.bf16 %v8687, %v8683
          %v8776 = vpack.c.bf16 %v8688, %v8684
          %v8777 = vpack.c.bf16 %v8689, %v8685
          %v8778 = vpack.c.bf16 %v8690, %v8686
          %v8779 = vpack.c.bf16 %v8695, %v8691
          %v8780 = vpack.c.bf16 %v8696, %v8692
          %v8781 = vpack.c.bf16 %v8697, %v8693
          %v8782 = vpack.c.bf16 %v8698, %v8694
          %v8783 = vpack.c.bf16 %v8703, %v8699
          %v8784 = vpack.c.bf16 %v8704, %v8700
          %v8785 = vpack.c.bf16 %v8705, %v8701
          %v8786 = vpack.c.bf16 %v8706, %v8702
          %v8787 = vpack.c.bf16 %v8711, %v8707
          %v8788 = vpack.c.bf16 %v8712, %v8708
          %v8789 = vpack.c.bf16 %v8713, %v8709
          %v8790 = vpack.c.bf16 %v8714, %v8710
          %v8791 = vpack.c.bf16 %v8719, %v8715
          %v8792 = vpack.c.bf16 %v8720, %v8716
          %v8793 = vpack.c.bf16 %v8721, %v8717
          %v8794 = vpack.c.bf16 %v8722, %v8718
          %v8795 = vpack.c.bf16 %v8727, %v8723
          %v8796 = vpack.c.bf16 %v8728, %v8724
          %v8797 = vpack.c.bf16 %v8729, %v8725
          %v8798 = vpack.c.bf16 %v8730, %v8726
          %v8799 = vpack.c.bf16 %v8735, %v8731
          %v8800 = vpack.c.bf16 %v8736, %v8732
          %v8801 = vpack.c.bf16 %v8737, %v8733
          %v8802 = vpack.c.bf16 %v8738, %v8734
          %8803 = vst [vmem:[#allocation3] sm:$0xff] %v8739
          %8804 = vst [vmem:[#allocation3 + $0x8] sm:$0xff] %v8740
          %8805 = vst [vmem:[#allocation3 + $0x10] sm:$0xff] %v8741
          %8806 = vst [vmem:[#allocation3 + $0x18] sm:$0xff] %v8742
          %8807 = vst [vmem:[#allocation3 + $0x20] sm:$0xff] %v8743
          %8808 = vst [vmem:[#allocation3 + $0x28] sm:$0xff] %v8744
          %8809 = vst [vmem:[#allocation3 + $0x30] sm:$0xff] %v8745
          %8810 = vst [vmem:[#allocation3 + $0x38] sm:$0xff] %v8746
          %8811 = vst [vmem:[#allocation3 + $0x40] sm:$0xff] %v8747
          %8812 = vst [vmem:[#allocation3 + $0x48] sm:$0xff] %v8748
          %8813 = vst [vmem:[#allocation3 + $0x50] sm:$0xff] %v8749
          %8814 = vst [vmem:[#allocation3 + $0x58] sm:$0xff] %v8750
          %8815 = vst [vmem:[#allocation3 + $0x60] sm:$0xff] %v8751
          %8816 = vst [vmem:[#allocation3 + $0x68] sm:$0xff] %v8752
          %8817 = vst [vmem:[#allocation3 + $0x70] sm:$0xff] %v8753
          %8818 = vst [vmem:[#allocation3 + $0x78] sm:$0xff] %v8754
          %8819 = vst [vmem:[#allocation3 + $0x80] sm:$0xff] %v8755
          %8820 = vst [vmem:[#allocation3 + $0x88] sm:$0xff] %v8756
          %8821 = vst [vmem:[#allocation3 + $0x90] sm:$0xff] %v8757
          %8822 = vst [vmem:[#allocation3 + $0x98] sm:$0xff] %v8758
          %8823 = vst [vmem:[#allocation3 + $0xa0] sm:$0xff] %v8759
          %8824 = vst [vmem:[#allocation3 + $0xa8] sm:$0xff] %v8760
          %8825 = vst [vmem:[#allocation3 + $0xb0] sm:$0xff] %v8761
          %8826 = vst [vmem:[#allocation3 + $0xb8] sm:$0xff] %v8762
          %8827 = vst [vmem:[#allocation3 + $0xc0] sm:$0xff] %v8763
          %8828 = vst [vmem:[#allocation3 + $0xc8] sm:$0xff] %v8764
          %8829 = vst [vmem:[#allocation3 + $0xd0] sm:$0xff] %v8765
          %8830 = vst [vmem:[#allocation3 + $0xd8] sm:$0xff] %v8766
          %8831 = vst [vmem:[#allocation3 + $0xe0] sm:$0xff] %v8767
          %8832 = vst [vmem:[#allocation3 + $0xe8] sm:$0xff] %v8768
          %8833 = vst [vmem:[#allocation3 + $0xf0] sm:$0xff] %v8769
          %8834 = vst [vmem:[#allocation3 + $0xf8] sm:$0xff] %v8770
          %8835 = vst [vmem:[#allocation3 + $0x100] sm:$0xff] %v8771
          %8836 = vst [vmem:[#allocation3 + $0x108] sm:$0xff] %v8772
          %8837 = vst [vmem:[#allocation3 + $0x110] sm:$0xff] %v8773
          %8838 = vst [vmem:[#allocation3 + $0x118] sm:$0xff] %v8774
          %8839 = vst [vmem:[#allocation3 + $0x120] sm:$0xff] %v8775
          %8840 = vst [vmem:[#allocation3 + $0x128] sm:$0xff] %v8776
          %8841 = vst [vmem:[#allocation3 + $0x130] sm:$0xff] %v8777
          %8842 = vst [vmem:[#allocation3 + $0x138] sm:$0xff] %v8778
          %8843 = vst [vmem:[#allocation3 + $0x140] sm:$0xff] %v8779
          %8844 = vst [vmem:[#allocation3 + $0x148] sm:$0xff] %v8780
          %8845 = vst [vmem:[#allocation3 + $0x150] sm:$0xff] %v8781
          %8846 = vst [vmem:[#allocation3 + $0x158] sm:$0xff] %v8782
          %8847 = vst [vmem:[#allocation3 + $0x160] sm:$0xff] %v8783
          %8848 = vst [vmem:[#allocation3 + $0x168] sm:$0xff] %v8784
          %8849 = vst [vmem:[#allocation3 + $0x170] sm:$0xff] %v8785
          %8850 = vst [vmem:[#allocation3 + $0x178] sm:$0xff] %v8786
          %8851 = vst [vmem:[#allocation3 + $0x180] sm:$0xff] %v8787
          %8852 = vst [vmem:[#allocation3 + $0x188] sm:$0xff] %v8788
          %8853 = vst [vmem:[#allocation3 + $0x190] sm:$0xff] %v8789
          %8854 = vst [vmem:[#allocation3 + $0x198] sm:$0xff] %v8790
          %8855 = vst [vmem:[#allocation3 + $0x1a0] sm:$0xff] %v8791
          %8856 = vst [vmem:[#allocation3 + $0x1a8] sm:$0xff] %v8792
          %8857 = vst [vmem:[#allocation3 + $0x1b0] sm:$0xff] %v8793
          %8858 = vst [vmem:[#allocation3 + $0x1b8] sm:$0xff] %v8794
          %8859 = vst [vmem:[#allocation3 + $0x1c0] sm:$0xff] %v8795
          %8860 = vst [vmem:[#allocation3 + $0x1c8] sm:$0xff] %v8796
          %8861 = vst [vmem:[#allocation3 + $0x1d0] sm:$0xff] %v8797
          %8862 = vst [vmem:[#allocation3 + $0x1d8] sm:$0xff] %v8798
          %8863 = vst [vmem:[#allocation3 + $0x1e0] sm:$0xff] %v8799
          %8864 = vst [vmem:[#allocation3 + $0x1e8] sm:$0xff] %v8800
          %8865 = vst [vmem:[#allocation3 + $0x1f0] sm:$0xff] %v8801
          %8866 = vst [vmem:[#allocation3 + $0x1f8] sm:$0xff] %v8802
          %8867 = vst [vmem:[#allocation4] sm:$0xff] %v8611
          %8868 = vst [vmem:[#allocation4 + $0x8] sm:$0xff] %v8612
          %8869 = vst [vmem:[#allocation4 + $0x10] sm:$0xff] %v8613
          %8870 = vst [vmem:[#allocation4 + $0x18] sm:$0xff] %v8614
          %8871 = vst [vmem:[#allocation4 + $0x20] sm:$0xff] %v8615
          %8872 = vst [vmem:[#allocation4 + $0x28] sm:$0xff] %v8616
          %8873 = vst [vmem:[#allocation4 + $0x30] sm:$0xff] %v8617
          %8874 = vst [vmem:[#allocation4 + $0x38] sm:$0xff] %v8618
          %8875 = vst [vmem:[#allocation4 + $0x40] sm:$0xff] %v8619
          %8876 = vst [vmem:[#allocation4 + $0x48] sm:$0xff] %v8620
          %8877 = vst [vmem:[#allocation4 + $0x50] sm:$0xff] %v8621
          %8878 = vst [vmem:[#allocation4 + $0x58] sm:$0xff] %v8622
          %8879 = vst [vmem:[#allocation4 + $0x60] sm:$0xff] %v8623
          %8880 = vst [vmem:[#allocation4 + $0x68] sm:$0xff] %v8624
          %8881 = vst [vmem:[#allocation4 + $0x70] sm:$0xff] %v8625
          %8882 = vst [vmem:[#allocation4 + $0x78] sm:$0xff] %v8626
          %8883 = vst [vmem:[#allocation4 + $0x80] sm:$0xff] %v8627
          %8884 = vst [vmem:[#allocation4 + $0x88] sm:$0xff] %v8628
          %8885 = vst [vmem:[#allocation4 + $0x90] sm:$0xff] %v8629
          %8886 = vst [vmem:[#allocation4 + $0x98] sm:$0xff] %v8630
          %8887 = vst [vmem:[#allocation4 + $0xa0] sm:$0xff] %v8631
          %8888 = vst [vmem:[#allocation4 + $0xa8] sm:$0xff] %v8632
          %8889 = vst [vmem:[#allocation4 + $0xb0] sm:$0xff] %v8633
          %8890 = vst [vmem:[#allocation4 + $0xb8] sm:$0xff] %v8634
          %8891 = vst [vmem:[#allocation4 + $0xc0] sm:$0xff] %v8635
          %8892 = vst [vmem:[#allocation4 + $0xc8] sm:$0xff] %v8636
          %8893 = vst [vmem:[#allocation4 + $0xd0] sm:$0xff] %v8637
          %8894 = vst [vmem:[#allocation4 + $0xd8] sm:$0xff] %v8638
          %8895 = vst [vmem:[#allocation4 + $0xe0] sm:$0xff] %v8639
          %8896 = vst [vmem:[#allocation4 + $0xe8] sm:$0xff] %v8640
          %8897 = vst [vmem:[#allocation4 + $0xf0] sm:$0xff] %v8641
          %8898 = vst [vmem:[#allocation4 + $0xf8] sm:$0xff] %v8642
          %8899 = vst [vmem:[#allocation4 + $0x100] sm:$0xff] %v8643
          %8900 = vst [vmem:[#allocation4 + $0x108] sm:$0xff] %v8644
          %8901 = vst [vmem:[#allocation4 + $0x110] sm:$0xff] %v8645
          %8902 = vst [vmem:[#allocation4 + $0x118] sm:$0xff] %v8646
          %8903 = vst [vmem:[#allocation4 + $0x120] sm:$0xff] %v8647
          %8904 = vst [vmem:[#allocation4 + $0x128] sm:$0xff] %v8648
          %8905 = vst [vmem:[#allocation4 + $0x130] sm:$0xff] %v8649
          %8906 = vst [vmem:[#allocation4 + $0x138] sm:$0xff] %v8650
          %8907 = vst [vmem:[#allocation4 + $0x140] sm:$0xff] %v8651
          %8908 = vst [vmem:[#allocation4 + $0x148] sm:$0xff] %v8652
          %8909 = vst [vmem:[#allocation4 + $0x150] sm:$0xff] %v8653
          %8910 = vst [vmem:[#allocation4 + $0x158] sm:$0xff] %v8654
          %8911 = vst [vmem:[#allocation4 + $0x160] sm:$0xff] %v8655
          %8912 = vst [vmem:[#allocation4 + $0x168] sm:$0xff] %v8656
          %8913 = vst [vmem:[#allocation4 + $0x170] sm:$0xff] %v8657
          %8914 = vst [vmem:[#allocation4 + $0x178] sm:$0xff] %v8658
          %8915 = vst [vmem:[#allocation4 + $0x180] sm:$0xff] %v8659
          %8916 = vst [vmem:[#allocation4 + $0x188] sm:$0xff] %v8660
          %8917 = vst [vmem:[#allocation4 + $0x190] sm:$0xff] %v8661
          %8918 = vst [vmem:[#allocation4 + $0x198] sm:$0xff] %v8662
          %8919 = vst [vmem:[#allocation4 + $0x1a0] sm:$0xff] %v8663
          %8920 = vst [vmem:[#allocation4 + $0x1a8] sm:$0xff] %v8664
          %8921 = vst [vmem:[#allocation4 + $0x1b0] sm:$0xff] %v8665
          %8922 = vst [vmem:[#allocation4 + $0x1b8] sm:$0xff] %v8666
          %8923 = vst [vmem:[#allocation4 + $0x1c0] sm:$0xff] %v8667
          %8924 = vst [vmem:[#allocation4 + $0x1c8] sm:$0xff] %v8668
          %8925 = vst [vmem:[#allocation4 + $0x1d0] sm:$0xff] %v8669
          %8926 = vst [vmem:[#allocation4 + $0x1d8] sm:$0xff] %v8670
          %8927 = vst [vmem:[#allocation4 + $0x1e0] sm:$0xff] %v8671
          %8928 = vst [vmem:[#allocation4 + $0x1e8] sm:$0xff] %v8672
          %8929 = vst [vmem:[#allocation4 + $0x1f0] sm:$0xff] %v8673
          %8930 = vst [vmem:[#allocation4 + $0x1f8] sm:$0xff] %v8674
          %8931 = vst [vmem:[#allocation4 + $0x200] sm:$0xff] %v8675
          %8932 = vst [vmem:[#allocation4 + $0x208] sm:$0xff] %v8676
          %8933 = vst [vmem:[#allocation4 + $0x210] sm:$0xff] %v8677
          %8934 = vst [vmem:[#allocation4 + $0x218] sm:$0xff] %v8678
          %8935 = vst [vmem:[#allocation4 + $0x220] sm:$0xff] %v8679
          %8936 = vst [vmem:[#allocation4 + $0x228] sm:$0xff] %v8680
          %8937 = vst [vmem:[#allocation4 + $0x230] sm:$0xff] %v8681
          %8938 = vst [vmem:[#allocation4 + $0x238] sm:$0xff] %v8682
          %8939 = vst [vmem:[#allocation4 + $0x240] sm:$0xff] %v8683
          %8940 = vst [vmem:[#allocation4 + $0x248] sm:$0xff] %v8684
          %8941 = vst [vmem:[#allocation4 + $0x250] sm:$0xff] %v8685
          %8942 = vst [vmem:[#allocation4 + $0x258] sm:$0xff] %v8686
          %8943 = vst [vmem:[#allocation4 + $0x260] sm:$0xff] %v8687
          %8944 = vst [vmem:[#allocation4 + $0x268] sm:$0xff] %v8688
          %8945 = vst [vmem:[#allocation4 + $0x270] sm:$0xff] %v8689
          %8946 = vst [vmem:[#allocation4 + $0x278] sm:$0xff] %v8690
          %8947 = vst [vmem:[#allocation4 + $0x280] sm:$0xff] %v8691
          %8948 = vst [vmem:[#allocation4 + $0x288] sm:$0xff] %v8692
          %8949 = vst [vmem:[#allocation4 + $0x290] sm:$0xff] %v8693
          %8950 = vst [vmem:[#allocation4 + $0x298] sm:$0xff] %v8694
          %8951 = vst [vmem:[#allocation4 + $0x2a0] sm:$0xff] %v8695
          %8952 = vst [vmem:[#allocation4 + $0x2a8] sm:$0xff] %v8696
          %8953 = vst [vmem:[#allocation4 + $0x2b0] sm:$0xff] %v8697
          %8954 = vst [vmem:[#allocation4 + $0x2b8] sm:$0xff] %v8698
          %8955 = vst [vmem:[#allocation4 + $0x2c0] sm:$0xff] %v8699
          %8956 = vst [vmem:[#allocation4 + $0x2c8] sm:$0xff] %v8700
          %8957 = vst [vmem:[#allocation4 + $0x2d0] sm:$0xff] %v8701
          %8958 = vst [vmem:[#allocation4 + $0x2d8] sm:$0xff] %v8702
          %8959 = vst [vmem:[#allocation4 + $0x2e0] sm:$0xff] %v8703
          %8960 = vst [vmem:[#allocation4 + $0x2e8] sm:$0xff] %v8704
          %8961 = vst [vmem:[#allocation4 + $0x2f0] sm:$0xff] %v8705
          %8962 = vst [vmem:[#allocation4 + $0x2f8] sm:$0xff] %v8706
          %8963 = vst [vmem:[#allocation4 + $0x300] sm:$0xff] %v8707
          %8964 = vst [vmem:[#allocation4 + $0x308] sm:$0xff] %v8708
          %8965 = vst [vmem:[#allocation4 + $0x310] sm:$0xff] %v8709
          %8966 = vst [vmem:[#allocation4 + $0x318] sm:$0xff] %v8710
          %8967 = vst [vmem:[#allocation4 + $0x320] sm:$0xff] %v8711
          %8968 = vst [vmem:[#allocation4 + $0x328] sm:$0xff] %v8712
          %8969 = vst [vmem:[#allocation4 + $0x330] sm:$0xff] %v8713
          %8970 = vst [vmem:[#allocation4 + $0x338] sm:$0xff] %v8714
          %8971 = vst [vmem:[#allocation4 + $0x340] sm:$0xff] %v8715
          %8972 = vst [vmem:[#allocation4 + $0x348] sm:$0xff] %v8716
          %8973 = vst [vmem:[#allocation4 + $0x350] sm:$0xff] %v8717
          %8974 = vst [vmem:[#allocation4 + $0x358] sm:$0xff] %v8718
          %8975 = vst [vmem:[#allocation4 + $0x360] sm:$0xff] %v8719
          %8976 = vst [vmem:[#allocation4 + $0x368] sm:$0xff] %v8720
          %8977 = vst [vmem:[#allocation4 + $0x370] sm:$0xff] %v8721
          %8978 = vst [vmem:[#allocation4 + $0x378] sm:$0xff] %v8722
          %8979 = vst [vmem:[#allocation4 + $0x380] sm:$0xff] %v8723
          %8980 = vst [vmem:[#allocation4 + $0x388] sm:$0xff] %v8724
          %8981 = vst [vmem:[#allocation4 + $0x390] sm:$0xff] %v8725
          %8982 = vst [vmem:[#allocation4 + $0x398] sm:$0xff] %v8726
          %8983 = vst [vmem:[#allocation4 + $0x3a0] sm:$0xff] %v8727
          %8984 = vst [vmem:[#allocation4 + $0x3a8] sm:$0xff] %v8728
          %8985 = vst [vmem:[#allocation4 + $0x3b0] sm:$0xff] %v8729
          %8986 = vst [vmem:[#allocation4 + $0x3b8] sm:$0xff] %v8730
          %8987 = vst [vmem:[#allocation4 + $0x3c0] sm:$0xff] %v8731
          %8988 = vst [vmem:[#allocation4 + $0x3c8] sm:$0xff] %v8732
          %8989 = vst [vmem:[#allocation4 + $0x3d0] sm:$0xff] %v8733
          %8990 = vst [vmem:[#allocation4 + $0x3d8] sm:$0xff] %v8734
          %8991 = vst [vmem:[#allocation4 + $0x3e0] sm:$0xff] %v8735
          %8992 = vst [vmem:[#allocation4 + $0x3e8] sm:$0xff] %v8736
          %8993 = vst [vmem:[#allocation4 + $0x3f0] sm:$0xff] %v8737
          %8994 = vst [vmem:[#allocation4 + $0x3f8] sm:$0xff] %v8738
        $region56: #{tpu_custom_call.1} parent=35 // pred_fallthru
          _
        %p8995 = scmp.eq.s32.totalorder %s24, 2
        %p8996 = pnand %p6779, %p8995
        %p8997 = pneg %p8996
        // Predicated region
        $region57: #{tpu_custom_call.1} parent=35 // pred_check
          _
        $region58: #{tpu_custom_call.1} parent=35 // pred_check_branch
          %8999 = sbr.rel (%p8996) target = $region60
        $region59: #{tpu_custom_call.1} parent=35 // pred_region
          %v9000 = vld [vmem:[#allocation4] sm:$0xff]
          %v9001 = vld [vmem:[#allocation4 + $0x8] sm:$0xff]
          %v9002 = vld [vmem:[#allocation4 + $0x10] sm:$0xff]
          %v9003 = vld [vmem:[#allocation4 + $0x18] sm:$0xff]
          %v9004 = vld [vmem:[#allocation4 + $0x20] sm:$0xff]
          %v9005 = vld [vmem:[#allocation4 + $0x28] sm:$0xff]
          %v9006 = vld [vmem:[#allocation4 + $0x30] sm:$0xff]
          %v9007 = vld [vmem:[#allocation4 + $0x38] sm:$0xff]
          %v9008 = vld [vmem:[#allocation4 + $0x40] sm:$0xff]
          %v9009 = vld [vmem:[#allocation4 + $0x48] sm:$0xff]
          %v9010 = vld [vmem:[#allocation4 + $0x50] sm:$0xff]
          %v9011 = vld [vmem:[#allocation4 + $0x58] sm:$0xff]
          %v9012 = vld [vmem:[#allocation4 + $0x60] sm:$0xff]
          %v9013 = vld [vmem:[#allocation4 + $0x68] sm:$0xff]
          %v9014 = vld [vmem:[#allocation4 + $0x70] sm:$0xff]
          %v9015 = vld [vmem:[#allocation4 + $0x78] sm:$0xff]
          %v9016 = vld [vmem:[#allocation4 + $0x80] sm:$0xff]
          %v9017 = vld [vmem:[#allocation4 + $0x88] sm:$0xff]
          %v9018 = vld [vmem:[#allocation4 + $0x90] sm:$0xff]
          %v9019 = vld [vmem:[#allocation4 + $0x98] sm:$0xff]
          %v9020 = vld [vmem:[#allocation4 + $0xa0] sm:$0xff]
          %v9021 = vld [vmem:[#allocation4 + $0xa8] sm:$0xff]
          %v9022 = vld [vmem:[#allocation4 + $0xb0] sm:$0xff]
          %v9023 = vld [vmem:[#allocation4 + $0xb8] sm:$0xff]
          %v9024 = vld [vmem:[#allocation4 + $0xc0] sm:$0xff]
          %v9025 = vld [vmem:[#allocation4 + $0xc8] sm:$0xff]
          %v9026 = vld [vmem:[#allocation4 + $0xd0] sm:$0xff]
          %v9027 = vld [vmem:[#allocation4 + $0xd8] sm:$0xff]
          %v9028 = vld [vmem:[#allocation4 + $0xe0] sm:$0xff]
          %v9029 = vld [vmem:[#allocation4 + $0xe8] sm:$0xff]
          %v9030 = vld [vmem:[#allocation4 + $0xf0] sm:$0xff]
          %v9031 = vld [vmem:[#allocation4 + $0xf8] sm:$0xff]
          %v9032 = vld [vmem:[#allocation4 + $0x100] sm:$0xff]
          %v9033 = vld [vmem:[#allocation4 + $0x108] sm:$0xff]
          %v9034 = vld [vmem:[#allocation4 + $0x110] sm:$0xff]
          %v9035 = vld [vmem:[#allocation4 + $0x118] sm:$0xff]
          %v9036 = vld [vmem:[#allocation4 + $0x120] sm:$0xff]
          %v9037 = vld [vmem:[#allocation4 + $0x128] sm:$0xff]
          %v9038 = vld [vmem:[#allocation4 + $0x130] sm:$0xff]
          %v9039 = vld [vmem:[#allocation4 + $0x138] sm:$0xff]
          %v9040 = vld [vmem:[#allocation4 + $0x140] sm:$0xff]
          %v9041 = vld [vmem:[#allocation4 + $0x148] sm:$0xff]
          %v9042 = vld [vmem:[#allocation4 + $0x150] sm:$0xff]
          %v9043 = vld [vmem:[#allocation4 + $0x158] sm:$0xff]
          %v9044 = vld [vmem:[#allocation4 + $0x160] sm:$0xff]
          %v9045 = vld [vmem:[#allocation4 + $0x168] sm:$0xff]
          %v9046 = vld [vmem:[#allocation4 + $0x170] sm:$0xff]
          %v9047 = vld [vmem:[#allocation4 + $0x178] sm:$0xff]
          %v9048 = vld [vmem:[#allocation4 + $0x180] sm:$0xff]
          %v9049 = vld [vmem:[#allocation4 + $0x188] sm:$0xff]
          %v9050 = vld [vmem:[#allocation4 + $0x190] sm:$0xff]
          %v9051 = vld [vmem:[#allocation4 + $0x198] sm:$0xff]
          %v9052 = vld [vmem:[#allocation4 + $0x1a0] sm:$0xff]
          %v9053 = vld [vmem:[#allocation4 + $0x1a8] sm:$0xff]
          %v9054 = vld [vmem:[#allocation4 + $0x1b0] sm:$0xff]
          %v9055 = vld [vmem:[#allocation4 + $0x1b8] sm:$0xff]
          %v9056 = vld [vmem:[#allocation4 + $0x1c0] sm:$0xff]
          %v9057 = vld [vmem:[#allocation4 + $0x1c8] sm:$0xff]
          %v9058 = vld [vmem:[#allocation4 + $0x1d0] sm:$0xff]
          %v9059 = vld [vmem:[#allocation4 + $0x1d8] sm:$0xff]
          %v9060 = vld [vmem:[#allocation4 + $0x1e0] sm:$0xff]
          %v9061 = vld [vmem:[#allocation4 + $0x1e8] sm:$0xff]
          %v9062 = vld [vmem:[#allocation4 + $0x1f0] sm:$0xff]
          %v9063 = vld [vmem:[#allocation4 + $0x1f8] sm:$0xff]
          %v9064 = vld [vmem:[#allocation4 + $0x200] sm:$0xff]
          %v9065 = vld [vmem:[#allocation4 + $0x208] sm:$0xff]
          %v9066 = vld [vmem:[#allocation4 + $0x210] sm:$0xff]
          %v9067 = vld [vmem:[#allocation4 + $0x218] sm:$0xff]
          %v9068 = vld [vmem:[#allocation4 + $0x220] sm:$0xff]
          %v9069 = vld [vmem:[#allocation4 + $0x228] sm:$0xff]
          %v9070 = vld [vmem:[#allocation4 + $0x230] sm:$0xff]
          %v9071 = vld [vmem:[#allocation4 + $0x238] sm:$0xff]
          %v9072 = vld [vmem:[#allocation4 + $0x240] sm:$0xff]
          %v9073 = vld [vmem:[#allocation4 + $0x248] sm:$0xff]
          %v9074 = vld [vmem:[#allocation4 + $0x250] sm:$0xff]
          %v9075 = vld [vmem:[#allocation4 + $0x258] sm:$0xff]
          %v9076 = vld [vmem:[#allocation4 + $0x260] sm:$0xff]
          %v9077 = vld [vmem:[#allocation4 + $0x268] sm:$0xff]
          %v9078 = vld [vmem:[#allocation4 + $0x270] sm:$0xff]
          %v9079 = vld [vmem:[#allocation4 + $0x278] sm:$0xff]
          %v9080 = vld [vmem:[#allocation4 + $0x280] sm:$0xff]
          %v9081 = vld [vmem:[#allocation4 + $0x288] sm:$0xff]
          %v9082 = vld [vmem:[#allocation4 + $0x290] sm:$0xff]
          %v9083 = vld [vmem:[#allocation4 + $0x298] sm:$0xff]
          %v9084 = vld [vmem:[#allocation4 + $0x2a0] sm:$0xff]
          %v9085 = vld [vmem:[#allocation4 + $0x2a8] sm:$0xff]
          %v9086 = vld [vmem:[#allocation4 + $0x2b0] sm:$0xff]
          %v9087 = vld [vmem:[#allocation4 + $0x2b8] sm:$0xff]
          %v9088 = vld [vmem:[#allocation4 + $0x2c0] sm:$0xff]
          %v9089 = vld [vmem:[#allocation4 + $0x2c8] sm:$0xff]
          %v9090 = vld [vmem:[#allocation4 + $0x2d0] sm:$0xff]
          %v9091 = vld [vmem:[#allocation4 + $0x2d8] sm:$0xff]
          %v9092 = vld [vmem:[#allocation4 + $0x2e0] sm:$0xff]
          %v9093 = vld [vmem:[#allocation4 + $0x2e8] sm:$0xff]
          %v9094 = vld [vmem:[#allocation4 + $0x2f0] sm:$0xff]
          %v9095 = vld [vmem:[#allocation4 + $0x2f8] sm:$0xff]
          %v9096 = vld [vmem:[#allocation4 + $0x300] sm:$0xff]
          %v9097 = vld [vmem:[#allocation4 + $0x308] sm:$0xff]
          %v9098 = vld [vmem:[#allocation4 + $0x310] sm:$0xff]
          %v9099 = vld [vmem:[#allocation4 + $0x318] sm:$0xff]
          %v9100 = vld [vmem:[#allocation4 + $0x320] sm:$0xff]
          %v9101 = vld [vmem:[#allocation4 + $0x328] sm:$0xff]
          %v9102 = vld [vmem:[#allocation4 + $0x330] sm:$0xff]
          %v9103 = vld [vmem:[#allocation4 + $0x338] sm:$0xff]
          %v9104 = vld [vmem:[#allocation4 + $0x340] sm:$0xff]
          %v9105 = vld [vmem:[#allocation4 + $0x348] sm:$0xff]
          %v9106 = vld [vmem:[#allocation4 + $0x350] sm:$0xff]
          %v9107 = vld [vmem:[#allocation4 + $0x358] sm:$0xff]
          %v9108 = vld [vmem:[#allocation4 + $0x360] sm:$0xff]
          %v9109 = vld [vmem:[#allocation4 + $0x368] sm:$0xff]
          %v9110 = vld [vmem:[#allocation4 + $0x370] sm:$0xff]
          %v9111 = vld [vmem:[#allocation4 + $0x378] sm:$0xff]
          %v9112 = vld [vmem:[#allocation4 + $0x380] sm:$0xff]
          %v9113 = vld [vmem:[#allocation4 + $0x388] sm:$0xff]
          %v9114 = vld [vmem:[#allocation4 + $0x390] sm:$0xff]
          %v9115 = vld [vmem:[#allocation4 + $0x398] sm:$0xff]
          %v9116 = vld [vmem:[#allocation4 + $0x3a0] sm:$0xff]
          %v9117 = vld [vmem:[#allocation4 + $0x3a8] sm:$0xff]
          %v9118 = vld [vmem:[#allocation4 + $0x3b0] sm:$0xff]
          %v9119 = vld [vmem:[#allocation4 + $0x3b8] sm:$0xff]
          %v9120 = vld [vmem:[#allocation4 + $0x3c0] sm:$0xff]
          %v9121 = vld [vmem:[#allocation4 + $0x3c8] sm:$0xff]
          %v9122 = vld [vmem:[#allocation4 + $0x3d0] sm:$0xff]
          %v9123 = vld [vmem:[#allocation4 + $0x3d8] sm:$0xff]
          %v9124 = vld [vmem:[#allocation4 + $0x3e0] sm:$0xff]
          %v9125 = vld [vmem:[#allocation4 + $0x3e8] sm:$0xff]
          %v9126 = vld [vmem:[#allocation4 + $0x3f0] sm:$0xff]
          %v9127 = vld [vmem:[#allocation4 + $0x3f8] sm:$0xff]
          %9128 = vst [vmem:[#allocation10] sm:$0xff] %v9000
          %9129 = vst [vmem:[#allocation10 + $0x8] sm:$0xff] %v9001
          %9130 = vst [vmem:[#allocation10 + $0x10] sm:$0xff] %v9002
          %9131 = vst [vmem:[#allocation10 + $0x18] sm:$0xff] %v9003
          %9132 = vst [vmem:[#allocation10 + $0x20] sm:$0xff] %v9004
          %9133 = vst [vmem:[#allocation10 + $0x28] sm:$0xff] %v9005
          %9134 = vst [vmem:[#allocation10 + $0x30] sm:$0xff] %v9006
          %9135 = vst [vmem:[#allocation10 + $0x38] sm:$0xff] %v9007
          %9136 = vst [vmem:[#allocation10 + $0x40] sm:$0xff] %v9008
          %9137 = vst [vmem:[#allocation10 + $0x48] sm:$0xff] %v9009
          %9138 = vst [vmem:[#allocation10 + $0x50] sm:$0xff] %v9010
          %9139 = vst [vmem:[#allocation10 + $0x58] sm:$0xff] %v9011
          %9140 = vst [vmem:[#allocation10 + $0x60] sm:$0xff] %v9012
          %9141 = vst [vmem:[#allocation10 + $0x68] sm:$0xff] %v9013
          %9142 = vst [vmem:[#allocation10 + $0x70] sm:$0xff] %v9014
          %9143 = vst [vmem:[#allocation10 + $0x78] sm:$0xff] %v9015
          %9144 = vst [vmem:[#allocation10 + $0x80] sm:$0xff] %v9016
          %9145 = vst [vmem:[#allocation10 + $0x88] sm:$0xff] %v9017
          %9146 = vst [vmem:[#allocation10 + $0x90] sm:$0xff] %v9018
          %9147 = vst [vmem:[#allocation10 + $0x98] sm:$0xff] %v9019
          %9148 = vst [vmem:[#allocation10 + $0xa0] sm:$0xff] %v9020
          %9149 = vst [vmem:[#allocation10 + $0xa8] sm:$0xff] %v9021
          %9150 = vst [vmem:[#allocation10 + $0xb0] sm:$0xff] %v9022
          %9151 = vst [vmem:[#allocation10 + $0xb8] sm:$0xff] %v9023
          %9152 = vst [vmem:[#allocation10 + $0xc0] sm:$0xff] %v9024
          %9153 = vst [vmem:[#allocation10 + $0xc8] sm:$0xff] %v9025
          %9154 = vst [vmem:[#allocation10 + $0xd0] sm:$0xff] %v9026
          %9155 = vst [vmem:[#allocation10 + $0xd8] sm:$0xff] %v9027
          %9156 = vst [vmem:[#allocation10 + $0xe0] sm:$0xff] %v9028
          %9157 = vst [vmem:[#allocation10 + $0xe8] sm:$0xff] %v9029
          %9158 = vst [vmem:[#allocation10 + $0xf0] sm:$0xff] %v9030
          %9159 = vst [vmem:[#allocation10 + $0xf8] sm:$0xff] %v9031
          %9160 = vst [vmem:[#allocation10 + $0x100] sm:$0xff] %v9032
          %9161 = vst [vmem:[#allocation10 + $0x108] sm:$0xff] %v9033
          %9162 = vst [vmem:[#allocation10 + $0x110] sm:$0xff] %v9034
          %9163 = vst [vmem:[#allocation10 + $0x118] sm:$0xff] %v9035
          %9164 = vst [vmem:[#allocation10 + $0x120] sm:$0xff] %v9036
          %9165 = vst [vmem:[#allocation10 + $0x128] sm:$0xff] %v9037
          %9166 = vst [vmem:[#allocation10 + $0x130] sm:$0xff] %v9038
          %9167 = vst [vmem:[#allocation10 + $0x138] sm:$0xff] %v9039
          %9168 = vst [vmem:[#allocation10 + $0x140] sm:$0xff] %v9040
          %9169 = vst [vmem:[#allocation10 + $0x148] sm:$0xff] %v9041
          %9170 = vst [vmem:[#allocation10 + $0x150] sm:$0xff] %v9042
          %9171 = vst [vmem:[#allocation10 + $0x158] sm:$0xff] %v9043
          %9172 = vst [vmem:[#allocation10 + $0x160] sm:$0xff] %v9044
          %9173 = vst [vmem:[#allocation10 + $0x168] sm:$0xff] %v9045
          %9174 = vst [vmem:[#allocation10 + $0x170] sm:$0xff] %v9046
          %9175 = vst [vmem:[#allocation10 + $0x178] sm:$0xff] %v9047
          %9176 = vst [vmem:[#allocation10 + $0x180] sm:$0xff] %v9048
          %9177 = vst [vmem:[#allocation10 + $0x188] sm:$0xff] %v9049
          %9178 = vst [vmem:[#allocation10 + $0x190] sm:$0xff] %v9050
          %9179 = vst [vmem:[#allocation10 + $0x198] sm:$0xff] %v9051
          %9180 = vst [vmem:[#allocation10 + $0x1a0] sm:$0xff] %v9052
          %9181 = vst [vmem:[#allocation10 + $0x1a8] sm:$0xff] %v9053
          %9182 = vst [vmem:[#allocation10 + $0x1b0] sm:$0xff] %v9054
          %9183 = vst [vmem:[#allocation10 + $0x1b8] sm:$0xff] %v9055
          %9184 = vst [vmem:[#allocation10 + $0x1c0] sm:$0xff] %v9056
          %9185 = vst [vmem:[#allocation10 + $0x1c8] sm:$0xff] %v9057
          %9186 = vst [vmem:[#allocation10 + $0x1d0] sm:$0xff] %v9058
          %9187 = vst [vmem:[#allocation10 + $0x1d8] sm:$0xff] %v9059
          %9188 = vst [vmem:[#allocation10 + $0x1e0] sm:$0xff] %v9060
          %9189 = vst [vmem:[#allocation10 + $0x1e8] sm:$0xff] %v9061
          %9190 = vst [vmem:[#allocation10 + $0x1f0] sm:$0xff] %v9062
          %9191 = vst [vmem:[#allocation10 + $0x1f8] sm:$0xff] %v9063
          %9192 = vst [vmem:[#allocation10 + $0x200] sm:$0xff] %v9064
          %9193 = vst [vmem:[#allocation10 + $0x208] sm:$0xff] %v9065
          %9194 = vst [vmem:[#allocation10 + $0x210] sm:$0xff] %v9066
          %9195 = vst [vmem:[#allocation10 + $0x218] sm:$0xff] %v9067
          %9196 = vst [vmem:[#allocation10 + $0x220] sm:$0xff] %v9068
          %9197 = vst [vmem:[#allocation10 + $0x228] sm:$0xff] %v9069
          %9198 = vst [vmem:[#allocation10 + $0x230] sm:$0xff] %v9070
          %9199 = vst [vmem:[#allocation10 + $0x238] sm:$0xff] %v9071
          %9200 = vst [vmem:[#allocation10 + $0x240] sm:$0xff] %v9072
          %9201 = vst [vmem:[#allocation10 + $0x248] sm:$0xff] %v9073
          %9202 = vst [vmem:[#allocation10 + $0x250] sm:$0xff] %v9074
          %9203 = vst [vmem:[#allocation10 + $0x258] sm:$0xff] %v9075
          %9204 = vst [vmem:[#allocation10 + $0x260] sm:$0xff] %v9076
          %9205 = vst [vmem:[#allocation10 + $0x268] sm:$0xff] %v9077
          %9206 = vst [vmem:[#allocation10 + $0x270] sm:$0xff] %v9078
          %9207 = vst [vmem:[#allocation10 + $0x278] sm:$0xff] %v9079
          %9208 = vst [vmem:[#allocation10 + $0x280] sm:$0xff] %v9080
          %9209 = vst [vmem:[#allocation10 + $0x288] sm:$0xff] %v9081
          %9210 = vst [vmem:[#allocation10 + $0x290] sm:$0xff] %v9082
          %9211 = vst [vmem:[#allocation10 + $0x298] sm:$0xff] %v9083
          %9212 = vst [vmem:[#allocation10 + $0x2a0] sm:$0xff] %v9084
          %9213 = vst [vmem:[#allocation10 + $0x2a8] sm:$0xff] %v9085
          %9214 = vst [vmem:[#allocation10 + $0x2b0] sm:$0xff] %v9086
          %9215 = vst [vmem:[#allocation10 + $0x2b8] sm:$0xff] %v9087
          %9216 = vst [vmem:[#allocation10 + $0x2c0] sm:$0xff] %v9088
          %9217 = vst [vmem:[#allocation10 + $0x2c8] sm:$0xff] %v9089
          %9218 = vst [vmem:[#allocation10 + $0x2d0] sm:$0xff] %v9090
          %9219 = vst [vmem:[#allocation10 + $0x2d8] sm:$0xff] %v9091
          %9220 = vst [vmem:[#allocation10 + $0x2e0] sm:$0xff] %v9092
          %9221 = vst [vmem:[#allocation10 + $0x2e8] sm:$0xff] %v9093
          %9222 = vst [vmem:[#allocation10 + $0x2f0] sm:$0xff] %v9094
          %9223 = vst [vmem:[#allocation10 + $0x2f8] sm:$0xff] %v9095
          %9224 = vst [vmem:[#allocation10 + $0x300] sm:$0xff] %v9096
          %9225 = vst [vmem:[#allocation10 + $0x308] sm:$0xff] %v9097
          %9226 = vst [vmem:[#allocation10 + $0x310] sm:$0xff] %v9098
          %9227 = vst [vmem:[#allocation10 + $0x318] sm:$0xff] %v9099
          %9228 = vst [vmem:[#allocation10 + $0x320] sm:$0xff] %v9100
          %9229 = vst [vmem:[#allocation10 + $0x328] sm:$0xff] %v9101
          %9230 = vst [vmem:[#allocation10 + $0x330] sm:$0xff] %v9102
          %9231 = vst [vmem:[#allocation10 + $0x338] sm:$0xff] %v9103
          %9232 = vst [vmem:[#allocation10 + $0x340] sm:$0xff] %v9104
          %9233 = vst [vmem:[#allocation10 + $0x348] sm:$0xff] %v9105
          %9234 = vst [vmem:[#allocation10 + $0x350] sm:$0xff] %v9106
          %9235 = vst [vmem:[#allocation10 + $0x358] sm:$0xff] %v9107
          %9236 = vst [vmem:[#allocation10 + $0x360] sm:$0xff] %v9108
          %9237 = vst [vmem:[#allocation10 + $0x368] sm:$0xff] %v9109
          %9238 = vst [vmem:[#allocation10 + $0x370] sm:$0xff] %v9110
          %9239 = vst [vmem:[#allocation10 + $0x378] sm:$0xff] %v9111
          %9240 = vst [vmem:[#allocation10 + $0x380] sm:$0xff] %v9112
          %9241 = vst [vmem:[#allocation10 + $0x388] sm:$0xff] %v9113
          %9242 = vst [vmem:[#allocation10 + $0x390] sm:$0xff] %v9114
          %9243 = vst [vmem:[#allocation10 + $0x398] sm:$0xff] %v9115
          %9244 = vst [vmem:[#allocation10 + $0x3a0] sm:$0xff] %v9116
          %9245 = vst [vmem:[#allocation10 + $0x3a8] sm:$0xff] %v9117
          %9246 = vst [vmem:[#allocation10 + $0x3b0] sm:$0xff] %v9118
          %9247 = vst [vmem:[#allocation10 + $0x3b8] sm:$0xff] %v9119
          %9248 = vst [vmem:[#allocation10 + $0x3c0] sm:$0xff] %v9120
          %9249 = vst [vmem:[#allocation10 + $0x3c8] sm:$0xff] %v9121
          %9250 = vst [vmem:[#allocation10 + $0x3d0] sm:$0xff] %v9122
          %9251 = vst [vmem:[#allocation10 + $0x3d8] sm:$0xff] %v9123
          %9252 = vst [vmem:[#allocation10 + $0x3e0] sm:$0xff] %v9124
          %9253 = vst [vmem:[#allocation10 + $0x3e8] sm:$0xff] %v9125
          %9254 = vst [vmem:[#allocation10 + $0x3f0] sm:$0xff] %v9126
          %9255 = vst [vmem:[#allocation10 + $0x3f8] sm:$0xff] %v9127
        $region60: #{tpu_custom_call.1} parent=35 // pred_fallthru
          _
        // Predicated region
        $region61: #{tpu_custom_call.1} parent=35 // pred_check
          %p9256 = pneg %p139
        $region62: #{tpu_custom_call.1} parent=35 // pred_check_branch
          %9258 = sbr.rel (%p9256) target = $region64
        $region63: #{tpu_custom_call.1} parent=35 // pred_region
          %s9260 = ssub.s32 16384, 16384
          %9261 = vsyncadd [#allocation7], %s9260
          %s9262 = sshll.u32 [#allocation10], 4
          %s9263 = int_to_ptr.vmem [resolvable:$true] %s9262
          %9268 = dma.vmem_to_hbm [thread:$0]  %s9263, 16384, %s4, [#allocation7], 512, 512, 32
        $region64: #{tpu_custom_call.1} parent=35 // pred_fallthru
          _
        // Predicated region
        $region65: #{tpu_custom_call.1} parent=35 // pred_check
          %p9269 = pneg %p139
        $region66: #{tpu_custom_call.1} parent=35 // pred_check_branch
          %9271 = sbr.rel (%p9269) target = $region68
        $region67: #{tpu_custom_call.1} parent=35 // pred_region
          %9272 = dma.done [#allocation7], 16384
        $region68: #{tpu_custom_call.1} parent=35 // pred_fallthru
          _
      $region36: #{tpu_custom_call.1} parent=5 // pred_fallthru
        _
      %p9273 = scmp.le.s32.totalorder 2, %s15
      // Predicated region
      $region69: #{tpu_custom_call.1} parent=5 // pred_check
        %p9274 = pneg %p9273
      $region70: #{tpu_custom_call.1} parent=5 // pred_check_branch
        %9276 = sbr.rel (%p9274) target = $region72
      $region71: #{tpu_custom_call.1} parent=5 // pred_region
        %s9277 = ssub.s32 %s15, 2
      $region72: #{tpu_custom_call.1} parent=5 // pred_fallthru
        _
    $region6: #{tpu_custom_call.1} parent=1 // loop_footer
      %s19 = sadd.s32 1, %s15
    $region7: #{tpu_custom_call.1} parent=1 // loop_footer_branch
      %14 = sbr.rel target = $region3
    $region8: #{tpu_custom_call.1} parent=1 // loop_exit
      _
    %9278 = vsyncpa [#allocation6], 1
    %s9279 = scalar_lea.sflag [#allocation6], 1
    %9280 = vsyncpa %s9279, 1
    %9281 = vsyncpa [#allocation9], 1
    %s9282 = scalar_lea.sflag [#allocation9], 1
    %9283 = vsyncpa %s9282, 1
    %9284 = vsyncpa [#allocation7], 1
    %s9285 = scalar_lea.sflag [#allocation7], 1
    %9286 = vsyncpa %s9285, 1

</llo_original>
